<compile_context>
chip_gen: v5e
topology: v5e:2x2
jax: 0.10.0
libtpu: 0.0.40
codegen_flags: <defaults>
</compile_context>

<pallas_src>
import jax
import jax.numpy as jnp
from jax import lax
from jax.experimental import pallas as pl
from jax.experimental.pallas import tpu as pltpu

HIDDEN = 128      # self.hidden_size
LAYERS = 3        # self.hidden_layer
CLASS_NUM = 2     # self.class_num
POS_DIM = 46      # pos feature width
CONV_CH = 32      # conv1 out channels
FC_OUT = 16       # self.fc out features
NEG_SLOPE = 0.01  # LeakyReLU default negative_slope
MAX_UNROLL_T = 32  # fully unroll the recurrence for T <= this


def _vmem_spec():
    return pl.BlockSpec(memory_space=pltpu.MemorySpace.VMEM)


def _gru_cell(gi, gh, h_prev, bhh_n):
    # PyTorch gate order [r, z, n]; gi already folds b_ih + b_hh[r], b_hh[z].
    H = HIDDEN
    r = jax.nn.sigmoid(gi[:, 0:H] + gh[:, 0:H])
    z = jax.nn.sigmoid(gi[:, H:2 * H] + gh[:, H:2 * H])
    n = jnp.tanh(gi[:, 2 * H:3 * H] + r * (gh[:, 2 * H:3 * H] + bhh_n))
    return (1.0 - z) * n + z * h_prev


def _bigru_full_layer(src, h0_f, h0_b, wih_ref, whh_ref, bih_ref, bhhn_ref,
                      gi_ref, out_ref):
    """One bidirectional GRU layer; writes all T hidden states into out_ref."""
    H, G = HIDDEN, 3 * HIDDEN
    Bp = h0_f.shape[0]
    T = src.shape[0] // Bp

    # Hoisted input projection: ONE (T*Bp, D_in) x (D_in, 6H) bf16 MXU matmul
    # covers both directions and all timesteps (f32 accumulation).
    gi_ref[...] = (jnp.dot(src, wih_ref[...],
                           preferred_element_type=jnp.float32) + bih_ref[...])

    whh = whh_ref[...]                 # (H, 6H): [W_hh_fwd.T | W_hh_bwd.T]
    bhhn_f = bhhn_ref[:, 0:H]
    bhhn_b = bhhn_ref[:, H:2 * H]

    def one_step(gi_f, gi_b, h_f, h_b):
        # Two (Bp,H)x(H,3H) matmuls; no half-zero block-diag W_hh, no concat.
        gh_f = jnp.dot(h_f, whh[:, 0:G], preferred_element_type=jnp.float32)
        gh_b = jnp.dot(h_b, whh[:, G:2 * G], preferred_element_type=jnp.float32)
        return (_gru_cell(gi_f, gh_f, h_f, bhhn_f),
                _gru_cell(gi_b, gh_b, h_b, bhhn_b))

    if T <= MAX_UNROLL_T:
        h_f, h_b = h0_f, h0_b
        for t in range(T):
            lo_f, hi_f = t * Bp, (t + 1) * Bp
            lo_b, hi_b = (T - 1 - t) * Bp, (T - t) * Bp
            h_f, h_b = one_step(gi_ref[lo_f:hi_f, 0:G],
                                gi_ref[lo_b:hi_b, G:2 * G], h_f, h_b)
            out_ref[lo_f:hi_f, 0:H] = h_f
            out_ref[lo_b:hi_b, H:2 * H] = h_b
    else:
        # Bounded register footprint for long T.
        def body(t, carry):
            h_f, h_b = carry
            of = pl.multiple_of(t * Bp, Bp)
            ob = pl.multiple_of((T - 1 - t) * Bp, Bp)
            h_f, h_b = one_step(gi_ref[pl.ds(of, Bp), 0:G],
                                gi_ref[pl.ds(ob, Bp), G:2 * G], h_f, h_b)
            out_ref[pl.ds(of, Bp), 0:H] = h_f
            out_ref[pl.ds(ob, Bp), H:2 * H] = h_b
            return h_f, h_b
        lax.fori_loop(0, T, body, (h0_f, h0_b), unroll=4)


def _bigru_last_layer(src, h0_f, h0_b, wih_ref, whh_ref, bih_ref, bhhn_ref,
                      gi_ref):
    """Last bidirectional layer -> only outputs[-1] == (Bp, 2H)."""
    H, G = HIDDEN, 3 * HIDDEN
    Bp = h0_f.shape[0]
    T = src.shape[0] // Bp

    # Only the FORWARD direction needs gate projections for all T.
    gi_ref[:, 0:G] = (jnp.dot(src, wih_ref[:, 0:G],
                              preferred_element_type=jnp.float32)
                      + bih_ref[:, 0:G])

    whh = whh_ref[...]
    bhhn_f = bhhn_ref[:, 0:H]
    bhhn_b = bhhn_ref[:, H:2 * H]

    def fwd_step(gi_f, h_f):
        gh_f = jnp.dot(h_f, whh[:, 0:G], preferred_element_type=jnp.float32)
        return _gru_cell(gi_f, gh_f, h_f, bhhn_f)

    if T <= MAX_UNROLL_T:
        h_f = h0_f
        for t in range(T):
            h_f = fwd_step(gi_ref[t * Bp:(t + 1) * Bp, 0:G], h_f)
    else:
        def body(t, h_f):
            of = pl.multiple_of(t * Bp, Bp)
            return fwd_step(gi_ref[pl.ds(of, Bp), 0:G], h_f)
        h_f = lax.fori_loop(0, T, body, h0_f, unroll=4)

    # Backward direction: outputs[-1][:, H:] is the FIRST step of the reversed
    # recurrence == one GRU cell on x[T-1] starting from h0_bwd, so only a
    # single (Bp, D_in) x (D_in, 3H) projection is needed.
    gi_b = (jnp.dot(src[(T - 1) * Bp:T * Bp, :], wih_ref[:, G:2 * G],
                    preferred_element_type=jnp.float32) + bih_ref[:, G:2 * G])
    gh_b = jnp.dot(h0_b, whh[:, G:2 * G], preferred_element_type=jnp.float32)
    h_b = _gru_cell(gi_b, gh_b, h0_b, bhhn_b)
    return jnp.concatenate([h_f, h_b], axis=1)              # (Bp, 2H)


# --------------------------------------------------------------------------
# Fused kernel: 3 bidirectional GRU layers + position_layer + emo*pos +
# conv(2,1) + leaky_relu + global max-pool + fc + softmax_layer + softmax.
# --------------------------------------------------------------------------
def _fused_forward_kernel(
        # activations
        x_ref, h0_ref, pos_ref, emo_ref,
        # GRU weights (per layer: wih (D_in,6H) bf16, whh (H,6H) f32,
        #              bih (1,6H) f32 with folded b_hh[r,z], bhhn (1,2H) f32)
        wih0_ref, whh0_ref, bih0_ref, bhhn0_ref,
        wih1_ref, whh1_ref, bih1_ref, bhhn1_ref,
        wih2_ref, whh2_ref, bih2_ref, bhhn2_ref,
        # head weights
        pw_ref, pb_ref, cw0_ref, cw1_ref, cb_ref, fcw_ref, fcb_ref,
        w1ep_ref, w1h_ref, w1pos_ref, b1_ref, w2_ref, b2_ref,
        # outputs
        logits_ref, probs_ref,
        # scratch
        gi_ref, buf0_ref, buf1_ref):
    H = HIDDEN

    # ----------------------- GRU stack (in-VMEM) ---------------------------
    # TODO(synk): inter-layer GRU dropout (p=0.25) is a no-op in eval mode.
    src = x_ref[...]                                       # (T*Bp, D) bf16
    layer_weights = ((wih0_ref, whh0_ref, bih0_ref, bhhn0_ref),
                     (wih1_ref, whh1_ref, bih1_ref, bhhn1_ref))
    layer_bufs = (buf0_ref, buf1_ref)
    for layer in range(LAYERS - 1):
        wih, whh, bih, bhhn = layer_weights[layer]
        _bigru_full_layer(src, h0_ref[2 * layer], h0_ref[2 * layer + 1],
                          wih, whh, bih, bhhn, gi_ref, layer_bufs[layer])
        # Next layer's input stays in VMEM; cast once (bulk) for the bf16 MXU
        # projection — the recurrence itself stays f32.
        src = layer_bufs[layer][...].astype(jnp.bfloat16)

    last = _bigru_last_layer(src, h0_ref[2 * LAYERS - 2], h0_ref[2 * LAYERS - 1],
                             wih2_ref, whh2_ref, bih2_ref, bhhn2_ref, gi_ref)

    # ------------------------------ head -----------------------------------
    D = emo_ref.shape[1]
    pos = pos_ref[...]                                                  # (Bp, 46)
    pos_repre = (jnp.dot(pos, pw_ref[...], preferred_element_type=jnp.float32)
                 + pb_ref[...])                                         # (Bp, D)
    emo_pos = pos_repre * emo_ref[...]                                  # (Bp, D)

    # Conv2d(1, 32, (2,1)) + LeakyReLU + global max-pool, vectorized.
    ep3 = jnp.expand_dims(emo_pos, 1)                                   # (Bp, 1, D)
    a = ep3[:, :, 0:D - 1]
    b = ep3[:, :, 1:D]
    w0 = jnp.expand_dims(cw0_ref[...], 0)                               # (1, 32, 1)
    w1 = jnp.expand_dims(cw1_ref[...], 0)
    cb = jnp.expand_dims(cb_ref[...], 0)
    val = a * w0 + b * w1 + cb                                          # (Bp, 32, D-1)
    act = jnp.where(val >= 0.0, val, NEG_SLOPE * val)
    pooled = jnp.max(act, axis=2)                                       # (Bp, 32)

    e_p = (jnp.dot(pooled, fcw_ref[...], preferred_element_type=jnp.float32)
           + fcb_ref[...])                                              # (Bp, 16)

    # softmax_layer on cat([e_p, last_outputs, pos], 1): the first Linear is
    # split into three row-blocks so the 318-wide concat is never built.
    # TODO(synk): dropout(p=0.25) between the two Linears is identity in eval.
    h = (jnp.dot(e_p, w1ep_ref[...], preferred_element_type=jnp.float32)
         + jnp.dot(last, w1h_ref[...], preferred_element_type=jnp.float32)
         + jnp.dot(pos, w1pos_ref[...], preferred_element_type=jnp.float32)
         + b1_ref[...])                                                 # (Bp, 128)
    h = jnp.where(h >= 0.0, h, NEG_SLOPE * h)
    logits = (jnp.dot(h, w2_ref[...], preferred_element_type=jnp.float32)
              + b2_ref[...])                                            # (Bp, 2)
    logits_ref[...] = logits

    m = jnp.max(logits, axis=-1, keepdims=True)
    e = jnp.exp(logits - m)
    probs_ref[...] = e / jnp.sum(e, axis=-1, keepdims=True)


# --------------------------------------------------------------------------
# Parameter construction (mirrors __init__ shapes + init_weight)
# --------------------------------------------------------------------------
def _xavier_normal(key, shape):
    fan_out, fan_in = shape[0], shape[1]
    std = (2.0 / (fan_in + fan_out)) ** 0.5
    return std * jax.random.normal(key, shape, dtype=jnp.float32)


def make_params(key, vocab, embed_dim):
    keys = iter(jax.random.split(key, 32))
    p = {}
    # embedding weight is copied from word2vec in the PyTorch module.
    p["embedding"] = 0.1 * jax.random.normal(next(keys), (vocab, embed_dim),
                                             dtype=jnp.float32)
    for layer in range(LAYERS):
        d_in = embed_dim if layer == 0 else 2 * HIDDEN
        for d in ("fwd", "bwd"):
            w_ih = _xavier_normal(next(keys), (3 * HIDDEN, d_in))
            w_hh = _xavier_normal(next(keys), (3 * HIDDEN, HIDDEN))
            b_ih = -0.1 * jnp.ones((3 * HIDDEN,), jnp.float32)  # uniform_(-0.1,-0.1)
            b_hh = -0.1 * jnp.ones((3 * HIDDEN,), jnp.float32)
            p[f"gru_l{layer}_{d}"] = (w_ih, w_hh, b_ih, b_hh)
    p["pos_w"] = _xavier_normal(next(keys), (embed_dim, POS_DIM))
    p["pos_b"] = -0.1 * jnp.ones((embed_dim,), jnp.float32)
    # Conv2d(1, 32, kernel_size=(2,1)): weight (32, 1, 2, 1) -> keep as (32, 2)
    p["conv_w"] = _xavier_normal(next(keys), (CONV_CH, 2))
    p["conv_b"] = -0.1 * jnp.ones((CONV_CH,), jnp.float32)
    p["fc_w"] = _xavier_normal(next(keys), (FC_OUT, CONV_CH))
    p["fc_b"] = -0.1 * jnp.ones((FC_OUT,), jnp.float32)
    in_dim = FC_OUT + 2 * HIDDEN + POS_DIM                   # 16 + 256 + 46 = 318
    p["l1_w"] = _xavier_normal(next(keys), (HIDDEN, in_dim))
    p["l1_b"] = -0.1 * jnp.ones((HIDDEN,), jnp.float32)
    p["l2_w"] = _xavier_normal(next(keys), (CLASS_NUM, HIDDEN))
    p["l2_b"] = -0.1 * jnp.ones((CLASS_NUM,), jnp.float32)
    return p


def prepare_kernel_params(p):
    """One-time weight re-layout (transpose / bias folding / bf16 cast)."""
    H = HIDDEN
    kp = {"embedding": p["embedding"]}

    def fold_bias(b_ih, b_hh):
        # Fold b_hh[r], b_hh[z] into b_ih; keep b_hh[n] separate (it sits
        # inside the r * (...) product of the GRU cell).
        return jnp.concatenate([b_ih[0:2 * H] + b_hh[0:2 * H], b_ih[2 * H:3 * H]])

    for layer in range(LAYERS):
        w_ih_f, w_hh_f, b_ih_f, b_hh_f = p[f"gru_l{layer}_fwd"]
        w_ih_b, w_hh_b, b_ih_b, b_hh_b = p[f"gru_l{layer}_bwd"]
        wih = jnp.concatenate([w_ih_f.T, w_ih_b.T], axis=1).astype(jnp.bfloat16)
        whh = jnp.concatenate([w_hh_f.T, w_hh_b.T], axis=1)          # (H, 6H) f32
        bih = jnp.concatenate([fold_bias(b_ih_f, b_hh_f),
                               fold_bias(b_ih_b, b_hh_b)]).reshape(1, 6 * H)
        bhhn = jnp.concatenate([b_hh_f[2 * H:3 * H],
                                b_hh_b[2 * H:3 * H]]).reshape(1, 2 * H)
        kp[f"gru{layer}"] = (wih, whh, bih, bhhn)

    kp["pos_w"] = p["pos_w"].T                                        # (46, D)
    kp["pos_b"] = p["pos_b"].reshape(1, -1)
    kp["conv_w0"] = p["conv_w"][:, 0:1]                               # (32, 1)
    kp["conv_w1"] = p["conv_w"][:, 1:2]                               # (32, 1)
    kp["conv_b"] = p["conv_b"].reshape(-1, 1)                         # (32, 1)
    kp["fc_w"] = p["fc_w"].T                                          # (32, 16)
    kp["fc_b"] = p["fc_b"].reshape(1, -1)
    l1T = p["l1_w"].T                                                 # (318, 128)
    kp["l1_ep"] = l1T[0:FC_OUT]                                       # (16, 128)
    kp["l1_h"] = l1T[FC_OUT:FC_OUT + 2 * H]                           # (256, 128)
    kp["l1_pos"] = l1T[FC_OUT + 2 * H:]                               # (46, 128)
    kp["l1_b"] = p["l1_b"].reshape(1, -1)
    kp["l2_w"] = p["l2_w"].T                                          # (128, 2)
    kp["l2_b"] = p["l2_b"].reshape(1, -1)
    return kp


# --------------------------------------------------------------------------
# Forward
# --------------------------------------------------------------------------
def forward(kp, text, emo, pos, init_state):
    """
    text:       (B, T)  int32 token ids
    emo:        (B, Ne) int32 emotion-word ids (fixed length per batch row)
    pos:        (B, 46) float32
    init_state: (2*LAYERS, B, HIDDEN) float32
    """
    emb = kp["embedding"]
    B, T = text.shape
    H = HIDDEN
    D = emb.shape[1]
    Bp = ((B + 7) // 8) * 8          # pad batch to a full sublane tile

    # self.embedding(text).permute(1, 0, 2) -> (T, B, D); pad, flatten time,
    # cast to bf16 (MXU operand of the hoisted projection).
    x = jnp.transpose(jnp.take(emb, text, axis=0), (1, 0, 2))             # (T, B, D)
    x = jnp.pad(x, ((0, 0), (0, Bp - B), (0, 0)))                          # (T, Bp, D)
    x = x.reshape(T * Bp, D).astype(jnp.bfloat16)

    h0 = jnp.pad(init_state, ((0, 0), (0, Bp - B), (0, 0)))                # (2L, Bp, H)

    # emo embedding mean per batch row (the Python loop in PyTorch).
    # TODO(synk): PyTorch averages a possibly variable-length list per row;
    #             fixed-length emo is assumed here.
    emo_repre = jnp.take(emb, emo, axis=0).mean(axis=1)                    # (B, D)
    emo_p = jnp.pad(emo_repre, ((0, Bp - B), (0, 0)))                      # (Bp, D)
    pos_p = jnp.pad(pos, ((0, Bp - B), (0, 0)))                            # (Bp, 46)

    args = (x, h0, pos_p, emo_p,
            *kp["gru0"], *kp["gru1"], *kp["gru2"],
            kp["pos_w"], kp["pos_b"], kp["conv_w0"], kp["conv_w1"], kp["conv_b"],
            kp["fc_w"], kp["fc_b"],
            kp["l1_ep"], kp["l1_h"], kp["l1_pos"], kp["l1_b"],
            kp["l2_w"], kp["l2_b"])

    scratch = [pltpu.VMEM((T * Bp, 6 * H), jnp.float32),   # hoisted gate projections
               pltpu.VMEM((T * Bp, 2 * H), jnp.float32),   # layer-0 output
               pltpu.VMEM((T * Bp, 2 * H), jnp.float32)]   # layer-1 output

    # Explicit scoped-VMEM limit sized from the actual footprint (+ headroom).
    est = sum(int(a.size) * a.dtype.itemsize for a in args)
    est += (T * Bp * 6 * H + 2 * T * Bp * 2 * H) * 4 + 2 * Bp * CLASS_NUM * 4
    vmem_limit = max(16 * 1024 * 1024,
                     min(100 * 1024 * 1024, int(est * 1.5) + (2 << 20)))

    logits_p, probs_p = pl.pallas_call(
        _fused_forward_kernel,
        out_shape=(jax.ShapeDtypeStruct((Bp, CLASS_NUM), jnp.float32),
                   jax.ShapeDtypeStruct((Bp, CLASS_NUM), jnp.float32)),
        in_specs=[_vmem_spec() for _ in args],
        out_specs=(_vmem_spec(), _vmem_spec()),
        scratch_shapes=scratch,
        compiler_params=pltpu.CompilerParams(vmem_limit_bytes=vmem_limit),
    )(*args)

    return logits_p[:B], probs_p[:B]


if __name__ == "__main__":
    key = jax.random.PRNGKey(0)
    B, T, D, VOCAB, N_EMO = 2, 8, 32, 100, 4   # small word2vec: (100, 32)

    kparam_key, kt, ke, kpos = jax.random.split(key, 4)
    params = make_params(kparam_key, VOCAB, D)
    kparams = prepare_kernel_params(params)     # one-time weight re-layout

    text = jax.random.randint(kt, (B, T), 0, VOCAB, dtype=jnp.int32)
    emo = jax.random.randint(ke, (B, N_EMO), 0, VOCAB, dtype=jnp.int32)
    pos = jax.random.normal(kpos, (B, POS_DIM), dtype=jnp.float32)
    init_state = jnp.zeros((2 * LAYERS, B, HIDDEN), jnp.float32)   # init_hidden

    logits, probs = jax.jit(forward)(kparams, text, emo, pos, init_state)
    jax.block_until_ready((logits, probs))

    assert logits.shape == (B, CLASS_NUM) and probs.shape == (B, CLASS_NUM)
    assert bool(jnp.all(jnp.isfinite(logits))) and bool(jnp.all(jnp.isfinite(probs)))
    assert bool(jnp.allclose(probs.sum(axis=-1), 1.0, atol=1e-5))
    print("KERNEL_OK")
</pallas_src>

<mosaic_0001>
module attributes {stable_mosaic.version = 11 : i64} {
  func.func @_fused_forward_kernel(%arg0: memref<64x32xbf16, #tpu.memory_space<vmem>>, %arg1: memref<6x8x128xf32, #tpu.memory_space<vmem>>, %arg2: memref<8x46xf32, #tpu.memory_space<vmem>>, %arg3: memref<8x32xf32, #tpu.memory_space<vmem>>, %arg4: memref<32x768xbf16, #tpu.memory_space<vmem>>, %arg5: memref<128x768xf32, #tpu.memory_space<vmem>>, %arg6: memref<1x768xf32, #tpu.memory_space<vmem>>, %arg7: memref<1x256xf32, #tpu.memory_space<vmem>>, %arg8: memref<256x768xbf16, #tpu.memory_space<vmem>>, %arg9: memref<128x768xf32, #tpu.memory_space<vmem>>, %arg10: memref<1x768xf32, #tpu.memory_space<vmem>>, %arg11: memref<1x256xf32, #tpu.memory_space<vmem>>, %arg12: memref<256x768xbf16, #tpu.memory_space<vmem>>, %arg13: memref<128x768xf32, #tpu.memory_space<vmem>>, %arg14: memref<1x768xf32, #tpu.memory_space<vmem>>, %arg15: memref<1x256xf32, #tpu.memory_space<vmem>>, %arg16: memref<46x32xf32, #tpu.memory_space<vmem>>, %arg17: memref<1x32xf32, #tpu.memory_space<vmem>>, %arg18: memref<32x1xf32, #tpu.memory_space<vmem>>, %arg19: memref<32x1xf32, #tpu.memory_space<vmem>>, %arg20: memref<32x1xf32, #tpu.memory_space<vmem>>, %arg21: memref<32x16xf32, #tpu.memory_space<vmem>>, %arg22: memref<1x16xf32, #tpu.memory_space<vmem>>, %arg23: memref<16x128xf32, #tpu.memory_space<vmem>>, %arg24: memref<256x128xf32, #tpu.memory_space<vmem>>, %arg25: memref<46x128xf32, #tpu.memory_space<vmem>>, %arg26: memref<1x128xf32, #tpu.memory_space<vmem>>, %arg27: memref<128x2xf32, #tpu.memory_space<vmem>>, %arg28: memref<1x2xf32, #tpu.memory_space<vmem>>, %arg29: memref<8x2xf32, #tpu.memory_space<vmem>>, %arg30: memref<8x2xf32, #tpu.memory_space<vmem>>, %arg31: memref<64x768xf32, #tpu.memory_space<vmem>>, %arg32: memref<64x256xf32, #tpu.memory_space<vmem>>, %arg33: memref<64x256xf32, #tpu.memory_space<vmem>>) attributes {dimension_semantics = [], scalar_prefetch = 0 : i64, scratch_operands = 3 : i64, tpu.core_type = #tpu.core_type<tc>} {
    %c0 = arith.constant 0 : index
    %c0_0 = arith.constant 0 : index
    %0 = vector.load %arg0[%c0, %c0_0] : memref<64x32xbf16, #tpu.memory_space<vmem>>, vector<64x32xbf16>
    %c0_1 = arith.constant 0 : index
    %c0_2 = arith.constant 0 : index
    %c0_3 = arith.constant 0 : index
    %1 = vector.load %arg1[%c0_1, %c0_2, %c0_3] : memref<6x8x128xf32, #tpu.memory_space<vmem>>, vector<1x8x128xf32>
    %2 = vector.shape_cast %1 : vector<1x8x128xf32> to vector<8x128xf32>
    %c1 = arith.constant 1 : index
    %c0_4 = arith.constant 0 : index
    %c0_5 = arith.constant 0 : index
    %3 = vector.load %arg1[%c1, %c0_4, %c0_5] : memref<6x8x128xf32, #tpu.memory_space<vmem>>, vector<1x8x128xf32>
    %4 = vector.shape_cast %3 : vector<1x8x128xf32> to vector<8x128xf32>
    %c0_6 = arith.constant 0 : index
    %c0_7 = arith.constant 0 : index
    %5 = vector.load %arg4[%c0_6, %c0_7] : memref<32x768xbf16, #tpu.memory_space<vmem>>, vector<32x768xbf16>
    %cst = arith.constant dense<0.000000e+00> : vector<64x768xf32>
    %6 = tpu.matmul %0, %5, %cst {dimension_numbers = #tpu.dot_dimension_numbers<[1], [0], [0], [1], [0, 0, 1, 1], [], []>} : vector<64x32xbf16>, vector<32x768xbf16>, vector<64x768xf32> -> vector<64x768xf32>
    %c0_8 = arith.constant 0 : index
    %c0_9 = arith.constant 0 : index
    %7 = vector.load %arg6[%c0_8, %c0_9] : memref<1x768xf32, #tpu.memory_space<vmem>>, vector<1x768xf32>
    %8 = vector.broadcast %7 : vector<1x768xf32> to vector<64x768xf32>
    %9 = arith.addf %6, %8 : vector<64x768xf32>
    %c0_10 = arith.constant 0 : index
    %c0_11 = arith.constant 0 : index
    %10 = vector.load %arg31[%c0_10, %c0_11] : memref<64x768xf32, #tpu.memory_space<vmem>>, vector<64x768xf32>
    tpu.vector_store %arg31[%c0_10, %c0_11], %9 {strides = array<i32>} : memref<64x768xf32, #tpu.memory_space<vmem>>, vector<64x768xf32>,
    %c0_12 = arith.constant 0 : index
    %c0_13 = arith.constant 0 : index
    %11 = vector.load %arg5[%c0_12, %c0_13] : memref<128x768xf32, #tpu.memory_space<vmem>>, vector<128x768xf32>
    %c0_14 = arith.constant 0 : index
    %c0_15 = arith.constant 0 : index
    %12 = vector.load %arg7[%c0_14, %c0_15] : memref<1x256xf32, #tpu.memory_space<vmem>>, vector<1x128xf32>
    %c0_16 = arith.constant 0 : index
    %c128 = arith.constant 128 : index
    %13 = vector.load %arg7[%c0_16, %c128] : memref<1x256xf32, #tpu.memory_space<vmem>>, vector<1x128xf32>
    %c0_17 = arith.constant 0 : index
    %c0_18 = arith.constant 0 : index
    %14 = vector.load %arg31[%c0_17, %c0_18] : memref<64x768xf32, #tpu.memory_space<vmem>>, vector<8x384xf32>
    %c56 = arith.constant 56 : index
    %c384 = arith.constant 384 : index
    %15 = vector.load %arg31[%c56, %c384] : memref<64x768xf32, #tpu.memory_space<vmem>>, vector<8x384xf32>
    %16 = vector.extract_strided_slice %11 {offsets = [0, 0], sizes = [128, 384], strides = [1, 1]} : vector<128x768xf32> to vector<128x384xf32>
    %cst_19 = arith.constant dense<0.000000e+00> : vector<8x384xf32>
    %17 = tpu.matmul %2, %16, %cst_19 {dimension_numbers = #tpu.dot_dimension_numbers<[1], [0], [0], [1], [0, 0, 1, 1], [], []>} : vector<8x128xf32>, vector<128x384xf32>, vector<8x384xf32> -> vector<8x384xf32>
    %18 = vector.extract_strided_slice %11 {offsets = [0, 384], sizes = [128, 384], strides = [1, 1]} : vector<128x768xf32> to vector<128x384xf32>
    %cst_20 = arith.constant dense<0.000000e+00> : vector<8x384xf32>
    %19 = tpu.matmul %4, %18, %cst_20 {dimension_numbers = #tpu.dot_dimension_numbers<[1], [0], [0], [1], [0, 0, 1, 1], [], []>} : vector<8x128xf32>, vector<128x384xf32>, vector<8x384xf32> -> vector<8x384xf32>
    %20 = vector.extract_strided_slice %14 {offsets = [0, 0], sizes = [8, 128], strides = [1, 1]} : vector<8x384xf32> to vector<8x128xf32>
    %21 = vector.extract_strided_slice %17 {offsets = [0, 0], sizes = [8, 128], strides = [1, 1]} : vector<8x384xf32> to vector<8x128xf32>
    %22 = arith.addf %20, %21 : vector<8x128xf32>
    %23 = arith.negf %22 : vector<8x128xf32>
    %24 = math.exp %23 : vector<8x128xf32>
    %cst_21 = arith.constant 1.000000e+00 : f32
    %25 = vector.broadcast %cst_21 : f32 to vector<8x128xf32>
    %26 = arith.addf %25, %24 : vector<8x128xf32>
    %27 = arith.divf %25, %26 : vector<8x128xf32>
    %28 = vector.extract_strided_slice %14 {offsets = [0, 128], sizes = [8, 128], strides = [1, 1]} : vector<8x384xf32> to vector<8x128xf32>
    %29 = vector.extract_strided_slice %17 {offsets = [0, 128], sizes = [8, 128], strides = [1, 1]} : vector<8x384xf32> to vector<8x128xf32>
    %30 = arith.addf %28, %29 : vector<8x128xf32>
    %31 = arith.negf %30 : vector<8x128xf32>
    %32 = math.exp %31 : vector<8x128xf32>
    %cst_22 = arith.constant 1.000000e+00 : f32
    %33 = vector.broadcast %cst_22 : f32 to vector<8x128xf32>
    %34 = arith.addf %33, %32 : vector<8x128xf32>
    %35 = arith.divf %33, %34 : vector<8x128xf32>
    %36 = vector.extract_strided_slice %14 {offsets = [0, 256], sizes = [8, 128], strides = [1, 1]} : vector<8x384xf32> to vector<8x128xf32>
    %37 = vector.extract_strided_slice %17 {offsets = [0, 256], sizes = [8, 128], strides = [1, 1]} : vector<8x384xf32> to vector<8x128xf32>
    %38 = vector.broadcast %12 : vector<1x128xf32> to vector<8x128xf32>
    %39 = arith.addf %37, %38 : vector<8x128xf32>
    %40 = arith.mulf %27, %39 : vector<8x128xf32>
    %41 = arith.addf %36, %40 : vector<8x128xf32>
    %42 = math.tanh %41 : vector<8x128xf32>
    %cst_23 = arith.constant 1.000000e+00 : f32
    %43 = vector.broadcast %cst_23 : f32 to vector<8x128xf32>
    %44 = arith.subf %43, %35 : vector<8x128xf32>
    %45 = arith.mulf %44, %42 : vector<8x128xf32>
    %46 = arith.mulf %35, %2 : vector<8x128xf32>
    %47 = arith.addf %45, %46 : vector<8x128xf32>
    %48 = vector.extract_strided_slice %15 {offsets = [0, 0], sizes = [8, 128], strides = [1, 1]} : vector<8x384xf32> to vector<8x128xf32>
    %49 = vector.extract_strided_slice %19 {offsets = [0, 0], sizes = [8, 128], strides = [1, 1]} : vector<8x384xf32> to vector<8x128xf32>
    %50 = arith.addf %48, %49 : vector<8x128xf32>
    %51 = arith.negf %50 : vector<8x128xf32>
    %52 = math.exp %51 : vector<8x128xf32>
    %cst_24 = arith.constant 1.000000e+00 : f32
    %53 = vector.broadcast %cst_24 : f32 to vector<8x128xf32>
    %54 = arith.addf %53, %52 : vector<8x128xf32>
    %55 = arith.divf %53, %54 : vector<8x128xf32>
    %56 = vector.extract_strided_slice %15 {offsets = [0, 128], sizes = [8, 128], strides = [1, 1]} : vector<8x384xf32> to vector<8x128xf32>
    %57 = vector.extract_strided_slice %19 {offsets = [0, 128], sizes = [8, 128], strides = [1, 1]} : vector<8x384xf32> to vector<8x128xf32>
    %58 = arith.addf %56, %57 : vector<8x128xf32>
    %59 = arith.negf %58 : vector<8x128xf32>
    %60 = math.exp %59 : vector<8x128xf32>
    %cst_25 = arith.constant 1.000000e+00 : f32
    %61 = vector.broadcast %cst_25 : f32 to vector<8x128xf32>
    %62 = arith.addf %61, %60 : vector<8x128xf32>
    %63 = arith.divf %61, %62 : vector<8x128xf32>
    %64 = vector.extract_strided_slice %15 {offsets = [0, 256], sizes = [8, 128], strides = [1, 1]} : vector<8x384xf32> to vector<8x128xf32>
    %65 = vector.extract_strided_slice %19 {offsets = [0, 256], sizes = [8, 128], strides = [1, 1]} : vector<8x384xf32> to vector<8x128xf32>
    %66 = vector.broadcast %13 : vector<1x128xf32> to vector<8x128xf32>
    %67 = arith.addf %65, %66 : vector<8x128xf32>
    %68 = arith.mulf %55, %67 : vector<8x128xf32>
    %69 = arith.addf %64, %68 : vector<8x128xf32>
    %70 = math.tanh %69 : vector<8x128xf32>
    %cst_26 = arith.constant 1.000000e+00 : f32
    %71 = vector.broadcast %cst_26 : f32 to vector<8x128xf32>
    %72 = arith.subf %71, %63 : vector<8x128xf32>
    %73 = arith.mulf %72, %70 : vector<8x128xf32>
    %74 = arith.mulf %63, %4 : vector<8x128xf32>
    %75 = arith.addf %73, %74 : vector<8x128xf32>
    %c0_27 = arith.constant 0 : index
    %c0_28 = arith.constant 0 : index
    %76 = vector.load %arg32[%c0_27, %c0_28] : memref<64x256xf32, #tpu.memory_space<vmem>>, vector<8x128xf32>
    tpu.vector_store %arg32[%c0_27, %c0_28], %47 {strides = array<i32>} : memref<64x256xf32, #tpu.memory_space<vmem>>, vector<8x128xf32>,
    %c56_29 = arith.constant 56 : index
    %c128_30 = arith.constant 128 : index
    %77 = vector.load %arg32[%c56_29, %c128_30] : memref<64x256xf32, #tpu.memory_space<vmem>>, vector<8x128xf32>
    tpu.vector_store %arg32[%c56_29, %c128_30], %75 {strides = array<i32>} : memref<64x256xf32, #tpu.memory_space<vmem>>, vector<8x128xf32>,
    %c8 = arith.constant 8 : index
    %c0_31 = arith.constant 0 : index
    %78 = vector.load %arg31[%c8, %c0_31] : memref<64x768xf32, #tpu.memory_space<vmem>>, vector<8x384xf32>
    %c48 = arith.constant 48 : index
    %c384_32 = arith.constant 384 : index
    %79 = vector.load %arg31[%c48, %c384_32] : memref<64x768xf32, #tpu.memory_space<vmem>>, vector<8x384xf32>
    %80 = vector.extract_strided_slice %11 {offsets = [0, 0], sizes = [128, 384], strides = [1, 1]} : vector<128x768xf32> to vector<128x384xf32>
    %cst_33 = arith.constant dense<0.000000e+00> : vector<8x384xf32>
    %81 = tpu.matmul %47, %80, %cst_33 {dimension_numbers = #tpu.dot_dimension_numbers<[1], [0], [0], [1], [0, 0, 1, 1], [], []>} : vector<8x128xf32>, vector<128x384xf32>, vector<8x384xf32> -> vector<8x384xf32>
    %82 = vector.extract_strided_slice %11 {offsets = [0, 384], sizes = [128, 384], strides = [1, 1]} : vector<128x768xf32> to vector<128x384xf32>
    %cst_34 = arith.constant dense<0.000000e+00> : vector<8x384xf32>
    %83 = tpu.matmul %75, %82, %cst_34 {dimension_numbers = #tpu.dot_dimension_numbers<[1], [0], [0], [1], [0, 0, 1, 1], [], []>} : vector<8x128xf32>, vector<128x384xf32>, vector<8x384xf32> -> vector<8x384xf32>
    %84 = vector.extract_strided_slice %78 {offsets = [0, 0], sizes = [8, 128], strides = [1, 1]} : vector<8x384xf32> to vector<8x128xf32>
    %85 = vector.extract_strided_slice %81 {offsets = [0, 0], sizes = [8, 128], strides = [1, 1]} : vector<8x384xf32> to vector<8x128xf32>
    %86 = arith.addf %84, %85 : vector<8x128xf32>
    %87 = arith.negf %86 : vector<8x128xf32>
    %88 = math.exp %87 : vector<8x128xf32>
    %cst_35 = arith.constant 1.000000e+00 : f32
    %89 = vector.broadcast %cst_35 : f32 to vector<8x128xf32>
    %90 = arith.addf %89, %88 : vector<8x128xf32>
    %91 = arith.divf %89, %90 : vector<8x128xf32>
    %92 = vector.extract_strided_slice %78 {offsets = [0, 128], sizes = [8, 128], strides = [1, 1]} : vector<8x384xf32> to vector<8x128xf32>
    %93 = vector.extract_strided_slice %81 {offsets = [0, 128], sizes = [8, 128], strides = [1, 1]} : vector<8x384xf32> to vector<8x128xf32>
    %94 = arith.addf %92, %93 : vector<8x128xf32>
    %95 = arith.negf %94 : vector<8x128xf32>
    %96 = math.exp %95 : vector<8x128xf32>
    %cst_36 = arith.constant 1.000000e+00 : f32
    %97 = vector.broadcast %cst_36 : f32 to vector<8x128xf32>
    %98 = arith.addf %97, %96 : vector<8x128xf32>
    %99 = arith.divf %97, %98 : vector<8x128xf32>
    %100 = vector.extract_strided_slice %78 {offsets = [0, 256], sizes = [8, 128], strides = [1, 1]} : vector<8x384xf32> to vector<8x128xf32>
    %101 = vector.extract_strided_slice %81 {offsets = [0, 256], sizes = [8, 128], strides = [1, 1]} : vector<8x384xf32> to vector<8x128xf32>
    %102 = vector.broadcast %12 : vector<1x128xf32> to vector<8x128xf32>
    %103 = arith.addf %101, %102 : vector<8x128xf32>
    %104 = arith.mulf %91, %103 : vector<8x128xf32>
    %105 = arith.addf %100, %104 : vector<8x128xf32>
    %106 = math.tanh %105 : vector<8x128xf32>
    %cst_37 = arith.constant 1.000000e+00 : f32
    %107 = vector.broadcast %cst_37 : f32 to vector<8x128xf32>
    %108 = arith.subf %107, %99 : vector<8x128xf32>
    %109 = arith.mulf %108, %106 : vector<8x128xf32>
    %110 = arith.mulf %99, %47 : vector<8x128xf32>
    %111 = arith.addf %109, %110 : vector<8x128xf32>
    %112 = vector.extract_strided_slice %79 {offsets = [0, 0], sizes = [8, 128], strides = [1, 1]} : vector<8x384xf32> to vector<8x128xf32>
    %113 = vector.extract_strided_slice %83 {offsets = [0, 0], sizes = [8, 128], strides = [1, 1]} : vector<8x384xf32> to vector<8x128xf32>
    %114 = arith.addf %112, %113 : vector<8x128xf32>
    %115 = arith.negf %114 : vector<8x128xf32>
    %116 = math.exp %115 : vector<8x128xf32>
    %cst_38 = arith.constant 1.000000e+00 : f32
    %117 = vector.broadcast %cst_38 : f32 to vector<8x128xf32>
    %118 = arith.addf %117, %116 : vector<8x128xf32>
    %119 = arith.divf %117, %118 : vector<8x128xf32>
    %120 = vector.extract_strided_slice %79 {offsets = [0, 128], sizes = [8, 128], strides = [1, 1]} : vector<8x384xf32> to vector<8x128xf32>
    %121 = vector.extract_strided_slice %83 {offsets = [0, 128], sizes = [8, 128], strides = [1, 1]} : vector<8x384xf32> to vector<8x128xf32>
    %122 = arith.addf %120, %121 : vector<8x128xf32>
    %123 = arith.negf %122 : vector<8x128xf32>
    %124 = math.exp %123 : vector<8x128xf32>
    %cst_39 = arith.constant 1.000000e+00 : f32
    %125 = vector.broadcast %cst_39 : f32 to vector<8x128xf32>
    %126 = arith.addf %125, %124 : vector<8x128xf32>
    %127 = arith.divf %125, %126 : vector<8x128xf32>
    %128 = vector.extract_strided_slice %79 {offsets = [0, 256], sizes = [8, 128], strides = [1, 1]} : vector<8x384xf32> to vector<8x128xf32>
    %129 = vector.extract_strided_slice %83 {offsets = [0, 256], sizes = [8, 128], strides = [1, 1]} : vector<8x384xf32> to vector<8x128xf32>
    %130 = vector.broadcast %13 : vector<1x128xf32> to vector<8x128xf32>
    %131 = arith.addf %129, %130 : vector<8x128xf32>
    %132 = arith.mulf %119, %131 : vector<8x128xf32>
    %133 = arith.addf %128, %132 : vector<8x128xf32>
    %134 = math.tanh %133 : vector<8x128xf32>
    %cst_40 = arith.constant 1.000000e+00 : f32
    %135 = vector.broadcast %cst_40 : f32 to vector<8x128xf32>
    %136 = arith.subf %135, %127 : vector<8x128xf32>
    %137 = arith.mulf %136, %134 : vector<8x128xf32>
    %138 = arith.mulf %127, %75 : vector<8x128xf32>
    %139 = arith.addf %137, %138 : vector<8x128xf32>
    %c8_41 = arith.constant 8 : index
    %c0_42 = arith.constant 0 : index
    %140 = vector.load %arg32[%c8_41, %c0_42] : memref<64x256xf32, #tpu.memory_space<vmem>>, vector<8x128xf32>
    tpu.vector_store %arg32[%c8_41, %c0_42], %111 {strides = array<i32>} : memref<64x256xf32, #tpu.memory_space<vmem>>, vector<8x128xf32>,
    %c48_43 = arith.constant 48 : index
    %c128_44 = arith.constant 128 : index
    %141 = vector.load %arg32[%c48_43, %c128_44] : memref<64x256xf32, #tpu.memory_space<vmem>>, vector<8x128xf32>
    tpu.vector_store %arg32[%c48_43, %c128_44], %139 {strides = array<i32>} : memref<64x256xf32, #tpu.memory_space<vmem>>, vector<8x128xf32>,
    %c16 = arith.constant 16 : index
    %c0_45 = arith.constant 0 : index
    %142 = vector.load %arg31[%c16, %c0_45] : memref<64x768xf32, #tpu.memory_space<vmem>>, vector<8x384xf32>
    %c40 = arith.constant 40 : index
    %c384_46 = arith.constant 384 : index
    %143 = vector.load %arg31[%c40, %c384_46] : memref<64x768xf32, #tpu.memory_space<vmem>>, vector<8x384xf32>
    %144 = vector.extract_strided_slice %11 {offsets = [0, 0], sizes = [128, 384], strides = [1, 1]} : vector<128x768xf32> to vector<128x384xf32>
    %cst_47 = arith.constant dense<0.000000e+00> : vector<8x384xf32>
    %145 = tpu.matmul %111, %144, %cst_47 {dimension_numbers = #tpu.dot_dimension_numbers<[1], [0], [0], [1], [0, 0, 1, 1], [], []>} : vector<8x128xf32>, vector<128x384xf32>, vector<8x384xf32> -> vector<8x384xf32>
    %146 = vector.extract_strided_slice %11 {offsets = [0, 384], sizes = [128, 384], strides = [1, 1]} : vector<128x768xf32> to vector<128x384xf32>
    %cst_48 = arith.constant dense<0.000000e+00> : vector<8x384xf32>
    %147 = tpu.matmul %139, %146, %cst_48 {dimension_numbers = #tpu.dot_dimension_numbers<[1], [0], [0], [1], [0, 0, 1, 1], [], []>} : vector<8x128xf32>, vector<128x384xf32>, vector<8x384xf32> -> vector<8x384xf32>
    %148 = vector.extract_strided_slice %142 {offsets = [0, 0], sizes = [8, 128], strides = [1, 1]} : vector<8x384xf32> to vector<8x128xf32>
    %149 = vector.extract_strided_slice %145 {offsets = [0, 0], sizes = [8, 128], strides = [1, 1]} : vector<8x384xf32> to vector<8x128xf32>
    %150 = arith.addf %148, %149 : vector<8x128xf32>
    %151 = arith.negf %150 : vector<8x128xf32>
    %152 = math.exp %151 : vector<8x128xf32>
    %cst_49 = arith.constant 1.000000e+00 : f32
    %153 = vector.broadcast %cst_49 : f32 to vector<8x128xf32>
    %154 = arith.addf %153, %152 : vector<8x128xf32>
    %155 = arith.divf %153, %154 : vector<8x128xf32>
    %156 = vector.extract_strided_slice %142 {offsets = [0, 128], sizes = [8, 128], strides = [1, 1]} : vector<8x384xf32> to vector<8x128xf32>
    %157 = vector.extract_strided_slice %145 {offsets = [0, 128], sizes = [8, 128], strides = [1, 1]} : vector<8x384xf32> to vector<8x128xf32>
    %158 = arith.addf %156, %157 : vector<8x128xf32>
    %159 = arith.negf %158 : vector<8x128xf32>
    %160 = math.exp %159 : vector<8x128xf32>
    %cst_50 = arith.constant 1.000000e+00 : f32
    %161 = vector.broadcast %cst_50 : f32 to vector<8x128xf32>
    %162 = arith.addf %161, %160 : vector<8x128xf32>
    %163 = arith.divf %161, %162 : vector<8x128xf32>
    %164 = vector.extract_strided_slice %142 {offsets = [0, 256], sizes = [8, 128], strides = [1, 1]} : vector<8x384xf32> to vector<8x128xf32>
    %165 = vector.extract_strided_slice %145 {offsets = [0, 256], sizes = [8, 128], strides = [1, 1]} : vector<8x384xf32> to vector<8x128xf32>
    %166 = vector.broadcast %12 : vector<1x128xf32> to vector<8x128xf32>
    %167 = arith.addf %165, %166 : vector<8x128xf32>
    %168 = arith.mulf %155, %167 : vector<8x128xf32>
    %169 = arith.addf %164, %168 : vector<8x128xf32>
    %170 = math.tanh %169 : vector<8x128xf32>
    %cst_51 = arith.constant 1.000000e+00 : f32
    %171 = vector.broadcast %cst_51 : f32 to vector<8x128xf32>
    %172 = arith.subf %171, %163 : vector<8x128xf32>
    %173 = arith.mulf %172, %170 : vector<8x128xf32>
    %174 = arith.mulf %163, %111 : vector<8x128xf32>
    %175 = arith.addf %173, %174 : vector<8x128xf32>
    %176 = vector.extract_strided_slice %143 {offsets = [0, 0], sizes = [8, 128], strides = [1, 1]} : vector<8x384xf32> to vector<8x128xf32>
    %177 = vector.extract_strided_slice %147 {offsets = [0, 0], sizes = [8, 128], strides = [1, 1]} : vector<8x384xf32> to vector<8x128xf32>
    %178 = arith.addf %176, %177 : vector<8x128xf32>
    %179 = arith.negf %178 : vector<8x128xf32>
    %180 = math.exp %179 : vector<8x128xf32>
    %cst_52 = arith.constant 1.000000e+00 : f32
    %181 = vector.broadcast %cst_52 : f32 to vector<8x128xf32>
    %182 = arith.addf %181, %180 : vector<8x128xf32>
    %183 = arith.divf %181, %182 : vector<8x128xf32>
    %184 = vector.extract_strided_slice %143 {offsets = [0, 128], sizes = [8, 128], strides = [1, 1]} : vector<8x384xf32> to vector<8x128xf32>
    %185 = vector.extract_strided_slice %147 {offsets = [0, 128], sizes = [8, 128], strides = [1, 1]} : vector<8x384xf32> to vector<8x128xf32>
    %186 = arith.addf %184, %185 : vector<8x128xf32>
    %187 = arith.negf %186 : vector<8x128xf32>
    %188 = math.exp %187 : vector<8x128xf32>
    %cst_53 = arith.constant 1.000000e+00 : f32
    %189 = vector.broadcast %cst_53 : f32 to vector<8x128xf32>
    %190 = arith.addf %189, %188 : vector<8x128xf32>
    %191 = arith.divf %189, %190 : vector<8x128xf32>
    %192 = vector.extract_strided_slice %143 {offsets = [0, 256], sizes = [8, 128], strides = [1, 1]} : vector<8x384xf32> to vector<8x128xf32>
    %193 = vector.extract_strided_slice %147 {offsets = [0, 256], sizes = [8, 128], strides = [1, 1]} : vector<8x384xf32> to vector<8x128xf32>
    %194 = vector.broadcast %13 : vector<1x128xf32> to vector<8x128xf32>
    %195 = arith.addf %193, %194 : vector<8x128xf32>
    %196 = arith.mulf %183, %195 : vector<8x128xf32>
    %197 = arith.addf %192, %196 : vector<8x128xf32>
    %198 = math.tanh %197 : vector<8x128xf32>
    %cst_54 = arith.constant 1.000000e+00 : f32
    %199 = vector.broadcast %cst_54 : f32 to vector<8x128xf32>
    %200 = arith.subf %199, %191 : vector<8x128xf32>
    %201 = arith.mulf %200, %198 : vector<8x128xf32>
    %202 = arith.mulf %191, %139 : vector<8x128xf32>
    %203 = arith.addf %201, %202 : vector<8x128xf32>
    %c16_55 = arith.constant 16 : index
    %c0_56 = arith.constant 0 : index
    %204 = vector.load %arg32[%c16_55, %c0_56] : memref<64x256xf32, #tpu.memory_space<vmem>>, vector<8x128xf32>
    tpu.vector_store %arg32[%c16_55, %c0_56], %175 {strides = array<i32>} : memref<64x256xf32, #tpu.memory_space<vmem>>, vector<8x128xf32>,
    %c40_57 = arith.constant 40 : index
    %c128_58 = arith.constant 128 : index
    %205 = vector.load %arg32[%c40_57, %c128_58] : memref<64x256xf32, #tpu.memory_space<vmem>>, vector<8x128xf32>
    tpu.vector_store %arg32[%c40_57, %c128_58], %203 {strides = array<i32>} : memref<64x256xf32, #tpu.memory_space<vmem>>, vector<8x128xf32>,
    %c24 = arith.constant 24 : index
    %c0_59 = arith.constant 0 : index
    %206 = vector.load %arg31[%c24, %c0_59] : memref<64x768xf32, #tpu.memory_space<vmem>>, vector<8x384xf32>
    %c32 = arith.constant 32 : index
    %c384_60 = arith.constant 384 : index
    %207 = vector.load %arg31[%c32, %c384_60] : memref<64x768xf32, #tpu.memory_space<vmem>>, vector<8x384xf32>
    %208 = vector.extract_strided_slice %11 {offsets = [0, 0], sizes = [128, 384], strides = [1, 1]} : vector<128x768xf32> to vector<128x384xf32>
    %cst_61 = arith.constant dense<0.000000e+00> : vector<8x384xf32>
    %209 = tpu.matmul %175, %208, %cst_61 {dimension_numbers = #tpu.dot_dimension_numbers<[1], [0], [0], [1], [0, 0, 1, 1], [], []>} : vector<8x128xf32>, vector<128x384xf32>, vector<8x384xf32> -> vector<8x384xf32>
    %210 = vector.extract_strided_slice %11 {offsets = [0, 384], sizes = [128, 384], strides = [1, 1]} : vector<128x768xf32> to vector<128x384xf32>
    %cst_62 = arith.constant dense<0.000000e+00> : vector<8x384xf32>
    %211 = tpu.matmul %203, %210, %cst_62 {dimension_numbers = #tpu.dot_dimension_numbers<[1], [0], [0], [1], [0, 0, 1, 1], [], []>} : vector<8x128xf32>, vector<128x384xf32>, vector<8x384xf32> -> vector<8x384xf32>
    %212 = vector.extract_strided_slice %206 {offsets = [0, 0], sizes = [8, 128], strides = [1, 1]} : vector<8x384xf32> to vector<8x128xf32>
    %213 = vector.extract_strided_slice %209 {offsets = [0, 0], sizes = [8, 128], strides = [1, 1]} : vector<8x384xf32> to vector<8x128xf32>
    %214 = arith.addf %212, %213 : vector<8x128xf32>
    %215 = arith.negf %214 : vector<8x128xf32>
    %216 = math.exp %215 : vector<8x128xf32>
    %cst_63 = arith.constant 1.000000e+00 : f32
    %217 = vector.broadcast %cst_63 : f32 to vector<8x128xf32>
    %218 = arith.addf %217, %216 : vector<8x128xf32>
    %219 = arith.divf %217, %218 : vector<8x128xf32>
    %220 = vector.extract_strided_slice %206 {offsets = [0, 128], sizes = [8, 128], strides = [1, 1]} : vector<8x384xf32> to vector<8x128xf32>
    %221 = vector.extract_strided_slice %209 {offsets = [0, 128], sizes = [8, 128], strides = [1, 1]} : vector<8x384xf32> to vector<8x128xf32>
    %222 = arith.addf %220, %221 : vector<8x128xf32>
    %223 = arith.negf %222 : vector<8x128xf32>
    %224 = math.exp %223 : vector<8x128xf32>
    %cst_64 = arith.constant 1.000000e+00 : f32
    %225 = vector.broadcast %cst_64 : f32 to vector<8x128xf32>
    %226 = arith.addf %225, %224 : vector<8x128xf32>
    %227 = arith.divf %225, %226 : vector<8x128xf32>
    %228 = vector.extract_strided_slice %206 {offsets = [0, 256], sizes = [8, 128], strides = [1, 1]} : vector<8x384xf32> to vector<8x128xf32>
    %229 = vector.extract_strided_slice %209 {offsets = [0, 256], sizes = [8, 128], strides = [1, 1]} : vector<8x384xf32> to vector<8x128xf32>
    %230 = vector.broadcast %12 : vector<1x128xf32> to vector<8x128xf32>
    %231 = arith.addf %229, %230 : vector<8x128xf32>
    %232 = arith.mulf %219, %231 : vector<8x128xf32>
    %233 = arith.addf %228, %232 : vector<8x128xf32>
    %234 = math.tanh %233 : vector<8x128xf32>
    %cst_65 = arith.constant 1.000000e+00 : f32
    %235 = vector.broadcast %cst_65 : f32 to vector<8x128xf32>
    %236 = arith.subf %235, %227 : vector<8x128xf32>
    %237 = arith.mulf %236, %234 : vector<8x128xf32>
    %238 = arith.mulf %227, %175 : vector<8x128xf32>
    %239 = arith.addf %237, %238 : vector<8x128xf32>
    %240 = vector.extract_strided_slice %207 {offsets = [0, 0], sizes = [8, 128], strides = [1, 1]} : vector<8x384xf32> to vector<8x128xf32>
    %241 = vector.extract_strided_slice %211 {offsets = [0, 0], sizes = [8, 128], strides = [1, 1]} : vector<8x384xf32> to vector<8x128xf32>
    %242 = arith.addf %240, %241 : vector<8x128xf32>
    %243 = arith.negf %242 : vector<8x128xf32>
    %244 = math.exp %243 : vector<8x128xf32>
    %cst_66 = arith.constant 1.000000e+00 : f32
    %245 = vector.broadcast %cst_66 : f32 to vector<8x128xf32>
    %246 = arith.addf %245, %244 : vector<8x128xf32>
    %247 = arith.divf %245, %246 : vector<8x128xf32>
    %248 = vector.extract_strided_slice %207 {offsets = [0, 128], sizes = [8, 128], strides = [1, 1]} : vector<8x384xf32> to vector<8x128xf32>
    %249 = vector.extract_strided_slice %211 {offsets = [0, 128], sizes = [8, 128], strides = [1, 1]} : vector<8x384xf32> to vector<8x128xf32>
    %250 = arith.addf %248, %249 : vector<8x128xf32>
    %251 = arith.negf %250 : vector<8x128xf32>
    %252 = math.exp %251 : vector<8x128xf32>
    %cst_67 = arith.constant 1.000000e+00 : f32
    %253 = vector.broadcast %cst_67 : f32 to vector<8x128xf32>
    %254 = arith.addf %253, %252 : vector<8x128xf32>
    %255 = arith.divf %253, %254 : vector<8x128xf32>
    %256 = vector.extract_strided_slice %207 {offsets = [0, 256], sizes = [8, 128], strides = [1, 1]} : vector<8x384xf32> to vector<8x128xf32>
    %257 = vector.extract_strided_slice %211 {offsets = [0, 256], sizes = [8, 128], strides = [1, 1]} : vector<8x384xf32> to vector<8x128xf32>
    %258 = vector.broadcast %13 : vector<1x128xf32> to vector<8x128xf32>
    %259 = arith.addf %257, %258 : vector<8x128xf32>
    %260 = arith.mulf %247, %259 : vector<8x128xf32>
    %261 = arith.addf %256, %260 : vector<8x128xf32>
    %262 = math.tanh %261 : vector<8x128xf32>
    %cst_68 = arith.constant 1.000000e+00 : f32
    %263 = vector.broadcast %cst_68 : f32 to vector<8x128xf32>
    %264 = arith.subf %263, %255 : vector<8x128xf32>
    %265 = arith.mulf %264, %262 : vector<8x128xf32>
    %266 = arith.mulf %255, %203 : vector<8x128xf32>
    %267 = arith.addf %265, %266 : vector<8x128xf32>
    %c24_69 = arith.constant 24 : index
    %c0_70 = arith.constant 0 : index
    %268 = vector.load %arg32[%c24_69, %c0_70] : memref<64x256xf32, #tpu.memory_space<vmem>>, vector<8x128xf32>
    tpu.vector_store %arg32[%c24_69, %c0_70], %239 {strides = array<i32>} : memref<64x256xf32, #tpu.memory_space<vmem>>, vector<8x128xf32>,
    %c32_71 = arith.constant 32 : index
    %c128_72 = arith.constant 128 : index
    %269 = vector.load %arg32[%c32_71, %c128_72] : memref<64x256xf32, #tpu.memory_space<vmem>>, vector<8x128xf32>
    tpu.vector_store %arg32[%c32_71, %c128_72], %267 {strides = array<i32>} : memref<64x256xf32, #tpu.memory_space<vmem>>, vector<8x128xf32>,
    %c32_73 = arith.constant 32 : index
    %c0_74 = arith.constant 0 : index
    %270 = vector.load %arg31[%c32_73, %c0_74] : memref<64x768xf32, #tpu.memory_space<vmem>>, vector<8x384xf32>
    %c24_75 = arith.constant 24 : index
    %c384_76 = arith.constant 384 : index
    %271 = vector.load %arg31[%c24_75, %c384_76] : memref<64x768xf32, #tpu.memory_space<vmem>>, vector<8x384xf32>
    %272 = vector.extract_strided_slice %11 {offsets = [0, 0], sizes = [128, 384], strides = [1, 1]} : vector<128x768xf32> to vector<128x384xf32>
    %cst_77 = arith.constant dense<0.000000e+00> : vector<8x384xf32>
    %273 = tpu.matmul %239, %272, %cst_77 {dimension_numbers = #tpu.dot_dimension_numbers<[1], [0], [0], [1], [0, 0, 1, 1], [], []>} : vector<8x128xf32>, vector<128x384xf32>, vector<8x384xf32> -> vector<8x384xf32>
    %274 = vector.extract_strided_slice %11 {offsets = [0, 384], sizes = [128, 384], strides = [1, 1]} : vector<128x768xf32> to vector<128x384xf32>
    %cst_78 = arith.constant dense<0.000000e+00> : vector<8x384xf32>
    %275 = tpu.matmul %267, %274, %cst_78 {dimension_numbers = #tpu.dot_dimension_numbers<[1], [0], [0], [1], [0, 0, 1, 1], [], []>} : vector<8x128xf32>, vector<128x384xf32>, vector<8x384xf32> -> vector<8x384xf32>
    %276 = vector.extract_strided_slice %270 {offsets = [0, 0], sizes = [8, 128], strides = [1, 1]} : vector<8x384xf32> to vector<8x128xf32>
    %277 = vector.extract_strided_slice %273 {offsets = [0, 0], sizes = [8, 128], strides = [1, 1]} : vector<8x384xf32> to vector<8x128xf32>
    %278 = arith.addf %276, %277 : vector<8x128xf32>
    %279 = arith.negf %278 : vector<8x128xf32>
    %280 = math.exp %279 : vector<8x128xf32>
    %cst_79 = arith.constant 1.000000e+00 : f32
    %281 = vector.broadcast %cst_79 : f32 to vector<8x128xf32>
    %282 = arith.addf %281, %280 : vector<8x128xf32>
    %283 = arith.divf %281, %282 : vector<8x128xf32>
    %284 = vector.extract_strided_slice %270 {offsets = [0, 128], sizes = [8, 128], strides = [1, 1]} : vector<8x384xf32> to vector<8x128xf32>
    %285 = vector.extract_strided_slice %273 {offsets = [0, 128], sizes = [8, 128], strides = [1, 1]} : vector<8x384xf32> to vector<8x128xf32>
    %286 = arith.addf %284, %285 : vector<8x128xf32>
    %287 = arith.negf %286 : vector<8x128xf32>
    %288 = math.exp %287 : vector<8x128xf32>
    %cst_80 = arith.constant 1.000000e+00 : f32
    %289 = vector.broadcast %cst_80 : f32 to vector<8x128xf32>
    %290 = arith.addf %289, %288 : vector<8x128xf32>
    %291 = arith.divf %289, %290 : vector<8x128xf32>
    %292 = vector.extract_strided_slice %270 {offsets = [0, 256], sizes = [8, 128], strides = [1, 1]} : vector<8x384xf32> to vector<8x128xf32>
    %293 = vector.extract_strided_slice %273 {offsets = [0, 256], sizes = [8, 128], strides = [1, 1]} : vector<8x384xf32> to vector<8x128xf32>
    %294 = vector.broadcast %12 : vector<1x128xf32> to vector<8x128xf32>
    %295 = arith.addf %293, %294 : vector<8x128xf32>
    %296 = arith.mulf %283, %295 : vector<8x128xf32>
    %297 = arith.addf %292, %296 : vector<8x128xf32>
    %298 = math.tanh %297 : vector<8x128xf32>
    %cst_81 = arith.constant 1.000000e+00 : f32
    %299 = vector.broadcast %cst_81 : f32 to vector<8x128xf32>
    %300 = arith.subf %299, %291 : vector<8x128xf32>
    %301 = arith.mulf %300, %298 : vector<8x128xf32>
    %302 = arith.mulf %291, %239 : vector<8x128xf32>
    %303 = arith.addf %301, %302 : vector<8x128xf32>
    %304 = vector.extract_strided_slice %271 {offsets = [0, 0], sizes = [8, 128], strides = [1, 1]} : vector<8x384xf32> to vector<8x128xf32>
    %305 = vector.extract_strided_slice %275 {offsets = [0, 0], sizes = [8, 128], strides = [1, 1]} : vector<8x384xf32> to vector<8x128xf32>
    %306 = arith.addf %304, %305 : vector<8x128xf32>
    %307 = arith.negf %306 : vector<8x128xf32>
    %308 = math.exp %307 : vector<8x128xf32>
    %cst_82 = arith.constant 1.000000e+00 : f32
    %309 = vector.broadcast %cst_82 : f32 to vector<8x128xf32>
    %310 = arith.addf %309, %308 : vector<8x128xf32>
    %311 = arith.divf %309, %310 : vector<8x128xf32>
    %312 = vector.extract_strided_slice %271 {offsets = [0, 128], sizes = [8, 128], strides = [1, 1]} : vector<8x384xf32> to vector<8x128xf32>
    %313 = vector.extract_strided_slice %275 {offsets = [0, 128], sizes = [8, 128], strides = [1, 1]} : vector<8x384xf32> to vector<8x128xf32>
    %314 = arith.addf %312, %313 : vector<8x128xf32>
    %315 = arith.negf %314 : vector<8x128xf32>
    %316 = math.exp %315 : vector<8x128xf32>
    %cst_83 = arith.constant 1.000000e+00 : f32
    %317 = vector.broadcast %cst_83 : f32 to vector<8x128xf32>
    %318 = arith.addf %317, %316 : vector<8x128xf32>
    %319 = arith.divf %317, %318 : vector<8x128xf32>
    %320 = vector.extract_strided_slice %271 {offsets = [0, 256], sizes = [8, 128], strides = [1, 1]} : vector<8x384xf32> to vector<8x128xf32>
    %321 = vector.extract_strided_slice %275 {offsets = [0, 256], sizes = [8, 128], strides = [1, 1]} : vector<8x384xf32> to vector<8x128xf32>
    %322 = vector.broadcast %13 : vector<1x128xf32> to vector<8x128xf32>
    %323 = arith.addf %321, %322 : vector<8x128xf32>
    %324 = arith.mulf %311, %323 : vector<8x128xf32>
    %325 = arith.addf %320, %324 : vector<8x128xf32>
    %326 = math.tanh %325 : vector<8x128xf32>
    %cst_84 = arith.constant 1.000000e+00 : f32
    %327 = vector.broadcast %cst_84 : f32 to vector<8x128xf32>
    %328 = arith.subf %327, %319 : vector<8x128xf32>
    %329 = arith.mulf %328, %326 : vector<8x128xf32>
    %330 = arith.mulf %319, %267 : vector<8x128xf32>
    %331 = arith.addf %329, %330 : vector<8x128xf32>
    %c32_85 = arith.constant 32 : index
    %c0_86 = arith.constant 0 : index
    %332 = vector.load %arg32[%c32_85, %c0_86] : memref<64x256xf32, #tpu.memory_space<vmem>>, vector<8x128xf32>
    tpu.vector_store %arg32[%c32_85, %c0_86], %303 {strides = array<i32>} : memref<64x256xf32, #tpu.memory_space<vmem>>, vector<8x128xf32>,
    %c24_87 = arith.constant 24 : index
    %c128_88 = arith.constant 128 : index
    %333 = vector.load %arg32[%c24_87, %c128_88] : memref<64x256xf32, #tpu.memory_space<vmem>>, vector<8x128xf32>
    tpu.vector_store %arg32[%c24_87, %c128_88], %331 {strides = array<i32>} : memref<64x256xf32, #tpu.memory_space<vmem>>, vector<8x128xf32>,
    %c40_89 = arith.constant 40 : index
    %c0_90 = arith.constant 0 : index
    %334 = vector.load %arg31[%c40_89, %c0_90] : memref<64x768xf32, #tpu.memory_space<vmem>>, vector<8x384xf32>
    %c16_91 = arith.constant 16 : index
    %c384_92 = arith.constant 384 : index
    %335 = vector.load %arg31[%c16_91, %c384_92] : memref<64x768xf32, #tpu.memory_space<vmem>>, vector<8x384xf32>
    %336 = vector.extract_strided_slice %11 {offsets = [0, 0], sizes = [128, 384], strides = [1, 1]} : vector<128x768xf32> to vector<128x384xf32>
    %cst_93 = arith.constant dense<0.000000e+00> : vector<8x384xf32>
    %337 = tpu.matmul %303, %336, %cst_93 {dimension_numbers = #tpu.dot_dimension_numbers<[1], [0], [0], [1], [0, 0, 1, 1], [], []>} : vector<8x128xf32>, vector<128x384xf32>, vector<8x384xf32> -> vector<8x384xf32>
    %338 = vector.extract_strided_slice %11 {offsets = [0, 384], sizes = [128, 384], strides = [1, 1]} : vector<128x768xf32> to vector<128x384xf32>
    %cst_94 = arith.constant dense<0.000000e+00> : vector<8x384xf32>
    %339 = tpu.matmul %331, %338, %cst_94 {dimension_numbers = #tpu.dot_dimension_numbers<[1], [0], [0], [1], [0, 0, 1, 1], [], []>} : vector<8x128xf32>, vector<128x384xf32>, vector<8x384xf32> -> vector<8x384xf32>
    %340 = vector.extract_strided_slice %334 {offsets = [0, 0], sizes = [8, 128], strides = [1, 1]} : vector<8x384xf32> to vector<8x128xf32>
    %341 = vector.extract_strided_slice %337 {offsets = [0, 0], sizes = [8, 128], strides = [1, 1]} : vector<8x384xf32> to vector<8x128xf32>
    %342 = arith.addf %340, %341 : vector<8x128xf32>
    %343 = arith.negf %342 : vector<8x128xf32>
    %344 = math.exp %343 : vector<8x128xf32>
    %cst_95 = arith.constant 1.000000e+00 : f32
    %345 = vector.broadcast %cst_95 : f32 to vector<8x128xf32>
    %346 = arith.addf %345, %344 : vector<8x128xf32>
    %347 = arith.divf %345, %346 : vector<8x128xf32>
    %348 = vector.extract_strided_slice %334 {offsets = [0, 128], sizes = [8, 128], strides = [1, 1]} : vector<8x384xf32> to vector<8x128xf32>
    %349 = vector.extract_strided_slice %337 {offsets = [0, 128], sizes = [8, 128], strides = [1, 1]} : vector<8x384xf32> to vector<8x128xf32>
    %350 = arith.addf %348, %349 : vector<8x128xf32>
    %351 = arith.negf %350 : vector<8x128xf32>
    %352 = math.exp %351 : vector<8x128xf32>
    %cst_96 = arith.constant 1.000000e+00 : f32
    %353 = vector.broadcast %cst_96 : f32 to vector<8x128xf32>
    %354 = arith.addf %353, %352 : vector<8x128xf32>
    %355 = arith.divf %353, %354 : vector<8x128xf32>
    %356 = vector.extract_strided_slice %334 {offsets = [0, 256], sizes = [8, 128], strides = [1, 1]} : vector<8x384xf32> to vector<8x128xf32>
    %357 = vector.extract_strided_slice %337 {offsets = [0, 256], sizes = [8, 128], strides = [1, 1]} : vector<8x384xf32> to vector<8x128xf32>
    %358 = vector.broadcast %12 : vector<1x128xf32> to vector<8x128xf32>
    %359 = arith.addf %357, %358 : vector<8x128xf32>
    %360 = arith.mulf %347, %359 : vector<8x128xf32>
    %361 = arith.addf %356, %360 : vector<8x128xf32>
    %362 = math.tanh %361 : vector<8x128xf32>
    %cst_97 = arith.constant 1.000000e+00 : f32
    %363 = vector.broadcast %cst_97 : f32 to vector<8x128xf32>
    %364 = arith.subf %363, %355 : vector<8x128xf32>
    %365 = arith.mulf %364, %362 : vector<8x128xf32>
    %366 = arith.mulf %355, %303 : vector<8x128xf32>
    %367 = arith.addf %365, %366 : vector<8x128xf32>
    %368 = vector.extract_strided_slice %335 {offsets = [0, 0], sizes = [8, 128], strides = [1, 1]} : vector<8x384xf32> to vector<8x128xf32>
    %369 = vector.extract_strided_slice %339 {offsets = [0, 0], sizes = [8, 128], strides = [1, 1]} : vector<8x384xf32> to vector<8x128xf32>
    %370 = arith.addf %368, %369 : vector<8x128xf32>
    %371 = arith.negf %370 : vector<8x128xf32>
    %372 = math.exp %371 : vector<8x128xf32>
    %cst_98 = arith.constant 1.000000e+00 : f32
    %373 = vector.broadcast %cst_98 : f32 to vector<8x128xf32>
    %374 = arith.addf %373, %372 : vector<8x128xf32>
    %375 = arith.divf %373, %374 : vector<8x128xf32>
    %376 = vector.extract_strided_slice %335 {offsets = [0, 128], sizes = [8, 128], strides = [1, 1]} : vector<8x384xf32> to vector<8x128xf32>
    %377 = vector.extract_strided_slice %339 {offsets = [0, 128], sizes = [8, 128], strides = [1, 1]} : vector<8x384xf32> to vector<8x128xf32>
    %378 = arith.addf %376, %377 : vector<8x128xf32>
    %379 = arith.negf %378 : vector<8x128xf32>
    %380 = math.exp %379 : vector<8x128xf32>
    %cst_99 = arith.constant 1.000000e+00 : f32
    %381 = vector.broadcast %cst_99 : f32 to vector<8x128xf32>
    %382 = arith.addf %381, %380 : vector<8x128xf32>
    %383 = arith.divf %381, %382 : vector<8x128xf32>
    %384 = vector.extract_strided_slice %335 {offsets = [0, 256], sizes = [8, 128], strides = [1, 1]} : vector<8x384xf32> to vector<8x128xf32>
    %385 = vector.extract_strided_slice %339 {offsets = [0, 256], sizes = [8, 128], strides = [1, 1]} : vector<8x384xf32> to vector<8x128xf32>
    %386 = vector.broadcast %13 : vector<1x128xf32> to vector<8x128xf32>
    %387 = arith.addf %385, %386 : vector<8x128xf32>
    %388 = arith.mulf %375, %387 : vector<8x128xf32>
    %389 = arith.addf %384, %388 : vector<8x128xf32>
    %390 = math.tanh %389 : vector<8x128xf32>
    %cst_100 = arith.constant 1.000000e+00 : f32
    %391 = vector.broadcast %cst_100 : f32 to vector<8x128xf32>
    %392 = arith.subf %391, %383 : vector<8x128xf32>
    %393 = arith.mulf %392, %390 : vector<8x128xf32>
    %394 = arith.mulf %383, %331 : vector<8x128xf32>
    %395 = arith.addf %393, %394 : vector<8x128xf32>
    %c40_101 = arith.constant 40 : index
    %c0_102 = arith.constant 0 : index
    %396 = vector.load %arg32[%c40_101, %c0_102] : memref<64x256xf32, #tpu.memory_space<vmem>>, vector<8x128xf32>
    tpu.vector_store %arg32[%c40_101, %c0_102], %367 {strides = array<i32>} : memref<64x256xf32, #tpu.memory_space<vmem>>, vector<8x128xf32>,
    %c16_103 = arith.constant 16 : index
    %c128_104 = arith.constant 128 : index
    %397 = vector.load %arg32[%c16_103, %c128_104] : memref<64x256xf32, #tpu.memory_space<vmem>>, vector<8x128xf32>
    tpu.vector_store %arg32[%c16_103, %c128_104], %395 {strides = array<i32>} : memref<64x256xf32, #tpu.memory_space<vmem>>, vector<8x128xf32>,
    %c48_105 = arith.constant 48 : index
    %c0_106 = arith.constant 0 : index
    %398 = vector.load %arg31[%c48_105, %c0_106] : memref<64x768xf32, #tpu.memory_space<vmem>>, vector<8x384xf32>
    %c8_107 = arith.constant 8 : index
    %c384_108 = arith.constant 384 : index
    %399 = vector.load %arg31[%c8_107, %c384_108] : memref<64x768xf32, #tpu.memory_space<vmem>>, vector<8x384xf32>
    %400 = vector.extract_strided_slice %11 {offsets = [0, 0], sizes = [128, 384], strides = [1, 1]} : vector<128x768xf32> to vector<128x384xf32>
    %cst_109 = arith.constant dense<0.000000e+00> : vector<8x384xf32>
    %401 = tpu.matmul %367, %400, %cst_109 {dimension_numbers = #tpu.dot_dimension_numbers<[1], [0], [0], [1], [0, 0, 1, 1], [], []>} : vector<8x128xf32>, vector<128x384xf32>, vector<8x384xf32> -> vector<8x384xf32>
    %402 = vector.extract_strided_slice %11 {offsets = [0, 384], sizes = [128, 384], strides = [1, 1]} : vector<128x768xf32> to vector<128x384xf32>
    %cst_110 = arith.constant dense<0.000000e+00> : vector<8x384xf32>
    %403 = tpu.matmul %395, %402, %cst_110 {dimension_numbers = #tpu.dot_dimension_numbers<[1], [0], [0], [1], [0, 0, 1, 1], [], []>} : vector<8x128xf32>, vector<128x384xf32>, vector<8x384xf32> -> vector<8x384xf32>
    %404 = vector.extract_strided_slice %398 {offsets = [0, 0], sizes = [8, 128], strides = [1, 1]} : vector<8x384xf32> to vector<8x128xf32>
    %405 = vector.extract_strided_slice %401 {offsets = [0, 0], sizes = [8, 128], strides = [1, 1]} : vector<8x384xf32> to vector<8x128xf32>
    %406 = arith.addf %404, %405 : vector<8x128xf32>
    %407 = arith.negf %406 : vector<8x128xf32>
    %408 = math.exp %407 : vector<8x128xf32>
    %cst_111 = arith.constant 1.000000e+00 : f32
    %409 = vector.broadcast %cst_111 : f32 to vector<8x128xf32>
    %410 = arith.addf %409, %408 : vector<8x128xf32>
    %411 = arith.divf %409, %410 : vector<8x128xf32>
    %412 = vector.extract_strided_slice %398 {offsets = [0, 128], sizes = [8, 128], strides = [1, 1]} : vector<8x384xf32> to vector<8x128xf32>
    %413 = vector.extract_strided_slice %401 {offsets = [0, 128], sizes = [8, 128], strides = [1, 1]} : vector<8x384xf32> to vector<8x128xf32>
    %414 = arith.addf %412, %413 : vector<8x128xf32>
    %415 = arith.negf %414 : vector<8x128xf32>
    %416 = math.exp %415 : vector<8x128xf32>
    %cst_112 = arith.constant 1.000000e+00 : f32
    %417 = vector.broadcast %cst_112 : f32 to vector<8x128xf32>
    %418 = arith.addf %417, %416 : vector<8x128xf32>
    %419 = arith.divf %417, %418 : vector<8x128xf32>
    %420 = vector.extract_strided_slice %398 {offsets = [0, 256], sizes = [8, 128], strides = [1, 1]} : vector<8x384xf32> to vector<8x128xf32>
    %421 = vector.extract_strided_slice %401 {offsets = [0, 256], sizes = [8, 128], strides = [1, 1]} : vector<8x384xf32> to vector<8x128xf32>
    %422 = vector.broadcast %12 : vector<1x128xf32> to vector<8x128xf32>
    %423 = arith.addf %421, %422 : vector<8x128xf32>
    %424 = arith.mulf %411, %423 : vector<8x128xf32>
    %425 = arith.addf %420, %424 : vector<8x128xf32>
    %426 = math.tanh %425 : vector<8x128xf32>
    %cst_113 = arith.constant 1.000000e+00 : f32
    %427 = vector.broadcast %cst_113 : f32 to vector<8x128xf32>
    %428 = arith.subf %427, %419 : vector<8x128xf32>
    %429 = arith.mulf %428, %426 : vector<8x128xf32>
    %430 = arith.mulf %419, %367 : vector<8x128xf32>
    %431 = arith.addf %429, %430 : vector<8x128xf32>
    %432 = vector.extract_strided_slice %399 {offsets = [0, 0], sizes = [8, 128], strides = [1, 1]} : vector<8x384xf32> to vector<8x128xf32>
    %433 = vector.extract_strided_slice %403 {offsets = [0, 0], sizes = [8, 128], strides = [1, 1]} : vector<8x384xf32> to vector<8x128xf32>
    %434 = arith.addf %432, %433 : vector<8x128xf32>
    %435 = arith.negf %434 : vector<8x128xf32>
    %436 = math.exp %435 : vector<8x128xf32>
    %cst_114 = arith.constant 1.000000e+00 : f32
    %437 = vector.broadcast %cst_114 : f32 to vector<8x128xf32>
    %438 = arith.addf %437, %436 : vector<8x128xf32>
    %439 = arith.divf %437, %438 : vector<8x128xf32>
    %440 = vector.extract_strided_slice %399 {offsets = [0, 128], sizes = [8, 128], strides = [1, 1]} : vector<8x384xf32> to vector<8x128xf32>
    %441 = vector.extract_strided_slice %403 {offsets = [0, 128], sizes = [8, 128], strides = [1, 1]} : vector<8x384xf32> to vector<8x128xf32>
    %442 = arith.addf %440, %441 : vector<8x128xf32>
    %443 = arith.negf %442 : vector<8x128xf32>
    %444 = math.exp %443 : vector<8x128xf32>
    %cst_115 = arith.constant 1.000000e+00 : f32
    %445 = vector.broadcast %cst_115 : f32 to vector<8x128xf32>
    %446 = arith.addf %445, %444 : vector<8x128xf32>
    %447 = arith.divf %445, %446 : vector<8x128xf32>
    %448 = vector.extract_strided_slice %399 {offsets = [0, 256], sizes = [8, 128], strides = [1, 1]} : vector<8x384xf32> to vector<8x128xf32>
    %449 = vector.extract_strided_slice %403 {offsets = [0, 256], sizes = [8, 128], strides = [1, 1]} : vector<8x384xf32> to vector<8x128xf32>
    %450 = vector.broadcast %13 : vector<1x128xf32> to vector<8x128xf32>
    %451 = arith.addf %449, %450 : vector<8x128xf32>
    %452 = arith.mulf %439, %451 : vector<8x128xf32>
    %453 = arith.addf %448, %452 : vector<8x128xf32>
    %454 = math.tanh %453 : vector<8x128xf32>
    %cst_116 = arith.constant 1.000000e+00 : f32
    %455 = vector.broadcast %cst_116 : f32 to vector<8x128xf32>
    %456 = arith.subf %455, %447 : vector<8x128xf32>
    %457 = arith.mulf %456, %454 : vector<8x128xf32>
    %458 = arith.mulf %447, %395 : vector<8x128xf32>
    %459 = arith.addf %457, %458 : vector<8x128xf32>
    %c48_117 = arith.constant 48 : index
    %c0_118 = arith.constant 0 : index
    %460 = vector.load %arg32[%c48_117, %c0_118] : memref<64x256xf32, #tpu.memory_space<vmem>>, vector<8x128xf32>
    tpu.vector_store %arg32[%c48_117, %c0_118], %431 {strides = array<i32>} : memref<64x256xf32, #tpu.memory_space<vmem>>, vector<8x128xf32>,
    %c8_119 = arith.constant 8 : index
    %c128_120 = arith.constant 128 : index
    %461 = vector.load %arg32[%c8_119, %c128_120] : memref<64x256xf32, #tpu.memory_space<vmem>>, vector<8x128xf32>
    tpu.vector_store %arg32[%c8_119, %c128_120], %459 {strides = array<i32>} : memref<64x256xf32, #tpu.memory_space<vmem>>, vector<8x128xf32>,
    %c56_121 = arith.constant 56 : index
    %c0_122 = arith.constant 0 : index
    %462 = vector.load %arg31[%c56_121, %c0_122] : memref<64x768xf32, #tpu.memory_space<vmem>>, vector<8x384xf32>
    %c0_123 = arith.constant 0 : index
    %c384_124 = arith.constant 384 : index
    %463 = vector.load %arg31[%c0_123, %c384_124] : memref<64x768xf32, #tpu.memory_space<vmem>>, vector<8x384xf32>
    %464 = vector.extract_strided_slice %11 {offsets = [0, 0], sizes = [128, 384], strides = [1, 1]} : vector<128x768xf32> to vector<128x384xf32>
    %cst_125 = arith.constant dense<0.000000e+00> : vector<8x384xf32>
    %465 = tpu.matmul %431, %464, %cst_125 {dimension_numbers = #tpu.dot_dimension_numbers<[1], [0], [0], [1], [0, 0, 1, 1], [], []>} : vector<8x128xf32>, vector<128x384xf32>, vector<8x384xf32> -> vector<8x384xf32>
    %466 = vector.extract_strided_slice %11 {offsets = [0, 384], sizes = [128, 384], strides = [1, 1]} : vector<128x768xf32> to vector<128x384xf32>
    %cst_126 = arith.constant dense<0.000000e+00> : vector<8x384xf32>
    %467 = tpu.matmul %459, %466, %cst_126 {dimension_numbers = #tpu.dot_dimension_numbers<[1], [0], [0], [1], [0, 0, 1, 1], [], []>} : vector<8x128xf32>, vector<128x384xf32>, vector<8x384xf32> -> vector<8x384xf32>
    %468 = vector.extract_strided_slice %462 {offsets = [0, 0], sizes = [8, 128], strides = [1, 1]} : vector<8x384xf32> to vector<8x128xf32>
    %469 = vector.extract_strided_slice %465 {offsets = [0, 0], sizes = [8, 128], strides = [1, 1]} : vector<8x384xf32> to vector<8x128xf32>
    %470 = arith.addf %468, %469 : vector<8x128xf32>
    %471 = arith.negf %470 : vector<8x128xf32>
    %472 = math.exp %471 : vector<8x128xf32>
    %cst_127 = arith.constant 1.000000e+00 : f32
    %473 = vector.broadcast %cst_127 : f32 to vector<8x128xf32>
    %474 = arith.addf %473, %472 : vector<8x128xf32>
    %475 = arith.divf %473, %474 : vector<8x128xf32>
    %476 = vector.extract_strided_slice %462 {offsets = [0, 128], sizes = [8, 128], strides = [1, 1]} : vector<8x384xf32> to vector<8x128xf32>
    %477 = vector.extract_strided_slice %465 {offsets = [0, 128], sizes = [8, 128], strides = [1, 1]} : vector<8x384xf32> to vector<8x128xf32>
    %478 = arith.addf %476, %477 : vector<8x128xf32>
    %479 = arith.negf %478 : vector<8x128xf32>
    %480 = math.exp %479 : vector<8x128xf32>
    %cst_128 = arith.constant 1.000000e+00 : f32
    %481 = vector.broadcast %cst_128 : f32 to vector<8x128xf32>
    %482 = arith.addf %481, %480 : vector<8x128xf32>
    %483 = arith.divf %481, %482 : vector<8x128xf32>
    %484 = vector.extract_strided_slice %462 {offsets = [0, 256], sizes = [8, 128], strides = [1, 1]} : vector<8x384xf32> to vector<8x128xf32>
    %485 = vector.extract_strided_slice %465 {offsets = [0, 256], sizes = [8, 128], strides = [1, 1]} : vector<8x384xf32> to vector<8x128xf32>
    %486 = vector.broadcast %12 : vector<1x128xf32> to vector<8x128xf32>
    %487 = arith.addf %485, %486 : vector<8x128xf32>
    %488 = arith.mulf %475, %487 : vector<8x128xf32>
    %489 = arith.addf %484, %488 : vector<8x128xf32>
    %490 = math.tanh %489 : vector<8x128xf32>
    %cst_129 = arith.constant 1.000000e+00 : f32
    %491 = vector.broadcast %cst_129 : f32 to vector<8x128xf32>
    %492 = arith.subf %491, %483 : vector<8x128xf32>
    %493 = arith.mulf %492, %490 : vector<8x128xf32>
    %494 = arith.mulf %483, %431 : vector<8x128xf32>
    %495 = arith.addf %493, %494 : vector<8x128xf32>
    %496 = vector.extract_strided_slice %463 {offsets = [0, 0], sizes = [8, 128], strides = [1, 1]} : vector<8x384xf32> to vector<8x128xf32>
    %497 = vector.extract_strided_slice %467 {offsets = [0, 0], sizes = [8, 128], strides = [1, 1]} : vector<8x384xf32> to vector<8x128xf32>
    %498 = arith.addf %496, %497 : vector<8x128xf32>
    %499 = arith.negf %498 : vector<8x128xf32>
    %500 = math.exp %499 : vector<8x128xf32>
    %cst_130 = arith.constant 1.000000e+00 : f32
    %501 = vector.broadcast %cst_130 : f32 to vector<8x128xf32>
    %502 = arith.addf %501, %500 : vector<8x128xf32>
    %503 = arith.divf %501, %502 : vector<8x128xf32>
    %504 = vector.extract_strided_slice %463 {offsets = [0, 128], sizes = [8, 128], strides = [1, 1]} : vector<8x384xf32> to vector<8x128xf32>
    %505 = vector.extract_strided_slice %467 {offsets = [0, 128], sizes = [8, 128], strides = [1, 1]} : vector<8x384xf32> to vector<8x128xf32>
    %506 = arith.addf %504, %505 : vector<8x128xf32>
    %507 = arith.negf %506 : vector<8x128xf32>
    %508 = math.exp %507 : vector<8x128xf32>
    %cst_131 = arith.constant 1.000000e+00 : f32
    %509 = vector.broadcast %cst_131 : f32 to vector<8x128xf32>
    %510 = arith.addf %509, %508 : vector<8x128xf32>
    %511 = arith.divf %509, %510 : vector<8x128xf32>
    %512 = vector.extract_strided_slice %463 {offsets = [0, 256], sizes = [8, 128], strides = [1, 1]} : vector<8x384xf32> to vector<8x128xf32>
    %513 = vector.extract_strided_slice %467 {offsets = [0, 256], sizes = [8, 128], strides = [1, 1]} : vector<8x384xf32> to vector<8x128xf32>
    %514 = vector.broadcast %13 : vector<1x128xf32> to vector<8x128xf32>
    %515 = arith.addf %513, %514 : vector<8x128xf32>
    %516 = arith.mulf %503, %515 : vector<8x128xf32>
    %517 = arith.addf %512, %516 : vector<8x128xf32>
    %518 = math.tanh %517 : vector<8x128xf32>
    %cst_132 = arith.constant 1.000000e+00 : f32
    %519 = vector.broadcast %cst_132 : f32 to vector<8x128xf32>
    %520 = arith.subf %519, %511 : vector<8x128xf32>
    %521 = arith.mulf %520, %518 : vector<8x128xf32>
    %522 = arith.mulf %511, %459 : vector<8x128xf32>
    %523 = arith.addf %521, %522 : vector<8x128xf32>
    %c56_133 = arith.constant 56 : index
    %c0_134 = arith.constant 0 : index
    %524 = vector.load %arg32[%c56_133, %c0_134] : memref<64x256xf32, #tpu.memory_space<vmem>>, vector<8x128xf32>
    tpu.vector_store %arg32[%c56_133, %c0_134], %495 {strides = array<i32>} : memref<64x256xf32, #tpu.memory_space<vmem>>, vector<8x128xf32>,
    %c0_135 = arith.constant 0 : index
    %c128_136 = arith.constant 128 : index
    %525 = vector.load %arg32[%c0_135, %c128_136] : memref<64x256xf32, #tpu.memory_space<vmem>>, vector<8x128xf32>
    tpu.vector_store %arg32[%c0_135, %c128_136], %523 {strides = array<i32>} : memref<64x256xf32, #tpu.memory_space<vmem>>, vector<8x128xf32>,
    %c0_137 = arith.constant 0 : index
    %c0_138 = arith.constant 0 : index
    %526 = vector.load %arg32[%c0_137, %c0_138] : memref<64x256xf32, #tpu.memory_space<vmem>>, vector<64x256xf32>
    %527 = arith.truncf %526 : vector<64x256xf32> to vector<64x256xbf16>
    %c2 = arith.constant 2 : index
    %c0_139 = arith.constant 0 : index
    %c0_140 = arith.constant 0 : index
    %528 = vector.load %arg1[%c2, %c0_139, %c0_140] : memref<6x8x128xf32, #tpu.memory_space<vmem>>, vector<1x8x128xf32>
    %529 = vector.shape_cast %528 : vector<1x8x128xf32> to vector<8x128xf32>
    %c3 = arith.constant 3 : index
    %c0_141 = arith.constant 0 : index
    %c0_142 = arith.constant 0 : index
    %530 = vector.load %arg1[%c3, %c0_141, %c0_142] : memref<6x8x128xf32, #tpu.memory_space<vmem>>, vector<1x8x128xf32>
    %531 = vector.shape_cast %530 : vector<1x8x128xf32> to vector<8x128xf32>
    %c0_143 = arith.constant 0 : index
    %c0_144 = arith.constant 0 : index
    %532 = vector.load %arg8[%c0_143, %c0_144] : memref<256x768xbf16, #tpu.memory_space<vmem>>, vector<256x768xbf16>
    %cst_145 = arith.constant dense<0.000000e+00> : vector<64x768xf32>
    %533 = tpu.matmul %527, %532, %cst_145 {dimension_numbers = #tpu.dot_dimension_numbers<[1], [0], [0], [1], [0, 0, 1, 1], [], []>} : vector<64x256xbf16>, vector<256x768xbf16>, vector<64x768xf32> -> vector<64x768xf32>
    %c0_146 = arith.constant 0 : index
    %c0_147 = arith.constant 0 : index
    %534 = vector.load %arg10[%c0_146, %c0_147] : memref<1x768xf32, #tpu.memory_space<vmem>>, vector<1x768xf32>
    %535 = vector.broadcast %534 : vector<1x768xf32> to vector<64x768xf32>
    %536 = arith.addf %533, %535 : vector<64x768xf32>
    %c0_148 = arith.constant 0 : index
    %c0_149 = arith.constant 0 : index
    %537 = vector.load %arg31[%c0_148, %c0_149] : memref<64x768xf32, #tpu.memory_space<vmem>>, vector<64x768xf32>
    tpu.vector_store %arg31[%c0_148, %c0_149], %536 {strides = array<i32>} : memref<64x768xf32, #tpu.memory_space<vmem>>, vector<64x768xf32>,
    %c0_150 = arith.constant 0 : index
    %c0_151 = arith.constant 0 : index
    %538 = vector.load %arg9[%c0_150, %c0_151] : memref<128x768xf32, #tpu.memory_space<vmem>>, vector<128x768xf32>
    %c0_152 = arith.constant 0 : index
    %c0_153 = arith.constant 0 : index
    %539 = vector.load %arg11[%c0_152, %c0_153] : memref<1x256xf32, #tpu.memory_space<vmem>>, vector<1x128xf32>
    %c0_154 = arith.constant 0 : index
    %c128_155 = arith.constant 128 : index
    %540 = vector.load %arg11[%c0_154, %c128_155] : memref<1x256xf32, #tpu.memory_space<vmem>>, vector<1x128xf32>
    %c0_156 = arith.constant 0 : index
    %c0_157 = arith.constant 0 : index
    %541 = vector.load %arg31[%c0_156, %c0_157] : memref<64x768xf32, #tpu.memory_space<vmem>>, vector<8x384xf32>
    %c56_158 = arith.constant 56 : index
    %c384_159 = arith.constant 384 : index
    %542 = vector.load %arg31[%c56_158, %c384_159] : memref<64x768xf32, #tpu.memory_space<vmem>>, vector<8x384xf32>
    %543 = vector.extract_strided_slice %538 {offsets = [0, 0], sizes = [128, 384], strides = [1, 1]} : vector<128x768xf32> to vector<128x384xf32>
    %cst_160 = arith.constant dense<0.000000e+00> : vector<8x384xf32>
    %544 = tpu.matmul %529, %543, %cst_160 {dimension_numbers = #tpu.dot_dimension_numbers<[1], [0], [0], [1], [0, 0, 1, 1], [], []>} : vector<8x128xf32>, vector<128x384xf32>, vector<8x384xf32> -> vector<8x384xf32>
    %545 = vector.extract_strided_slice %538 {offsets = [0, 384], sizes = [128, 384], strides = [1, 1]} : vector<128x768xf32> to vector<128x384xf32>
    %cst_161 = arith.constant dense<0.000000e+00> : vector<8x384xf32>
    %546 = tpu.matmul %531, %545, %cst_161 {dimension_numbers = #tpu.dot_dimension_numbers<[1], [0], [0], [1], [0, 0, 1, 1], [], []>} : vector<8x128xf32>, vector<128x384xf32>, vector<8x384xf32> -> vector<8x384xf32>
    %547 = vector.extract_strided_slice %541 {offsets = [0, 0], sizes = [8, 128], strides = [1, 1]} : vector<8x384xf32> to vector<8x128xf32>
    %548 = vector.extract_strided_slice %544 {offsets = [0, 0], sizes = [8, 128], strides = [1, 1]} : vector<8x384xf32> to vector<8x128xf32>
    %549 = arith.addf %547, %548 : vector<8x128xf32>
    %550 = arith.negf %549 : vector<8x128xf32>
    %551 = math.exp %550 : vector<8x128xf32>
    %cst_162 = arith.constant 1.000000e+00 : f32
    %552 = vector.broadcast %cst_162 : f32 to vector<8x128xf32>
    %553 = arith.addf %552, %551 : vector<8x128xf32>
    %554 = arith.divf %552, %553 : vector<8x128xf32>
    %555 = vector.extract_strided_slice %541 {offsets = [0, 128], sizes = [8, 128], strides = [1, 1]} : vector<8x384xf32> to vector<8x128xf32>
    %556 = vector.extract_strided_slice %544 {offsets = [0, 128], sizes = [8, 128], strides = [1, 1]} : vector<8x384xf32> to vector<8x128xf32>
    %557 = arith.addf %555, %556 : vector<8x128xf32>
    %558 = arith.negf %557 : vector<8x128xf32>
    %559 = math.exp %558 : vector<8x128xf32>
    %cst_163 = arith.constant 1.000000e+00 : f32
    %560 = vector.broadcast %cst_163 : f32 to vector<8x128xf32>
    %561 = arith.addf %560, %559 : vector<8x128xf32>
    %562 = arith.divf %560, %561 : vector<8x128xf32>
    %563 = vector.extract_strided_slice %541 {offsets = [0, 256], sizes = [8, 128], strides = [1, 1]} : vector<8x384xf32> to vector<8x128xf32>
    %564 = vector.extract_strided_slice %544 {offsets = [0, 256], sizes = [8, 128], strides = [1, 1]} : vector<8x384xf32> to vector<8x128xf32>
    %565 = vector.broadcast %539 : vector<1x128xf32> to vector<8x128xf32>
    %566 = arith.addf %564, %565 : vector<8x128xf32>
    %567 = arith.mulf %554, %566 : vector<8x128xf32>
    %568 = arith.addf %563, %567 : vector<8x128xf32>
    %569 = math.tanh %568 : vector<8x128xf32>
    %cst_164 = arith.constant 1.000000e+00 : f32
    %570 = vector.broadcast %cst_164 : f32 to vector<8x128xf32>
    %571 = arith.subf %570, %562 : vector<8x128xf32>
    %572 = arith.mulf %571, %569 : vector<8x128xf32>
    %573 = arith.mulf %562, %529 : vector<8x128xf32>
    %574 = arith.addf %572, %573 : vector<8x128xf32>
    %575 = vector.extract_strided_slice %542 {offsets = [0, 0], sizes = [8, 128], strides = [1, 1]} : vector<8x384xf32> to vector<8x128xf32>
    %576 = vector.extract_strided_slice %546 {offsets = [0, 0], sizes = [8, 128], strides = [1, 1]} : vector<8x384xf32> to vector<8x128xf32>
    %577 = arith.addf %575, %576 : vector<8x128xf32>
    %578 = arith.negf %577 : vector<8x128xf32>
    %579 = math.exp %578 : vector<8x128xf32>
    %cst_165 = arith.constant 1.000000e+00 : f32
    %580 = vector.broadcast %cst_165 : f32 to vector<8x128xf32>
    %581 = arith.addf %580, %579 : vector<8x128xf32>
    %582 = arith.divf %580, %581 : vector<8x128xf32>
    %583 = vector.extract_strided_slice %542 {offsets = [0, 128], sizes = [8, 128], strides = [1, 1]} : vector<8x384xf32> to vector<8x128xf32>
    %584 = vector.extract_strided_slice %546 {offsets = [0, 128], sizes = [8, 128], strides = [1, 1]} : vector<8x384xf32> to vector<8x128xf32>
    %585 = arith.addf %583, %584 : vector<8x128xf32>
    %586 = arith.negf %585 : vector<8x128xf32>
    %587 = math.exp %586 : vector<8x128xf32>
    %cst_166 = arith.constant 1.000000e+00 : f32
    %588 = vector.broadcast %cst_166 : f32 to vector<8x128xf32>
    %589 = arith.addf %588, %587 : vector<8x128xf32>
    %590 = arith.divf %588, %589 : vector<8x128xf32>
    %591 = vector.extract_strided_slice %542 {offsets = [0, 256], sizes = [8, 128], strides = [1, 1]} : vector<8x384xf32> to vector<8x128xf32>
    %592 = vector.extract_strided_slice %546 {offsets = [0, 256], sizes = [8, 128], strides = [1, 1]} : vector<8x384xf32> to vector<8x128xf32>
    %593 = vector.broadcast %540 : vector<1x128xf32> to vector<8x128xf32>
    %594 = arith.addf %592, %593 : vector<8x128xf32>
    %595 = arith.mulf %582, %594 : vector<8x128xf32>
    %596 = arith.addf %591, %595 : vector<8x128xf32>
    %597 = math.tanh %596 : vector<8x128xf32>
    %cst_167 = arith.constant 1.000000e+00 : f32
    %598 = vector.broadcast %cst_167 : f32 to vector<8x128xf32>
    %599 = arith.subf %598, %590 : vector<8x128xf32>
    %600 = arith.mulf %599, %597 : vector<8x128xf32>
    %601 = arith.mulf %590, %531 : vector<8x128xf32>
    %602 = arith.addf %600, %601 : vector<8x128xf32>
    %c0_168 = arith.constant 0 : index
    %c0_169 = arith.constant 0 : index
    %603 = vector.load %arg33[%c0_168, %c0_169] : memref<64x256xf32, #tpu.memory_space<vmem>>, vector<8x128xf32>
    tpu.vector_store %arg33[%c0_168, %c0_169], %574 {strides = array<i32>} : memref<64x256xf32, #tpu.memory_space<vmem>>, vector<8x128xf32>,
    %c56_170 = arith.constant 56 : index
    %c128_171 = arith.constant 128 : index
    %604 = vector.load %arg33[%c56_170, %c128_171] : memref<64x256xf32, #tpu.memory_space<vmem>>, vector<8x128xf32>
    tpu.vector_store %arg33[%c56_170, %c128_171], %602 {strides = array<i32>} : memref<64x256xf32, #tpu.memory_space<vmem>>, vector<8x128xf32>,
    %c8_172 = arith.constant 8 : index
    %c0_173 = arith.constant 0 : index
    %605 = vector.load %arg31[%c8_172, %c0_173] : memref<64x768xf32, #tpu.memory_space<vmem>>, vector<8x384xf32>
    %c48_174 = arith.constant 48 : index
    %c384_175 = arith.constant 384 : index
    %606 = vector.load %arg31[%c48_174, %c384_175] : memref<64x768xf32, #tpu.memory_space<vmem>>, vector<8x384xf32>
    %607 = vector.extract_strided_slice %538 {offsets = [0, 0], sizes = [128, 384], strides = [1, 1]} : vector<128x768xf32> to vector<128x384xf32>
    %cst_176 = arith.constant dense<0.000000e+00> : vector<8x384xf32>
    %608 = tpu.matmul %574, %607, %cst_176 {dimension_numbers = #tpu.dot_dimension_numbers<[1], [0], [0], [1], [0, 0, 1, 1], [], []>} : vector<8x128xf32>, vector<128x384xf32>, vector<8x384xf32> -> vector<8x384xf32>
    %609 = vector.extract_strided_slice %538 {offsets = [0, 384], sizes = [128, 384], strides = [1, 1]} : vector<128x768xf32> to vector<128x384xf32>
    %cst_177 = arith.constant dense<0.000000e+00> : vector<8x384xf32>
    %610 = tpu.matmul %602, %609, %cst_177 {dimension_numbers = #tpu.dot_dimension_numbers<[1], [0], [0], [1], [0, 0, 1, 1], [], []>} : vector<8x128xf32>, vector<128x384xf32>, vector<8x384xf32> -> vector<8x384xf32>
    %611 = vector.extract_strided_slice %605 {offsets = [0, 0], sizes = [8, 128], strides = [1, 1]} : vector<8x384xf32> to vector<8x128xf32>
    %612 = vector.extract_strided_slice %608 {offsets = [0, 0], sizes = [8, 128], strides = [1, 1]} : vector<8x384xf32> to vector<8x128xf32>
    %613 = arith.addf %611, %612 : vector<8x128xf32>
    %614 = arith.negf %613 : vector<8x128xf32>
    %615 = math.exp %614 : vector<8x128xf32>
    %cst_178 = arith.constant 1.000000e+00 : f32
    %616 = vector.broadcast %cst_178 : f32 to vector<8x128xf32>
    %617 = arith.addf %616, %615 : vector<8x128xf32>
    %618 = arith.divf %616, %617 : vector<8x128xf32>
    %619 = vector.extract_strided_slice %605 {offsets = [0, 128], sizes = [8, 128], strides = [1, 1]} : vector<8x384xf32> to vector<8x128xf32>
    %620 = vector.extract_strided_slice %608 {offsets = [0, 128], sizes = [8, 128], strides = [1, 1]} : vector<8x384xf32> to vector<8x128xf32>
    %621 = arith.addf %619, %620 : vector<8x128xf32>
    %622 = arith.negf %621 : vector<8x128xf32>
    %623 = math.exp %622 : vector<8x128xf32>
    %cst_179 = arith.constant 1.000000e+00 : f32
    %624 = vector.broadcast %cst_179 : f32 to vector<8x128xf32>
    %625 = arith.addf %624, %623 : vector<8x128xf32>
    %626 = arith.divf %624, %625 : vector<8x128xf32>
    %627 = vector.extract_strided_slice %605 {offsets = [0, 256], sizes = [8, 128], strides = [1, 1]} : vector<8x384xf32> to vector<8x128xf32>
    %628 = vector.extract_strided_slice %608 {offsets = [0, 256], sizes = [8, 128], strides = [1, 1]} : vector<8x384xf32> to vector<8x128xf32>
    %629 = vector.broadcast %539 : vector<1x128xf32> to vector<8x128xf32>
    %630 = arith.addf %628, %629 : vector<8x128xf32>
    %631 = arith.mulf %618, %630 : vector<8x128xf32>
    %632 = arith.addf %627, %631 : vector<8x128xf32>
    %633 = math.tanh %632 : vector<8x128xf32>
    %cst_180 = arith.constant 1.000000e+00 : f32
    %634 = vector.broadcast %cst_180 : f32 to vector<8x128xf32>
    %635 = arith.subf %634, %626 : vector<8x128xf32>
    %636 = arith.mulf %635, %633 : vector<8x128xf32>
    %637 = arith.mulf %626, %574 : vector<8x128xf32>
    %638 = arith.addf %636, %637 : vector<8x128xf32>
    %639 = vector.extract_strided_slice %606 {offsets = [0, 0], sizes = [8, 128], strides = [1, 1]} : vector<8x384xf32> to vector<8x128xf32>
    %640 = vector.extract_strided_slice %610 {offsets = [0, 0], sizes = [8, 128], strides = [1, 1]} : vector<8x384xf32> to vector<8x128xf32>
    %641 = arith.addf %639, %640 : vector<8x128xf32>
    %642 = arith.negf %641 : vector<8x128xf32>
    %643 = math.exp %642 : vector<8x128xf32>
    %cst_181 = arith.constant 1.000000e+00 : f32
    %644 = vector.broadcast %cst_181 : f32 to vector<8x128xf32>
    %645 = arith.addf %644, %643 : vector<8x128xf32>
    %646 = arith.divf %644, %645 : vector<8x128xf32>
    %647 = vector.extract_strided_slice %606 {offsets = [0, 128], sizes = [8, 128], strides = [1, 1]} : vector<8x384xf32> to vector<8x128xf32>
    %648 = vector.extract_strided_slice %610 {offsets = [0, 128], sizes = [8, 128], strides = [1, 1]} : vector<8x384xf32> to vector<8x128xf32>
    %649 = arith.addf %647, %648 : vector<8x128xf32>
    %650 = arith.negf %649 : vector<8x128xf32>
    %651 = math.exp %650 : vector<8x128xf32>
    %cst_182 = arith.constant 1.000000e+00 : f32
    %652 = vector.broadcast %cst_182 : f32 to vector<8x128xf32>
    %653 = arith.addf %652, %651 : vector<8x128xf32>
    %654 = arith.divf %652, %653 : vector<8x128xf32>
    %655 = vector.extract_strided_slice %606 {offsets = [0, 256], sizes = [8, 128], strides = [1, 1]} : vector<8x384xf32> to vector<8x128xf32>
    %656 = vector.extract_strided_slice %610 {offsets = [0, 256], sizes = [8, 128], strides = [1, 1]} : vector<8x384xf32> to vector<8x128xf32>
    %657 = vector.broadcast %540 : vector<1x128xf32> to vector<8x128xf32>
    %658 = arith.addf %656, %657 : vector<8x128xf32>
    %659 = arith.mulf %646, %658 : vector<8x128xf32>
    %660 = arith.addf %655, %659 : vector<8x128xf32>
    %661 = math.tanh %660 : vector<8x128xf32>
    %cst_183 = arith.constant 1.000000e+00 : f32
    %662 = vector.broadcast %cst_183 : f32 to vector<8x128xf32>
    %663 = arith.subf %662, %654 : vector<8x128xf32>
    %664 = arith.mulf %663, %661 : vector<8x128xf32>
    %665 = arith.mulf %654, %602 : vector<8x128xf32>
    %666 = arith.addf %664, %665 : vector<8x128xf32>
    %c8_184 = arith.constant 8 : index
    %c0_185 = arith.constant 0 : index
    %667 = vector.load %arg33[%c8_184, %c0_185] : memref<64x256xf32, #tpu.memory_space<vmem>>, vector<8x128xf32>
    tpu.vector_store %arg33[%c8_184, %c0_185], %638 {strides = array<i32>} : memref<64x256xf32, #tpu.memory_space<vmem>>, vector<8x128xf32>,
    %c48_186 = arith.constant 48 : index
    %c128_187 = arith.constant 128 : index
    %668 = vector.load %arg33[%c48_186, %c128_187] : memref<64x256xf32, #tpu.memory_space<vmem>>, vector<8x128xf32>
    tpu.vector_store %arg33[%c48_186, %c128_187], %666 {strides = array<i32>} : memref<64x256xf32, #tpu.memory_space<vmem>>, vector<8x128xf32>,
    %c16_188 = arith.constant 16 : index
    %c0_189 = arith.constant 0 : index
    %669 = vector.load %arg31[%c16_188, %c0_189] : memref<64x768xf32, #tpu.memory_space<vmem>>, vector<8x384xf32>
    %c40_190 = arith.constant 40 : index
    %c384_191 = arith.constant 384 : index
    %670 = vector.load %arg31[%c40_190, %c384_191] : memref<64x768xf32, #tpu.memory_space<vmem>>, vector<8x384xf32>
    %671 = vector.extract_strided_slice %538 {offsets = [0, 0], sizes = [128, 384], strides = [1, 1]} : vector<128x768xf32> to vector<128x384xf32>
    %cst_192 = arith.constant dense<0.000000e+00> : vector<8x384xf32>
    %672 = tpu.matmul %638, %671, %cst_192 {dimension_numbers = #tpu.dot_dimension_numbers<[1], [0], [0], [1], [0, 0, 1, 1], [], []>} : vector<8x128xf32>, vector<128x384xf32>, vector<8x384xf32> -> vector<8x384xf32>
    %673 = vector.extract_strided_slice %538 {offsets = [0, 384], sizes = [128, 384], strides = [1, 1]} : vector<128x768xf32> to vector<128x384xf32>
    %cst_193 = arith.constant dense<0.000000e+00> : vector<8x384xf32>
    %674 = tpu.matmul %666, %673, %cst_193 {dimension_numbers = #tpu.dot_dimension_numbers<[1], [0], [0], [1], [0, 0, 1, 1], [], []>} : vector<8x128xf32>, vector<128x384xf32>, vector<8x384xf32> -> vector<8x384xf32>
    %675 = vector.extract_strided_slice %669 {offsets = [0, 0], sizes = [8, 128], strides = [1, 1]} : vector<8x384xf32> to vector<8x128xf32>
    %676 = vector.extract_strided_slice %672 {offsets = [0, 0], sizes = [8, 128], strides = [1, 1]} : vector<8x384xf32> to vector<8x128xf32>
    %677 = arith.addf %675, %676 : vector<8x128xf32>
    %678 = arith.negf %677 : vector<8x128xf32>
    %679 = math.exp %678 : vector<8x128xf32>
    %cst_194 = arith.constant 1.000000e+00 : f32
    %680 = vector.broadcast %cst_194 : f32 to vector<8x128xf32>
    %681 = arith.addf %680, %679 : vector<8x128xf32>
    %682 = arith.divf %680, %681 : vector<8x128xf32>
    %683 = vector.extract_strided_slice %669 {offsets = [0, 128], sizes = [8, 128], strides = [1, 1]} : vector<8x384xf32> to vector<8x128xf32>
    %684 = vector.extract_strided_slice %672 {offsets = [0, 128], sizes = [8, 128], strides = [1, 1]} : vector<8x384xf32> to vector<8x128xf32>
    %685 = arith.addf %683, %684 : vector<8x128xf32>
    %686 = arith.negf %685 : vector<8x128xf32>
    %687 = math.exp %686 : vector<8x128xf32>
    %cst_195 = arith.constant 1.000000e+00 : f32
    %688 = vector.broadcast %cst_195 : f32 to vector<8x128xf32>
    %689 = arith.addf %688, %687 : vector<8x128xf32>
    %690 = arith.divf %688, %689 : vector<8x128xf32>
    %691 = vector.extract_strided_slice %669 {offsets = [0, 256], sizes = [8, 128], strides = [1, 1]} : vector<8x384xf32> to vector<8x128xf32>
    %692 = vector.extract_strided_slice %672 {offsets = [0, 256], sizes = [8, 128], strides = [1, 1]} : vector<8x384xf32> to vector<8x128xf32>
    %693 = vector.broadcast %539 : vector<1x128xf32> to vector<8x128xf32>
    %694 = arith.addf %692, %693 : vector<8x128xf32>
    %695 = arith.mulf %682, %694 : vector<8x128xf32>
    %696 = arith.addf %691, %695 : vector<8x128xf32>
    %697 = math.tanh %696 : vector<8x128xf32>
    %cst_196 = arith.constant 1.000000e+00 : f32
    %698 = vector.broadcast %cst_196 : f32 to vector<8x128xf32>
    %699 = arith.subf %698, %690 : vector<8x128xf32>
    %700 = arith.mulf %699, %697 : vector<8x128xf32>
    %701 = arith.mulf %690, %638 : vector<8x128xf32>
    %702 = arith.addf %700, %701 : vector<8x128xf32>
    %703 = vector.extract_strided_slice %670 {offsets = [0, 0], sizes = [8, 128], strides = [1, 1]} : vector<8x384xf32> to vector<8x128xf32>
    %704 = vector.extract_strided_slice %674 {offsets = [0, 0], sizes = [8, 128], strides = [1, 1]} : vector<8x384xf32> to vector<8x128xf32>
    %705 = arith.addf %703, %704 : vector<8x128xf32>
    %706 = arith.negf %705 : vector<8x128xf32>
    %707 = math.exp %706 : vector<8x128xf32>
    %cst_197 = arith.constant 1.000000e+00 : f32
    %708 = vector.broadcast %cst_197 : f32 to vector<8x128xf32>
    %709 = arith.addf %708, %707 : vector<8x128xf32>
    %710 = arith.divf %708, %709 : vector<8x128xf32>
    %711 = vector.extract_strided_slice %670 {offsets = [0, 128], sizes = [8, 128], strides = [1, 1]} : vector<8x384xf32> to vector<8x128xf32>
    %712 = vector.extract_strided_slice %674 {offsets = [0, 128], sizes = [8, 128], strides = [1, 1]} : vector<8x384xf32> to vector<8x128xf32>
    %713 = arith.addf %711, %712 : vector<8x128xf32>
    %714 = arith.negf %713 : vector<8x128xf32>
    %715 = math.exp %714 : vector<8x128xf32>
    %cst_198 = arith.constant 1.000000e+00 : f32
    %716 = vector.broadcast %cst_198 : f32 to vector<8x128xf32>
    %717 = arith.addf %716, %715 : vector<8x128xf32>
    %718 = arith.divf %716, %717 : vector<8x128xf32>
    %719 = vector.extract_strided_slice %670 {offsets = [0, 256], sizes = [8, 128], strides = [1, 1]} : vector<8x384xf32> to vector<8x128xf32>
    %720 = vector.extract_strided_slice %674 {offsets = [0, 256], sizes = [8, 128], strides = [1, 1]} : vector<8x384xf32> to vector<8x128xf32>
    %721 = vector.broadcast %540 : vector<1x128xf32> to vector<8x128xf32>
    %722 = arith.addf %720, %721 : vector<8x128xf32>
    %723 = arith.mulf %710, %722 : vector<8x128xf32>
    %724 = arith.addf %719, %723 : vector<8x128xf32>
    %725 = math.tanh %724 : vector<8x128xf32>
    %cst_199 = arith.constant 1.000000e+00 : f32
    %726 = vector.broadcast %cst_199 : f32 to vector<8x128xf32>
    %727 = arith.subf %726, %718 : vector<8x128xf32>
    %728 = arith.mulf %727, %725 : vector<8x128xf32>
    %729 = arith.mulf %718, %666 : vector<8x128xf32>
    %730 = arith.addf %728, %729 : vector<8x128xf32>
    %c16_200 = arith.constant 16 : index
    %c0_201 = arith.constant 0 : index
    %731 = vector.load %arg33[%c16_200, %c0_201] : memref<64x256xf32, #tpu.memory_space<vmem>>, vector<8x128xf32>
    tpu.vector_store %arg33[%c16_200, %c0_201], %702 {strides = array<i32>} : memref<64x256xf32, #tpu.memory_space<vmem>>, vector<8x128xf32>,
    %c40_202 = arith.constant 40 : index
    %c128_203 = arith.constant 128 : index
    %732 = vector.load %arg33[%c40_202, %c128_203] : memref<64x256xf32, #tpu.memory_space<vmem>>, vector<8x128xf32>
    tpu.vector_store %arg33[%c40_202, %c128_203], %730 {strides = array<i32>} : memref<64x256xf32, #tpu.memory_space<vmem>>, vector<8x128xf32>,
    %c24_204 = arith.constant 24 : index
    %c0_205 = arith.constant 0 : index
    %733 = vector.load %arg31[%c24_204, %c0_205] : memref<64x768xf32, #tpu.memory_space<vmem>>, vector<8x384xf32>
    %c32_206 = arith.constant 32 : index
    %c384_207 = arith.constant 384 : index
    %734 = vector.load %arg31[%c32_206, %c384_207] : memref<64x768xf32, #tpu.memory_space<vmem>>, vector<8x384xf32>
    %735 = vector.extract_strided_slice %538 {offsets = [0, 0], sizes = [128, 384], strides = [1, 1]} : vector<128x768xf32> to vector<128x384xf32>
    %cst_208 = arith.constant dense<0.000000e+00> : vector<8x384xf32>
    %736 = tpu.matmul %702, %735, %cst_208 {dimension_numbers = #tpu.dot_dimension_numbers<[1], [0], [0], [1], [0, 0, 1, 1], [], []>} : vector<8x128xf32>, vector<128x384xf32>, vector<8x384xf32> -> vector<8x384xf32>
    %737 = vector.extract_strided_slice %538 {offsets = [0, 384], sizes = [128, 384], strides = [1, 1]} : vector<128x768xf32> to vector<128x384xf32>
    %cst_209 = arith.constant dense<0.000000e+00> : vector<8x384xf32>
    %738 = tpu.matmul %730, %737, %cst_209 {dimension_numbers = #tpu.dot_dimension_numbers<[1], [0], [0], [1], [0, 0, 1, 1], [], []>} : vector<8x128xf32>, vector<128x384xf32>, vector<8x384xf32> -> vector<8x384xf32>
    %739 = vector.extract_strided_slice %733 {offsets = [0, 0], sizes = [8, 128], strides = [1, 1]} : vector<8x384xf32> to vector<8x128xf32>
    %740 = vector.extract_strided_slice %736 {offsets = [0, 0], sizes = [8, 128], strides = [1, 1]} : vector<8x384xf32> to vector<8x128xf32>
    %741 = arith.addf %739, %740 : vector<8x128xf32>
    %742 = arith.negf %741 : vector<8x128xf32>
    %743 = math.exp %742 : vector<8x128xf32>
    %cst_210 = arith.constant 1.000000e+00 : f32
    %744 = vector.broadcast %cst_210 : f32 to vector<8x128xf32>
    %745 = arith.addf %744, %743 : vector<8x128xf32>
    %746 = arith.divf %744, %745 : vector<8x128xf32>
    %747 = vector.extract_strided_slice %733 {offsets = [0, 128], sizes = [8, 128], strides = [1, 1]} : vector<8x384xf32> to vector<8x128xf32>
    %748 = vector.extract_strided_slice %736 {offsets = [0, 128], sizes = [8, 128], strides = [1, 1]} : vector<8x384xf32> to vector<8x128xf32>
    %749 = arith.addf %747, %748 : vector<8x128xf32>
    %750 = arith.negf %749 : vector<8x128xf32>
    %751 = math.exp %750 : vector<8x128xf32>
    %cst_211 = arith.constant 1.000000e+00 : f32
    %752 = vector.broadcast %cst_211 : f32 to vector<8x128xf32>
    %753 = arith.addf %752, %751 : vector<8x128xf32>
    %754 = arith.divf %752, %753 : vector<8x128xf32>
    %755 = vector.extract_strided_slice %733 {offsets = [0, 256], sizes = [8, 128], strides = [1, 1]} : vector<8x384xf32> to vector<8x128xf32>
    %756 = vector.extract_strided_slice %736 {offsets = [0, 256], sizes = [8, 128], strides = [1, 1]} : vector<8x384xf32> to vector<8x128xf32>
    %757 = vector.broadcast %539 : vector<1x128xf32> to vector<8x128xf32>
    %758 = arith.addf %756, %757 : vector<8x128xf32>
    %759 = arith.mulf %746, %758 : vector<8x128xf32>
    %760 = arith.addf %755, %759 : vector<8x128xf32>
    %761 = math.tanh %760 : vector<8x128xf32>
    %cst_212 = arith.constant 1.000000e+00 : f32
    %762 = vector.broadcast %cst_212 : f32 to vector<8x128xf32>
    %763 = arith.subf %762, %754 : vector<8x128xf32>
    %764 = arith.mulf %763, %761 : vector<8x128xf32>
    %765 = arith.mulf %754, %702 : vector<8x128xf32>
    %766 = arith.addf %764, %765 : vector<8x128xf32>
    %767 = vector.extract_strided_slice %734 {offsets = [0, 0], sizes = [8, 128], strides = [1, 1]} : vector<8x384xf32> to vector<8x128xf32>
    %768 = vector.extract_strided_slice %738 {offsets = [0, 0], sizes = [8, 128], strides = [1, 1]} : vector<8x384xf32> to vector<8x128xf32>
    %769 = arith.addf %767, %768 : vector<8x128xf32>
    %770 = arith.negf %769 : vector<8x128xf32>
    %771 = math.exp %770 : vector<8x128xf32>
    %cst_213 = arith.constant 1.000000e+00 : f32
    %772 = vector.broadcast %cst_213 : f32 to vector<8x128xf32>
    %773 = arith.addf %772, %771 : vector<8x128xf32>
    %774 = arith.divf %772, %773 : vector<8x128xf32>
    %775 = vector.extract_strided_slice %734 {offsets = [0, 128], sizes = [8, 128], strides = [1, 1]} : vector<8x384xf32> to vector<8x128xf32>
    %776 = vector.extract_strided_slice %738 {offsets = [0, 128], sizes = [8, 128], strides = [1, 1]} : vector<8x384xf32> to vector<8x128xf32>
    %777 = arith.addf %775, %776 : vector<8x128xf32>
    %778 = arith.negf %777 : vector<8x128xf32>
    %779 = math.exp %778 : vector<8x128xf32>
    %cst_214 = arith.constant 1.000000e+00 : f32
    %780 = vector.broadcast %cst_214 : f32 to vector<8x128xf32>
    %781 = arith.addf %780, %779 : vector<8x128xf32>
    %782 = arith.divf %780, %781 : vector<8x128xf32>
    %783 = vector.extract_strided_slice %734 {offsets = [0, 256], sizes = [8, 128], strides = [1, 1]} : vector<8x384xf32> to vector<8x128xf32>
    %784 = vector.extract_strided_slice %738 {offsets = [0, 256], sizes = [8, 128], strides = [1, 1]} : vector<8x384xf32> to vector<8x128xf32>
    %785 = vector.broadcast %540 : vector<1x128xf32> to vector<8x128xf32>
    %786 = arith.addf %784, %785 : vector<8x128xf32>
    %787 = arith.mulf %774, %786 : vector<8x128xf32>
    %788 = arith.addf %783, %787 : vector<8x128xf32>
    %789 = math.tanh %788 : vector<8x128xf32>
    %cst_215 = arith.constant 1.000000e+00 : f32
    %790 = vector.broadcast %cst_215 : f32 to vector<8x128xf32>
    %791 = arith.subf %790, %782 : vector<8x128xf32>
    %792 = arith.mulf %791, %789 : vector<8x128xf32>
    %793 = arith.mulf %782, %730 : vector<8x128xf32>
    %794 = arith.addf %792, %793 : vector<8x128xf32>
    %c24_216 = arith.constant 24 : index
    %c0_217 = arith.constant 0 : index
    %795 = vector.load %arg33[%c24_216, %c0_217] : memref<64x256xf32, #tpu.memory_space<vmem>>, vector<8x128xf32>
    tpu.vector_store %arg33[%c24_216, %c0_217], %766 {strides = array<i32>} : memref<64x256xf32, #tpu.memory_space<vmem>>, vector<8x128xf32>,
    %c32_218 = arith.constant 32 : index
    %c128_219 = arith.constant 128 : index
    %796 = vector.load %arg33[%c32_218, %c128_219] : memref<64x256xf32, #tpu.memory_space<vmem>>, vector<8x128xf32>
    tpu.vector_store %arg33[%c32_218, %c128_219], %794 {strides = array<i32>} : memref<64x256xf32, #tpu.memory_space<vmem>>, vector<8x128xf32>,
    %c32_220 = arith.constant 32 : index
    %c0_221 = arith.constant 0 : index
    %797 = vector.load %arg31[%c32_220, %c0_221] : memref<64x768xf32, #tpu.memory_space<vmem>>, vector<8x384xf32>
    %c24_222 = arith.constant 24 : index
    %c384_223 = arith.constant 384 : index
    %798 = vector.load %arg31[%c24_222, %c384_223] : memref<64x768xf32, #tpu.memory_space<vmem>>, vector<8x384xf32>
    %799 = vector.extract_strided_slice %538 {offsets = [0, 0], sizes = [128, 384], strides = [1, 1]} : vector<128x768xf32> to vector<128x384xf32>
    %cst_224 = arith.constant dense<0.000000e+00> : vector<8x384xf32>
    %800 = tpu.matmul %766, %799, %cst_224 {dimension_numbers = #tpu.dot_dimension_numbers<[1], [0], [0], [1], [0, 0, 1, 1], [], []>} : vector<8x128xf32>, vector<128x384xf32>, vector<8x384xf32> -> vector<8x384xf32>
    %801 = vector.extract_strided_slice %538 {offsets = [0, 384], sizes = [128, 384], strides = [1, 1]} : vector<128x768xf32> to vector<128x384xf32>
    %cst_225 = arith.constant dense<0.000000e+00> : vector<8x384xf32>
    %802 = tpu.matmul %794, %801, %cst_225 {dimension_numbers = #tpu.dot_dimension_numbers<[1], [0], [0], [1], [0, 0, 1, 1], [], []>} : vector<8x128xf32>, vector<128x384xf32>, vector<8x384xf32> -> vector<8x384xf32>
    %803 = vector.extract_strided_slice %797 {offsets = [0, 0], sizes = [8, 128], strides = [1, 1]} : vector<8x384xf32> to vector<8x128xf32>
    %804 = vector.extract_strided_slice %800 {offsets = [0, 0], sizes = [8, 128], strides = [1, 1]} : vector<8x384xf32> to vector<8x128xf32>
    %805 = arith.addf %803, %804 : vector<8x128xf32>
    %806 = arith.negf %805 : vector<8x128xf32>
    %807 = math.exp %806 : vector<8x128xf32>
    %cst_226 = arith.constant 1.000000e+00 : f32
    %808 = vector.broadcast %cst_226 : f32 to vector<8x128xf32>
    %809 = arith.addf %808, %807 : vector<8x128xf32>
    %810 = arith.divf %808, %809 : vector<8x128xf32>
    %811 = vector.extract_strided_slice %797 {offsets = [0, 128], sizes = [8, 128], strides = [1, 1]} : vector<8x384xf32> to vector<8x128xf32>
    %812 = vector.extract_strided_slice %800 {offsets = [0, 128], sizes = [8, 128], strides = [1, 1]} : vector<8x384xf32> to vector<8x128xf32>
    %813 = arith.addf %811, %812 : vector<8x128xf32>
    %814 = arith.negf %813 : vector<8x128xf32>
    %815 = math.exp %814 : vector<8x128xf32>
    %cst_227 = arith.constant 1.000000e+00 : f32
    %816 = vector.broadcast %cst_227 : f32 to vector<8x128xf32>
    %817 = arith.addf %816, %815 : vector<8x128xf32>
    %818 = arith.divf %816, %817 : vector<8x128xf32>
    %819 = vector.extract_strided_slice %797 {offsets = [0, 256], sizes = [8, 128], strides = [1, 1]} : vector<8x384xf32> to vector<8x128xf32>
    %820 = vector.extract_strided_slice %800 {offsets = [0, 256], sizes = [8, 128], strides = [1, 1]} : vector<8x384xf32> to vector<8x128xf32>
    %821 = vector.broadcast %539 : vector<1x128xf32> to vector<8x128xf32>
    %822 = arith.addf %820, %821 : vector<8x128xf32>
    %823 = arith.mulf %810, %822 : vector<8x128xf32>
    %824 = arith.addf %819, %823 : vector<8x128xf32>
    %825 = math.tanh %824 : vector<8x128xf32>
    %cst_228 = arith.constant 1.000000e+00 : f32
    %826 = vector.broadcast %cst_228 : f32 to vector<8x128xf32>
    %827 = arith.subf %826, %818 : vector<8x128xf32>
    %828 = arith.mulf %827, %825 : vector<8x128xf32>
    %829 = arith.mulf %818, %766 : vector<8x128xf32>
    %830 = arith.addf %828, %829 : vector<8x128xf32>
    %831 = vector.extract_strided_slice %798 {offsets = [0, 0], sizes = [8, 128], strides = [1, 1]} : vector<8x384xf32> to vector<8x128xf32>
    %832 = vector.extract_strided_slice %802 {offsets = [0, 0], sizes = [8, 128], strides = [1, 1]} : vector<8x384xf32> to vector<8x128xf32>
    %833 = arith.addf %831, %832 : vector<8x128xf32>
    %834 = arith.negf %833 : vector<8x128xf32>
    %835 = math.exp %834 : vector<8x128xf32>
    %cst_229 = arith.constant 1.000000e+00 : f32
    %836 = vector.broadcast %cst_229 : f32 to vector<8x128xf32>
    %837 = arith.addf %836, %835 : vector<8x128xf32>
    %838 = arith.divf %836, %837 : vector<8x128xf32>
    %839 = vector.extract_strided_slice %798 {offsets = [0, 128], sizes = [8, 128], strides = [1, 1]} : vector<8x384xf32> to vector<8x128xf32>
    %840 = vector.extract_strided_slice %802 {offsets = [0, 128], sizes = [8, 128], strides = [1, 1]} : vector<8x384xf32> to vector<8x128xf32>
    %841 = arith.addf %839, %840 : vector<8x128xf32>
    %842 = arith.negf %841 : vector<8x128xf32>
    %843 = math.exp %842 : vector<8x128xf32>
    %cst_230 = arith.constant 1.000000e+00 : f32
    %844 = vector.broadcast %cst_230 : f32 to vector<8x128xf32>
    %845 = arith.addf %844, %843 : vector<8x128xf32>
    %846 = arith.divf %844, %845 : vector<8x128xf32>
    %847 = vector.extract_strided_slice %798 {offsets = [0, 256], sizes = [8, 128], strides = [1, 1]} : vector<8x384xf32> to vector<8x128xf32>
    %848 = vector.extract_strided_slice %802 {offsets = [0, 256], sizes = [8, 128], strides = [1, 1]} : vector<8x384xf32> to vector<8x128xf32>
    %849 = vector.broadcast %540 : vector<1x128xf32> to vector<8x128xf32>
    %850 = arith.addf %848, %849 : vector<8x128xf32>
    %851 = arith.mulf %838, %850 : vector<8x128xf32>
    %852 = arith.addf %847, %851 : vector<8x128xf32>
    %853 = math.tanh %852 : vector<8x128xf32>
    %cst_231 = arith.constant 1.000000e+00 : f32
    %854 = vector.broadcast %cst_231 : f32 to vector<8x128xf32>
    %855 = arith.subf %854, %846 : vector<8x128xf32>
    %856 = arith.mulf %855, %853 : vector<8x128xf32>
    %857 = arith.mulf %846, %794 : vector<8x128xf32>
    %858 = arith.addf %856, %857 : vector<8x128xf32>
    %c32_232 = arith.constant 32 : index
    %c0_233 = arith.constant 0 : index
    %859 = vector.load %arg33[%c32_232, %c0_233] : memref<64x256xf32, #tpu.memory_space<vmem>>, vector<8x128xf32>
    tpu.vector_store %arg33[%c32_232, %c0_233], %830 {strides = array<i32>} : memref<64x256xf32, #tpu.memory_space<vmem>>, vector<8x128xf32>,
    %c24_234 = arith.constant 24 : index
    %c128_235 = arith.constant 128 : index
    %860 = vector.load %arg33[%c24_234, %c128_235] : memref<64x256xf32, #tpu.memory_space<vmem>>, vector<8x128xf32>
    tpu.vector_store %arg33[%c24_234, %c128_235], %858 {strides = array<i32>} : memref<64x256xf32, #tpu.memory_space<vmem>>, vector<8x128xf32>,
    %c40_236 = arith.constant 40 : index
    %c0_237 = arith.constant 0 : index
    %861 = vector.load %arg31[%c40_236, %c0_237] : memref<64x768xf32, #tpu.memory_space<vmem>>, vector<8x384xf32>
    %c16_238 = arith.constant 16 : index
    %c384_239 = arith.constant 384 : index
    %862 = vector.load %arg31[%c16_238, %c384_239] : memref<64x768xf32, #tpu.memory_space<vmem>>, vector<8x384xf32>
    %863 = vector.extract_strided_slice %538 {offsets = [0, 0], sizes = [128, 384], strides = [1, 1]} : vector<128x768xf32> to vector<128x384xf32>
    %cst_240 = arith.constant dense<0.000000e+00> : vector<8x384xf32>
    %864 = tpu.matmul %830, %863, %cst_240 {dimension_numbers = #tpu.dot_dimension_numbers<[1], [0], [0], [1], [0, 0, 1, 1], [], []>} : vector<8x128xf32>, vector<128x384xf32>, vector<8x384xf32> -> vector<8x384xf32>
    %865 = vector.extract_strided_slice %538 {offsets = [0, 384], sizes = [128, 384], strides = [1, 1]} : vector<128x768xf32> to vector<128x384xf32>
    %cst_241 = arith.constant dense<0.000000e+00> : vector<8x384xf32>
    %866 = tpu.matmul %858, %865, %cst_241 {dimension_numbers = #tpu.dot_dimension_numbers<[1], [0], [0], [1], [0, 0, 1, 1], [], []>} : vector<8x128xf32>, vector<128x384xf32>, vector<8x384xf32> -> vector<8x384xf32>
    %867 = vector.extract_strided_slice %861 {offsets = [0, 0], sizes = [8, 128], strides = [1, 1]} : vector<8x384xf32> to vector<8x128xf32>
    %868 = vector.extract_strided_slice %864 {offsets = [0, 0], sizes = [8, 128], strides = [1, 1]} : vector<8x384xf32> to vector<8x128xf32>
    %869 = arith.addf %867, %868 : vector<8x128xf32>
    %870 = arith.negf %869 : vector<8x128xf32>
    %871 = math.exp %870 : vector<8x128xf32>
    %cst_242 = arith.constant 1.000000e+00 : f32
    %872 = vector.broadcast %cst_242 : f32 to vector<8x128xf32>
    %873 = arith.addf %872, %871 : vector<8x128xf32>
    %874 = arith.divf %872, %873 : vector<8x128xf32>
    %875 = vector.extract_strided_slice %861 {offsets = [0, 128], sizes = [8, 128], strides = [1, 1]} : vector<8x384xf32> to vector<8x128xf32>
    %876 = vector.extract_strided_slice %864 {offsets = [0, 128], sizes = [8, 128], strides = [1, 1]} : vector<8x384xf32> to vector<8x128xf32>
    %877 = arith.addf %875, %876 : vector<8x128xf32>
    %878 = arith.negf %877 : vector<8x128xf32>
    %879 = math.exp %878 : vector<8x128xf32>
    %cst_243 = arith.constant 1.000000e+00 : f32
    %880 = vector.broadcast %cst_243 : f32 to vector<8x128xf32>
    %881 = arith.addf %880, %879 : vector<8x128xf32>
    %882 = arith.divf %880, %881 : vector<8x128xf32>
    %883 = vector.extract_strided_slice %861 {offsets = [0, 256], sizes = [8, 128], strides = [1, 1]} : vector<8x384xf32> to vector<8x128xf32>
    %884 = vector.extract_strided_slice %864 {offsets = [0, 256], sizes = [8, 128], strides = [1, 1]} : vector<8x384xf32> to vector<8x128xf32>
    %885 = vector.broadcast %539 : vector<1x128xf32> to vector<8x128xf32>
    %886 = arith.addf %884, %885 : vector<8x128xf32>
    %887 = arith.mulf %874, %886 : vector<8x128xf32>
    %888 = arith.addf %883, %887 : vector<8x128xf32>
    %889 = math.tanh %888 : vector<8x128xf32>
    %cst_244 = arith.constant 1.000000e+00 : f32
    %890 = vector.broadcast %cst_244 : f32 to vector<8x128xf32>
    %891 = arith.subf %890, %882 : vector<8x128xf32>
    %892 = arith.mulf %891, %889 : vector<8x128xf32>
    %893 = arith.mulf %882, %830 : vector<8x128xf32>
    %894 = arith.addf %892, %893 : vector<8x128xf32>
    %895 = vector.extract_strided_slice %862 {offsets = [0, 0], sizes = [8, 128], strides = [1, 1]} : vector<8x384xf32> to vector<8x128xf32>
    %896 = vector.extract_strided_slice %866 {offsets = [0, 0], sizes = [8, 128], strides = [1, 1]} : vector<8x384xf32> to vector<8x128xf32>
    %897 = arith.addf %895, %896 : vector<8x128xf32>
    %898 = arith.negf %897 : vector<8x128xf32>
    %899 = math.exp %898 : vector<8x128xf32>
    %cst_245 = arith.constant 1.000000e+00 : f32
    %900 = vector.broadcast %cst_245 : f32 to vector<8x128xf32>
    %901 = arith.addf %900, %899 : vector<8x128xf32>
    %902 = arith.divf %900, %901 : vector<8x128xf32>
    %903 = vector.extract_strided_slice %862 {offsets = [0, 128], sizes = [8, 128], strides = [1, 1]} : vector<8x384xf32> to vector<8x128xf32>
    %904 = vector.extract_strided_slice %866 {offsets = [0, 128], sizes = [8, 128], strides = [1, 1]} : vector<8x384xf32> to vector<8x128xf32>
    %905 = arith.addf %903, %904 : vector<8x128xf32>
    %906 = arith.negf %905 : vector<8x128xf32>
    %907 = math.exp %906 : vector<8x128xf32>
    %cst_246 = arith.constant 1.000000e+00 : f32
    %908 = vector.broadcast %cst_246 : f32 to vector<8x128xf32>
    %909 = arith.addf %908, %907 : vector<8x128xf32>
    %910 = arith.divf %908, %909 : vector<8x128xf32>
    %911 = vector.extract_strided_slice %862 {offsets = [0, 256], sizes = [8, 128], strides = [1, 1]} : vector<8x384xf32> to vector<8x128xf32>
    %912 = vector.extract_strided_slice %866 {offsets = [0, 256], sizes = [8, 128], strides = [1, 1]} : vector<8x384xf32> to vector<8x128xf32>
    %913 = vector.broadcast %540 : vector<1x128xf32> to vector<8x128xf32>
    %914 = arith.addf %912, %913 : vector<8x128xf32>
    %915 = arith.mulf %902, %914 : vector<8x128xf32>
    %916 = arith.addf %911, %915 : vector<8x128xf32>
    %917 = math.tanh %916 : vector<8x128xf32>
    %cst_247 = arith.constant 1.000000e+00 : f32
    %918 = vector.broadcast %cst_247 : f32 to vector<8x128xf32>
    %919 = arith.subf %918, %910 : vector<8x128xf32>
    %920 = arith.mulf %919, %917 : vector<8x128xf32>
    %921 = arith.mulf %910, %858 : vector<8x128xf32>
    %922 = arith.addf %920, %921 : vector<8x128xf32>
    %c40_248 = arith.constant 40 : index
    %c0_249 = arith.constant 0 : index
    %923 = vector.load %arg33[%c40_248, %c0_249] : memref<64x256xf32, #tpu.memory_space<vmem>>, vector<8x128xf32>
    tpu.vector_store %arg33[%c40_248, %c0_249], %894 {strides = array<i32>} : memref<64x256xf32, #tpu.memory_space<vmem>>, vector<8x128xf32>,
    %c16_250 = arith.constant 16 : index
    %c128_251 = arith.constant 128 : index
    %924 = vector.load %arg33[%c16_250, %c128_251] : memref<64x256xf32, #tpu.memory_space<vmem>>, vector<8x128xf32>
    tpu.vector_store %arg33[%c16_250, %c128_251], %922 {strides = array<i32>} : memref<64x256xf32, #tpu.memory_space<vmem>>, vector<8x128xf32>,
    %c48_252 = arith.constant 48 : index
    %c0_253 = arith.constant 0 : index
    %925 = vector.load %arg31[%c48_252, %c0_253] : memref<64x768xf32, #tpu.memory_space<vmem>>, vector<8x384xf32>
    %c8_254 = arith.constant 8 : index
    %c384_255 = arith.constant 384 : index
    %926 = vector.load %arg31[%c8_254, %c384_255] : memref<64x768xf32, #tpu.memory_space<vmem>>, vector<8x384xf32>
    %927 = vector.extract_strided_slice %538 {offsets = [0, 0], sizes = [128, 384], strides = [1, 1]} : vector<128x768xf32> to vector<128x384xf32>
    %cst_256 = arith.constant dense<0.000000e+00> : vector<8x384xf32>
    %928 = tpu.matmul %894, %927, %cst_256 {dimension_numbers = #tpu.dot_dimension_numbers<[1], [0], [0], [1], [0, 0, 1, 1], [], []>} : vector<8x128xf32>, vector<128x384xf32>, vector<8x384xf32> -> vector<8x384xf32>
    %929 = vector.extract_strided_slice %538 {offsets = [0, 384], sizes = [128, 384], strides = [1, 1]} : vector<128x768xf32> to vector<128x384xf32>
    %cst_257 = arith.constant dense<0.000000e+00> : vector<8x384xf32>
    %930 = tpu.matmul %922, %929, %cst_257 {dimension_numbers = #tpu.dot_dimension_numbers<[1], [0], [0], [1], [0, 0, 1, 1], [], []>} : vector<8x128xf32>, vector<128x384xf32>, vector<8x384xf32> -> vector<8x384xf32>
    %931 = vector.extract_strided_slice %925 {offsets = [0, 0], sizes = [8, 128], strides = [1, 1]} : vector<8x384xf32> to vector<8x128xf32>
    %932 = vector.extract_strided_slice %928 {offsets = [0, 0], sizes = [8, 128], strides = [1, 1]} : vector<8x384xf32> to vector<8x128xf32>
    %933 = arith.addf %931, %932 : vector<8x128xf32>
    %934 = arith.negf %933 : vector<8x128xf32>
    %935 = math.exp %934 : vector<8x128xf32>
    %cst_258 = arith.constant 1.000000e+00 : f32
    %936 = vector.broadcast %cst_258 : f32 to vector<8x128xf32>
    %937 = arith.addf %936, %935 : vector<8x128xf32>
    %938 = arith.divf %936, %937 : vector<8x128xf32>
    %939 = vector.extract_strided_slice %925 {offsets = [0, 128], sizes = [8, 128], strides = [1, 1]} : vector<8x384xf32> to vector<8x128xf32>
    %940 = vector.extract_strided_slice %928 {offsets = [0, 128], sizes = [8, 128], strides = [1, 1]} : vector<8x384xf32> to vector<8x128xf32>
    %941 = arith.addf %939, %940 : vector<8x128xf32>
    %942 = arith.negf %941 : vector<8x128xf32>
    %943 = math.exp %942 : vector<8x128xf32>
    %cst_259 = arith.constant 1.000000e+00 : f32
    %944 = vector.broadcast %cst_259 : f32 to vector<8x128xf32>
    %945 = arith.addf %944, %943 : vector<8x128xf32>
    %946 = arith.divf %944, %945 : vector<8x128xf32>
    %947 = vector.extract_strided_slice %925 {offsets = [0, 256], sizes = [8, 128], strides = [1, 1]} : vector<8x384xf32> to vector<8x128xf32>
    %948 = vector.extract_strided_slice %928 {offsets = [0, 256], sizes = [8, 128], strides = [1, 1]} : vector<8x384xf32> to vector<8x128xf32>
    %949 = vector.broadcast %539 : vector<1x128xf32> to vector<8x128xf32>
    %950 = arith.addf %948, %949 : vector<8x128xf32>
    %951 = arith.mulf %938, %950 : vector<8x128xf32>
    %952 = arith.addf %947, %951 : vector<8x128xf32>
    %953 = math.tanh %952 : vector<8x128xf32>
    %cst_260 = arith.constant 1.000000e+00 : f32
    %954 = vector.broadcast %cst_260 : f32 to vector<8x128xf32>
    %955 = arith.subf %954, %946 : vector<8x128xf32>
    %956 = arith.mulf %955, %953 : vector<8x128xf32>
    %957 = arith.mulf %946, %894 : vector<8x128xf32>
    %958 = arith.addf %956, %957 : vector<8x128xf32>
    %959 = vector.extract_strided_slice %926 {offsets = [0, 0], sizes = [8, 128], strides = [1, 1]} : vector<8x384xf32> to vector<8x128xf32>
    %960 = vector.extract_strided_slice %930 {offsets = [0, 0], sizes = [8, 128], strides = [1, 1]} : vector<8x384xf32> to vector<8x128xf32>
    %961 = arith.addf %959, %960 : vector<8x128xf32>
    %962 = arith.negf %961 : vector<8x128xf32>
    %963 = math.exp %962 : vector<8x128xf32>
    %cst_261 = arith.constant 1.000000e+00 : f32
    %964 = vector.broadcast %cst_261 : f32 to vector<8x128xf32>
    %965 = arith.addf %964, %963 : vector<8x128xf32>
    %966 = arith.divf %964, %965 : vector<8x128xf32>
    %967 = vector.extract_strided_slice %926 {offsets = [0, 128], sizes = [8, 128], strides = [1, 1]} : vector<8x384xf32> to vector<8x128xf32>
    %968 = vector.extract_strided_slice %930 {offsets = [0, 128], sizes = [8, 128], strides = [1, 1]} : vector<8x384xf32> to vector<8x128xf32>
    %969 = arith.addf %967, %968 : vector<8x128xf32>
    %970 = arith.negf %969 : vector<8x128xf32>
    %971 = math.exp %970 : vector<8x128xf32>
    %cst_262 = arith.constant 1.000000e+00 : f32
    %972 = vector.broadcast %cst_262 : f32 to vector<8x128xf32>
    %973 = arith.addf %972, %971 : vector<8x128xf32>
    %974 = arith.divf %972, %973 : vector<8x128xf32>
    %975 = vector.extract_strided_slice %926 {offsets = [0, 256], sizes = [8, 128], strides = [1, 1]} : vector<8x384xf32> to vector<8x128xf32>
    %976 = vector.extract_strided_slice %930 {offsets = [0, 256], sizes = [8, 128], strides = [1, 1]} : vector<8x384xf32> to vector<8x128xf32>
    %977 = vector.broadcast %540 : vector<1x128xf32> to vector<8x128xf32>
    %978 = arith.addf %976, %977 : vector<8x128xf32>
    %979 = arith.mulf %966, %978 : vector<8x128xf32>
    %980 = arith.addf %975, %979 : vector<8x128xf32>
    %981 = math.tanh %980 : vector<8x128xf32>
    %cst_263 = arith.constant 1.000000e+00 : f32
    %982 = vector.broadcast %cst_263 : f32 to vector<8x128xf32>
    %983 = arith.subf %982, %974 : vector<8x128xf32>
    %984 = arith.mulf %983, %981 : vector<8x128xf32>
    %985 = arith.mulf %974, %922 : vector<8x128xf32>
    %986 = arith.addf %984, %985 : vector<8x128xf32>
    %c48_264 = arith.constant 48 : index
    %c0_265 = arith.constant 0 : index
    %987 = vector.load %arg33[%c48_264, %c0_265] : memref<64x256xf32, #tpu.memory_space<vmem>>, vector<8x128xf32>
    tpu.vector_store %arg33[%c48_264, %c0_265], %958 {strides = array<i32>} : memref<64x256xf32, #tpu.memory_space<vmem>>, vector<8x128xf32>,
    %c8_266 = arith.constant 8 : index
    %c128_267 = arith.constant 128 : index
    %988 = vector.load %arg33[%c8_266, %c128_267] : memref<64x256xf32, #tpu.memory_space<vmem>>, vector<8x128xf32>
    tpu.vector_store %arg33[%c8_266, %c128_267], %986 {strides = array<i32>} : memref<64x256xf32, #tpu.memory_space<vmem>>, vector<8x128xf32>,
    %c56_268 = arith.constant 56 : index
    %c0_269 = arith.constant 0 : index
    %989 = vector.load %arg31[%c56_268, %c0_269] : memref<64x768xf32, #tpu.memory_space<vmem>>, vector<8x384xf32>
    %c0_270 = arith.constant 0 : index
    %c384_271 = arith.constant 384 : index
    %990 = vector.load %arg31[%c0_270, %c384_271] : memref<64x768xf32, #tpu.memory_space<vmem>>, vector<8x384xf32>
    %991 = vector.extract_strided_slice %538 {offsets = [0, 0], sizes = [128, 384], strides = [1, 1]} : vector<128x768xf32> to vector<128x384xf32>
    %cst_272 = arith.constant dense<0.000000e+00> : vector<8x384xf32>
    %992 = tpu.matmul %958, %991, %cst_272 {dimension_numbers = #tpu.dot_dimension_numbers<[1], [0], [0], [1], [0, 0, 1, 1], [], []>} : vector<8x128xf32>, vector<128x384xf32>, vector<8x384xf32> -> vector<8x384xf32>
    %993 = vector.extract_strided_slice %538 {offsets = [0, 384], sizes = [128, 384], strides = [1, 1]} : vector<128x768xf32> to vector<128x384xf32>
    %cst_273 = arith.constant dense<0.000000e+00> : vector<8x384xf32>
    %994 = tpu.matmul %986, %993, %cst_273 {dimension_numbers = #tpu.dot_dimension_numbers<[1], [0], [0], [1], [0, 0, 1, 1], [], []>} : vector<8x128xf32>, vector<128x384xf32>, vector<8x384xf32> -> vector<8x384xf32>
    %995 = vector.extract_strided_slice %989 {offsets = [0, 0], sizes = [8, 128], strides = [1, 1]} : vector<8x384xf32> to vector<8x128xf32>
    %996 = vector.extract_strided_slice %992 {offsets = [0, 0], sizes = [8, 128], strides = [1, 1]} : vector<8x384xf32> to vector<8x128xf32>
    %997 = arith.addf %995, %996 : vector<8x128xf32>
    %998 = arith.negf %997 : vector<8x128xf32>
    %999 = math.exp %998 : vector<8x128xf32>
    %cst_274 = arith.constant 1.000000e+00 : f32
    %1000 = vector.broadcast %cst_274 : f32 to vector<8x128xf32>
    %1001 = arith.addf %1000, %999 : vector<8x128xf32>
    %1002 = arith.divf %1000, %1001 : vector<8x128xf32>
    %1003 = vector.extract_strided_slice %989 {offsets = [0, 128], sizes = [8, 128], strides = [1, 1]} : vector<8x384xf32> to vector<8x128xf32>
    %1004 = vector.extract_strided_slice %992 {offsets = [0, 128], sizes = [8, 128], strides = [1, 1]} : vector<8x384xf32> to vector<8x128xf32>
    %1005 = arith.addf %1003, %1004 : vector<8x128xf32>
    %1006 = arith.negf %1005 : vector<8x128xf32>
    %1007 = math.exp %1006 : vector<8x128xf32>
    %cst_275 = arith.constant 1.000000e+00 : f32
    %1008 = vector.broadcast %cst_275 : f32 to vector<8x128xf32>
    %1009 = arith.addf %1008, %1007 : vector<8x128xf32>
    %1010 = arith.divf %1008, %1009 : vector<8x128xf32>
    %1011 = vector.extract_strided_slice %989 {offsets = [0, 256], sizes = [8, 128], strides = [1, 1]} : vector<8x384xf32> to vector<8x128xf32>
    %1012 = vector.extract_strided_slice %992 {offsets = [0, 256], sizes = [8, 128], strides = [1, 1]} : vector<8x384xf32> to vector<8x128xf32>
    %1013 = vector.broadcast %539 : vector<1x128xf32> to vector<8x128xf32>
    %1014 = arith.addf %1012, %1013 : vector<8x128xf32>
    %1015 = arith.mulf %1002, %1014 : vector<8x128xf32>
    %1016 = arith.addf %1011, %1015 : vector<8x128xf32>
    %1017 = math.tanh %1016 : vector<8x128xf32>
    %cst_276 = arith.constant 1.000000e+00 : f32
    %1018 = vector.broadcast %cst_276 : f32 to vector<8x128xf32>
    %1019 = arith.subf %1018, %1010 : vector<8x128xf32>
    %1020 = arith.mulf %1019, %1017 : vector<8x128xf32>
    %1021 = arith.mulf %1010, %958 : vector<8x128xf32>
    %1022 = arith.addf %1020, %1021 : vector<8x128xf32>
    %1023 = vector.extract_strided_slice %990 {offsets = [0, 0], sizes = [8, 128], strides = [1, 1]} : vector<8x384xf32> to vector<8x128xf32>
    %1024 = vector.extract_strided_slice %994 {offsets = [0, 0], sizes = [8, 128], strides = [1, 1]} : vector<8x384xf32> to vector<8x128xf32>
    %1025 = arith.addf %1023, %1024 : vector<8x128xf32>
    %1026 = arith.negf %1025 : vector<8x128xf32>
    %1027 = math.exp %1026 : vector<8x128xf32>
    %cst_277 = arith.constant 1.000000e+00 : f32
    %1028 = vector.broadcast %cst_277 : f32 to vector<8x128xf32>
    %1029 = arith.addf %1028, %1027 : vector<8x128xf32>
    %1030 = arith.divf %1028, %1029 : vector<8x128xf32>
    %1031 = vector.extract_strided_slice %990 {offsets = [0, 128], sizes = [8, 128], strides = [1, 1]} : vector<8x384xf32> to vector<8x128xf32>
    %1032 = vector.extract_strided_slice %994 {offsets = [0, 128], sizes = [8, 128], strides = [1, 1]} : vector<8x384xf32> to vector<8x128xf32>
    %1033 = arith.addf %1031, %1032 : vector<8x128xf32>
    %1034 = arith.negf %1033 : vector<8x128xf32>
    %1035 = math.exp %1034 : vector<8x128xf32>
    %cst_278 = arith.constant 1.000000e+00 : f32
    %1036 = vector.broadcast %cst_278 : f32 to vector<8x128xf32>
    %1037 = arith.addf %1036, %1035 : vector<8x128xf32>
    %1038 = arith.divf %1036, %1037 : vector<8x128xf32>
    %1039 = vector.extract_strided_slice %990 {offsets = [0, 256], sizes = [8, 128], strides = [1, 1]} : vector<8x384xf32> to vector<8x128xf32>
    %1040 = vector.extract_strided_slice %994 {offsets = [0, 256], sizes = [8, 128], strides = [1, 1]} : vector<8x384xf32> to vector<8x128xf32>
    %1041 = vector.broadcast %540 : vector<1x128xf32> to vector<8x128xf32>
    %1042 = arith.addf %1040, %1041 : vector<8x128xf32>
    %1043 = arith.mulf %1030, %1042 : vector<8x128xf32>
    %1044 = arith.addf %1039, %1043 : vector<8x128xf32>
    %1045 = math.tanh %1044 : vector<8x128xf32>
    %cst_279 = arith.constant 1.000000e+00 : f32
    %1046 = vector.broadcast %cst_279 : f32 to vector<8x128xf32>
    %1047 = arith.subf %1046, %1038 : vector<8x128xf32>
    %1048 = arith.mulf %1047, %1045 : vector<8x128xf32>
    %1049 = arith.mulf %1038, %986 : vector<8x128xf32>
    %1050 = arith.addf %1048, %1049 : vector<8x128xf32>
    %c56_280 = arith.constant 56 : index
    %c0_281 = arith.constant 0 : index
    %1051 = vector.load %arg33[%c56_280, %c0_281] : memref<64x256xf32, #tpu.memory_space<vmem>>, vector<8x128xf32>
    tpu.vector_store %arg33[%c56_280, %c0_281], %1022 {strides = array<i32>} : memref<64x256xf32, #tpu.memory_space<vmem>>, vector<8x128xf32>,
    %c0_282 = arith.constant 0 : index
    %c128_283 = arith.constant 128 : index
    %1052 = vector.load %arg33[%c0_282, %c128_283] : memref<64x256xf32, #tpu.memory_space<vmem>>, vector<8x128xf32>
    tpu.vector_store %arg33[%c0_282, %c128_283], %1050 {strides = array<i32>} : memref<64x256xf32, #tpu.memory_space<vmem>>, vector<8x128xf32>,
    %c0_284 = arith.constant 0 : index
    %c0_285 = arith.constant 0 : index
    %1053 = vector.load %arg33[%c0_284, %c0_285] : memref<64x256xf32, #tpu.memory_space<vmem>>, vector<64x256xf32>
    %1054 = arith.truncf %1053 : vector<64x256xf32> to vector<64x256xbf16>
    %c4 = arith.constant 4 : index
    %c0_286 = arith.constant 0 : index
    %c0_287 = arith.constant 0 : index
    %1055 = vector.load %arg1[%c4, %c0_286, %c0_287] : memref<6x8x128xf32, #tpu.memory_space<vmem>>, vector<1x8x128xf32>
    %1056 = vector.shape_cast %1055 : vector<1x8x128xf32> to vector<8x128xf32>
    %c5 = arith.constant 5 : index
    %c0_288 = arith.constant 0 : index
    %c0_289 = arith.constant 0 : index
    %1057 = vector.load %arg1[%c5, %c0_288, %c0_289] : memref<6x8x128xf32, #tpu.memory_space<vmem>>, vector<1x8x128xf32>
    %1058 = vector.shape_cast %1057 : vector<1x8x128xf32> to vector<8x128xf32>
    %c0_290 = arith.constant 0 : index
    %c0_291 = arith.constant 0 : index
    %1059 = vector.load %arg12[%c0_290, %c0_291] : memref<256x768xbf16, #tpu.memory_space<vmem>>, vector<256x384xbf16>
    %cst_292 = arith.constant dense<0.000000e+00> : vector<64x384xf32>
    %1060 = tpu.matmul %1054, %1059, %cst_292 {dimension_numbers = #tpu.dot_dimension_numbers<[1], [0], [0], [1], [0, 0, 1, 1], [], []>} : vector<64x256xbf16>, vector<256x384xbf16>, vector<64x384xf32> -> vector<64x384xf32>
    %c0_293 = arith.constant 0 : index
    %c0_294 = arith.constant 0 : index
    %1061 = vector.load %arg14[%c0_293, %c0_294] : memref<1x768xf32, #tpu.memory_space<vmem>>, vector<1x384xf32>
    %1062 = vector.broadcast %1061 : vector<1x384xf32> to vector<64x384xf32>
    %1063 = arith.addf %1060, %1062 : vector<64x384xf32>
    %c0_295 = arith.constant 0 : index
    %c0_296 = arith.constant 0 : index
    %1064 = vector.load %arg31[%c0_295, %c0_296] : memref<64x768xf32, #tpu.memory_space<vmem>>, vector<64x384xf32>
    tpu.vector_store %arg31[%c0_295, %c0_296], %1063 {strides = array<i32>} : memref<64x768xf32, #tpu.memory_space<vmem>>, vector<64x384xf32>,
    %c0_297 = arith.constant 0 : index
    %c0_298 = arith.constant 0 : index
    %1065 = vector.load %arg13[%c0_297, %c0_298] : memref<128x768xf32, #tpu.memory_space<vmem>>, vector<128x768xf32>
    %c0_299 = arith.constant 0 : index
    %c0_300 = arith.constant 0 : index
    %1066 = vector.load %arg15[%c0_299, %c0_300] : memref<1x256xf32, #tpu.memory_space<vmem>>, vector<1x128xf32>
    %c0_301 = arith.constant 0 : index
    %c128_302 = arith.constant 128 : index
    %1067 = vector.load %arg15[%c0_301, %c128_302] : memref<1x256xf32, #tpu.memory_space<vmem>>, vector<1x128xf32>
    %c0_303 = arith.constant 0 : index
    %c0_304 = arith.constant 0 : index
    %1068 = vector.load %arg31[%c0_303, %c0_304] : memref<64x768xf32, #tpu.memory_space<vmem>>, vector<8x384xf32>
    %1069 = vector.extract_strided_slice %1065 {offsets = [0, 0], sizes = [128, 384], strides = [1, 1]} : vector<128x768xf32> to vector<128x384xf32>
    %cst_305 = arith.constant dense<0.000000e+00> : vector<8x384xf32>
    %1070 = tpu.matmul %1056, %1069, %cst_305 {dimension_numbers = #tpu.dot_dimension_numbers<[1], [0], [0], [1], [0, 0, 1, 1], [], []>} : vector<8x128xf32>, vector<128x384xf32>, vector<8x384xf32> -> vector<8x384xf32>
    %1071 = vector.extract_strided_slice %1068 {offsets = [0, 0], sizes = [8, 128], strides = [1, 1]} : vector<8x384xf32> to vector<8x128xf32>
    %1072 = vector.extract_strided_slice %1070 {offsets = [0, 0], sizes = [8, 128], strides = [1, 1]} : vector<8x384xf32> to vector<8x128xf32>
    %1073 = arith.addf %1071, %1072 : vector<8x128xf32>
    %1074 = arith.negf %1073 : vector<8x128xf32>
    %1075 = math.exp %1074 : vector<8x128xf32>
    %cst_306 = arith.constant 1.000000e+00 : f32
    %1076 = vector.broadcast %cst_306 : f32 to vector<8x128xf32>
    %1077 = arith.addf %1076, %1075 : vector<8x128xf32>
    %1078 = arith.divf %1076, %1077 : vector<8x128xf32>
    %1079 = vector.extract_strided_slice %1068 {offsets = [0, 128], sizes = [8, 128], strides = [1, 1]} : vector<8x384xf32> to vector<8x128xf32>
    %1080 = vector.extract_strided_slice %1070 {offsets = [0, 128], sizes = [8, 128], strides = [1, 1]} : vector<8x384xf32> to vector<8x128xf32>
    %1081 = arith.addf %1079, %1080 : vector<8x128xf32>
    %1082 = arith.negf %1081 : vector<8x128xf32>
    %1083 = math.exp %1082 : vector<8x128xf32>
    %cst_307 = arith.constant 1.000000e+00 : f32
    %1084 = vector.broadcast %cst_307 : f32 to vector<8x128xf32>
    %1085 = arith.addf %1084, %1083 : vector<8x128xf32>
    %1086 = arith.divf %1084, %1085 : vector<8x128xf32>
    %1087 = vector.extract_strided_slice %1068 {offsets = [0, 256], sizes = [8, 128], strides = [1, 1]} : vector<8x384xf32> to vector<8x128xf32>
    %1088 = vector.extract_strided_slice %1070 {offsets = [0, 256], sizes = [8, 128], strides = [1, 1]} : vector<8x384xf32> to vector<8x128xf32>
    %1089 = vector.broadcast %1066 : vector<1x128xf32> to vector<8x128xf32>
    %1090 = arith.addf %1088, %1089 : vector<8x128xf32>
    %1091 = arith.mulf %1078, %1090 : vector<8x128xf32>
    %1092 = arith.addf %1087, %1091 : vector<8x128xf32>
    %1093 = math.tanh %1092 : vector<8x128xf32>
    %cst_308 = arith.constant 1.000000e+00 : f32
    %1094 = vector.broadcast %cst_308 : f32 to vector<8x128xf32>
    %1095 = arith.subf %1094, %1086 : vector<8x128xf32>
    %1096 = arith.mulf %1095, %1093 : vector<8x128xf32>
    %1097 = arith.mulf %1086, %1056 : vector<8x128xf32>
    %1098 = arith.addf %1096, %1097 : vector<8x128xf32>
    %c8_309 = arith.constant 8 : index
    %c0_310 = arith.constant 0 : index
    %1099 = vector.load %arg31[%c8_309, %c0_310] : memref<64x768xf32, #tpu.memory_space<vmem>>, vector<8x384xf32>
    %1100 = vector.extract_strided_slice %1065 {offsets = [0, 0], sizes = [128, 384], strides = [1, 1]} : vector<128x768xf32> to vector<128x384xf32>
    %cst_311 = arith.constant dense<0.000000e+00> : vector<8x384xf32>
    %1101 = tpu.matmul %1098, %1100, %cst_311 {dimension_numbers = #tpu.dot_dimension_numbers<[1], [0], [0], [1], [0, 0, 1, 1], [], []>} : vector<8x128xf32>, vector<128x384xf32>, vector<8x384xf32> -> vector<8x384xf32>
    %1102 = vector.extract_strided_slice %1099 {offsets = [0, 0], sizes = [8, 128], strides = [1, 1]} : vector<8x384xf32> to vector<8x128xf32>
    %1103 = vector.extract_strided_slice %1101 {offsets = [0, 0], sizes = [8, 128], strides = [1, 1]} : vector<8x384xf32> to vector<8x128xf32>
    %1104 = arith.addf %1102, %1103 : vector<8x128xf32>
    %1105 = arith.negf %1104 : vector<8x128xf32>
    %1106 = math.exp %1105 : vector<8x128xf32>
    %cst_312 = arith.constant 1.000000e+00 : f32
    %1107 = vector.broadcast %cst_312 : f32 to vector<8x128xf32>
    %1108 = arith.addf %1107, %1106 : vector<8x128xf32>
    %1109 = arith.divf %1107, %1108 : vector<8x128xf32>
    %1110 = vector.extract_strided_slice %1099 {offsets = [0, 128], sizes = [8, 128], strides = [1, 1]} : vector<8x384xf32> to vector<8x128xf32>
    %1111 = vector.extract_strided_slice %1101 {offsets = [0, 128], sizes = [8, 128], strides = [1, 1]} : vector<8x384xf32> to vector<8x128xf32>
    %1112 = arith.addf %1110, %1111 : vector<8x128xf32>
    %1113 = arith.negf %1112 : vector<8x128xf32>
    %1114 = math.exp %1113 : vector<8x128xf32>
    %cst_313 = arith.constant 1.000000e+00 : f32
    %1115 = vector.broadcast %cst_313 : f32 to vector<8x128xf32>
    %1116 = arith.addf %1115, %1114 : vector<8x128xf32>
    %1117 = arith.divf %1115, %1116 : vector<8x128xf32>
    %1118 = vector.extract_strided_slice %1099 {offsets = [0, 256], sizes = [8, 128], strides = [1, 1]} : vector<8x384xf32> to vector<8x128xf32>
    %1119 = vector.extract_strided_slice %1101 {offsets = [0, 256], sizes = [8, 128], strides = [1, 1]} : vector<8x384xf32> to vector<8x128xf32>
    %1120 = vector.broadcast %1066 : vector<1x128xf32> to vector<8x128xf32>
    %1121 = arith.addf %1119, %1120 : vector<8x128xf32>
    %1122 = arith.mulf %1109, %1121 : vector<8x128xf32>
    %1123 = arith.addf %1118, %1122 : vector<8x128xf32>
    %1124 = math.tanh %1123 : vector<8x128xf32>
    %cst_314 = arith.constant 1.000000e+00 : f32
    %1125 = vector.broadcast %cst_314 : f32 to vector<8x128xf32>
    %1126 = arith.subf %1125, %1117 : vector<8x128xf32>
    %1127 = arith.mulf %1126, %1124 : vector<8x128xf32>
    %1128 = arith.mulf %1117, %1098 : vector<8x128xf32>
    %1129 = arith.addf %1127, %1128 : vector<8x128xf32>
    %c16_315 = arith.constant 16 : index
    %c0_316 = arith.constant 0 : index
    %1130 = vector.load %arg31[%c16_315, %c0_316] : memref<64x768xf32, #tpu.memory_space<vmem>>, vector<8x384xf32>
    %1131 = vector.extract_strided_slice %1065 {offsets = [0, 0], sizes = [128, 384], strides = [1, 1]} : vector<128x768xf32> to vector<128x384xf32>
    %cst_317 = arith.constant dense<0.000000e+00> : vector<8x384xf32>
    %1132 = tpu.matmul %1129, %1131, %cst_317 {dimension_numbers = #tpu.dot_dimension_numbers<[1], [0], [0], [1], [0, 0, 1, 1], [], []>} : vector<8x128xf32>, vector<128x384xf32>, vector<8x384xf32> -> vector<8x384xf32>
    %1133 = vector.extract_strided_slice %1130 {offsets = [0, 0], sizes = [8, 128], strides = [1, 1]} : vector<8x384xf32> to vector<8x128xf32>
    %1134 = vector.extract_strided_slice %1132 {offsets = [0, 0], sizes = [8, 128], strides = [1, 1]} : vector<8x384xf32> to vector<8x128xf32>
    %1135 = arith.addf %1133, %1134 : vector<8x128xf32>
    %1136 = arith.negf %1135 : vector<8x128xf32>
    %1137 = math.exp %1136 : vector<8x128xf32>
    %cst_318 = arith.constant 1.000000e+00 : f32
    %1138 = vector.broadcast %cst_318 : f32 to vector<8x128xf32>
    %1139 = arith.addf %1138, %1137 : vector<8x128xf32>
    %1140 = arith.divf %1138, %1139 : vector<8x128xf32>
    %1141 = vector.extract_strided_slice %1130 {offsets = [0, 128], sizes = [8, 128], strides = [1, 1]} : vector<8x384xf32> to vector<8x128xf32>
    %1142 = vector.extract_strided_slice %1132 {offsets = [0, 128], sizes = [8, 128], strides = [1, 1]} : vector<8x384xf32> to vector<8x128xf32>
    %1143 = arith.addf %1141, %1142 : vector<8x128xf32>
    %1144 = arith.negf %1143 : vector<8x128xf32>
    %1145 = math.exp %1144 : vector<8x128xf32>
    %cst_319 = arith.constant 1.000000e+00 : f32
    %1146 = vector.broadcast %cst_319 : f32 to vector<8x128xf32>
    %1147 = arith.addf %1146, %1145 : vector<8x128xf32>
    %1148 = arith.divf %1146, %1147 : vector<8x128xf32>
    %1149 = vector.extract_strided_slice %1130 {offsets = [0, 256], sizes = [8, 128], strides = [1, 1]} : vector<8x384xf32> to vector<8x128xf32>
    %1150 = vector.extract_strided_slice %1132 {offsets = [0, 256], sizes = [8, 128], strides = [1, 1]} : vector<8x384xf32> to vector<8x128xf32>
    %1151 = vector.broadcast %1066 : vector<1x128xf32> to vector<8x128xf32>
    %1152 = arith.addf %1150, %1151 : vector<8x128xf32>
    %1153 = arith.mulf %1140, %1152 : vector<8x128xf32>
    %1154 = arith.addf %1149, %1153 : vector<8x128xf32>
    %1155 = math.tanh %1154 : vector<8x128xf32>
    %cst_320 = arith.constant 1.000000e+00 : f32
    %1156 = vector.broadcast %cst_320 : f32 to vector<8x128xf32>
    %1157 = arith.subf %1156, %1148 : vector<8x128xf32>
    %1158 = arith.mulf %1157, %1155 : vector<8x128xf32>
    %1159 = arith.mulf %1148, %1129 : vector<8x128xf32>
    %1160 = arith.addf %1158, %1159 : vector<8x128xf32>
    %c24_321 = arith.constant 24 : index
    %c0_322 = arith.constant 0 : index
    %1161 = vector.load %arg31[%c24_321, %c0_322] : memref<64x768xf32, #tpu.memory_space<vmem>>, vector<8x384xf32>
    %1162 = vector.extract_strided_slice %1065 {offsets = [0, 0], sizes = [128, 384], strides = [1, 1]} : vector<128x768xf32> to vector<128x384xf32>
    %cst_323 = arith.constant dense<0.000000e+00> : vector<8x384xf32>
    %1163 = tpu.matmul %1160, %1162, %cst_323 {dimension_numbers = #tpu.dot_dimension_numbers<[1], [0], [0], [1], [0, 0, 1, 1], [], []>} : vector<8x128xf32>, vector<128x384xf32>, vector<8x384xf32> -> vector<8x384xf32>
    %1164 = vector.extract_strided_slice %1161 {offsets = [0, 0], sizes = [8, 128], strides = [1, 1]} : vector<8x384xf32> to vector<8x128xf32>
    %1165 = vector.extract_strided_slice %1163 {offsets = [0, 0], sizes = [8, 128], strides = [1, 1]} : vector<8x384xf32> to vector<8x128xf32>
    %1166 = arith.addf %1164, %1165 : vector<8x128xf32>
    %1167 = arith.negf %1166 : vector<8x128xf32>
    %1168 = math.exp %1167 : vector<8x128xf32>
    %cst_324 = arith.constant 1.000000e+00 : f32
    %1169 = vector.broadcast %cst_324 : f32 to vector<8x128xf32>
    %1170 = arith.addf %1169, %1168 : vector<8x128xf32>
    %1171 = arith.divf %1169, %1170 : vector<8x128xf32>
    %1172 = vector.extract_strided_slice %1161 {offsets = [0, 128], sizes = [8, 128], strides = [1, 1]} : vector<8x384xf32> to vector<8x128xf32>
    %1173 = vector.extract_strided_slice %1163 {offsets = [0, 128], sizes = [8, 128], strides = [1, 1]} : vector<8x384xf32> to vector<8x128xf32>
    %1174 = arith.addf %1172, %1173 : vector<8x128xf32>
    %1175 = arith.negf %1174 : vector<8x128xf32>
    %1176 = math.exp %1175 : vector<8x128xf32>
    %cst_325 = arith.constant 1.000000e+00 : f32
    %1177 = vector.broadcast %cst_325 : f32 to vector<8x128xf32>
    %1178 = arith.addf %1177, %1176 : vector<8x128xf32>
    %1179 = arith.divf %1177, %1178 : vector<8x128xf32>
    %1180 = vector.extract_strided_slice %1161 {offsets = [0, 256], sizes = [8, 128], strides = [1, 1]} : vector<8x384xf32> to vector<8x128xf32>
    %1181 = vector.extract_strided_slice %1163 {offsets = [0, 256], sizes = [8, 128], strides = [1, 1]} : vector<8x384xf32> to vector<8x128xf32>
    %1182 = vector.broadcast %1066 : vector<1x128xf32> to vector<8x128xf32>
    %1183 = arith.addf %1181, %1182 : vector<8x128xf32>
    %1184 = arith.mulf %1171, %1183 : vector<8x128xf32>
    %1185 = arith.addf %1180, %1184 : vector<8x128xf32>
    %1186 = math.tanh %1185 : vector<8x128xf32>
    %cst_326 = arith.constant 1.000000e+00 : f32
    %1187 = vector.broadcast %cst_326 : f32 to vector<8x128xf32>
    %1188 = arith.subf %1187, %1179 : vector<8x128xf32>
    %1189 = arith.mulf %1188, %1186 : vector<8x128xf32>
    %1190 = arith.mulf %1179, %1160 : vector<8x128xf32>
    %1191 = arith.addf %1189, %1190 : vector<8x128xf32>
    %c32_327 = arith.constant 32 : index
    %c0_328 = arith.constant 0 : index
    %1192 = vector.load %arg31[%c32_327, %c0_328] : memref<64x768xf32, #tpu.memory_space<vmem>>, vector<8x384xf32>
    %1193 = vector.extract_strided_slice %1065 {offsets = [0, 0], sizes = [128, 384], strides = [1, 1]} : vector<128x768xf32> to vector<128x384xf32>
    %cst_329 = arith.constant dense<0.000000e+00> : vector<8x384xf32>
    %1194 = tpu.matmul %1191, %1193, %cst_329 {dimension_numbers = #tpu.dot_dimension_numbers<[1], [0], [0], [1], [0, 0, 1, 1], [], []>} : vector<8x128xf32>, vector<128x384xf32>, vector<8x384xf32> -> vector<8x384xf32>
    %1195 = vector.extract_strided_slice %1192 {offsets = [0, 0], sizes = [8, 128], strides = [1, 1]} : vector<8x384xf32> to vector<8x128xf32>
    %1196 = vector.extract_strided_slice %1194 {offsets = [0, 0], sizes = [8, 128], strides = [1, 1]} : vector<8x384xf32> to vector<8x128xf32>
    %1197 = arith.addf %1195, %1196 : vector<8x128xf32>
    %1198 = arith.negf %1197 : vector<8x128xf32>
    %1199 = math.exp %1198 : vector<8x128xf32>
    %cst_330 = arith.constant 1.000000e+00 : f32
    %1200 = vector.broadcast %cst_330 : f32 to vector<8x128xf32>
    %1201 = arith.addf %1200, %1199 : vector<8x128xf32>
    %1202 = arith.divf %1200, %1201 : vector<8x128xf32>
    %1203 = vector.extract_strided_slice %1192 {offsets = [0, 128], sizes = [8, 128], strides = [1, 1]} : vector<8x384xf32> to vector<8x128xf32>
    %1204 = vector.extract_strided_slice %1194 {offsets = [0, 128], sizes = [8, 128], strides = [1, 1]} : vector<8x384xf32> to vector<8x128xf32>
    %1205 = arith.addf %1203, %1204 : vector<8x128xf32>
    %1206 = arith.negf %1205 : vector<8x128xf32>
    %1207 = math.exp %1206 : vector<8x128xf32>
    %cst_331 = arith.constant 1.000000e+00 : f32
    %1208 = vector.broadcast %cst_331 : f32 to vector<8x128xf32>
    %1209 = arith.addf %1208, %1207 : vector<8x128xf32>
    %1210 = arith.divf %1208, %1209 : vector<8x128xf32>
    %1211 = vector.extract_strided_slice %1192 {offsets = [0, 256], sizes = [8, 128], strides = [1, 1]} : vector<8x384xf32> to vector<8x128xf32>
    %1212 = vector.extract_strided_slice %1194 {offsets = [0, 256], sizes = [8, 128], strides = [1, 1]} : vector<8x384xf32> to vector<8x128xf32>
    %1213 = vector.broadcast %1066 : vector<1x128xf32> to vector<8x128xf32>
    %1214 = arith.addf %1212, %1213 : vector<8x128xf32>
    %1215 = arith.mulf %1202, %1214 : vector<8x128xf32>
    %1216 = arith.addf %1211, %1215 : vector<8x128xf32>
    %1217 = math.tanh %1216 : vector<8x128xf32>
    %cst_332 = arith.constant 1.000000e+00 : f32
    %1218 = vector.broadcast %cst_332 : f32 to vector<8x128xf32>
    %1219 = arith.subf %1218, %1210 : vector<8x128xf32>
    %1220 = arith.mulf %1219, %1217 : vector<8x128xf32>
    %1221 = arith.mulf %1210, %1191 : vector<8x128xf32>
    %1222 = arith.addf %1220, %1221 : vector<8x128xf32>
    %c40_333 = arith.constant 40 : index
    %c0_334 = arith.constant 0 : index
    %1223 = vector.load %arg31[%c40_333, %c0_334] : memref<64x768xf32, #tpu.memory_space<vmem>>, vector<8x384xf32>
    %1224 = vector.extract_strided_slice %1065 {offsets = [0, 0], sizes = [128, 384], strides = [1, 1]} : vector<128x768xf32> to vector<128x384xf32>
    %cst_335 = arith.constant dense<0.000000e+00> : vector<8x384xf32>
    %1225 = tpu.matmul %1222, %1224, %cst_335 {dimension_numbers = #tpu.dot_dimension_numbers<[1], [0], [0], [1], [0, 0, 1, 1], [], []>} : vector<8x128xf32>, vector<128x384xf32>, vector<8x384xf32> -> vector<8x384xf32>
    %1226 = vector.extract_strided_slice %1223 {offsets = [0, 0], sizes = [8, 128], strides = [1, 1]} : vector<8x384xf32> to vector<8x128xf32>
    %1227 = vector.extract_strided_slice %1225 {offsets = [0, 0], sizes = [8, 128], strides = [1, 1]} : vector<8x384xf32> to vector<8x128xf32>
    %1228 = arith.addf %1226, %1227 : vector<8x128xf32>
    %1229 = arith.negf %1228 : vector<8x128xf32>
    %1230 = math.exp %1229 : vector<8x128xf32>
    %cst_336 = arith.constant 1.000000e+00 : f32
    %1231 = vector.broadcast %cst_336 : f32 to vector<8x128xf32>
    %1232 = arith.addf %1231, %1230 : vector<8x128xf32>
    %1233 = arith.divf %1231, %1232 : vector<8x128xf32>
    %1234 = vector.extract_strided_slice %1223 {offsets = [0, 128], sizes = [8, 128], strides = [1, 1]} : vector<8x384xf32> to vector<8x128xf32>
    %1235 = vector.extract_strided_slice %1225 {offsets = [0, 128], sizes = [8, 128], strides = [1, 1]} : vector<8x384xf32> to vector<8x128xf32>
    %1236 = arith.addf %1234, %1235 : vector<8x128xf32>
    %1237 = arith.negf %1236 : vector<8x128xf32>
    %1238 = math.exp %1237 : vector<8x128xf32>
    %cst_337 = arith.constant 1.000000e+00 : f32
    %1239 = vector.broadcast %cst_337 : f32 to vector<8x128xf32>
    %1240 = arith.addf %1239, %1238 : vector<8x128xf32>
    %1241 = arith.divf %1239, %1240 : vector<8x128xf32>
    %1242 = vector.extract_strided_slice %1223 {offsets = [0, 256], sizes = [8, 128], strides = [1, 1]} : vector<8x384xf32> to vector<8x128xf32>
    %1243 = vector.extract_strided_slice %1225 {offsets = [0, 256], sizes = [8, 128], strides = [1, 1]} : vector<8x384xf32> to vector<8x128xf32>
    %1244 = vector.broadcast %1066 : vector<1x128xf32> to vector<8x128xf32>
    %1245 = arith.addf %1243, %1244 : vector<8x128xf32>
    %1246 = arith.mulf %1233, %1245 : vector<8x128xf32>
    %1247 = arith.addf %1242, %1246 : vector<8x128xf32>
    %1248 = math.tanh %1247 : vector<8x128xf32>
    %cst_338 = arith.constant 1.000000e+00 : f32
    %1249 = vector.broadcast %cst_338 : f32 to vector<8x128xf32>
    %1250 = arith.subf %1249, %1241 : vector<8x128xf32>
    %1251 = arith.mulf %1250, %1248 : vector<8x128xf32>
    %1252 = arith.mulf %1241, %1222 : vector<8x128xf32>
    %1253 = arith.addf %1251, %1252 : vector<8x128xf32>
    %c48_339 = arith.constant 48 : index
    %c0_340 = arith.constant 0 : index
    %1254 = vector.load %arg31[%c48_339, %c0_340] : memref<64x768xf32, #tpu.memory_space<vmem>>, vector<8x384xf32>
    %1255 = vector.extract_strided_slice %1065 {offsets = [0, 0], sizes = [128, 384], strides = [1, 1]} : vector<128x768xf32> to vector<128x384xf32>
    %cst_341 = arith.constant dense<0.000000e+00> : vector<8x384xf32>
    %1256 = tpu.matmul %1253, %1255, %cst_341 {dimension_numbers = #tpu.dot_dimension_numbers<[1], [0], [0], [1], [0, 0, 1, 1], [], []>} : vector<8x128xf32>, vector<128x384xf32>, vector<8x384xf32> -> vector<8x384xf32>
    %1257 = vector.extract_strided_slice %1254 {offsets = [0, 0], sizes = [8, 128], strides = [1, 1]} : vector<8x384xf32> to vector<8x128xf32>
    %1258 = vector.extract_strided_slice %1256 {offsets = [0, 0], sizes = [8, 128], strides = [1, 1]} : vector<8x384xf32> to vector<8x128xf32>
    %1259 = arith.addf %1257, %1258 : vector<8x128xf32>
    %1260 = arith.negf %1259 : vector<8x128xf32>
    %1261 = math.exp %1260 : vector<8x128xf32>
    %cst_342 = arith.constant 1.000000e+00 : f32
    %1262 = vector.broadcast %cst_342 : f32 to vector<8x128xf32>
    %1263 = arith.addf %1262, %1261 : vector<8x128xf32>
    %1264 = arith.divf %1262, %1263 : vector<8x128xf32>
    %1265 = vector.extract_strided_slice %1254 {offsets = [0, 128], sizes = [8, 128], strides = [1, 1]} : vector<8x384xf32> to vector<8x128xf32>
    %1266 = vector.extract_strided_slice %1256 {offsets = [0, 128], sizes = [8, 128], strides = [1, 1]} : vector<8x384xf32> to vector<8x128xf32>
    %1267 = arith.addf %1265, %1266 : vector<8x128xf32>
    %1268 = arith.negf %1267 : vector<8x128xf32>
    %1269 = math.exp %1268 : vector<8x128xf32>
    %cst_343 = arith.constant 1.000000e+00 : f32
    %1270 = vector.broadcast %cst_343 : f32 to vector<8x128xf32>
    %1271 = arith.addf %1270, %1269 : vector<8x128xf32>
    %1272 = arith.divf %1270, %1271 : vector<8x128xf32>
    %1273 = vector.extract_strided_slice %1254 {offsets = [0, 256], sizes = [8, 128], strides = [1, 1]} : vector<8x384xf32> to vector<8x128xf32>
    %1274 = vector.extract_strided_slice %1256 {offsets = [0, 256], sizes = [8, 128], strides = [1, 1]} : vector<8x384xf32> to vector<8x128xf32>
    %1275 = vector.broadcast %1066 : vector<1x128xf32> to vector<8x128xf32>
    %1276 = arith.addf %1274, %1275 : vector<8x128xf32>
    %1277 = arith.mulf %1264, %1276 : vector<8x128xf32>
    %1278 = arith.addf %1273, %1277 : vector<8x128xf32>
    %1279 = math.tanh %1278 : vector<8x128xf32>
    %cst_344 = arith.constant 1.000000e+00 : f32
    %1280 = vector.broadcast %cst_344 : f32 to vector<8x128xf32>
    %1281 = arith.subf %1280, %1272 : vector<8x128xf32>
    %1282 = arith.mulf %1281, %1279 : vector<8x128xf32>
    %1283 = arith.mulf %1272, %1253 : vector<8x128xf32>
    %1284 = arith.addf %1282, %1283 : vector<8x128xf32>
    %c56_345 = arith.constant 56 : index
    %c0_346 = arith.constant 0 : index
    %1285 = vector.load %arg31[%c56_345, %c0_346] : memref<64x768xf32, #tpu.memory_space<vmem>>, vector<8x384xf32>
    %1286 = vector.extract_strided_slice %1065 {offsets = [0, 0], sizes = [128, 384], strides = [1, 1]} : vector<128x768xf32> to vector<128x384xf32>
    %cst_347 = arith.constant dense<0.000000e+00> : vector<8x384xf32>
    %1287 = tpu.matmul %1284, %1286, %cst_347 {dimension_numbers = #tpu.dot_dimension_numbers<[1], [0], [0], [1], [0, 0, 1, 1], [], []>} : vector<8x128xf32>, vector<128x384xf32>, vector<8x384xf32> -> vector<8x384xf32>
    %1288 = vector.extract_strided_slice %1285 {offsets = [0, 0], sizes = [8, 128], strides = [1, 1]} : vector<8x384xf32> to vector<8x128xf32>
    %1289 = vector.extract_strided_slice %1287 {offsets = [0, 0], sizes = [8, 128], strides = [1, 1]} : vector<8x384xf32> to vector<8x128xf32>
    %1290 = arith.addf %1288, %1289 : vector<8x128xf32>
    %1291 = arith.negf %1290 : vector<8x128xf32>
    %1292 = math.exp %1291 : vector<8x128xf32>
    %cst_348 = arith.constant 1.000000e+00 : f32
    %1293 = vector.broadcast %cst_348 : f32 to vector<8x128xf32>
    %1294 = arith.addf %1293, %1292 : vector<8x128xf32>
    %1295 = arith.divf %1293, %1294 : vector<8x128xf32>
    %1296 = vector.extract_strided_slice %1285 {offsets = [0, 128], sizes = [8, 128], strides = [1, 1]} : vector<8x384xf32> to vector<8x128xf32>
    %1297 = vector.extract_strided_slice %1287 {offsets = [0, 128], sizes = [8, 128], strides = [1, 1]} : vector<8x384xf32> to vector<8x128xf32>
    %1298 = arith.addf %1296, %1297 : vector<8x128xf32>
    %1299 = arith.negf %1298 : vector<8x128xf32>
    %1300 = math.exp %1299 : vector<8x128xf32>
    %cst_349 = arith.constant 1.000000e+00 : f32
    %1301 = vector.broadcast %cst_349 : f32 to vector<8x128xf32>
    %1302 = arith.addf %1301, %1300 : vector<8x128xf32>
    %1303 = arith.divf %1301, %1302 : vector<8x128xf32>
    %1304 = vector.extract_strided_slice %1285 {offsets = [0, 256], sizes = [8, 128], strides = [1, 1]} : vector<8x384xf32> to vector<8x128xf32>
    %1305 = vector.extract_strided_slice %1287 {offsets = [0, 256], sizes = [8, 128], strides = [1, 1]} : vector<8x384xf32> to vector<8x128xf32>
    %1306 = vector.broadcast %1066 : vector<1x128xf32> to vector<8x128xf32>
    %1307 = arith.addf %1305, %1306 : vector<8x128xf32>
    %1308 = arith.mulf %1295, %1307 : vector<8x128xf32>
    %1309 = arith.addf %1304, %1308 : vector<8x128xf32>
    %1310 = math.tanh %1309 : vector<8x128xf32>
    %cst_350 = arith.constant 1.000000e+00 : f32
    %1311 = vector.broadcast %cst_350 : f32 to vector<8x128xf32>
    %1312 = arith.subf %1311, %1303 : vector<8x128xf32>
    %1313 = arith.mulf %1312, %1310 : vector<8x128xf32>
    %1314 = arith.mulf %1303, %1284 : vector<8x128xf32>
    %1315 = arith.addf %1313, %1314 : vector<8x128xf32>
    %1316 = vector.extract_strided_slice %1054 {offsets = [56, 0], sizes = [8, 256], strides = [1, 1]} : vector<64x256xbf16> to vector<8x256xbf16>
    %c0_351 = arith.constant 0 : index
    %c384_352 = arith.constant 384 : index
    %1317 = vector.load %arg12[%c0_351, %c384_352] : memref<256x768xbf16, #tpu.memory_space<vmem>>, vector<256x384xbf16>
    %cst_353 = arith.constant dense<0.000000e+00> : vector<8x384xf32>
    %1318 = tpu.matmul %1316, %1317, %cst_353 {dimension_numbers = #tpu.dot_dimension_numbers<[1], [0], [0], [1], [0, 0, 1, 1], [], []>} : vector<8x256xbf16>, vector<256x384xbf16>, vector<8x384xf32> -> vector<8x384xf32>
    %c0_354 = arith.constant 0 : index
    %c384_355 = arith.constant 384 : index
    %1319 = vector.load %arg14[%c0_354, %c384_355] : memref<1x768xf32, #tpu.memory_space<vmem>>, vector<1x384xf32>
    %1320 = vector.broadcast %1319 : vector<1x384xf32> to vector<8x384xf32>
    %1321 = arith.addf %1318, %1320 : vector<8x384xf32>
    %1322 = vector.extract_strided_slice %1065 {offsets = [0, 384], sizes = [128, 384], strides = [1, 1]} : vector<128x768xf32> to vector<128x384xf32>
    %cst_356 = arith.constant dense<0.000000e+00> : vector<8x384xf32>
    %1323 = tpu.matmul %1058, %1322, %cst_356 {dimension_numbers = #tpu.dot_dimension_numbers<[1], [0], [0], [1], [0, 0, 1, 1], [], []>} : vector<8x128xf32>, vector<128x384xf32>, vector<8x384xf32> -> vector<8x384xf32>
    %1324 = vector.extract_strided_slice %1321 {offsets = [0, 0], sizes = [8, 128], strides = [1, 1]} : vector<8x384xf32> to vector<8x128xf32>
    %1325 = vector.extract_strided_slice %1323 {offsets = [0, 0], sizes = [8, 128], strides = [1, 1]} : vector<8x384xf32> to vector<8x128xf32>
    %1326 = arith.addf %1324, %1325 : vector<8x128xf32>
    %1327 = arith.negf %1326 : vector<8x128xf32>
    %1328 = math.exp %1327 : vector<8x128xf32>
    %cst_357 = arith.constant 1.000000e+00 : f32
    %1329 = vector.broadcast %cst_357 : f32 to vector<8x128xf32>
    %1330 = arith.addf %1329, %1328 : vector<8x128xf32>
    %1331 = arith.divf %1329, %1330 : vector<8x128xf32>
    %1332 = vector.extract_strided_slice %1321 {offsets = [0, 128], sizes = [8, 128], strides = [1, 1]} : vector<8x384xf32> to vector<8x128xf32>
    %1333 = vector.extract_strided_slice %1323 {offsets = [0, 128], sizes = [8, 128], strides = [1, 1]} : vector<8x384xf32> to vector<8x128xf32>
    %1334 = arith.addf %1332, %1333 : vector<8x128xf32>
    %1335 = arith.negf %1334 : vector<8x128xf32>
    %1336 = math.exp %1335 : vector<8x128xf32>
    %cst_358 = arith.constant 1.000000e+00 : f32
    %1337 = vector.broadcast %cst_358 : f32 to vector<8x128xf32>
    %1338 = arith.addf %1337, %1336 : vector<8x128xf32>
    %1339 = arith.divf %1337, %1338 : vector<8x128xf32>
    %1340 = vector.extract_strided_slice %1321 {offsets = [0, 256], sizes = [8, 128], strides = [1, 1]} : vector<8x384xf32> to vector<8x128xf32>
    %1341 = vector.extract_strided_slice %1323 {offsets = [0, 256], sizes = [8, 128], strides = [1, 1]} : vector<8x384xf32> to vector<8x128xf32>
    %1342 = vector.broadcast %1067 : vector<1x128xf32> to vector<8x128xf32>
    %1343 = arith.addf %1341, %1342 : vector<8x128xf32>
    %1344 = arith.mulf %1331, %1343 : vector<8x128xf32>
    %1345 = arith.addf %1340, %1344 : vector<8x128xf32>
    %1346 = math.tanh %1345 : vector<8x128xf32>
    %cst_359 = arith.constant 1.000000e+00 : f32
    %1347 = vector.broadcast %cst_359 : f32 to vector<8x128xf32>
    %1348 = arith.subf %1347, %1339 : vector<8x128xf32>
    %1349 = arith.mulf %1348, %1346 : vector<8x128xf32>
    %1350 = arith.mulf %1339, %1058 : vector<8x128xf32>
    %1351 = arith.addf %1349, %1350 : vector<8x128xf32>
    %1352 = tpu.concatenate %1315, %1351 in 1 : vector<8x128xf32>, vector<8x128xf32> -> vector<8x256xf32>
    %c0_360 = arith.constant 0 : index
    %c0_361 = arith.constant 0 : index
    %1353 = vector.load %arg2[%c0_360, %c0_361] : memref<8x46xf32, #tpu.memory_space<vmem>>, vector<8x46xf32>
    %c0_362 = arith.constant 0 : index
    %c0_363 = arith.constant 0 : index
    %1354 = vector.load %arg16[%c0_362, %c0_363] : memref<46x32xf32, #tpu.memory_space<vmem>>, vector<46x32xf32>
    %cst_364 = arith.constant dense<0.000000e+00> : vector<8x32xf32>
    %1355 = tpu.matmul %1353, %1354, %cst_364 {dimension_numbers = #tpu.dot_dimension_numbers<[1], [0], [0], [1], [0, 0, 1, 1], [], []>} : vector<8x46xf32>, vector<46x32xf32>, vector<8x32xf32> -> vector<8x32xf32>
    %c0_365 = arith.constant 0 : index
    %c0_366 = arith.constant 0 : index
    %1356 = vector.load %arg17[%c0_365, %c0_366] : memref<1x32xf32, #tpu.memory_space<vmem>>, vector<1x32xf32>
    %1357 = vector.broadcast %1356 : vector<1x32xf32> to vector<8x32xf32>
    %1358 = arith.addf %1355, %1357 : vector<8x32xf32>
    %c0_367 = arith.constant 0 : index
    %c0_368 = arith.constant 0 : index
    %1359 = vector.load %arg3[%c0_367, %c0_368] : memref<8x32xf32, #tpu.memory_space<vmem>>, vector<8x32xf32>
    %1360 = arith.mulf %1358, %1359 : vector<8x32xf32>
    %1361 = vector.shape_cast %1360 : vector<8x32xf32> to vector<8x1x32xf32>
    %1362 = vector.extract_strided_slice %1361 {offsets = [0, 0, 0], sizes = [8, 1, 31], strides = [1, 1, 1]} : vector<8x1x32xf32> to vector<8x1x31xf32>
    %1363 = vector.extract_strided_slice %1361 {offsets = [0, 0, 1], sizes = [8, 1, 31], strides = [1, 1, 1]} : vector<8x1x32xf32> to vector<8x1x31xf32>
    %c0_369 = arith.constant 0 : index
    %c0_370 = arith.constant 0 : index
    %1364 = vector.load %arg18[%c0_369, %c0_370] : memref<32x1xf32, #tpu.memory_space<vmem>>, vector<32x1xf32>
    %1365 = vector.shape_cast %1364 : vector<32x1xf32> to vector<1x32x1xf32>
    %c0_371 = arith.constant 0 : index
    %c0_372 = arith.constant 0 : index
    %1366 = vector.load %arg19[%c0_371, %c0_372] : memref<32x1xf32, #tpu.memory_space<vmem>>, vector<32x1xf32>
    %1367 = vector.shape_cast %1366 : vector<32x1xf32> to vector<1x32x1xf32>
    %c0_373 = arith.constant 0 : index
    %c0_374 = arith.constant 0 : index
    %1368 = vector.load %arg20[%c0_373, %c0_374] : memref<32x1xf32, #tpu.memory_space<vmem>>, vector<32x1xf32>
    %1369 = vector.shape_cast %1368 : vector<32x1xf32> to vector<1x32x1xf32>
    %1370 = vector.broadcast %1362 : vector<8x1x31xf32> to vector<8x32x31xf32>
    %1371 = vector.broadcast %1365 : vector<1x32x1xf32> to vector<8x32x31xf32>
    %1372 = arith.mulf %1370, %1371 : vector<8x32x31xf32>
    %1373 = vector.broadcast %1363 : vector<8x1x31xf32> to vector<8x32x31xf32>
    %1374 = vector.broadcast %1367 : vector<1x32x1xf32> to vector<8x32x31xf32>
    %1375 = arith.mulf %1373, %1374 : vector<8x32x31xf32>
    %1376 = arith.addf %1372, %1375 : vector<8x32x31xf32>
    %1377 = vector.broadcast %1369 : vector<1x32x1xf32> to vector<8x32x31xf32>
    %1378 = arith.addf %1376, %1377 : vector<8x32x31xf32>
    %cst_375 = arith.constant 0.000000e+00 : f32
    %1379 = vector.broadcast %cst_375 : f32 to vector<8x32x31xf32>
    %1380 = arith.cmpf oge, %1378, %1379 : vector<8x32x31xf32>
    %cst_376 = arith.constant 0.00999999977 : f32
    %1381 = vector.broadcast %cst_376 : f32 to vector<8x32x31xf32>
    %1382 = arith.mulf %1381, %1378 : vector<8x32x31xf32>
    %1383 = arith.select %1380, %1378, %1382 : vector<8x32x31xi1>, vector<8x32x31xf32>
    %cst_377 = arith.constant dense<0xFF800000> : vector<8x32xf32>
    %1384 = vector.multi_reduction <maximumf>, %1383, %cst_377 [2] : vector<8x32x31xf32> to vector<8x32xf32>
    %c0_378 = arith.constant 0 : index
    %c0_379 = arith.constant 0 : index
    %1385 = vector.load %arg21[%c0_378, %c0_379] : memref<32x16xf32, #tpu.memory_space<vmem>>, vector<32x16xf32>
    %cst_380 = arith.constant dense<0.000000e+00> : vector<8x16xf32>
    %1386 = tpu.matmul %1384, %1385, %cst_380 {dimension_numbers = #tpu.dot_dimension_numbers<[1], [0], [0], [1], [0, 0, 1, 1], [], []>} : vector<8x32xf32>, vector<32x16xf32>, vector<8x16xf32> -> vector<8x16xf32>
    %c0_381 = arith.constant 0 : index
    %c0_382 = arith.constant 0 : index
    %1387 = vector.load %arg22[%c0_381, %c0_382] : memref<1x16xf32, #tpu.memory_space<vmem>>, vector<1x16xf32>
    %1388 = vector.broadcast %1387 : vector<1x16xf32> to vector<8x16xf32>
    %1389 = arith.addf %1386, %1388 : vector<8x16xf32>
    %c0_383 = arith.constant 0 : index
    %c0_384 = arith.constant 0 : index
    %1390 = vector.load %arg23[%c0_383, %c0_384] : memref<16x128xf32, #tpu.memory_space<vmem>>, vector<16x128xf32>
    %cst_385 = arith.constant dense<0.000000e+00> : vector<8x128xf32>
    %1391 = tpu.matmul %1389, %1390, %cst_385 {dimension_numbers = #tpu.dot_dimension_numbers<[1], [0], [0], [1], [0, 0, 1, 1], [], []>} : vector<8x16xf32>, vector<16x128xf32>, vector<8x128xf32> -> vector<8x128xf32>
    %c0_386 = arith.constant 0 : index
    %c0_387 = arith.constant 0 : index
    %1392 = vector.load %arg24[%c0_386, %c0_387] : memref<256x128xf32, #tpu.memory_space<vmem>>, vector<256x128xf32>
    %cst_388 = arith.constant dense<0.000000e+00> : vector<8x128xf32>
    %1393 = tpu.matmul %1352, %1392, %cst_388 {dimension_numbers = #tpu.dot_dimension_numbers<[1], [0], [0], [1], [0, 0, 1, 1], [], []>} : vector<8x256xf32>, vector<256x128xf32>, vector<8x128xf32> -> vector<8x128xf32>
    %1394 = arith.addf %1391, %1393 : vector<8x128xf32>
    %c0_389 = arith.constant 0 : index
    %c0_390 = arith.constant 0 : index
    %1395 = vector.load %arg25[%c0_389, %c0_390] : memref<46x128xf32, #tpu.memory_space<vmem>>, vector<46x128xf32>
    %cst_391 = arith.constant dense<0.000000e+00> : vector<8x128xf32>
    %1396 = tpu.matmul %1353, %1395, %cst_391 {dimension_numbers = #tpu.dot_dimension_numbers<[1], [0], [0], [1], [0, 0, 1, 1], [], []>} : vector<8x46xf32>, vector<46x128xf32>, vector<8x128xf32> -> vector<8x128xf32>
    %1397 = arith.addf %1394, %1396 : vector<8x128xf32>
    %c0_392 = arith.constant 0 : index
    %c0_393 = arith.constant 0 : index
    %1398 = vector.load %arg26[%c0_392, %c0_393] : memref<1x128xf32, #tpu.memory_space<vmem>>, vector<1x128xf32>
    %1399 = vector.broadcast %1398 : vector<1x128xf32> to vector<8x128xf32>
    %1400 = arith.addf %1397, %1399 : vector<8x128xf32>
    %cst_394 = arith.constant 0.000000e+00 : f32
    %1401 = vector.broadcast %cst_394 : f32 to vector<8x128xf32>
    %1402 = arith.cmpf oge, %1400, %1401 : vector<8x128xf32>
    %cst_395 = arith.constant 0.00999999977 : f32
    %1403 = vector.broadcast %cst_395 : f32 to vector<8x128xf32>
    %1404 = arith.mulf %1403, %1400 : vector<8x128xf32>
    %1405 = arith.select %1402, %1400, %1404 : vector<8x128xi1>, vector<8x128xf32>
    %c0_396 = arith.constant 0 : index
    %c0_397 = arith.constant 0 : index
    %1406 = vector.load %arg27[%c0_396, %c0_397] : memref<128x2xf32, #tpu.memory_space<vmem>>, vector<128x2xf32>
    %cst_398 = arith.constant dense<0.000000e+00> : vector<8x2xf32>
    %1407 = tpu.matmul %1405, %1406, %cst_398 {dimension_numbers = #tpu.dot_dimension_numbers<[1], [0], [0], [1], [0, 0, 1, 1], [], []>} : vector<8x128xf32>, vector<128x2xf32>, vector<8x2xf32> -> vector<8x2xf32>
    %c0_399 = arith.constant 0 : index
    %c0_400 = arith.constant 0 : index
    %1408 = vector.load %arg28[%c0_399, %c0_400] : memref<1x2xf32, #tpu.memory_space<vmem>>, vector<1x2xf32>
    %1409 = vector.broadcast %1408 : vector<1x2xf32> to vector<8x2xf32>
    %1410 = arith.addf %1407, %1409 : vector<8x2xf32>
    %c0_401 = arith.constant 0 : index
    %c0_402 = arith.constant 0 : index
    %1411 = vector.load %arg29[%c0_401, %c0_402] : memref<8x2xf32, #tpu.memory_space<vmem>>, vector<8x2xf32>
    tpu.vector_store %arg29[%c0_401, %c0_402], %1410 {strides = array<i32>} : memref<8x2xf32, #tpu.memory_space<vmem>>, vector<8x2xf32>,
    %cst_403 = arith.constant dense<0xFF800000> : vector<8xf32>
    %1412 = vector.multi_reduction <maximumf>, %1410, %cst_403 [1] : vector<8x2xf32> to vector<8xf32>
    %1413 = vector.shape_cast %1412 : vector<8xf32> to vector<8x1xf32>
    %1414 = vector.broadcast %1413 : vector<8x1xf32> to vector<8x2xf32>
    %1415 = arith.subf %1410, %1414 : vector<8x2xf32>
    %1416 = math.exp %1415 : vector<8x2xf32>
    %cst_404 = arith.constant dense<0.000000e+00> : vector<8xf32>
    %1417 = vector.multi_reduction <add>, %1416, %cst_404 [1] : vector<8x2xf32> to vector<8xf32>
    %1418 = vector.shape_cast %1417 : vector<8xf32> to vector<8x1xf32>
    %1419 = vector.broadcast %1418 : vector<8x1xf32> to vector<8x2xf32>
    %1420 = arith.divf %1416, %1419 : vector<8x2xf32>
    %c0_405 = arith.constant 0 : index
    %c0_406 = arith.constant 0 : index
    %1421 = vector.load %arg30[%c0_405, %c0_406] : memref<8x2xf32, #tpu.memory_space<vmem>>, vector<8x2xf32>
    tpu.vector_store %arg30[%c0_405, %c0_406], %1420 {strides = array<i32>} : memref<8x2xf32, #tpu.memory_space<vmem>>, vector<8x2xf32>,
    return
  }
}

</mosaic_0001>

<llo_original>
// kernel: forward.1
$region0: #{forward.1}
  #allocation0 [shape = 'u32[]', space=smem, size = 0x4, offset = 0x4, fixed_abs, tag = 'smem constant byte address 0x4 - core index']
  #allocation1 [shape = 'u32[72,128]{1,0:T(1,128)}', space=vmem, size = 0x9000, scoped, tag = 'internal scratch']
  #allocation2 [shape = 'f32[64,768]{1,0:T(8,128)}', space=vmem, size = 0x30000, scoped, tag = 'scratch operand']
  #allocation3 [shape = 'f32[64,256]{1,0:T(8,128)}', space=vmem, size = 0x10000, scoped, tag = 'scratch operand']
  #allocation4 [shape = 'f32[64,256]{1,0:T(8,128)}', space=vmem, size = 0x10000, scoped, tag = 'scratch operand']
  %s0 = inlined_call_operand.smem [shape: u32[31], index: -1, kind: input, shape index: {}]
  %s1 = sld [smem:[%s0]]
  %s2 = scalar_lea.smem %s0, 1
  %s3 = sld [smem:[%s2]]
  %s4 = scalar_lea.smem %s0, 2
  %s5 = sld [smem:[%s4]]
  %s6 = scalar_lea.smem %s0, 3
  %s7 = sld [smem:[%s6]]
  %s8 = scalar_lea.smem %s0, 4
  %s9 = sld [smem:[%s8]]
  %s10 = scalar_lea.smem %s0, 5
  %s11 = sld [smem:[%s10]]
  %s12 = scalar_lea.smem %s0, 6
  %s13 = sld [smem:[%s12]]
  %s14 = scalar_lea.smem %s0, 7
  %s15 = sld [smem:[%s14]]
  %s16 = scalar_lea.smem %s0, 8
  %s17 = sld [smem:[%s16]]
  %s18 = scalar_lea.smem %s0, 9
  %s19 = sld [smem:[%s18]]
  %s20 = scalar_lea.smem %s0, 10
  %s21 = sld [smem:[%s20]]
  %s22 = scalar_lea.smem %s0, 11
  %s23 = sld [smem:[%s22]]
  %s24 = scalar_lea.smem %s0, 12
  %s25 = sld [smem:[%s24]]
  %s26 = scalar_lea.smem %s0, 13
  %s27 = sld [smem:[%s26]]
  %s28 = scalar_lea.smem %s0, 14
  %s29 = sld [smem:[%s28]]
  %s30 = scalar_lea.smem %s0, 15
  %s31 = sld [smem:[%s30]]
  %s32 = scalar_lea.smem %s0, 16
  %s33 = sld [smem:[%s32]]
  %s34 = scalar_lea.smem %s0, 17
  %s35 = sld [smem:[%s34]]
  %s36 = scalar_lea.smem %s0, 18
  %s37 = sld [smem:[%s36]]
  %s38 = scalar_lea.smem %s0, 19
  %s39 = sld [smem:[%s38]]
  %s40 = scalar_lea.smem %s0, 20
  %s41 = sld [smem:[%s40]]
  %s42 = scalar_lea.smem %s0, 21
  %s43 = sld [smem:[%s42]]
  %s44 = scalar_lea.smem %s0, 22
  %s45 = sld [smem:[%s44]]
  %s46 = scalar_lea.smem %s0, 23
  %s47 = sld [smem:[%s46]]
  %s48 = scalar_lea.smem %s0, 24
  %s49 = sld [smem:[%s48]]
  %s50 = scalar_lea.smem %s0, 25
  %s51 = sld [smem:[%s50]]
  %s52 = scalar_lea.smem %s0, 26
  %s53 = sld [smem:[%s52]]
  %s54 = scalar_lea.smem %s0, 27
  %s55 = sld [smem:[%s54]]
  %s56 = scalar_lea.smem %s0, 28
  %s57 = sld [smem:[%s56]]
  %s58 = scalar_lea.smem %s0, 29
  %s59 = sld [smem:[%s58]]
  %s60 = scalar_lea.smem %s0, 30
  %s61 = sld [smem:[%s60]]
  %62 = xla_tuple %s59, %s61
  %s63 = sld [smem:[#allocation0]]
  $region154: #{forward.1} parent=0
    _
  %s65 = ssub.s32 1, %s63
  %s66 = scalar_select 0, %s65, %s63
  $region1: #{forward.1} parent=0
    #allocation5 [shape = 'u8[393216]{0}', space=vmem, size = 0x60000, scoped, tag = 'input window, operand 5, single buffered']
    #allocation6 [shape = 's32[1]{0}', space=sflag, size = 0x4, scoped, tag = 'scoped memory for forward.1']
    #allocation7 [shape = 'u8[393216]{0}', space=vmem, size = 0x60000, scoped, tag = 'input window, operand 8, single buffered']
    #allocation8 [shape = 's32[1]{0}', space=sflag, size = 0x4, scoped, tag = 'scoped memory for forward.1']
    #allocation9 [shape = 'u8[393216]{0}', space=vmem, size = 0x60000, scoped, tag = 'input window, operand 9, single buffered']
    #allocation10 [shape = 'u8[393216]{0}', space=vmem, size = 0x60000, scoped, tag = 'input window, operand 12, single buffered']
    #allocation11 [shape = 's32[1]{0}', space=sflag, size = 0x4, scoped, tag = 'scoped memory for forward.1']
    #allocation12 [shape = 'u8[393216]{0}', space=vmem, size = 0x60000, scoped, tag = 'input window, operand 13, single buffered']
    %67 = vsyncpa [#allocation6], 0
    %68 = vsyncpa [#allocation8], 0
    %69 = vsyncpa [#allocation11], 0
    // Predicated region
    $region2: #{forward.1} parent=1 // pred_check
      _
    $region3: #{forward.1} parent=1 // pred_check_branch
      %71 = sbr.rel (0) target = $region5
    $region4: #{forward.1} parent=1 // pred_region
      _
    $region5: #{forward.1} parent=1 // pred_fallthru
      _
    // Predicated region
    $region6: #{forward.1} parent=1 // pred_check
      _
    $region7: #{forward.1} parent=1 // pred_check_branch
      %73 = sbr.rel (0) target = $region9
    $region8: #{forward.1} parent=1 // pred_region
      _
    $region9: #{forward.1} parent=1 // pred_fallthru
      _
    // Predicated region
    $region10: #{forward.1} parent=1 // pred_check
      _
    $region11: #{forward.1} parent=1 // pred_check_branch
      %75 = sbr.rel (0) target = $region13
    $region12: #{forward.1} parent=1 // pred_region
      _
    $region13: #{forward.1} parent=1 // pred_fallthru
      _
    // Predicated region
    $region14: #{forward.1} parent=1 // pred_check
      _
    $region15: #{forward.1} parent=1 // pred_check_branch
      %77 = sbr.rel (0) target = $region17
    $region16: #{forward.1} parent=1 // pred_region
      _
    $region17: #{forward.1} parent=1 // pred_fallthru
      _
    // Predicated region
    $region18: #{forward.1} parent=1 // pred_check
      _
    $region19: #{forward.1} parent=1 // pred_check_branch
      %79 = sbr.rel (0) target = $region21
    $region20: #{forward.1} parent=1 // pred_region
      _
    $region21: #{forward.1} parent=1 // pred_fallthru
      _
    // Predicated region
    $region22: #{forward.1} parent=1 // pred_check
      _
    $region23: #{forward.1} parent=1 // pred_check_branch
      %81 = sbr.rel (0) target = $region25
    $region24: #{forward.1} parent=1 // pred_region
      %83 = vsyncadd [#allocation6], 0
      %s84 = sshll.u32 %s11, 4
      %s85 = int_to_ptr.hbm [resolvable:$true] %s84
      %s86 = sshll.u32 [#allocation5], 4
      %s87 = int_to_ptr.vmem [resolvable:$true] %s86
      %92 = dma.hbm_to_vmem [thread:$0]  %s85, 12288, %s87, [#allocation6], 768, 768, 48
    $region25: #{forward.1} parent=1 // pred_fallthru
      _
    // Predicated region
    $region26: #{forward.1} parent=1 // pred_check
      _
    $region27: #{forward.1} parent=1 // pred_check_branch
      %94 = sbr.rel (0) target = $region29
    $region28: #{forward.1} parent=1 // pred_region
      _
    $region29: #{forward.1} parent=1 // pred_fallthru
      _
    // Predicated region
    $region30: #{forward.1} parent=1 // pred_check
      _
    $region31: #{forward.1} parent=1 // pred_check_branch
      %96 = sbr.rel (0) target = $region33
    $region32: #{forward.1} parent=1 // pred_region
      _
    $region33: #{forward.1} parent=1 // pred_fallthru
      _
    // Predicated region
    $region34: #{forward.1} parent=1 // pred_check
      _
    $region35: #{forward.1} parent=1 // pred_check_branch
      %98 = sbr.rel (0) target = $region37
    $region36: #{forward.1} parent=1 // pred_region
      %100 = vsyncadd [#allocation8], 0
      %s101 = sshll.u32 %s17, 4
      %s102 = int_to_ptr.hbm [resolvable:$true] %s101
      %s103 = sshll.u32 [#allocation7], 4
      %s104 = int_to_ptr.vmem [resolvable:$true] %s103
      %109 = dma.hbm_to_vmem [thread:$0]  %s102, 12288, %s104, [#allocation8], 384, 384, 24
    $region37: #{forward.1} parent=1 // pred_fallthru
      _
    // Predicated region
    $region38: #{forward.1} parent=1 // pred_check
      _
    $region39: #{forward.1} parent=1 // pred_check_branch
      %111 = sbr.rel (0) target = $region41
    $region40: #{forward.1} parent=1 // pred_region
      %113 = vsyncadd [#allocation8], 0
      %s114 = sshll.u32 %s19, 4
      %s115 = int_to_ptr.hbm [resolvable:$true] %s114
      %s116 = sshll.u32 [#allocation9], 4
      %s117 = int_to_ptr.vmem [resolvable:$true] %s116
      %122 = dma.hbm_to_vmem [thread:$0]  %s115, 12288, %s117, [#allocation8], 768, 768, 48
    $region41: #{forward.1} parent=1 // pred_fallthru
      _
    // Predicated region
    $region42: #{forward.1} parent=1 // pred_check
      _
    $region43: #{forward.1} parent=1 // pred_check_branch
      %124 = sbr.rel (0) target = $region45
    $region44: #{forward.1} parent=1 // pred_region
      _
    $region45: #{forward.1} parent=1 // pred_fallthru
      _
    // Predicated region
    $region46: #{forward.1} parent=1 // pred_check
      _
    $region47: #{forward.1} parent=1 // pred_check_branch
      %126 = sbr.rel (0) target = $region49
    $region48: #{forward.1} parent=1 // pred_region
      _
    $region49: #{forward.1} parent=1 // pred_fallthru
      _
    // Predicated region
    $region50: #{forward.1} parent=1 // pred_check
      _
    $region51: #{forward.1} parent=1 // pred_check_branch
      %128 = sbr.rel (0) target = $region53
    $region52: #{forward.1} parent=1 // pred_region
      %130 = vsyncadd [#allocation11], 0
      %s131 = sshll.u32 %s25, 4
      %s132 = int_to_ptr.hbm [resolvable:$true] %s131
      %s133 = sshll.u32 [#allocation10], 4
      %s134 = int_to_ptr.vmem [resolvable:$true] %s133
      %139 = dma.hbm_to_vmem [thread:$0]  %s132, 12288, %s134, [#allocation11], 384, 384, 24
    $region53: #{forward.1} parent=1 // pred_fallthru
      _
    // Predicated region
    $region54: #{forward.1} parent=1 // pred_check
      _
    $region55: #{forward.1} parent=1 // pred_check_branch
      %141 = sbr.rel (0) target = $region57
    $region56: #{forward.1} parent=1 // pred_region
      %143 = vsyncadd [#allocation11], 0
      %s144 = sshll.u32 %s27, 4
      %s145 = int_to_ptr.hbm [resolvable:$true] %s144
      %s146 = sshll.u32 [#allocation12], 4
      %s147 = int_to_ptr.vmem [resolvable:$true] %s146
      %152 = dma.hbm_to_vmem [thread:$0]  %s145, 12288, %s147, [#allocation11], 768, 768, 48
    $region57: #{forward.1} parent=1 // pred_fallthru
      _
    // Predicated region
    $region58: #{forward.1} parent=1 // pred_check
      _
    $region59: #{forward.1} parent=1 // pred_check_branch
      %154 = sbr.rel (0) target = $region61
    $region60: #{forward.1} parent=1 // pred_region
      _
    $region61: #{forward.1} parent=1 // pred_fallthru
      _
    // Predicated region
    $region62: #{forward.1} parent=1 // pred_check
      _
    $region63: #{forward.1} parent=1 // pred_check_branch
      %156 = sbr.rel (0) target = $region65
    $region64: #{forward.1} parent=1 // pred_region
      _
    $region65: #{forward.1} parent=1 // pred_fallthru
      _
    // Predicated region
    $region66: #{forward.1} parent=1 // pred_check
      _
    $region67: #{forward.1} parent=1 // pred_check_branch
      %158 = sbr.rel (0) target = $region69
    $region68: #{forward.1} parent=1 // pred_region
      _
    $region69: #{forward.1} parent=1 // pred_fallthru
      _
    // Predicated region
    $region70: #{forward.1} parent=1 // pred_check
      _
    $region71: #{forward.1} parent=1 // pred_check_branch
      %160 = sbr.rel (0) target = $region73
    $region72: #{forward.1} parent=1 // pred_region
      _
    $region73: #{forward.1} parent=1 // pred_fallthru
      _
    // Predicated region
    $region74: #{forward.1} parent=1 // pred_check
      _
    $region75: #{forward.1} parent=1 // pred_check_branch
      %162 = sbr.rel (0) target = $region77
    $region76: #{forward.1} parent=1 // pred_region
      _
    $region77: #{forward.1} parent=1 // pred_fallthru
      _
    // Predicated region
    $region78: #{forward.1} parent=1 // pred_check
      _
    $region79: #{forward.1} parent=1 // pred_check_branch
      %164 = sbr.rel (0) target = $region81
    $region80: #{forward.1} parent=1 // pred_region
      _
    $region81: #{forward.1} parent=1 // pred_fallthru
      _
    // Predicated region
    $region82: #{forward.1} parent=1 // pred_check
      _
    $region83: #{forward.1} parent=1 // pred_check_branch
      %166 = sbr.rel (0) target = $region85
    $region84: #{forward.1} parent=1 // pred_region
      _
    $region85: #{forward.1} parent=1 // pred_fallthru
      _
    // Predicated region
    $region86: #{forward.1} parent=1 // pred_check
      _
    $region87: #{forward.1} parent=1 // pred_check_branch
      %168 = sbr.rel (0) target = $region89
    $region88: #{forward.1} parent=1 // pred_region
      _
    $region89: #{forward.1} parent=1 // pred_fallthru
      _
    // Predicated region
    $region90: #{forward.1} parent=1 // pred_check
      _
    $region91: #{forward.1} parent=1 // pred_check_branch
      %170 = sbr.rel (0) target = $region93
    $region92: #{forward.1} parent=1 // pred_region
      _
    $region93: #{forward.1} parent=1 // pred_fallthru
      _
    // Predicated region
    $region94: #{forward.1} parent=1 // pred_check
      _
    $region95: #{forward.1} parent=1 // pred_check_branch
      %172 = sbr.rel (0) target = $region97
    $region96: #{forward.1} parent=1 // pred_region
      _
    $region97: #{forward.1} parent=1 // pred_fallthru
      _
    // Predicated region
    $region98: #{forward.1} parent=1 // pred_check
      _
    $region99: #{forward.1} parent=1 // pred_check_branch
      %174 = sbr.rel (0) target = $region101
    $region100: #{forward.1} parent=1 // pred_region
      _
    $region101: #{forward.1} parent=1 // pred_fallthru
      _
    // Predicated region
    $region102: #{forward.1} parent=1 // pred_check
      _
    $region103: #{forward.1} parent=1 // pred_check_branch
      %176 = sbr.rel (0) target = $region105
    $region104: #{forward.1} parent=1 // pred_region
      _
    $region105: #{forward.1} parent=1 // pred_fallthru
      _
    // Predicated region
    $region106: #{forward.1} parent=1 // pred_check
      _
    $region107: #{forward.1} parent=1 // pred_check_branch
      %178 = sbr.rel (0) target = $region109
    $region108: #{forward.1} parent=1 // pred_region
      _
    $region109: #{forward.1} parent=1 // pred_fallthru
      _
    // Predicated region
    $region110: #{forward.1} parent=1 // pred_check
      _
    $region111: #{forward.1} parent=1 // pred_check_branch
      %180 = sbr.rel (0) target = $region113
    $region112: #{forward.1} parent=1 // pred_region
      _
    $region113: #{forward.1} parent=1 // pred_fallthru
      _
    // Predicated region
    $region114: #{forward.1} parent=1 // pred_check
      _
    $region115: #{forward.1} parent=1 // pred_check_branch
      %182 = sbr.rel (0) target = $region117
    $region116: #{forward.1} parent=1 // pred_region
      _
    $region117: #{forward.1} parent=1 // pred_fallthru
      _
    // Predicated region
    $region118: #{forward.1} parent=1 // pred_check
      _
    $region119: #{forward.1} parent=1 // pred_check_branch
      %184 = sbr.rel (0) target = $region121
    $region120: #{forward.1} parent=1 // pred_region
      %186 = dma.done [#allocation6], 12288
    $region121: #{forward.1} parent=1 // pred_fallthru
      _
    // Predicated region
    $region122: #{forward.1} parent=1 // pred_check
      _
    $region123: #{forward.1} parent=1 // pred_check_branch
      %188 = sbr.rel (0) target = $region125
    $region124: #{forward.1} parent=1 // pred_region
      %190 = dma.done [#allocation8], 12288
    $region125: #{forward.1} parent=1 // pred_fallthru
      _
    // Predicated region
    $region126: #{forward.1} parent=1 // pred_check
      _
    $region127: #{forward.1} parent=1 // pred_check_branch
      %192 = sbr.rel (0) target = $region129
    $region128: #{forward.1} parent=1 // pred_region
      %194 = dma.done [#allocation8], 12288
    $region129: #{forward.1} parent=1 // pred_fallthru
      _
    // Predicated region
    $region130: #{forward.1} parent=1 // pred_check
      _
    $region131: #{forward.1} parent=1 // pred_check_branch
      %196 = sbr.rel (0) target = $region133
    $region132: #{forward.1} parent=1 // pred_region
      %198 = dma.done [#allocation11], 12288
    $region133: #{forward.1} parent=1 // pred_fallthru
      _
    // Predicated region
    $region134: #{forward.1} parent=1 // pred_check
      _
    $region135: #{forward.1} parent=1 // pred_check_branch
      %200 = sbr.rel (0) target = $region137
    $region136: #{forward.1} parent=1 // pred_region
      %202 = dma.done [#allocation11], 12288
    $region137: #{forward.1} parent=1 // pred_fallthru
      _
    %v204 = vld [vmem:[%s1] sm:$0xf]
    %v205 = vld [vmem:[%s1 + $0x4] sm:$0xf]
    %v206 = vld [vmem:[%s1 + $0x8] sm:$0xf]
    %v207 = vld [vmem:[%s1 + $0xc] sm:$0xf]
    %v208 = vld [vmem:[%s1 + $0x10] sm:$0xf]
    %v209 = vld [vmem:[%s1 + $0x14] sm:$0xf]
    %v210 = vld [vmem:[%s1 + $0x18] sm:$0xf]
    %v211 = vld [vmem:[%s1 + $0x1c] sm:$0xf]
    %v212 = vld [vmem:[%s3] sm:$0xff]
    %s213 = scalar_lea.vmem %s3, 8
    %v214 = vld [vmem:[%s213] sm:$0xff]
    %v215 = vld [vmem:[%s9] sm:$0xff]
    %v216 = vld [vmem:[%s9 + $0x8] sm:$0xff]
    %v217 = vld [vmem:[%s9 + $0x10] sm:$0xff]
    %v218 = vld [vmem:[%s9 + $0x18] sm:$0xff]
    %v219 = vld [vmem:[%s9 + $0x20] sm:$0xff]
    %v220 = vld [vmem:[%s9 + $0x28] sm:$0xff]
    %v221 = vld [vmem:[%s9 + $0x30] sm:$0xff]
    %v222 = vld [vmem:[%s9 + $0x38] sm:$0xff]
    %v223 = vld [vmem:[%s9 + $0x40] sm:$0xff]
    %v224 = vld [vmem:[%s9 + $0x48] sm:$0xff]
    %v225 = vld [vmem:[%s9 + $0x50] sm:$0xff]
    %v226 = vld [vmem:[%s9 + $0x58] sm:$0xff]
    %v227 = vld [vmem:[%s13] sm:$0x3f]
    %v229 = vperm.slane %v227, 0
    %v230 = vperm.slane %v227, 1
    %v231 = vperm.slane %v227, 2
    %v232 = vperm.slane %v227, 3
    %v233 = vperm.slane %v227, 4
    %v234 = vperm.slane %v227, 5
    %v249 = vunpack.c.l.b16 %v204
    %v250 = vunpack.c.l.b16 %v205
    %v251 = vunpack.c.l.b16 %v206
    %v252 = vunpack.c.l.b16 %v207
    %v253 = vunpack.c.l.b16 %v208
    %v254 = vunpack.c.l.b16 %v209
    %v255 = vunpack.c.l.b16 %v210
    %v256 = vunpack.c.l.b16 %v211
    %v257 = vpack.c.b16 %v250, %v249
    %v258 = vpack.c.b16 %v252, %v251
    %v259 = vpack.c.b16 %v254, %v253
    %v260 = vpack.c.b16 %v256, %v255
    %v273 = vunpack.c.l.b16 %v215
    %v274 = vunpack.c.h.b16 %v215
    %v275 = vunpack.c.l.b16 %v216
    %v276 = vunpack.c.h.b16 %v216
    %v277 = vunpack.c.l.b16 %v217
    %v278 = vunpack.c.h.b16 %v217
    %v279 = vunpack.c.l.b16 %v218
    %v280 = vunpack.c.h.b16 %v218
    %v281 = vunpack.c.l.b16 %v219
    %v282 = vunpack.c.h.b16 %v219
    %v283 = vunpack.c.l.b16 %v220
    %v284 = vunpack.c.h.b16 %v220
    %v285 = vunpack.c.l.b16 %v221
    %v286 = vunpack.c.h.b16 %v221
    %v287 = vunpack.c.l.b16 %v222
    %v288 = vunpack.c.h.b16 %v222
    %v289 = vunpack.c.l.b16 %v223
    %v290 = vunpack.c.h.b16 %v223
    %v291 = vunpack.c.l.b16 %v224
    %v292 = vunpack.c.h.b16 %v224
    %v293 = vunpack.c.l.b16 %v225
    %v294 = vunpack.c.h.b16 %v225
    %v295 = vunpack.c.l.b16 %v226
    %v296 = vunpack.c.h.b16 %v226
    %v297 = vpack.c.b16 %v279, %v273
    %v298 = vpack.c.b16 %v280, %v274
    %v299 = vpack.c.b16 %v281, %v275
    %v300 = vpack.c.b16 %v282, %v276
    %v301 = vpack.c.b16 %v283, %v277
    %v302 = vpack.c.b16 %v284, %v278
    %v303 = vpack.c.b16 %v291, %v285
    %v304 = vpack.c.b16 %v292, %v286
    %v305 = vpack.c.b16 %v293, %v287
    %v306 = vpack.c.b16 %v294, %v288
    %v307 = vpack.c.b16 %v295, %v289
    %v308 = vpack.c.b16 %v296, %v290
    %vm321 = vcmask 261120
    %v323 = vsel %vm321, %v257, 0
    %v326 = vsel %vm321, %v258, 0
    %v329 = vsel %vm321, %v259, 0
    %v332 = vsel %vm321, %v260, 0
    %334 = vmatpush.bf16.msra.mxu0 0
    %335 = vmatpush.bf16.msra.mxu0 0
    %336 = vmatpush.bf16.msra.mxu0 0
    %337 = vmatpush.bf16.msra.mxu0 0
    %338 = vmatpush.bf16.msra.mxu0 0
    %339 = vmatpush.bf16.msra.mxu0 0
    %340 = vmatpush.bf16.msra.mxu0 %v303
    %341 = vmatpush.bf16.msra.mxu0 %v297
    %342 = vmatmul.bf16.gmra.mxu0 %v323
    %v343 = vpop.f32.mrf.mxu0
    %v344 = vadd.f32 %v229, %v343
    %v345 = vpop.f32.mrf.mxu0
    %v346 = vadd.f32 %v229, %v345
    %347 = vmatmul.bf16.gmra.mxu0 %v326
    %v348 = vpop.f32.mrf.mxu0
    %v349 = vadd.f32 %v229, %v348
    %v350 = vpop.f32.mrf.mxu0
    %v351 = vadd.f32 %v229, %v350
    %352 = vmatmul.bf16.gmra.mxu0 %v329
    %v353 = vpop.f32.mrf.mxu0
    %v354 = vadd.f32 %v229, %v353
    %v355 = vpop.f32.mrf.mxu0
    %v356 = vadd.f32 %v229, %v355
    %357 = vmatmul.bf16.gmra.mxu0 %v332
    %v358 = vpop.f32.mrf.mxu0
    %v359 = vadd.f32 %v229, %v358
    %v360 = vpop.f32.mrf.mxu0
    %v361 = vadd.f32 %v229, %v360
    %362 = vdwg.mxu0
    %363 = vmatpush.bf16.msra.mxu0 0
    %364 = vmatpush.bf16.msra.mxu0 0
    %365 = vmatpush.bf16.msra.mxu0 0
    %366 = vmatpush.bf16.msra.mxu0 0
    %367 = vmatpush.bf16.msra.mxu0 0
    %368 = vmatpush.bf16.msra.mxu0 0
    %369 = vmatpush.bf16.msra.mxu0 %v304
    %370 = vmatpush.bf16.msra.mxu0 %v298
    %371 = vmatmul.bf16.gmra.mxu0 %v323
    %v372 = vpop.f32.mrf.mxu0
    %v373 = vadd.f32 %v230, %v372
    %v374 = vpop.f32.mrf.mxu0
    %v375 = vadd.f32 %v230, %v374
    %376 = vmatmul.bf16.gmra.mxu0 %v326
    %v377 = vpop.f32.mrf.mxu0
    %v378 = vadd.f32 %v230, %v377
    %v379 = vpop.f32.mrf.mxu0
    %v380 = vadd.f32 %v230, %v379
    %381 = vmatmul.bf16.gmra.mxu0 %v329
    %v382 = vpop.f32.mrf.mxu0
    %v383 = vadd.f32 %v230, %v382
    %v384 = vpop.f32.mrf.mxu0
    %v385 = vadd.f32 %v230, %v384
    %386 = vmatmul.bf16.gmra.mxu0 %v332
    %v387 = vpop.f32.mrf.mxu0
    %v388 = vadd.f32 %v230, %v387
    %v389 = vpop.f32.mrf.mxu0
    %v390 = vadd.f32 %v230, %v389
    %391 = vdwg.mxu0
    %392 = vmatpush.bf16.msra.mxu0 0
    %393 = vmatpush.bf16.msra.mxu0 0
    %394 = vmatpush.bf16.msra.mxu0 0
    %395 = vmatpush.bf16.msra.mxu0 0
    %396 = vmatpush.bf16.msra.mxu0 0
    %397 = vmatpush.bf16.msra.mxu0 0
    %398 = vmatpush.bf16.msra.mxu0 %v305
    %399 = vmatpush.bf16.msra.mxu0 %v299
    %400 = vmatmul.bf16.gmra.mxu0 %v323
    %v401 = vpop.f32.mrf.mxu0
    %v402 = vadd.f32 %v231, %v401
    %v403 = vpop.f32.mrf.mxu0
    %v404 = vadd.f32 %v231, %v403
    %405 = vmatmul.bf16.gmra.mxu0 %v326
    %v406 = vpop.f32.mrf.mxu0
    %v407 = vadd.f32 %v231, %v406
    %v408 = vpop.f32.mrf.mxu0
    %v409 = vadd.f32 %v231, %v408
    %410 = vmatmul.bf16.gmra.mxu0 %v329
    %v411 = vpop.f32.mrf.mxu0
    %v412 = vadd.f32 %v231, %v411
    %v413 = vpop.f32.mrf.mxu0
    %v414 = vadd.f32 %v231, %v413
    %415 = vmatmul.bf16.gmra.mxu0 %v332
    %v416 = vpop.f32.mrf.mxu0
    %v417 = vadd.f32 %v231, %v416
    %v418 = vpop.f32.mrf.mxu0
    %v419 = vadd.f32 %v231, %v418
    %420 = vdwg.mxu0
    %421 = vmatpush.bf16.msra.mxu0 0
    %422 = vmatpush.bf16.msra.mxu0 0
    %423 = vmatpush.bf16.msra.mxu0 0
    %424 = vmatpush.bf16.msra.mxu0 0
    %425 = vmatpush.bf16.msra.mxu0 0
    %426 = vmatpush.bf16.msra.mxu0 0
    %427 = vmatpush.bf16.msra.mxu0 %v306
    %428 = vmatpush.bf16.msra.mxu0 %v300
    %429 = vmatmul.bf16.gmra.mxu0 %v323
    %v430 = vpop.f32.mrf.mxu0
    %v431 = vadd.f32 %v232, %v430
    %v432 = vpop.f32.mrf.mxu0
    %v433 = vadd.f32 %v232, %v432
    %434 = vmatmul.bf16.gmra.mxu0 %v326
    %v435 = vpop.f32.mrf.mxu0
    %v436 = vadd.f32 %v232, %v435
    %v437 = vpop.f32.mrf.mxu0
    %v438 = vadd.f32 %v232, %v437
    %439 = vmatmul.bf16.gmra.mxu0 %v329
    %v440 = vpop.f32.mrf.mxu0
    %v441 = vadd.f32 %v232, %v440
    %v442 = vpop.f32.mrf.mxu0
    %v443 = vadd.f32 %v232, %v442
    %444 = vmatmul.bf16.gmra.mxu0 %v332
    %v445 = vpop.f32.mrf.mxu0
    %v446 = vadd.f32 %v232, %v445
    %v447 = vpop.f32.mrf.mxu0
    %v448 = vadd.f32 %v232, %v447
    %449 = vdwg.mxu0
    %450 = vmatpush.bf16.msra.mxu0 0
    %451 = vmatpush.bf16.msra.mxu0 0
    %452 = vmatpush.bf16.msra.mxu0 0
    %453 = vmatpush.bf16.msra.mxu0 0
    %454 = vmatpush.bf16.msra.mxu0 0
    %455 = vmatpush.bf16.msra.mxu0 0
    %456 = vmatpush.bf16.msra.mxu0 %v307
    %457 = vmatpush.bf16.msra.mxu0 %v301
    %458 = vmatmul.bf16.gmra.mxu0 %v323
    %v459 = vpop.f32.mrf.mxu0
    %v460 = vadd.f32 %v233, %v459
    %v461 = vpop.f32.mrf.mxu0
    %v462 = vadd.f32 %v233, %v461
    %463 = vmatmul.bf16.gmra.mxu0 %v326
    %v464 = vpop.f32.mrf.mxu0
    %v465 = vadd.f32 %v233, %v464
    %v466 = vpop.f32.mrf.mxu0
    %v467 = vadd.f32 %v233, %v466
    %468 = vmatmul.bf16.gmra.mxu0 %v329
    %v469 = vpop.f32.mrf.mxu0
    %v470 = vadd.f32 %v233, %v469
    %v471 = vpop.f32.mrf.mxu0
    %v472 = vadd.f32 %v233, %v471
    %473 = vmatmul.bf16.gmra.mxu0 %v332
    %v474 = vpop.f32.mrf.mxu0
    %v475 = vadd.f32 %v233, %v474
    %v476 = vpop.f32.mrf.mxu0
    %v477 = vadd.f32 %v233, %v476
    %478 = vdwg.mxu0
    %479 = vmatpush.bf16.msra.mxu0 0
    %480 = vmatpush.bf16.msra.mxu0 0
    %481 = vmatpush.bf16.msra.mxu0 0
    %482 = vmatpush.bf16.msra.mxu0 0
    %483 = vmatpush.bf16.msra.mxu0 0
    %484 = vmatpush.bf16.msra.mxu0 0
    %485 = vmatpush.bf16.msra.mxu0 %v308
    %486 = vmatpush.bf16.msra.mxu0 %v302
    %487 = vmatmul.bf16.gmra.mxu0 %v323
    %v488 = vpop.f32.mrf.mxu0
    %v489 = vadd.f32 %v234, %v488
    %v490 = vpop.f32.mrf.mxu0
    %v491 = vadd.f32 %v234, %v490
    %492 = vmatmul.bf16.gmra.mxu0 %v326
    %v493 = vpop.f32.mrf.mxu0
    %v494 = vadd.f32 %v234, %v493
    %v495 = vpop.f32.mrf.mxu0
    %v496 = vadd.f32 %v234, %v495
    %497 = vmatmul.bf16.gmra.mxu0 %v329
    %v498 = vpop.f32.mrf.mxu0
    %v499 = vadd.f32 %v234, %v498
    %v500 = vpop.f32.mrf.mxu0
    %v501 = vadd.f32 %v234, %v500
    %502 = vmatmul.bf16.gmra.mxu0 %v332
    %v503 = vpop.f32.mrf.mxu0
    %v504 = vadd.f32 %v234, %v503
    %v505 = vpop.f32.mrf.mxu0
    %v506 = vadd.f32 %v234, %v505
    %507 = vdwg.mxu0
    %508 = vst [vmem:[#allocation2] sm:$0xff] %v344
    %509 = vst [vmem:[#allocation2 + $0x8] sm:$0xff] %v373
    %510 = vst [vmem:[#allocation2 + $0x10] sm:$0xff] %v402
    %511 = vst [vmem:[#allocation2 + $0x18] sm:$0xff] %v431
    %512 = vst [vmem:[#allocation2 + $0x20] sm:$0xff] %v460
    %513 = vst [vmem:[#allocation2 + $0x28] sm:$0xff] %v489
    %514 = vst [vmem:[#allocation2 + $0x30] sm:$0xff] %v346
    %515 = vst [vmem:[#allocation2 + $0x38] sm:$0xff] %v375
    %516 = vst [vmem:[#allocation2 + $0x40] sm:$0xff] %v404
    %517 = vst [vmem:[#allocation2 + $0x48] sm:$0xff] %v433
    %518 = vst [vmem:[#allocation2 + $0x50] sm:$0xff] %v462
    %519 = vst [vmem:[#allocation2 + $0x58] sm:$0xff] %v491
    %520 = vst [vmem:[#allocation2 + $0x60] sm:$0xff] %v349
    %521 = vst [vmem:[#allocation2 + $0x68] sm:$0xff] %v378
    %522 = vst [vmem:[#allocation2 + $0x70] sm:$0xff] %v407
    %523 = vst [vmem:[#allocation2 + $0x78] sm:$0xff] %v436
    %524 = vst [vmem:[#allocation2 + $0x80] sm:$0xff] %v465
    %525 = vst [vmem:[#allocation2 + $0x88] sm:$0xff] %v494
    %526 = vst [vmem:[#allocation2 + $0x90] sm:$0xff] %v351
    %527 = vst [vmem:[#allocation2 + $0x98] sm:$0xff] %v380
    %528 = vst [vmem:[#allocation2 + $0xa0] sm:$0xff] %v409
    %529 = vst [vmem:[#allocation2 + $0xa8] sm:$0xff] %v438
    %530 = vst [vmem:[#allocation2 + $0xb0] sm:$0xff] %v467
    %531 = vst [vmem:[#allocation2 + $0xb8] sm:$0xff] %v496
    %532 = vst [vmem:[#allocation2 + $0xc0] sm:$0xff] %v354
    %533 = vst [vmem:[#allocation2 + $0xc8] sm:$0xff] %v383
    %534 = vst [vmem:[#allocation2 + $0xd0] sm:$0xff] %v412
    %535 = vst [vmem:[#allocation2 + $0xd8] sm:$0xff] %v441
    %536 = vst [vmem:[#allocation2 + $0xe0] sm:$0xff] %v470
    %537 = vst [vmem:[#allocation2 + $0xe8] sm:$0xff] %v499
    %538 = vst [vmem:[#allocation2 + $0xf0] sm:$0xff] %v356
    %539 = vst [vmem:[#allocation2 + $0xf8] sm:$0xff] %v385
    %540 = vst [vmem:[#allocation2 + $0x100] sm:$0xff] %v414
    %541 = vst [vmem:[#allocation2 + $0x108] sm:$0xff] %v443
    %542 = vst [vmem:[#allocation2 + $0x110] sm:$0xff] %v472
    %543 = vst [vmem:[#allocation2 + $0x118] sm:$0xff] %v501
    %544 = vst [vmem:[#allocation2 + $0x120] sm:$0xff] %v359
    %545 = vst [vmem:[#allocation2 + $0x128] sm:$0xff] %v388
    %546 = vst [vmem:[#allocation2 + $0x130] sm:$0xff] %v417
    %547 = vst [vmem:[#allocation2 + $0x138] sm:$0xff] %v446
    %548 = vst [vmem:[#allocation2 + $0x140] sm:$0xff] %v475
    %549 = vst [vmem:[#allocation2 + $0x148] sm:$0xff] %v504
    %550 = vst [vmem:[#allocation2 + $0x150] sm:$0xff] %v361
    %551 = vst [vmem:[#allocation2 + $0x158] sm:$0xff] %v390
    %552 = vst [vmem:[#allocation2 + $0x160] sm:$0xff] %v419
    %553 = vst [vmem:[#allocation2 + $0x168] sm:$0xff] %v448
    %554 = vst [vmem:[#allocation2 + $0x170] sm:$0xff] %v477
    %555 = vst [vmem:[#allocation2 + $0x178] sm:$0xff] %v506
    %v556 = vld [vmem:[#allocation5] sm:$0xff]
    %v557 = vld [vmem:[#allocation5 + $0x8] sm:$0xff]
    %v558 = vld [vmem:[#allocation5 + $0x10] sm:$0xff]
    %v559 = vld [vmem:[#allocation5 + $0x18] sm:$0xff]
    %v560 = vld [vmem:[#allocation5 + $0x20] sm:$0xff]
    %v561 = vld [vmem:[#allocation5 + $0x28] sm:$0xff]
    %v562 = vld [vmem:[#allocation5 + $0x30] sm:$0xff]
    %v563 = vld [vmem:[#allocation5 + $0x38] sm:$0xff]
    %v564 = vld [vmem:[#allocation5 + $0x40] sm:$0xff]
    %v565 = vld [vmem:[#allocation5 + $0x48] sm:$0xff]
    %v566 = vld [vmem:[#allocation5 + $0x50] sm:$0xff]
    %v567 = vld [vmem:[#allocation5 + $0x58] sm:$0xff]
    %v568 = vld [vmem:[#allocation5 + $0x60] sm:$0xff]
    %v569 = vld [vmem:[#allocation5 + $0x68] sm:$0xff]
    %v570 = vld [vmem:[#allocation5 + $0x70] sm:$0xff]
    %v571 = vld [vmem:[#allocation5 + $0x78] sm:$0xff]
    %v572 = vld [vmem:[#allocation5 + $0x80] sm:$0xff]
    %v573 = vld [vmem:[#allocation5 + $0x88] sm:$0xff]
    %v574 = vld [vmem:[#allocation5 + $0x90] sm:$0xff]
    %v575 = vld [vmem:[#allocation5 + $0x98] sm:$0xff]
    %v576 = vld [vmem:[#allocation5 + $0xa0] sm:$0xff]
    %v577 = vld [vmem:[#allocation5 + $0xa8] sm:$0xff]
    %v578 = vld [vmem:[#allocation5 + $0xb0] sm:$0xff]
    %v579 = vld [vmem:[#allocation5 + $0xb8] sm:$0xff]
    %v580 = vld [vmem:[#allocation5 + $0xc0] sm:$0xff]
    %v581 = vld [vmem:[#allocation5 + $0xc8] sm:$0xff]
    %v582 = vld [vmem:[#allocation5 + $0xd0] sm:$0xff]
    %v583 = vld [vmem:[#allocation5 + $0xd8] sm:$0xff]
    %v584 = vld [vmem:[#allocation5 + $0xe0] sm:$0xff]
    %v585 = vld [vmem:[#allocation5 + $0xe8] sm:$0xff]
    %v586 = vld [vmem:[#allocation5 + $0xf0] sm:$0xff]
    %v587 = vld [vmem:[#allocation5 + $0xf8] sm:$0xff]
    %v588 = vld [vmem:[#allocation5 + $0x100] sm:$0xff]
    %v589 = vld [vmem:[#allocation5 + $0x108] sm:$0xff]
    %v590 = vld [vmem:[#allocation5 + $0x110] sm:$0xff]
    %v591 = vld [vmem:[#allocation5 + $0x118] sm:$0xff]
    %v592 = vld [vmem:[#allocation5 + $0x120] sm:$0xff]
    %v593 = vld [vmem:[#allocation5 + $0x128] sm:$0xff]
    %v594 = vld [vmem:[#allocation5 + $0x130] sm:$0xff]
    %v595 = vld [vmem:[#allocation5 + $0x138] sm:$0xff]
    %v596 = vld [vmem:[#allocation5 + $0x140] sm:$0xff]
    %v597 = vld [vmem:[#allocation5 + $0x148] sm:$0xff]
    %v598 = vld [vmem:[#allocation5 + $0x150] sm:$0xff]
    %v599 = vld [vmem:[#allocation5 + $0x158] sm:$0xff]
    %v600 = vld [vmem:[#allocation5 + $0x160] sm:$0xff]
    %v601 = vld [vmem:[#allocation5 + $0x168] sm:$0xff]
    %v602 = vld [vmem:[#allocation5 + $0x170] sm:$0xff]
    %v603 = vld [vmem:[#allocation5 + $0x178] sm:$0xff]
    %v604 = vld [vmem:[#allocation5 + $0x180] sm:$0xff]
    %v605 = vld [vmem:[#allocation5 + $0x188] sm:$0xff]
    %v606 = vld [vmem:[#allocation5 + $0x190] sm:$0xff]
    %v607 = vld [vmem:[#allocation5 + $0x198] sm:$0xff]
    %v608 = vld [vmem:[#allocation5 + $0x1a0] sm:$0xff]
    %v609 = vld [vmem:[#allocation5 + $0x1a8] sm:$0xff]
    %v610 = vld [vmem:[#allocation5 + $0x1b0] sm:$0xff]
    %v611 = vld [vmem:[#allocation5 + $0x1b8] sm:$0xff]
    %v612 = vld [vmem:[#allocation5 + $0x1c0] sm:$0xff]
    %v613 = vld [vmem:[#allocation5 + $0x1c8] sm:$0xff]
    %v614 = vld [vmem:[#allocation5 + $0x1d0] sm:$0xff]
    %v615 = vld [vmem:[#allocation5 + $0x1d8] sm:$0xff]
    %v616 = vld [vmem:[#allocation5 + $0x1e0] sm:$0xff]
    %v617 = vld [vmem:[#allocation5 + $0x1e8] sm:$0xff]
    %v618 = vld [vmem:[#allocation5 + $0x1f0] sm:$0xff]
    %v619 = vld [vmem:[#allocation5 + $0x1f8] sm:$0xff]
    %v620 = vld [vmem:[#allocation5 + $0x200] sm:$0xff]
    %v621 = vld [vmem:[#allocation5 + $0x208] sm:$0xff]
    %v622 = vld [vmem:[#allocation5 + $0x210] sm:$0xff]
    %v623 = vld [vmem:[#allocation5 + $0x218] sm:$0xff]
    %v624 = vld [vmem:[#allocation5 + $0x220] sm:$0xff]
    %v625 = vld [vmem:[#allocation5 + $0x228] sm:$0xff]
    %v626 = vld [vmem:[#allocation5 + $0x230] sm:$0xff]
    %v627 = vld [vmem:[#allocation5 + $0x238] sm:$0xff]
    %v628 = vld [vmem:[#allocation5 + $0x240] sm:$0xff]
    %v629 = vld [vmem:[#allocation5 + $0x248] sm:$0xff]
    %v630 = vld [vmem:[#allocation5 + $0x250] sm:$0xff]
    %v631 = vld [vmem:[#allocation5 + $0x258] sm:$0xff]
    %v632 = vld [vmem:[#allocation5 + $0x260] sm:$0xff]
    %v633 = vld [vmem:[#allocation5 + $0x268] sm:$0xff]
    %v634 = vld [vmem:[#allocation5 + $0x270] sm:$0xff]
    %v635 = vld [vmem:[#allocation5 + $0x278] sm:$0xff]
    %v636 = vld [vmem:[#allocation5 + $0x280] sm:$0xff]
    %v637 = vld [vmem:[#allocation5 + $0x288] sm:$0xff]
    %v638 = vld [vmem:[#allocation5 + $0x290] sm:$0xff]
    %v639 = vld [vmem:[#allocation5 + $0x298] sm:$0xff]
    %v640 = vld [vmem:[#allocation5 + $0x2a0] sm:$0xff]
    %v641 = vld [vmem:[#allocation5 + $0x2a8] sm:$0xff]
    %v642 = vld [vmem:[#allocation5 + $0x2b0] sm:$0xff]
    %v643 = vld [vmem:[#allocation5 + $0x2b8] sm:$0xff]
    %v644 = vld [vmem:[#allocation5 + $0x2c0] sm:$0xff]
    %v645 = vld [vmem:[#allocation5 + $0x2c8] sm:$0xff]
    %v646 = vld [vmem:[#allocation5 + $0x2d0] sm:$0xff]
    %v647 = vld [vmem:[#allocation5 + $0x2d8] sm:$0xff]
    %v648 = vld [vmem:[#allocation5 + $0x2e0] sm:$0xff]
    %v649 = vld [vmem:[#allocation5 + $0x2e8] sm:$0xff]
    %v650 = vld [vmem:[#allocation5 + $0x2f0] sm:$0xff]
    %v651 = vld [vmem:[#allocation5 + $0x2f8] sm:$0xff]
    %v652 = vld [vmem:[%s15] sm:$0x1]
    %v653 = vld [vmem:[%s15 + $0x1] sm:$0x1]
    %v654 = vld [vmem:[#allocation2] sm:$0xff]
    %v655 = vld [vmem:[#allocation2 + $0x8] sm:$0xff]
    %v656 = vld [vmem:[#allocation2 + $0x10] sm:$0xff]
    %v657 = vld [vmem:[#allocation2 + $0x168] sm:$0xff]
    %v658 = vld [vmem:[#allocation2 + $0x170] sm:$0xff]
    %v659 = vld [vmem:[#allocation2 + $0x178] sm:$0xff]
    %660 = vmatpush.msra.mxu0 %v646
    %661 = vmatpush.msra.mxu0 %v640
    %662 = vmatpush.msra.mxu0 %v634
    %663 = vmatpush.msra.mxu0 %v628
    %664 = vmatpush.msra.mxu0 %v622
    %665 = vmatpush.msra.mxu0 %v616
    %666 = vmatpush.msra.mxu0 %v610
    %667 = vmatpush.msra.mxu0 %v604
    %668 = vmatpush.msra.mxu0 %v598
    %669 = vmatpush.msra.mxu0 %v592
    %670 = vmatpush.msra.mxu0 %v586
    %671 = vmatpush.msra.mxu0 %v580
    %672 = vmatpush.msra.mxu0 %v574
    %673 = vmatpush.msra.mxu0 %v568
    %674 = vmatpush.msra.mxu0 %v562
    %675 = vmatpush.msra.mxu0 %v556
    %676 = vmatmul.f32.gmra.mxu0 %v212
    %v677 = vpop.f32.mrf.mxu0
    %v678 = vadd.f32 0.0, %v677
    %679 = vdwg.mxu0
    %680 = vmatpush.msra.mxu0 %v647
    %681 = vmatpush.msra.mxu0 %v641
    %682 = vmatpush.msra.mxu0 %v635
    %683 = vmatpush.msra.mxu0 %v629
    %684 = vmatpush.msra.mxu0 %v623
    %685 = vmatpush.msra.mxu0 %v617
    %686 = vmatpush.msra.mxu0 %v611
    %687 = vmatpush.msra.mxu0 %v605
    %688 = vmatpush.msra.mxu0 %v599
    %689 = vmatpush.msra.mxu0 %v593
    %690 = vmatpush.msra.mxu0 %v587
    %691 = vmatpush.msra.mxu0 %v581
    %692 = vmatpush.msra.mxu0 %v575
    %693 = vmatpush.msra.mxu0 %v569
    %694 = vmatpush.msra.mxu0 %v563
    %695 = vmatpush.msra.mxu0 %v557
    %696 = vmatmul.f32.gmra.mxu0 %v212
    %v697 = vpop.f32.mrf.mxu0
    %v698 = vadd.f32 0.0, %v697
    %699 = vdwg.mxu0
    %700 = vmatpush.msra.mxu0 %v648
    %701 = vmatpush.msra.mxu0 %v642
    %702 = vmatpush.msra.mxu0 %v636
    %703 = vmatpush.msra.mxu0 %v630
    %704 = vmatpush.msra.mxu0 %v624
    %705 = vmatpush.msra.mxu0 %v618
    %706 = vmatpush.msra.mxu0 %v612
    %707 = vmatpush.msra.mxu0 %v606
    %708 = vmatpush.msra.mxu0 %v600
    %709 = vmatpush.msra.mxu0 %v594
    %710 = vmatpush.msra.mxu0 %v588
    %711 = vmatpush.msra.mxu0 %v582
    %712 = vmatpush.msra.mxu0 %v576
    %713 = vmatpush.msra.mxu0 %v570
    %714 = vmatpush.msra.mxu0 %v564
    %715 = vmatpush.msra.mxu0 %v558
    %716 = vmatmul.f32.gmra.mxu0 %v212
    %v717 = vpop.f32.mrf.mxu0
    %v718 = vadd.f32 0.0, %v717
    %719 = vdwg.mxu0
    %720 = vmatpush.msra.mxu0 %v649
    %721 = vmatpush.msra.mxu0 %v643
    %722 = vmatpush.msra.mxu0 %v637
    %723 = vmatpush.msra.mxu0 %v631
    %724 = vmatpush.msra.mxu0 %v625
    %725 = vmatpush.msra.mxu0 %v619
    %726 = vmatpush.msra.mxu0 %v613
    %727 = vmatpush.msra.mxu0 %v607
    %728 = vmatpush.msra.mxu0 %v601
    %729 = vmatpush.msra.mxu0 %v595
    %730 = vmatpush.msra.mxu0 %v589
    %731 = vmatpush.msra.mxu0 %v583
    %732 = vmatpush.msra.mxu0 %v577
    %733 = vmatpush.msra.mxu0 %v571
    %734 = vmatpush.msra.mxu0 %v565
    %735 = vmatpush.msra.mxu0 %v559
    %736 = vmatmul.f32.gmra.mxu0 %v214
    %v737 = vpop.f32.mrf.mxu0
    %v738 = vadd.f32 0.0, %v737
    %739 = vdwg.mxu0
    %740 = vmatpush.msra.mxu0 %v650
    %741 = vmatpush.msra.mxu0 %v644
    %742 = vmatpush.msra.mxu0 %v638
    %743 = vmatpush.msra.mxu0 %v632
    %744 = vmatpush.msra.mxu0 %v626
    %745 = vmatpush.msra.mxu0 %v620
    %746 = vmatpush.msra.mxu0 %v614
    %747 = vmatpush.msra.mxu0 %v608
    %748 = vmatpush.msra.mxu0 %v602
    %749 = vmatpush.msra.mxu0 %v596
    %750 = vmatpush.msra.mxu0 %v590
    %751 = vmatpush.msra.mxu0 %v584
    %752 = vmatpush.msra.mxu0 %v578
    %753 = vmatpush.msra.mxu0 %v572
    %754 = vmatpush.msra.mxu0 %v566
    %755 = vmatpush.msra.mxu0 %v560
    %756 = vmatmul.f32.gmra.mxu0 %v214
    %v757 = vpop.f32.mrf.mxu0
    %v758 = vadd.f32 0.0, %v757
    %759 = vdwg.mxu0
    %760 = vmatpush.msra.mxu0 %v651
    %761 = vmatpush.msra.mxu0 %v645
    %762 = vmatpush.msra.mxu0 %v639
    %763 = vmatpush.msra.mxu0 %v633
    %764 = vmatpush.msra.mxu0 %v627
    %765 = vmatpush.msra.mxu0 %v621
    %766 = vmatpush.msra.mxu0 %v615
    %767 = vmatpush.msra.mxu0 %v609
    %768 = vmatpush.msra.mxu0 %v603
    %769 = vmatpush.msra.mxu0 %v597
    %770 = vmatpush.msra.mxu0 %v591
    %771 = vmatpush.msra.mxu0 %v585
    %772 = vmatpush.msra.mxu0 %v579
    %773 = vmatpush.msra.mxu0 %v573
    %774 = vmatpush.msra.mxu0 %v567
    %775 = vmatpush.msra.mxu0 %v561
    %776 = vmatmul.f32.gmra.mxu0 %v214
    %v777 = vpop.f32.mrf.mxu0
    %v778 = vadd.f32 0.0, %v777
    %779 = vdwg.mxu0
    %v780 = vadd.f32 %v654, %v678
    %v781 = vxor.u32 %v780, 2147483648
    %v782 = vmul.f32 %v781, 1.442695
    %v783 = vpow.pop %v782
    %v784 = vadd.f32 %v783, 1.0
    %v785 = vrcp.pop %v784
    %v786 = vmul.f32 %v784, %v785
    %v787 = vsub.f32 1.0, %v786
    %v788 = vmul.f32 %v785, %v787
    %v789 = vadd.f32 %v785, %v788
    %vm790 = vweird.f32 %v784
    %vm791 = vweird.f32 %v785
    %vm792 = vmor %vm790, %vm791
    %v793 = vsel %vm792, %v785, %v789
    %v794 = vand.u32 2147483647, %v784
    %vm795 = vcmp.eq.f32.partialorder %v794, 8.507059e+37
    %v796 = vand.u32 %v784, 2147483648
    %v797 = vor.u32 1.1754944e-38, %v796
    %v798 = vsel %vm795, %v797, %v793
    %v799 = vmul.f32 1.0, %v798
    %v800 = vadd.f32 %v655, %v698
    %v801 = vxor.u32 %v800, 2147483648
    %v802 = vmul.f32 %v801, 1.442695
    %v803 = vpow.pop %v802
    %v804 = vadd.f32 %v803, 1.0
    %v805 = vrcp.pop %v804
    %v806 = vmul.f32 %v804, %v805
    %v807 = vsub.f32 1.0, %v806
    %v808 = vmul.f32 %v805, %v807
    %v809 = vadd.f32 %v805, %v808
    %vm810 = vweird.f32 %v804
    %vm811 = vweird.f32 %v805
    %vm812 = vmor %vm810, %vm811
    %v813 = vsel %vm812, %v805, %v809
    %v814 = vand.u32 2147483647, %v804
    %vm815 = vcmp.eq.f32.partialorder %v814, 8.507059e+37
    %v816 = vand.u32 %v804, 2147483648
    %v817 = vor.u32 1.1754944e-38, %v816
    %v818 = vsel %vm815, %v817, %v813
    %v819 = vmul.f32 1.0, %v818
    %v821 = vperm.slane %v652, 0
    %v823 = vadd.f32 %v718, %v821
    %v824 = vmul.f32 %v799, %v823
    %v825 = vadd.f32 %v656, %v824
    %v826 = vtanh.pop %v825
    %v827 = vsub.f32 1.0, %v819
    %v828 = vmul.f32 %v827, %v826
    %v829 = vmul.f32 %v819, %v212
    %v830 = vadd.f32 %v828, %v829
    %v831 = vadd.f32 %v657, %v738
    %v832 = vxor.u32 %v831, 2147483648
    %v833 = vmul.f32 %v832, 1.442695
    %v834 = vpow.pop %v833
    %v835 = vadd.f32 %v834, 1.0
    %v836 = vrcp.pop %v835
    %v837 = vmul.f32 %v835, %v836
    %v838 = vsub.f32 1.0, %v837
    %v839 = vmul.f32 %v836, %v838
    %v840 = vadd.f32 %v836, %v839
    %vm841 = vweird.f32 %v835
    %vm842 = vweird.f32 %v836
    %vm843 = vmor %vm841, %vm842
    %v844 = vsel %vm843, %v836, %v840
    %v845 = vand.u32 2147483647, %v835
    %vm846 = vcmp.eq.f32.partialorder %v845, 8.507059e+37
    %v847 = vand.u32 %v835, 2147483648
    %v848 = vor.u32 1.1754944e-38, %v847
    %v849 = vsel %vm846, %v848, %v844
    %v850 = vmul.f32 1.0, %v849
    %v851 = vadd.f32 %v658, %v758
    %v852 = vxor.u32 %v851, 2147483648
    %v853 = vmul.f32 %v852, 1.442695
    %v854 = vpow.pop %v853
    %v855 = vadd.f32 %v854, 1.0
    %v856 = vrcp.pop %v855
    %v857 = vmul.f32 %v855, %v856
    %v858 = vsub.f32 1.0, %v857
    %v859 = vmul.f32 %v856, %v858
    %v860 = vadd.f32 %v856, %v859
    %vm861 = vweird.f32 %v855
    %vm862 = vweird.f32 %v856
    %vm863 = vmor %vm861, %vm862
    %v864 = vsel %vm863, %v856, %v860
    %v865 = vand.u32 2147483647, %v855
    %vm866 = vcmp.eq.f32.partialorder %v865, 8.507059e+37
    %v867 = vand.u32 %v855, 2147483648
    %v868 = vor.u32 1.1754944e-38, %v867
    %v869 = vsel %vm866, %v868, %v864
    %v870 = vmul.f32 1.0, %v869
    %v872 = vperm.slane %v653, 0
    %v874 = vadd.f32 %v778, %v872
    %v875 = vmul.f32 %v850, %v874
    %v876 = vadd.f32 %v659, %v875
    %v877 = vtanh.pop %v876
    %v878 = vsub.f32 1.0, %v870
    %v879 = vmul.f32 %v878, %v877
    %v880 = vmul.f32 %v870, %v214
    %v881 = vadd.f32 %v879, %v880
    %882 = vst [vmem:[#allocation3] sm:$0xff] %v830
    %883 = vst [vmem:[#allocation3 + $0x78] sm:$0xff] %v881
    %v884 = vld [vmem:[#allocation2 + $0x30] sm:$0xff]
    %v885 = vld [vmem:[#allocation2 + $0x38] sm:$0xff]
    %v886 = vld [vmem:[#allocation2 + $0x40] sm:$0xff]
    %v887 = vld [vmem:[#allocation2 + $0x138] sm:$0xff]
    %v888 = vld [vmem:[#allocation2 + $0x140] sm:$0xff]
    %v889 = vld [vmem:[#allocation2 + $0x148] sm:$0xff]
    %890 = vmatpush.msra.mxu0 %v646
    %891 = vmatpush.msra.mxu0 %v640
    %892 = vmatpush.msra.mxu0 %v634
    %893 = vmatpush.msra.mxu0 %v628
    %894 = vmatpush.msra.mxu0 %v622
    %895 = vmatpush.msra.mxu0 %v616
    %896 = vmatpush.msra.mxu0 %v610
    %897 = vmatpush.msra.mxu0 %v604
    %898 = vmatpush.msra.mxu0 %v598
    %899 = vmatpush.msra.mxu0 %v592
    %900 = vmatpush.msra.mxu0 %v586
    %901 = vmatpush.msra.mxu0 %v580
    %902 = vmatpush.msra.mxu0 %v574
    %903 = vmatpush.msra.mxu0 %v568
    %904 = vmatpush.msra.mxu0 %v562
    %905 = vmatpush.msra.mxu0 %v556
    %906 = vmatmul.f32.gmra.mxu0 %v830
    %v907 = vpop.f32.mrf.mxu0
    %v908 = vadd.f32 0.0, %v907
    %909 = vdwg.mxu0
    %910 = vmatpush.msra.mxu0 %v647
    %911 = vmatpush.msra.mxu0 %v641
    %912 = vmatpush.msra.mxu0 %v635
    %913 = vmatpush.msra.mxu0 %v629
    %914 = vmatpush.msra.mxu0 %v623
    %915 = vmatpush.msra.mxu0 %v617
    %916 = vmatpush.msra.mxu0 %v611
    %917 = vmatpush.msra.mxu0 %v605
    %918 = vmatpush.msra.mxu0 %v599
    %919 = vmatpush.msra.mxu0 %v593
    %920 = vmatpush.msra.mxu0 %v587
    %921 = vmatpush.msra.mxu0 %v581
    %922 = vmatpush.msra.mxu0 %v575
    %923 = vmatpush.msra.mxu0 %v569
    %924 = vmatpush.msra.mxu0 %v563
    %925 = vmatpush.msra.mxu0 %v557
    %926 = vmatmul.f32.gmra.mxu0 %v830
    %v927 = vpop.f32.mrf.mxu0
    %v928 = vadd.f32 0.0, %v927
    %929 = vdwg.mxu0
    %930 = vmatpush.msra.mxu0 %v648
    %931 = vmatpush.msra.mxu0 %v642
    %932 = vmatpush.msra.mxu0 %v636
    %933 = vmatpush.msra.mxu0 %v630
    %934 = vmatpush.msra.mxu0 %v624
    %935 = vmatpush.msra.mxu0 %v618
    %936 = vmatpush.msra.mxu0 %v612
    %937 = vmatpush.msra.mxu0 %v606
    %938 = vmatpush.msra.mxu0 %v600
    %939 = vmatpush.msra.mxu0 %v594
    %940 = vmatpush.msra.mxu0 %v588
    %941 = vmatpush.msra.mxu0 %v582
    %942 = vmatpush.msra.mxu0 %v576
    %943 = vmatpush.msra.mxu0 %v570
    %944 = vmatpush.msra.mxu0 %v564
    %945 = vmatpush.msra.mxu0 %v558
    %946 = vmatmul.f32.gmra.mxu0 %v830
    %v947 = vpop.f32.mrf.mxu0
    %v948 = vadd.f32 0.0, %v947
    %949 = vdwg.mxu0
    %950 = vmatpush.msra.mxu0 %v649
    %951 = vmatpush.msra.mxu0 %v643
    %952 = vmatpush.msra.mxu0 %v637
    %953 = vmatpush.msra.mxu0 %v631
    %954 = vmatpush.msra.mxu0 %v625
    %955 = vmatpush.msra.mxu0 %v619
    %956 = vmatpush.msra.mxu0 %v613
    %957 = vmatpush.msra.mxu0 %v607
    %958 = vmatpush.msra.mxu0 %v601
    %959 = vmatpush.msra.mxu0 %v595
    %960 = vmatpush.msra.mxu0 %v589
    %961 = vmatpush.msra.mxu0 %v583
    %962 = vmatpush.msra.mxu0 %v577
    %963 = vmatpush.msra.mxu0 %v571
    %964 = vmatpush.msra.mxu0 %v565
    %965 = vmatpush.msra.mxu0 %v559
    %966 = vmatmul.f32.gmra.mxu0 %v881
    %v967 = vpop.f32.mrf.mxu0
    %v968 = vadd.f32 0.0, %v967
    %969 = vdwg.mxu0
    %970 = vmatpush.msra.mxu0 %v650
    %971 = vmatpush.msra.mxu0 %v644
    %972 = vmatpush.msra.mxu0 %v638
    %973 = vmatpush.msra.mxu0 %v632
    %974 = vmatpush.msra.mxu0 %v626
    %975 = vmatpush.msra.mxu0 %v620
    %976 = vmatpush.msra.mxu0 %v614
    %977 = vmatpush.msra.mxu0 %v608
    %978 = vmatpush.msra.mxu0 %v602
    %979 = vmatpush.msra.mxu0 %v596
    %980 = vmatpush.msra.mxu0 %v590
    %981 = vmatpush.msra.mxu0 %v584
    %982 = vmatpush.msra.mxu0 %v578
    %983 = vmatpush.msra.mxu0 %v572
    %984 = vmatpush.msra.mxu0 %v566
    %985 = vmatpush.msra.mxu0 %v560
    %986 = vmatmul.f32.gmra.mxu0 %v881
    %v987 = vpop.f32.mrf.mxu0
    %v988 = vadd.f32 0.0, %v987
    %989 = vdwg.mxu0
    %990 = vmatpush.msra.mxu0 %v651
    %991 = vmatpush.msra.mxu0 %v645
    %992 = vmatpush.msra.mxu0 %v639
    %993 = vmatpush.msra.mxu0 %v633
    %994 = vmatpush.msra.mxu0 %v627
    %995 = vmatpush.msra.mxu0 %v621
    %996 = vmatpush.msra.mxu0 %v615
    %997 = vmatpush.msra.mxu0 %v609
    %998 = vmatpush.msra.mxu0 %v603
    %999 = vmatpush.msra.mxu0 %v597
    %1000 = vmatpush.msra.mxu0 %v591
    %1001 = vmatpush.msra.mxu0 %v585
    %1002 = vmatpush.msra.mxu0 %v579
    %1003 = vmatpush.msra.mxu0 %v573
    %1004 = vmatpush.msra.mxu0 %v567
    %1005 = vmatpush.msra.mxu0 %v561
    %1006 = vmatmul.f32.gmra.mxu0 %v881
    %v1007 = vpop.f32.mrf.mxu0
    %v1008 = vadd.f32 0.0, %v1007
    %1009 = vdwg.mxu0
    %v1010 = vadd.f32 %v884, %v908
    %v1011 = vxor.u32 %v1010, 2147483648
    %v1012 = vmul.f32 %v1011, 1.442695
    %v1013 = vpow.pop %v1012
    %v1014 = vadd.f32 %v1013, 1.0
    %v1015 = vrcp.pop %v1014
    %v1016 = vmul.f32 %v1014, %v1015
    %v1017 = vsub.f32 1.0, %v1016
    %v1018 = vmul.f32 %v1015, %v1017
    %v1019 = vadd.f32 %v1015, %v1018
    %vm1020 = vweird.f32 %v1014
    %vm1021 = vweird.f32 %v1015
    %vm1022 = vmor %vm1020, %vm1021
    %v1023 = vsel %vm1022, %v1015, %v1019
    %v1024 = vand.u32 2147483647, %v1014
    %vm1025 = vcmp.eq.f32.partialorder %v1024, 8.507059e+37
    %v1026 = vand.u32 %v1014, 2147483648
    %v1027 = vor.u32 1.1754944e-38, %v1026
    %v1028 = vsel %vm1025, %v1027, %v1023
    %v1029 = vmul.f32 1.0, %v1028
    %v1030 = vadd.f32 %v885, %v928
    %v1031 = vxor.u32 %v1030, 2147483648
    %v1032 = vmul.f32 %v1031, 1.442695
    %v1033 = vpow.pop %v1032
    %v1034 = vadd.f32 %v1033, 1.0
    %v1035 = vrcp.pop %v1034
    %v1036 = vmul.f32 %v1034, %v1035
    %v1037 = vsub.f32 1.0, %v1036
    %v1038 = vmul.f32 %v1035, %v1037
    %v1039 = vadd.f32 %v1035, %v1038
    %vm1040 = vweird.f32 %v1034
    %vm1041 = vweird.f32 %v1035
    %vm1042 = vmor %vm1040, %vm1041
    %v1043 = vsel %vm1042, %v1035, %v1039
    %v1044 = vand.u32 2147483647, %v1034
    %vm1045 = vcmp.eq.f32.partialorder %v1044, 8.507059e+37
    %v1046 = vand.u32 %v1034, 2147483648
    %v1047 = vor.u32 1.1754944e-38, %v1046
    %v1048 = vsel %vm1045, %v1047, %v1043
    %v1049 = vmul.f32 1.0, %v1048
    %v1050 = vadd.f32 %v948, %v821
    %v1051 = vmul.f32 %v1029, %v1050
    %v1052 = vadd.f32 %v886, %v1051
    %v1053 = vtanh.pop %v1052
    %v1054 = vsub.f32 1.0, %v1049
    %v1055 = vmul.f32 %v1054, %v1053
    %v1056 = vmul.f32 %v1049, %v830
    %v1057 = vadd.f32 %v1055, %v1056
    %v1058 = vadd.f32 %v887, %v968
    %v1059 = vxor.u32 %v1058, 2147483648
    %v1060 = vmul.f32 %v1059, 1.442695
    %v1061 = vpow.pop %v1060
    %v1062 = vadd.f32 %v1061, 1.0
    %v1063 = vrcp.pop %v1062
    %v1064 = vmul.f32 %v1062, %v1063
    %v1065 = vsub.f32 1.0, %v1064
    %v1066 = vmul.f32 %v1063, %v1065
    %v1067 = vadd.f32 %v1063, %v1066
    %vm1068 = vweird.f32 %v1062
    %vm1069 = vweird.f32 %v1063
    %vm1070 = vmor %vm1068, %vm1069
    %v1071 = vsel %vm1070, %v1063, %v1067
    %v1072 = vand.u32 2147483647, %v1062
    %vm1073 = vcmp.eq.f32.partialorder %v1072, 8.507059e+37
    %v1074 = vand.u32 %v1062, 2147483648
    %v1075 = vor.u32 1.1754944e-38, %v1074
    %v1076 = vsel %vm1073, %v1075, %v1071
    %v1077 = vmul.f32 1.0, %v1076
    %v1078 = vadd.f32 %v888, %v988
    %v1079 = vxor.u32 %v1078, 2147483648
    %v1080 = vmul.f32 %v1079, 1.442695
    %v1081 = vpow.pop %v1080
    %v1082 = vadd.f32 %v1081, 1.0
    %v1083 = vrcp.pop %v1082
    %v1084 = vmul.f32 %v1082, %v1083
    %v1085 = vsub.f32 1.0, %v1084
    %v1086 = vmul.f32 %v1083, %v1085
    %v1087 = vadd.f32 %v1083, %v1086
    %vm1088 = vweird.f32 %v1082
    %vm1089 = vweird.f32 %v1083
    %vm1090 = vmor %vm1088, %vm1089
    %v1091 = vsel %vm1090, %v1083, %v1087
    %v1092 = vand.u32 2147483647, %v1082
    %vm1093 = vcmp.eq.f32.partialorder %v1092, 8.507059e+37
    %v1094 = vand.u32 %v1082, 2147483648
    %v1095 = vor.u32 1.1754944e-38, %v1094
    %v1096 = vsel %vm1093, %v1095, %v1091
    %v1097 = vmul.f32 1.0, %v1096
    %v1098 = vadd.f32 %v1008, %v872
    %v1099 = vmul.f32 %v1077, %v1098
    %v1100 = vadd.f32 %v889, %v1099
    %v1101 = vtanh.pop %v1100
    %v1102 = vsub.f32 1.0, %v1097
    %v1103 = vmul.f32 %v1102, %v1101
    %v1104 = vmul.f32 %v1097, %v881
    %v1105 = vadd.f32 %v1103, %v1104
    %1106 = vst [vmem:[#allocation3 + $0x10] sm:$0xff] %v1057
    %1107 = vst [vmem:[#allocation3 + $0x68] sm:$0xff] %v1105
    %v1108 = vld [vmem:[#allocation2 + $0x60] sm:$0xff]
    %v1109 = vld [vmem:[#allocation2 + $0x68] sm:$0xff]
    %v1110 = vld [vmem:[#allocation2 + $0x70] sm:$0xff]
    %v1111 = vld [vmem:[#allocation2 + $0x108] sm:$0xff]
    %v1112 = vld [vmem:[#allocation2 + $0x110] sm:$0xff]
    %v1113 = vld [vmem:[#allocation2 + $0x118] sm:$0xff]
    %1114 = vmatpush.msra.mxu0 %v646
    %1115 = vmatpush.msra.mxu0 %v640
    %1116 = vmatpush.msra.mxu0 %v634
    %1117 = vmatpush.msra.mxu0 %v628
    %1118 = vmatpush.msra.mxu0 %v622
    %1119 = vmatpush.msra.mxu0 %v616
    %1120 = vmatpush.msra.mxu0 %v610
    %1121 = vmatpush.msra.mxu0 %v604
    %1122 = vmatpush.msra.mxu0 %v598
    %1123 = vmatpush.msra.mxu0 %v592
    %1124 = vmatpush.msra.mxu0 %v586
    %1125 = vmatpush.msra.mxu0 %v580
    %1126 = vmatpush.msra.mxu0 %v574
    %1127 = vmatpush.msra.mxu0 %v568
    %1128 = vmatpush.msra.mxu0 %v562
    %1129 = vmatpush.msra.mxu0 %v556
    %1130 = vmatmul.f32.gmra.mxu0 %v1057
    %v1131 = vpop.f32.mrf.mxu0
    %v1132 = vadd.f32 0.0, %v1131
    %1133 = vdwg.mxu0
    %1134 = vmatpush.msra.mxu0 %v647
    %1135 = vmatpush.msra.mxu0 %v641
    %1136 = vmatpush.msra.mxu0 %v635
    %1137 = vmatpush.msra.mxu0 %v629
    %1138 = vmatpush.msra.mxu0 %v623
    %1139 = vmatpush.msra.mxu0 %v617
    %1140 = vmatpush.msra.mxu0 %v611
    %1141 = vmatpush.msra.mxu0 %v605
    %1142 = vmatpush.msra.mxu0 %v599
    %1143 = vmatpush.msra.mxu0 %v593
    %1144 = vmatpush.msra.mxu0 %v587
    %1145 = vmatpush.msra.mxu0 %v581
    %1146 = vmatpush.msra.mxu0 %v575
    %1147 = vmatpush.msra.mxu0 %v569
    %1148 = vmatpush.msra.mxu0 %v563
    %1149 = vmatpush.msra.mxu0 %v557
    %1150 = vmatmul.f32.gmra.mxu0 %v1057
    %v1151 = vpop.f32.mrf.mxu0
    %v1152 = vadd.f32 0.0, %v1151
    %1153 = vdwg.mxu0
    %1154 = vmatpush.msra.mxu0 %v648
    %1155 = vmatpush.msra.mxu0 %v642
    %1156 = vmatpush.msra.mxu0 %v636
    %1157 = vmatpush.msra.mxu0 %v630
    %1158 = vmatpush.msra.mxu0 %v624
    %1159 = vmatpush.msra.mxu0 %v618
    %1160 = vmatpush.msra.mxu0 %v612
    %1161 = vmatpush.msra.mxu0 %v606
    %1162 = vmatpush.msra.mxu0 %v600
    %1163 = vmatpush.msra.mxu0 %v594
    %1164 = vmatpush.msra.mxu0 %v588
    %1165 = vmatpush.msra.mxu0 %v582
    %1166 = vmatpush.msra.mxu0 %v576
    %1167 = vmatpush.msra.mxu0 %v570
    %1168 = vmatpush.msra.mxu0 %v564
    %1169 = vmatpush.msra.mxu0 %v558
    %1170 = vmatmul.f32.gmra.mxu0 %v1057
    %v1171 = vpop.f32.mrf.mxu0
    %v1172 = vadd.f32 0.0, %v1171
    %1173 = vdwg.mxu0
    %1174 = vmatpush.msra.mxu0 %v649
    %1175 = vmatpush.msra.mxu0 %v643
    %1176 = vmatpush.msra.mxu0 %v637
    %1177 = vmatpush.msra.mxu0 %v631
    %1178 = vmatpush.msra.mxu0 %v625
    %1179 = vmatpush.msra.mxu0 %v619
    %1180 = vmatpush.msra.mxu0 %v613
    %1181 = vmatpush.msra.mxu0 %v607
    %1182 = vmatpush.msra.mxu0 %v601
    %1183 = vmatpush.msra.mxu0 %v595
    %1184 = vmatpush.msra.mxu0 %v589
    %1185 = vmatpush.msra.mxu0 %v583
    %1186 = vmatpush.msra.mxu0 %v577
    %1187 = vmatpush.msra.mxu0 %v571
    %1188 = vmatpush.msra.mxu0 %v565
    %1189 = vmatpush.msra.mxu0 %v559
    %1190 = vmatmul.f32.gmra.mxu0 %v1105
    %v1191 = vpop.f32.mrf.mxu0
    %v1192 = vadd.f32 0.0, %v1191
    %1193 = vdwg.mxu0
    %1194 = vmatpush.msra.mxu0 %v650
    %1195 = vmatpush.msra.mxu0 %v644
    %1196 = vmatpush.msra.mxu0 %v638
    %1197 = vmatpush.msra.mxu0 %v632
    %1198 = vmatpush.msra.mxu0 %v626
    %1199 = vmatpush.msra.mxu0 %v620
    %1200 = vmatpush.msra.mxu0 %v614
    %1201 = vmatpush.msra.mxu0 %v608
    %1202 = vmatpush.msra.mxu0 %v602
    %1203 = vmatpush.msra.mxu0 %v596
    %1204 = vmatpush.msra.mxu0 %v590
    %1205 = vmatpush.msra.mxu0 %v584
    %1206 = vmatpush.msra.mxu0 %v578
    %1207 = vmatpush.msra.mxu0 %v572
    %1208 = vmatpush.msra.mxu0 %v566
    %1209 = vmatpush.msra.mxu0 %v560
    %1210 = vmatmul.f32.gmra.mxu0 %v1105
    %v1211 = vpop.f32.mrf.mxu0
    %v1212 = vadd.f32 0.0, %v1211
    %1213 = vdwg.mxu0
    %1214 = vmatpush.msra.mxu0 %v651
    %1215 = vmatpush.msra.mxu0 %v645
    %1216 = vmatpush.msra.mxu0 %v639
    %1217 = vmatpush.msra.mxu0 %v633
    %1218 = vmatpush.msra.mxu0 %v627
    %1219 = vmatpush.msra.mxu0 %v621
    %1220 = vmatpush.msra.mxu0 %v615
    %1221 = vmatpush.msra.mxu0 %v609
    %1222 = vmatpush.msra.mxu0 %v603
    %1223 = vmatpush.msra.mxu0 %v597
    %1224 = vmatpush.msra.mxu0 %v591
    %1225 = vmatpush.msra.mxu0 %v585
    %1226 = vmatpush.msra.mxu0 %v579
    %1227 = vmatpush.msra.mxu0 %v573
    %1228 = vmatpush.msra.mxu0 %v567
    %1229 = vmatpush.msra.mxu0 %v561
    %1230 = vmatmul.f32.gmra.mxu0 %v1105
    %v1231 = vpop.f32.mrf.mxu0
    %v1232 = vadd.f32 0.0, %v1231
    %1233 = vdwg.mxu0
    %v1234 = vadd.f32 %v1108, %v1132
    %v1235 = vxor.u32 %v1234, 2147483648
    %v1236 = vmul.f32 %v1235, 1.442695
    %v1237 = vpow.pop %v1236
    %v1238 = vadd.f32 %v1237, 1.0
    %v1239 = vrcp.pop %v1238
    %v1240 = vmul.f32 %v1238, %v1239
    %v1241 = vsub.f32 1.0, %v1240
    %v1242 = vmul.f32 %v1239, %v1241
    %v1243 = vadd.f32 %v1239, %v1242
    %vm1244 = vweird.f32 %v1238
    %vm1245 = vweird.f32 %v1239
    %vm1246 = vmor %vm1244, %vm1245
    %v1247 = vsel %vm1246, %v1239, %v1243
    %v1248 = vand.u32 2147483647, %v1238
    %vm1249 = vcmp.eq.f32.partialorder %v1248, 8.507059e+37
    %v1250 = vand.u32 %v1238, 2147483648
    %v1251 = vor.u32 1.1754944e-38, %v1250
    %v1252 = vsel %vm1249, %v1251, %v1247
    %v1253 = vmul.f32 1.0, %v1252
    %v1254 = vadd.f32 %v1109, %v1152
    %v1255 = vxor.u32 %v1254, 2147483648
    %v1256 = vmul.f32 %v1255, 1.442695
    %v1257 = vpow.pop %v1256
    %v1258 = vadd.f32 %v1257, 1.0
    %v1259 = vrcp.pop %v1258
    %v1260 = vmul.f32 %v1258, %v1259
    %v1261 = vsub.f32 1.0, %v1260
    %v1262 = vmul.f32 %v1259, %v1261
    %v1263 = vadd.f32 %v1259, %v1262
    %vm1264 = vweird.f32 %v1258
    %vm1265 = vweird.f32 %v1259
    %vm1266 = vmor %vm1264, %vm1265
    %v1267 = vsel %vm1266, %v1259, %v1263
    %v1268 = vand.u32 2147483647, %v1258
    %vm1269 = vcmp.eq.f32.partialorder %v1268, 8.507059e+37
    %v1270 = vand.u32 %v1258, 2147483648
    %v1271 = vor.u32 1.1754944e-38, %v1270
    %v1272 = vsel %vm1269, %v1271, %v1267
    %v1273 = vmul.f32 1.0, %v1272
    %v1274 = vadd.f32 %v1172, %v821
    %v1275 = vmul.f32 %v1253, %v1274
    %v1276 = vadd.f32 %v1110, %v1275
    %v1277 = vtanh.pop %v1276
    %v1278 = vsub.f32 1.0, %v1273
    %v1279 = vmul.f32 %v1278, %v1277
    %v1280 = vmul.f32 %v1273, %v1057
    %v1281 = vadd.f32 %v1279, %v1280
    %v1282 = vadd.f32 %v1111, %v1192
    %v1283 = vxor.u32 %v1282, 2147483648
    %v1284 = vmul.f32 %v1283, 1.442695
    %v1285 = vpow.pop %v1284
    %v1286 = vadd.f32 %v1285, 1.0
    %v1287 = vrcp.pop %v1286
    %v1288 = vmul.f32 %v1286, %v1287
    %v1289 = vsub.f32 1.0, %v1288
    %v1290 = vmul.f32 %v1287, %v1289
    %v1291 = vadd.f32 %v1287, %v1290
    %vm1292 = vweird.f32 %v1286
    %vm1293 = vweird.f32 %v1287
    %vm1294 = vmor %vm1292, %vm1293
    %v1295 = vsel %vm1294, %v1287, %v1291
    %v1296 = vand.u32 2147483647, %v1286
    %vm1297 = vcmp.eq.f32.partialorder %v1296, 8.507059e+37
    %v1298 = vand.u32 %v1286, 2147483648
    %v1299 = vor.u32 1.1754944e-38, %v1298
    %v1300 = vsel %vm1297, %v1299, %v1295
    %v1301 = vmul.f32 1.0, %v1300
    %v1302 = vadd.f32 %v1112, %v1212
    %v1303 = vxor.u32 %v1302, 2147483648
    %v1304 = vmul.f32 %v1303, 1.442695
    %v1305 = vpow.pop %v1304
    %v1306 = vadd.f32 %v1305, 1.0
    %v1307 = vrcp.pop %v1306
    %v1308 = vmul.f32 %v1306, %v1307
    %v1309 = vsub.f32 1.0, %v1308
    %v1310 = vmul.f32 %v1307, %v1309
    %v1311 = vadd.f32 %v1307, %v1310
    %vm1312 = vweird.f32 %v1306
    %vm1313 = vweird.f32 %v1307
    %vm1314 = vmor %vm1312, %vm1313
    %v1315 = vsel %vm1314, %v1307, %v1311
    %v1316 = vand.u32 2147483647, %v1306
    %vm1317 = vcmp.eq.f32.partialorder %v1316, 8.507059e+37
    %v1318 = vand.u32 %v1306, 2147483648
    %v1319 = vor.u32 1.1754944e-38, %v1318
    %v1320 = vsel %vm1317, %v1319, %v1315
    %v1321 = vmul.f32 1.0, %v1320
    %v1322 = vadd.f32 %v1232, %v872
    %v1323 = vmul.f32 %v1301, %v1322
    %v1324 = vadd.f32 %v1113, %v1323
    %v1325 = vtanh.pop %v1324
    %v1326 = vsub.f32 1.0, %v1321
    %v1327 = vmul.f32 %v1326, %v1325
    %v1328 = vmul.f32 %v1321, %v1105
    %v1329 = vadd.f32 %v1327, %v1328
    %1330 = vst [vmem:[#allocation3 + $0x20] sm:$0xff] %v1281
    %1331 = vst [vmem:[#allocation3 + $0x58] sm:$0xff] %v1329
    %v1332 = vld [vmem:[#allocation2 + $0x90] sm:$0xff]
    %v1333 = vld [vmem:[#allocation2 + $0x98] sm:$0xff]
    %v1334 = vld [vmem:[#allocation2 + $0xa0] sm:$0xff]
    %v1335 = vld [vmem:[#allocation2 + $0xd8] sm:$0xff]
    %v1336 = vld [vmem:[#allocation2 + $0xe0] sm:$0xff]
    %v1337 = vld [vmem:[#allocation2 + $0xe8] sm:$0xff]
    %1338 = vmatpush.msra.mxu0 %v646
    %1339 = vmatpush.msra.mxu0 %v640
    %1340 = vmatpush.msra.mxu0 %v634
    %1341 = vmatpush.msra.mxu0 %v628
    %1342 = vmatpush.msra.mxu0 %v622
    %1343 = vmatpush.msra.mxu0 %v616
    %1344 = vmatpush.msra.mxu0 %v610
    %1345 = vmatpush.msra.mxu0 %v604
    %1346 = vmatpush.msra.mxu0 %v598
    %1347 = vmatpush.msra.mxu0 %v592
    %1348 = vmatpush.msra.mxu0 %v586
    %1349 = vmatpush.msra.mxu0 %v580
    %1350 = vmatpush.msra.mxu0 %v574
    %1351 = vmatpush.msra.mxu0 %v568
    %1352 = vmatpush.msra.mxu0 %v562
    %1353 = vmatpush.msra.mxu0 %v556
    %1354 = vmatmul.f32.gmra.mxu0 %v1281
    %v1355 = vpop.f32.mrf.mxu0
    %v1356 = vadd.f32 0.0, %v1355
    %1357 = vdwg.mxu0
    %1358 = vmatpush.msra.mxu0 %v647
    %1359 = vmatpush.msra.mxu0 %v641
    %1360 = vmatpush.msra.mxu0 %v635
    %1361 = vmatpush.msra.mxu0 %v629
    %1362 = vmatpush.msra.mxu0 %v623
    %1363 = vmatpush.msra.mxu0 %v617
    %1364 = vmatpush.msra.mxu0 %v611
    %1365 = vmatpush.msra.mxu0 %v605
    %1366 = vmatpush.msra.mxu0 %v599
    %1367 = vmatpush.msra.mxu0 %v593
    %1368 = vmatpush.msra.mxu0 %v587
    %1369 = vmatpush.msra.mxu0 %v581
    %1370 = vmatpush.msra.mxu0 %v575
    %1371 = vmatpush.msra.mxu0 %v569
    %1372 = vmatpush.msra.mxu0 %v563
    %1373 = vmatpush.msra.mxu0 %v557
    %1374 = vmatmul.f32.gmra.mxu0 %v1281
    %v1375 = vpop.f32.mrf.mxu0
    %v1376 = vadd.f32 0.0, %v1375
    %1377 = vdwg.mxu0
    %1378 = vmatpush.msra.mxu0 %v648
    %1379 = vmatpush.msra.mxu0 %v642
    %1380 = vmatpush.msra.mxu0 %v636
    %1381 = vmatpush.msra.mxu0 %v630
    %1382 = vmatpush.msra.mxu0 %v624
    %1383 = vmatpush.msra.mxu0 %v618
    %1384 = vmatpush.msra.mxu0 %v612
    %1385 = vmatpush.msra.mxu0 %v606
    %1386 = vmatpush.msra.mxu0 %v600
    %1387 = vmatpush.msra.mxu0 %v594
    %1388 = vmatpush.msra.mxu0 %v588
    %1389 = vmatpush.msra.mxu0 %v582
    %1390 = vmatpush.msra.mxu0 %v576
    %1391 = vmatpush.msra.mxu0 %v570
    %1392 = vmatpush.msra.mxu0 %v564
    %1393 = vmatpush.msra.mxu0 %v558
    %1394 = vmatmul.f32.gmra.mxu0 %v1281
    %v1395 = vpop.f32.mrf.mxu0
    %v1396 = vadd.f32 0.0, %v1395
    %1397 = vdwg.mxu0
    %1398 = vmatpush.msra.mxu0 %v649
    %1399 = vmatpush.msra.mxu0 %v643
    %1400 = vmatpush.msra.mxu0 %v637
    %1401 = vmatpush.msra.mxu0 %v631
    %1402 = vmatpush.msra.mxu0 %v625
    %1403 = vmatpush.msra.mxu0 %v619
    %1404 = vmatpush.msra.mxu0 %v613
    %1405 = vmatpush.msra.mxu0 %v607
    %1406 = vmatpush.msra.mxu0 %v601
    %1407 = vmatpush.msra.mxu0 %v595
    %1408 = vmatpush.msra.mxu0 %v589
    %1409 = vmatpush.msra.mxu0 %v583
    %1410 = vmatpush.msra.mxu0 %v577
    %1411 = vmatpush.msra.mxu0 %v571
    %1412 = vmatpush.msra.mxu0 %v565
    %1413 = vmatpush.msra.mxu0 %v559
    %1414 = vmatmul.f32.gmra.mxu0 %v1329
    %v1415 = vpop.f32.mrf.mxu0
    %v1416 = vadd.f32 0.0, %v1415
    %1417 = vdwg.mxu0
    %1418 = vmatpush.msra.mxu0 %v650
    %1419 = vmatpush.msra.mxu0 %v644
    %1420 = vmatpush.msra.mxu0 %v638
    %1421 = vmatpush.msra.mxu0 %v632
    %1422 = vmatpush.msra.mxu0 %v626
    %1423 = vmatpush.msra.mxu0 %v620
    %1424 = vmatpush.msra.mxu0 %v614
    %1425 = vmatpush.msra.mxu0 %v608
    %1426 = vmatpush.msra.mxu0 %v602
    %1427 = vmatpush.msra.mxu0 %v596
    %1428 = vmatpush.msra.mxu0 %v590
    %1429 = vmatpush.msra.mxu0 %v584
    %1430 = vmatpush.msra.mxu0 %v578
    %1431 = vmatpush.msra.mxu0 %v572
    %1432 = vmatpush.msra.mxu0 %v566
    %1433 = vmatpush.msra.mxu0 %v560
    %1434 = vmatmul.f32.gmra.mxu0 %v1329
    %v1435 = vpop.f32.mrf.mxu0
    %v1436 = vadd.f32 0.0, %v1435
    %1437 = vdwg.mxu0
    %1438 = vmatpush.msra.mxu0 %v651
    %1439 = vmatpush.msra.mxu0 %v645
    %1440 = vmatpush.msra.mxu0 %v639
    %1441 = vmatpush.msra.mxu0 %v633
    %1442 = vmatpush.msra.mxu0 %v627
    %1443 = vmatpush.msra.mxu0 %v621
    %1444 = vmatpush.msra.mxu0 %v615
    %1445 = vmatpush.msra.mxu0 %v609
    %1446 = vmatpush.msra.mxu0 %v603
    %1447 = vmatpush.msra.mxu0 %v597
    %1448 = vmatpush.msra.mxu0 %v591
    %1449 = vmatpush.msra.mxu0 %v585
    %1450 = vmatpush.msra.mxu0 %v579
    %1451 = vmatpush.msra.mxu0 %v573
    %1452 = vmatpush.msra.mxu0 %v567
    %1453 = vmatpush.msra.mxu0 %v561
    %1454 = vmatmul.f32.gmra.mxu0 %v1329
    %v1455 = vpop.f32.mrf.mxu0
    %v1456 = vadd.f32 0.0, %v1455
    %1457 = vdwg.mxu0
    %v1458 = vadd.f32 %v1332, %v1356
    %v1459 = vxor.u32 %v1458, 2147483648
    %v1460 = vmul.f32 %v1459, 1.442695
    %v1461 = vpow.pop %v1460
    %v1462 = vadd.f32 %v1461, 1.0
    %v1463 = vrcp.pop %v1462
    %v1464 = vmul.f32 %v1462, %v1463
    %v1465 = vsub.f32 1.0, %v1464
    %v1466 = vmul.f32 %v1463, %v1465
    %v1467 = vadd.f32 %v1463, %v1466
    %vm1468 = vweird.f32 %v1462
    %vm1469 = vweird.f32 %v1463
    %vm1470 = vmor %vm1468, %vm1469
    %v1471 = vsel %vm1470, %v1463, %v1467
    %v1472 = vand.u32 2147483647, %v1462
    %vm1473 = vcmp.eq.f32.partialorder %v1472, 8.507059e+37
    %v1474 = vand.u32 %v1462, 2147483648
    %v1475 = vor.u32 1.1754944e-38, %v1474
    %v1476 = vsel %vm1473, %v1475, %v1471
    %v1477 = vmul.f32 1.0, %v1476
    %v1478 = vadd.f32 %v1333, %v1376
    %v1479 = vxor.u32 %v1478, 2147483648
    %v1480 = vmul.f32 %v1479, 1.442695
    %v1481 = vpow.pop %v1480
    %v1482 = vadd.f32 %v1481, 1.0
    %v1483 = vrcp.pop %v1482
    %v1484 = vmul.f32 %v1482, %v1483
    %v1485 = vsub.f32 1.0, %v1484
    %v1486 = vmul.f32 %v1483, %v1485
    %v1487 = vadd.f32 %v1483, %v1486
    %vm1488 = vweird.f32 %v1482
    %vm1489 = vweird.f32 %v1483
    %vm1490 = vmor %vm1488, %vm1489
    %v1491 = vsel %vm1490, %v1483, %v1487
    %v1492 = vand.u32 2147483647, %v1482
    %vm1493 = vcmp.eq.f32.partialorder %v1492, 8.507059e+37
    %v1494 = vand.u32 %v1482, 2147483648
    %v1495 = vor.u32 1.1754944e-38, %v1494
    %v1496 = vsel %vm1493, %v1495, %v1491
    %v1497 = vmul.f32 1.0, %v1496
    %v1498 = vadd.f32 %v1396, %v821
    %v1499 = vmul.f32 %v1477, %v1498
    %v1500 = vadd.f32 %v1334, %v1499
    %v1501 = vtanh.pop %v1500
    %v1502 = vsub.f32 1.0, %v1497
    %v1503 = vmul.f32 %v1502, %v1501
    %v1504 = vmul.f32 %v1497, %v1281
    %v1505 = vadd.f32 %v1503, %v1504
    %v1506 = vadd.f32 %v1335, %v1416
    %v1507 = vxor.u32 %v1506, 2147483648
    %v1508 = vmul.f32 %v1507, 1.442695
    %v1509 = vpow.pop %v1508
    %v1510 = vadd.f32 %v1509, 1.0
    %v1511 = vrcp.pop %v1510
    %v1512 = vmul.f32 %v1510, %v1511
    %v1513 = vsub.f32 1.0, %v1512
    %v1514 = vmul.f32 %v1511, %v1513
    %v1515 = vadd.f32 %v1511, %v1514
    %vm1516 = vweird.f32 %v1510
    %vm1517 = vweird.f32 %v1511
    %vm1518 = vmor %vm1516, %vm1517
    %v1519 = vsel %vm1518, %v1511, %v1515
    %v1520 = vand.u32 2147483647, %v1510
    %vm1521 = vcmp.eq.f32.partialorder %v1520, 8.507059e+37
    %v1522 = vand.u32 %v1510, 2147483648
    %v1523 = vor.u32 1.1754944e-38, %v1522
    %v1524 = vsel %vm1521, %v1523, %v1519
    %v1525 = vmul.f32 1.0, %v1524
    %v1526 = vadd.f32 %v1336, %v1436
    %v1527 = vxor.u32 %v1526, 2147483648
    %v1528 = vmul.f32 %v1527, 1.442695
    %v1529 = vpow.pop %v1528
    %v1530 = vadd.f32 %v1529, 1.0
    %v1531 = vrcp.pop %v1530
    %v1532 = vmul.f32 %v1530, %v1531
    %v1533 = vsub.f32 1.0, %v1532
    %v1534 = vmul.f32 %v1531, %v1533
    %v1535 = vadd.f32 %v1531, %v1534
    %vm1536 = vweird.f32 %v1530
    %vm1537 = vweird.f32 %v1531
    %vm1538 = vmor %vm1536, %vm1537
    %v1539 = vsel %vm1538, %v1531, %v1535
    %v1540 = vand.u32 2147483647, %v1530
    %vm1541 = vcmp.eq.f32.partialorder %v1540, 8.507059e+37
    %v1542 = vand.u32 %v1530, 2147483648
    %v1543 = vor.u32 1.1754944e-38, %v1542
    %v1544 = vsel %vm1541, %v1543, %v1539
    %v1545 = vmul.f32 1.0, %v1544
    %v1546 = vadd.f32 %v1456, %v872
    %v1547 = vmul.f32 %v1525, %v1546
    %v1548 = vadd.f32 %v1337, %v1547
    %v1549 = vtanh.pop %v1548
    %v1550 = vsub.f32 1.0, %v1545
    %v1551 = vmul.f32 %v1550, %v1549
    %v1552 = vmul.f32 %v1545, %v1329
    %v1553 = vadd.f32 %v1551, %v1552
    %1554 = vst [vmem:[#allocation3 + $0x30] sm:$0xff] %v1505
    %1555 = vst [vmem:[#allocation3 + $0x48] sm:$0xff] %v1553
    %v1556 = vld [vmem:[#allocation2 + $0xc0] sm:$0xff]
    %v1557 = vld [vmem:[#allocation2 + $0xc8] sm:$0xff]
    %v1558 = vld [vmem:[#allocation2 + $0xd0] sm:$0xff]
    %v1559 = vld [vmem:[#allocation2 + $0xa8] sm:$0xff]
    %v1560 = vld [vmem:[#allocation2 + $0xb0] sm:$0xff]
    %v1561 = vld [vmem:[#allocation2 + $0xb8] sm:$0xff]
    %1562 = vmatpush.msra.mxu0 %v646
    %1563 = vmatpush.msra.mxu0 %v640
    %1564 = vmatpush.msra.mxu0 %v634
    %1565 = vmatpush.msra.mxu0 %v628
    %1566 = vmatpush.msra.mxu0 %v622
    %1567 = vmatpush.msra.mxu0 %v616
    %1568 = vmatpush.msra.mxu0 %v610
    %1569 = vmatpush.msra.mxu0 %v604
    %1570 = vmatpush.msra.mxu0 %v598
    %1571 = vmatpush.msra.mxu0 %v592
    %1572 = vmatpush.msra.mxu0 %v586
    %1573 = vmatpush.msra.mxu0 %v580
    %1574 = vmatpush.msra.mxu0 %v574
    %1575 = vmatpush.msra.mxu0 %v568
    %1576 = vmatpush.msra.mxu0 %v562
    %1577 = vmatpush.msra.mxu0 %v556
    %1578 = vmatmul.f32.gmra.mxu0 %v1505
    %v1579 = vpop.f32.mrf.mxu0
    %v1580 = vadd.f32 0.0, %v1579
    %1581 = vdwg.mxu0
    %1582 = vmatpush.msra.mxu0 %v647
    %1583 = vmatpush.msra.mxu0 %v641
    %1584 = vmatpush.msra.mxu0 %v635
    %1585 = vmatpush.msra.mxu0 %v629
    %1586 = vmatpush.msra.mxu0 %v623
    %1587 = vmatpush.msra.mxu0 %v617
    %1588 = vmatpush.msra.mxu0 %v611
    %1589 = vmatpush.msra.mxu0 %v605
    %1590 = vmatpush.msra.mxu0 %v599
    %1591 = vmatpush.msra.mxu0 %v593
    %1592 = vmatpush.msra.mxu0 %v587
    %1593 = vmatpush.msra.mxu0 %v581
    %1594 = vmatpush.msra.mxu0 %v575
    %1595 = vmatpush.msra.mxu0 %v569
    %1596 = vmatpush.msra.mxu0 %v563
    %1597 = vmatpush.msra.mxu0 %v557
    %1598 = vmatmul.f32.gmra.mxu0 %v1505
    %v1599 = vpop.f32.mrf.mxu0
    %v1600 = vadd.f32 0.0, %v1599
    %1601 = vdwg.mxu0
    %1602 = vmatpush.msra.mxu0 %v648
    %1603 = vmatpush.msra.mxu0 %v642
    %1604 = vmatpush.msra.mxu0 %v636
    %1605 = vmatpush.msra.mxu0 %v630
    %1606 = vmatpush.msra.mxu0 %v624
    %1607 = vmatpush.msra.mxu0 %v618
    %1608 = vmatpush.msra.mxu0 %v612
    %1609 = vmatpush.msra.mxu0 %v606
    %1610 = vmatpush.msra.mxu0 %v600
    %1611 = vmatpush.msra.mxu0 %v594
    %1612 = vmatpush.msra.mxu0 %v588
    %1613 = vmatpush.msra.mxu0 %v582
    %1614 = vmatpush.msra.mxu0 %v576
    %1615 = vmatpush.msra.mxu0 %v570
    %1616 = vmatpush.msra.mxu0 %v564
    %1617 = vmatpush.msra.mxu0 %v558
    %1618 = vmatmul.f32.gmra.mxu0 %v1505
    %v1619 = vpop.f32.mrf.mxu0
    %v1620 = vadd.f32 0.0, %v1619
    %1621 = vdwg.mxu0
    %1622 = vmatpush.msra.mxu0 %v649
    %1623 = vmatpush.msra.mxu0 %v643
    %1624 = vmatpush.msra.mxu0 %v637
    %1625 = vmatpush.msra.mxu0 %v631
    %1626 = vmatpush.msra.mxu0 %v625
    %1627 = vmatpush.msra.mxu0 %v619
    %1628 = vmatpush.msra.mxu0 %v613
    %1629 = vmatpush.msra.mxu0 %v607
    %1630 = vmatpush.msra.mxu0 %v601
    %1631 = vmatpush.msra.mxu0 %v595
    %1632 = vmatpush.msra.mxu0 %v589
    %1633 = vmatpush.msra.mxu0 %v583
    %1634 = vmatpush.msra.mxu0 %v577
    %1635 = vmatpush.msra.mxu0 %v571
    %1636 = vmatpush.msra.mxu0 %v565
    %1637 = vmatpush.msra.mxu0 %v559
    %1638 = vmatmul.f32.gmra.mxu0 %v1553
    %v1639 = vpop.f32.mrf.mxu0
    %v1640 = vadd.f32 0.0, %v1639
    %1641 = vdwg.mxu0
    %1642 = vmatpush.msra.mxu0 %v650
    %1643 = vmatpush.msra.mxu0 %v644
    %1644 = vmatpush.msra.mxu0 %v638
    %1645 = vmatpush.msra.mxu0 %v632
    %1646 = vmatpush.msra.mxu0 %v626
    %1647 = vmatpush.msra.mxu0 %v620
    %1648 = vmatpush.msra.mxu0 %v614
    %1649 = vmatpush.msra.mxu0 %v608
    %1650 = vmatpush.msra.mxu0 %v602
    %1651 = vmatpush.msra.mxu0 %v596
    %1652 = vmatpush.msra.mxu0 %v590
    %1653 = vmatpush.msra.mxu0 %v584
    %1654 = vmatpush.msra.mxu0 %v578
    %1655 = vmatpush.msra.mxu0 %v572
    %1656 = vmatpush.msra.mxu0 %v566
    %1657 = vmatpush.msra.mxu0 %v560
    %1658 = vmatmul.f32.gmra.mxu0 %v1553
    %v1659 = vpop.f32.mrf.mxu0
    %v1660 = vadd.f32 0.0, %v1659
    %1661 = vdwg.mxu0
    %1662 = vmatpush.msra.mxu0 %v651
    %1663 = vmatpush.msra.mxu0 %v645
    %1664 = vmatpush.msra.mxu0 %v639
    %1665 = vmatpush.msra.mxu0 %v633
    %1666 = vmatpush.msra.mxu0 %v627
    %1667 = vmatpush.msra.mxu0 %v621
    %1668 = vmatpush.msra.mxu0 %v615
    %1669 = vmatpush.msra.mxu0 %v609
    %1670 = vmatpush.msra.mxu0 %v603
    %1671 = vmatpush.msra.mxu0 %v597
    %1672 = vmatpush.msra.mxu0 %v591
    %1673 = vmatpush.msra.mxu0 %v585
    %1674 = vmatpush.msra.mxu0 %v579
    %1675 = vmatpush.msra.mxu0 %v573
    %1676 = vmatpush.msra.mxu0 %v567
    %1677 = vmatpush.msra.mxu0 %v561
    %1678 = vmatmul.f32.gmra.mxu0 %v1553
    %v1679 = vpop.f32.mrf.mxu0
    %v1680 = vadd.f32 0.0, %v1679
    %1681 = vdwg.mxu0
    %v1682 = vadd.f32 %v1556, %v1580
    %v1683 = vxor.u32 %v1682, 2147483648
    %v1684 = vmul.f32 %v1683, 1.442695
    %v1685 = vpow.pop %v1684
    %v1686 = vadd.f32 %v1685, 1.0
    %v1687 = vrcp.pop %v1686
    %v1688 = vmul.f32 %v1686, %v1687
    %v1689 = vsub.f32 1.0, %v1688
    %v1690 = vmul.f32 %v1687, %v1689
    %v1691 = vadd.f32 %v1687, %v1690
    %vm1692 = vweird.f32 %v1686
    %vm1693 = vweird.f32 %v1687
    %vm1694 = vmor %vm1692, %vm1693
    %v1695 = vsel %vm1694, %v1687, %v1691
    %v1696 = vand.u32 2147483647, %v1686
    %vm1697 = vcmp.eq.f32.partialorder %v1696, 8.507059e+37
    %v1698 = vand.u32 %v1686, 2147483648
    %v1699 = vor.u32 1.1754944e-38, %v1698
    %v1700 = vsel %vm1697, %v1699, %v1695
    %v1701 = vmul.f32 1.0, %v1700
    %v1702 = vadd.f32 %v1557, %v1600
    %v1703 = vxor.u32 %v1702, 2147483648
    %v1704 = vmul.f32 %v1703, 1.442695
    %v1705 = vpow.pop %v1704
    %v1706 = vadd.f32 %v1705, 1.0
    %v1707 = vrcp.pop %v1706
    %v1708 = vmul.f32 %v1706, %v1707
    %v1709 = vsub.f32 1.0, %v1708
    %v1710 = vmul.f32 %v1707, %v1709
    %v1711 = vadd.f32 %v1707, %v1710
    %vm1712 = vweird.f32 %v1706
    %vm1713 = vweird.f32 %v1707
    %vm1714 = vmor %vm1712, %vm1713
    %v1715 = vsel %vm1714, %v1707, %v1711
    %v1716 = vand.u32 2147483647, %v1706
    %vm1717 = vcmp.eq.f32.partialorder %v1716, 8.507059e+37
    %v1718 = vand.u32 %v1706, 2147483648
    %v1719 = vor.u32 1.1754944e-38, %v1718
    %v1720 = vsel %vm1717, %v1719, %v1715
    %v1721 = vmul.f32 1.0, %v1720
    %v1722 = vadd.f32 %v1620, %v821
    %v1723 = vmul.f32 %v1701, %v1722
    %v1724 = vadd.f32 %v1558, %v1723
    %v1725 = vtanh.pop %v1724
    %v1726 = vsub.f32 1.0, %v1721
    %v1727 = vmul.f32 %v1726, %v1725
    %v1728 = vmul.f32 %v1721, %v1505
    %v1729 = vadd.f32 %v1727, %v1728
    %v1730 = vadd.f32 %v1559, %v1640
    %v1731 = vxor.u32 %v1730, 2147483648
    %v1732 = vmul.f32 %v1731, 1.442695
    %v1733 = vpow.pop %v1732
    %v1734 = vadd.f32 %v1733, 1.0
    %v1735 = vrcp.pop %v1734
    %v1736 = vmul.f32 %v1734, %v1735
    %v1737 = vsub.f32 1.0, %v1736
    %v1738 = vmul.f32 %v1735, %v1737
    %v1739 = vadd.f32 %v1735, %v1738
    %vm1740 = vweird.f32 %v1734
    %vm1741 = vweird.f32 %v1735
    %vm1742 = vmor %vm1740, %vm1741
    %v1743 = vsel %vm1742, %v1735, %v1739
    %v1744 = vand.u32 2147483647, %v1734
    %vm1745 = vcmp.eq.f32.partialorder %v1744, 8.507059e+37
    %v1746 = vand.u32 %v1734, 2147483648
    %v1747 = vor.u32 1.1754944e-38, %v1746
    %v1748 = vsel %vm1745, %v1747, %v1743
    %v1749 = vmul.f32 1.0, %v1748
    %v1750 = vadd.f32 %v1560, %v1660
    %v1751 = vxor.u32 %v1750, 2147483648
    %v1752 = vmul.f32 %v1751, 1.442695
    %v1753 = vpow.pop %v1752
    %v1754 = vadd.f32 %v1753, 1.0
    %v1755 = vrcp.pop %v1754
    %v1756 = vmul.f32 %v1754, %v1755
    %v1757 = vsub.f32 1.0, %v1756
    %v1758 = vmul.f32 %v1755, %v1757
    %v1759 = vadd.f32 %v1755, %v1758
    %vm1760 = vweird.f32 %v1754
    %vm1761 = vweird.f32 %v1755
    %vm1762 = vmor %vm1760, %vm1761
    %v1763 = vsel %vm1762, %v1755, %v1759
    %v1764 = vand.u32 2147483647, %v1754
    %vm1765 = vcmp.eq.f32.partialorder %v1764, 8.507059e+37
    %v1766 = vand.u32 %v1754, 2147483648
    %v1767 = vor.u32 1.1754944e-38, %v1766
    %v1768 = vsel %vm1765, %v1767, %v1763
    %v1769 = vmul.f32 1.0, %v1768
    %v1770 = vadd.f32 %v1680, %v872
    %v1771 = vmul.f32 %v1749, %v1770
    %v1772 = vadd.f32 %v1561, %v1771
    %v1773 = vtanh.pop %v1772
    %v1774 = vsub.f32 1.0, %v1769
    %v1775 = vmul.f32 %v1774, %v1773
    %v1776 = vmul.f32 %v1769, %v1553
    %v1777 = vadd.f32 %v1775, %v1776
    %1778 = vst [vmem:[#allocation3 + $0x40] sm:$0xff] %v1729
    %1779 = vst [vmem:[#allocation3 + $0x38] sm:$0xff] %v1777
    %v1780 = vld [vmem:[#allocation2 + $0xf0] sm:$0xff]
    %v1781 = vld [vmem:[#allocation2 + $0xf8] sm:$0xff]
    %v1782 = vld [vmem:[#allocation2 + $0x100] sm:$0xff]
    %v1783 = vld [vmem:[#allocation2 + $0x78] sm:$0xff]
    %v1784 = vld [vmem:[#allocation2 + $0x80] sm:$0xff]
    %v1785 = vld [vmem:[#allocation2 + $0x88] sm:$0xff]
    %1786 = vmatpush.msra.mxu0 %v646
    %1787 = vmatpush.msra.mxu0 %v640
    %1788 = vmatpush.msra.mxu0 %v634
    %1789 = vmatpush.msra.mxu0 %v628
    %1790 = vmatpush.msra.mxu0 %v622
    %1791 = vmatpush.msra.mxu0 %v616
    %1792 = vmatpush.msra.mxu0 %v610
    %1793 = vmatpush.msra.mxu0 %v604
    %1794 = vmatpush.msra.mxu0 %v598
    %1795 = vmatpush.msra.mxu0 %v592
    %1796 = vmatpush.msra.mxu0 %v586
    %1797 = vmatpush.msra.mxu0 %v580
    %1798 = vmatpush.msra.mxu0 %v574
    %1799 = vmatpush.msra.mxu0 %v568
    %1800 = vmatpush.msra.mxu0 %v562
    %1801 = vmatpush.msra.mxu0 %v556
    %1802 = vmatmul.f32.gmra.mxu0 %v1729
    %v1803 = vpop.f32.mrf.mxu0
    %v1804 = vadd.f32 0.0, %v1803
    %1805 = vdwg.mxu0
    %1806 = vmatpush.msra.mxu0 %v647
    %1807 = vmatpush.msra.mxu0 %v641
    %1808 = vmatpush.msra.mxu0 %v635
    %1809 = vmatpush.msra.mxu0 %v629
    %1810 = vmatpush.msra.mxu0 %v623
    %1811 = vmatpush.msra.mxu0 %v617
    %1812 = vmatpush.msra.mxu0 %v611
    %1813 = vmatpush.msra.mxu0 %v605
    %1814 = vmatpush.msra.mxu0 %v599
    %1815 = vmatpush.msra.mxu0 %v593
    %1816 = vmatpush.msra.mxu0 %v587
    %1817 = vmatpush.msra.mxu0 %v581
    %1818 = vmatpush.msra.mxu0 %v575
    %1819 = vmatpush.msra.mxu0 %v569
    %1820 = vmatpush.msra.mxu0 %v563
    %1821 = vmatpush.msra.mxu0 %v557
    %1822 = vmatmul.f32.gmra.mxu0 %v1729
    %v1823 = vpop.f32.mrf.mxu0
    %v1824 = vadd.f32 0.0, %v1823
    %1825 = vdwg.mxu0
    %1826 = vmatpush.msra.mxu0 %v648
    %1827 = vmatpush.msra.mxu0 %v642
    %1828 = vmatpush.msra.mxu0 %v636
    %1829 = vmatpush.msra.mxu0 %v630
    %1830 = vmatpush.msra.mxu0 %v624
    %1831 = vmatpush.msra.mxu0 %v618
    %1832 = vmatpush.msra.mxu0 %v612
    %1833 = vmatpush.msra.mxu0 %v606
    %1834 = vmatpush.msra.mxu0 %v600
    %1835 = vmatpush.msra.mxu0 %v594
    %1836 = vmatpush.msra.mxu0 %v588
    %1837 = vmatpush.msra.mxu0 %v582
    %1838 = vmatpush.msra.mxu0 %v576
    %1839 = vmatpush.msra.mxu0 %v570
    %1840 = vmatpush.msra.mxu0 %v564
    %1841 = vmatpush.msra.mxu0 %v558
    %1842 = vmatmul.f32.gmra.mxu0 %v1729
    %v1843 = vpop.f32.mrf.mxu0
    %v1844 = vadd.f32 0.0, %v1843
    %1845 = vdwg.mxu0
    %1846 = vmatpush.msra.mxu0 %v649
    %1847 = vmatpush.msra.mxu0 %v643
    %1848 = vmatpush.msra.mxu0 %v637
    %1849 = vmatpush.msra.mxu0 %v631
    %1850 = vmatpush.msra.mxu0 %v625
    %1851 = vmatpush.msra.mxu0 %v619
    %1852 = vmatpush.msra.mxu0 %v613
    %1853 = vmatpush.msra.mxu0 %v607
    %1854 = vmatpush.msra.mxu0 %v601
    %1855 = vmatpush.msra.mxu0 %v595
    %1856 = vmatpush.msra.mxu0 %v589
    %1857 = vmatpush.msra.mxu0 %v583
    %1858 = vmatpush.msra.mxu0 %v577
    %1859 = vmatpush.msra.mxu0 %v571
    %1860 = vmatpush.msra.mxu0 %v565
    %1861 = vmatpush.msra.mxu0 %v559
    %1862 = vmatmul.f32.gmra.mxu0 %v1777
    %v1863 = vpop.f32.mrf.mxu0
    %v1864 = vadd.f32 0.0, %v1863
    %1865 = vdwg.mxu0
    %1866 = vmatpush.msra.mxu0 %v650
    %1867 = vmatpush.msra.mxu0 %v644
    %1868 = vmatpush.msra.mxu0 %v638
    %1869 = vmatpush.msra.mxu0 %v632
    %1870 = vmatpush.msra.mxu0 %v626
    %1871 = vmatpush.msra.mxu0 %v620
    %1872 = vmatpush.msra.mxu0 %v614
    %1873 = vmatpush.msra.mxu0 %v608
    %1874 = vmatpush.msra.mxu0 %v602
    %1875 = vmatpush.msra.mxu0 %v596
    %1876 = vmatpush.msra.mxu0 %v590
    %1877 = vmatpush.msra.mxu0 %v584
    %1878 = vmatpush.msra.mxu0 %v578
    %1879 = vmatpush.msra.mxu0 %v572
    %1880 = vmatpush.msra.mxu0 %v566
    %1881 = vmatpush.msra.mxu0 %v560
    %1882 = vmatmul.f32.gmra.mxu0 %v1777
    %v1883 = vpop.f32.mrf.mxu0
    %v1884 = vadd.f32 0.0, %v1883
    %1885 = vdwg.mxu0
    %1886 = vmatpush.msra.mxu0 %v651
    %1887 = vmatpush.msra.mxu0 %v645
    %1888 = vmatpush.msra.mxu0 %v639
    %1889 = vmatpush.msra.mxu0 %v633
    %1890 = vmatpush.msra.mxu0 %v627
    %1891 = vmatpush.msra.mxu0 %v621
    %1892 = vmatpush.msra.mxu0 %v615
    %1893 = vmatpush.msra.mxu0 %v609
    %1894 = vmatpush.msra.mxu0 %v603
    %1895 = vmatpush.msra.mxu0 %v597
    %1896 = vmatpush.msra.mxu0 %v591
    %1897 = vmatpush.msra.mxu0 %v585
    %1898 = vmatpush.msra.mxu0 %v579
    %1899 = vmatpush.msra.mxu0 %v573
    %1900 = vmatpush.msra.mxu0 %v567
    %1901 = vmatpush.msra.mxu0 %v561
    %1902 = vmatmul.f32.gmra.mxu0 %v1777
    %v1903 = vpop.f32.mrf.mxu0
    %v1904 = vadd.f32 0.0, %v1903
    %1905 = vdwg.mxu0
    %v1906 = vadd.f32 %v1780, %v1804
    %v1907 = vxor.u32 %v1906, 2147483648
    %v1908 = vmul.f32 %v1907, 1.442695
    %v1909 = vpow.pop %v1908
    %v1910 = vadd.f32 %v1909, 1.0
    %v1911 = vrcp.pop %v1910
    %v1912 = vmul.f32 %v1910, %v1911
    %v1913 = vsub.f32 1.0, %v1912
    %v1914 = vmul.f32 %v1911, %v1913
    %v1915 = vadd.f32 %v1911, %v1914
    %vm1916 = vweird.f32 %v1910
    %vm1917 = vweird.f32 %v1911
    %vm1918 = vmor %vm1916, %vm1917
    %v1919 = vsel %vm1918, %v1911, %v1915
    %v1920 = vand.u32 2147483647, %v1910
    %vm1921 = vcmp.eq.f32.partialorder %v1920, 8.507059e+37
    %v1922 = vand.u32 %v1910, 2147483648
    %v1923 = vor.u32 1.1754944e-38, %v1922
    %v1924 = vsel %vm1921, %v1923, %v1919
    %v1925 = vmul.f32 1.0, %v1924
    %v1926 = vadd.f32 %v1781, %v1824
    %v1927 = vxor.u32 %v1926, 2147483648
    %v1928 = vmul.f32 %v1927, 1.442695
    %v1929 = vpow.pop %v1928
    %v1930 = vadd.f32 %v1929, 1.0
    %v1931 = vrcp.pop %v1930
    %v1932 = vmul.f32 %v1930, %v1931
    %v1933 = vsub.f32 1.0, %v1932
    %v1934 = vmul.f32 %v1931, %v1933
    %v1935 = vadd.f32 %v1931, %v1934
    %vm1936 = vweird.f32 %v1930
    %vm1937 = vweird.f32 %v1931
    %vm1938 = vmor %vm1936, %vm1937
    %v1939 = vsel %vm1938, %v1931, %v1935
    %v1940 = vand.u32 2147483647, %v1930
    %vm1941 = vcmp.eq.f32.partialorder %v1940, 8.507059e+37
    %v1942 = vand.u32 %v1930, 2147483648
    %v1943 = vor.u32 1.1754944e-38, %v1942
    %v1944 = vsel %vm1941, %v1943, %v1939
    %v1945 = vmul.f32 1.0, %v1944
    %v1946 = vadd.f32 %v1844, %v821
    %v1947 = vmul.f32 %v1925, %v1946
    %v1948 = vadd.f32 %v1782, %v1947
    %v1949 = vtanh.pop %v1948
    %v1950 = vsub.f32 1.0, %v1945
    %v1951 = vmul.f32 %v1950, %v1949
    %v1952 = vmul.f32 %v1945, %v1729
    %v1953 = vadd.f32 %v1951, %v1952
    %v1954 = vadd.f32 %v1783, %v1864
    %v1955 = vxor.u32 %v1954, 2147483648
    %v1956 = vmul.f32 %v1955, 1.442695
    %v1957 = vpow.pop %v1956
    %v1958 = vadd.f32 %v1957, 1.0
    %v1959 = vrcp.pop %v1958
    %v1960 = vmul.f32 %v1958, %v1959
    %v1961 = vsub.f32 1.0, %v1960
    %v1962 = vmul.f32 %v1959, %v1961
    %v1963 = vadd.f32 %v1959, %v1962
    %vm1964 = vweird.f32 %v1958
    %vm1965 = vweird.f32 %v1959
    %vm1966 = vmor %vm1964, %vm1965
    %v1967 = vsel %vm1966, %v1959, %v1963
    %v1968 = vand.u32 2147483647, %v1958
    %vm1969 = vcmp.eq.f32.partialorder %v1968, 8.507059e+37
    %v1970 = vand.u32 %v1958, 2147483648
    %v1971 = vor.u32 1.1754944e-38, %v1970
    %v1972 = vsel %vm1969, %v1971, %v1967
    %v1973 = vmul.f32 1.0, %v1972
    %v1974 = vadd.f32 %v1784, %v1884
    %v1975 = vxor.u32 %v1974, 2147483648
    %v1976 = vmul.f32 %v1975, 1.442695
    %v1977 = vpow.pop %v1976
    %v1978 = vadd.f32 %v1977, 1.0
    %v1979 = vrcp.pop %v1978
    %v1980 = vmul.f32 %v1978, %v1979
    %v1981 = vsub.f32 1.0, %v1980
    %v1982 = vmul.f32 %v1979, %v1981
    %v1983 = vadd.f32 %v1979, %v1982
    %vm1984 = vweird.f32 %v1978
    %vm1985 = vweird.f32 %v1979
    %vm1986 = vmor %vm1984, %vm1985
    %v1987 = vsel %vm1986, %v1979, %v1983
    %v1988 = vand.u32 2147483647, %v1978
    %vm1989 = vcmp.eq.f32.partialorder %v1988, 8.507059e+37
    %v1990 = vand.u32 %v1978, 2147483648
    %v1991 = vor.u32 1.1754944e-38, %v1990
    %v1992 = vsel %vm1989, %v1991, %v1987
    %v1993 = vmul.f32 1.0, %v1992
    %v1994 = vadd.f32 %v1904, %v872
    %v1995 = vmul.f32 %v1973, %v1994
    %v1996 = vadd.f32 %v1785, %v1995
    %v1997 = vtanh.pop %v1996
    %v1998 = vsub.f32 1.0, %v1993
    %v1999 = vmul.f32 %v1998, %v1997
    %v2000 = vmul.f32 %v1993, %v1777
    %v2001 = vadd.f32 %v1999, %v2000
    %2002 = vst [vmem:[#allocation3 + $0x50] sm:$0xff] %v1953
    %2003 = vst [vmem:[#allocation3 + $0x28] sm:$0xff] %v2001
    %v2004 = vld [vmem:[#allocation2 + $0x120] sm:$0xff]
    %v2005 = vld [vmem:[#allocation2 + $0x128] sm:$0xff]
    %v2006 = vld [vmem:[#allocation2 + $0x130] sm:$0xff]
    %v2007 = vld [vmem:[#allocation2 + $0x48] sm:$0xff]
    %v2008 = vld [vmem:[#allocation2 + $0x50] sm:$0xff]
    %v2009 = vld [vmem:[#allocation2 + $0x58] sm:$0xff]
    %2010 = vmatpush.msra.mxu0 %v646
    %2011 = vmatpush.msra.mxu0 %v640
    %2012 = vmatpush.msra.mxu0 %v634
    %2013 = vmatpush.msra.mxu0 %v628
    %2014 = vmatpush.msra.mxu0 %v622
    %2015 = vmatpush.msra.mxu0 %v616
    %2016 = vmatpush.msra.mxu0 %v610
    %2017 = vmatpush.msra.mxu0 %v604
    %2018 = vmatpush.msra.mxu0 %v598
    %2019 = vmatpush.msra.mxu0 %v592
    %2020 = vmatpush.msra.mxu0 %v586
    %2021 = vmatpush.msra.mxu0 %v580
    %2022 = vmatpush.msra.mxu0 %v574
    %2023 = vmatpush.msra.mxu0 %v568
    %2024 = vmatpush.msra.mxu0 %v562
    %2025 = vmatpush.msra.mxu0 %v556
    %2026 = vmatmul.f32.gmra.mxu0 %v1953
    %v2027 = vpop.f32.mrf.mxu0
    %v2028 = vadd.f32 0.0, %v2027
    %2029 = vdwg.mxu0
    %2030 = vmatpush.msra.mxu0 %v647
    %2031 = vmatpush.msra.mxu0 %v641
    %2032 = vmatpush.msra.mxu0 %v635
    %2033 = vmatpush.msra.mxu0 %v629
    %2034 = vmatpush.msra.mxu0 %v623
    %2035 = vmatpush.msra.mxu0 %v617
    %2036 = vmatpush.msra.mxu0 %v611
    %2037 = vmatpush.msra.mxu0 %v605
    %2038 = vmatpush.msra.mxu0 %v599
    %2039 = vmatpush.msra.mxu0 %v593
    %2040 = vmatpush.msra.mxu0 %v587
    %2041 = vmatpush.msra.mxu0 %v581
    %2042 = vmatpush.msra.mxu0 %v575
    %2043 = vmatpush.msra.mxu0 %v569
    %2044 = vmatpush.msra.mxu0 %v563
    %2045 = vmatpush.msra.mxu0 %v557
    %2046 = vmatmul.f32.gmra.mxu0 %v1953
    %v2047 = vpop.f32.mrf.mxu0
    %v2048 = vadd.f32 0.0, %v2047
    %2049 = vdwg.mxu0
    %2050 = vmatpush.msra.mxu0 %v648
    %2051 = vmatpush.msra.mxu0 %v642
    %2052 = vmatpush.msra.mxu0 %v636
    %2053 = vmatpush.msra.mxu0 %v630
    %2054 = vmatpush.msra.mxu0 %v624
    %2055 = vmatpush.msra.mxu0 %v618
    %2056 = vmatpush.msra.mxu0 %v612
    %2057 = vmatpush.msra.mxu0 %v606
    %2058 = vmatpush.msra.mxu0 %v600
    %2059 = vmatpush.msra.mxu0 %v594
    %2060 = vmatpush.msra.mxu0 %v588
    %2061 = vmatpush.msra.mxu0 %v582
    %2062 = vmatpush.msra.mxu0 %v576
    %2063 = vmatpush.msra.mxu0 %v570
    %2064 = vmatpush.msra.mxu0 %v564
    %2065 = vmatpush.msra.mxu0 %v558
    %2066 = vmatmul.f32.gmra.mxu0 %v1953
    %v2067 = vpop.f32.mrf.mxu0
    %v2068 = vadd.f32 0.0, %v2067
    %2069 = vdwg.mxu0
    %2070 = vmatpush.msra.mxu0 %v649
    %2071 = vmatpush.msra.mxu0 %v643
    %2072 = vmatpush.msra.mxu0 %v637
    %2073 = vmatpush.msra.mxu0 %v631
    %2074 = vmatpush.msra.mxu0 %v625
    %2075 = vmatpush.msra.mxu0 %v619
    %2076 = vmatpush.msra.mxu0 %v613
    %2077 = vmatpush.msra.mxu0 %v607
    %2078 = vmatpush.msra.mxu0 %v601
    %2079 = vmatpush.msra.mxu0 %v595
    %2080 = vmatpush.msra.mxu0 %v589
    %2081 = vmatpush.msra.mxu0 %v583
    %2082 = vmatpush.msra.mxu0 %v577
    %2083 = vmatpush.msra.mxu0 %v571
    %2084 = vmatpush.msra.mxu0 %v565
    %2085 = vmatpush.msra.mxu0 %v559
    %2086 = vmatmul.f32.gmra.mxu0 %v2001
    %v2087 = vpop.f32.mrf.mxu0
    %v2088 = vadd.f32 0.0, %v2087
    %2089 = vdwg.mxu0
    %2090 = vmatpush.msra.mxu0 %v650
    %2091 = vmatpush.msra.mxu0 %v644
    %2092 = vmatpush.msra.mxu0 %v638
    %2093 = vmatpush.msra.mxu0 %v632
    %2094 = vmatpush.msra.mxu0 %v626
    %2095 = vmatpush.msra.mxu0 %v620
    %2096 = vmatpush.msra.mxu0 %v614
    %2097 = vmatpush.msra.mxu0 %v608
    %2098 = vmatpush.msra.mxu0 %v602
    %2099 = vmatpush.msra.mxu0 %v596
    %2100 = vmatpush.msra.mxu0 %v590
    %2101 = vmatpush.msra.mxu0 %v584
    %2102 = vmatpush.msra.mxu0 %v578
    %2103 = vmatpush.msra.mxu0 %v572
    %2104 = vmatpush.msra.mxu0 %v566
    %2105 = vmatpush.msra.mxu0 %v560
    %2106 = vmatmul.f32.gmra.mxu0 %v2001
    %v2107 = vpop.f32.mrf.mxu0
    %v2108 = vadd.f32 0.0, %v2107
    %2109 = vdwg.mxu0
    %2110 = vmatpush.msra.mxu0 %v651
    %2111 = vmatpush.msra.mxu0 %v645
    %2112 = vmatpush.msra.mxu0 %v639
    %2113 = vmatpush.msra.mxu0 %v633
    %2114 = vmatpush.msra.mxu0 %v627
    %2115 = vmatpush.msra.mxu0 %v621
    %2116 = vmatpush.msra.mxu0 %v615
    %2117 = vmatpush.msra.mxu0 %v609
    %2118 = vmatpush.msra.mxu0 %v603
    %2119 = vmatpush.msra.mxu0 %v597
    %2120 = vmatpush.msra.mxu0 %v591
    %2121 = vmatpush.msra.mxu0 %v585
    %2122 = vmatpush.msra.mxu0 %v579
    %2123 = vmatpush.msra.mxu0 %v573
    %2124 = vmatpush.msra.mxu0 %v567
    %2125 = vmatpush.msra.mxu0 %v561
    %2126 = vmatmul.f32.gmra.mxu0 %v2001
    %v2127 = vpop.f32.mrf.mxu0
    %v2128 = vadd.f32 0.0, %v2127
    %2129 = vdwg.mxu0
    %v2130 = vadd.f32 %v2004, %v2028
    %v2131 = vxor.u32 %v2130, 2147483648
    %v2132 = vmul.f32 %v2131, 1.442695
    %v2133 = vpow.pop %v2132
    %v2134 = vadd.f32 %v2133, 1.0
    %v2135 = vrcp.pop %v2134
    %v2136 = vmul.f32 %v2134, %v2135
    %v2137 = vsub.f32 1.0, %v2136
    %v2138 = vmul.f32 %v2135, %v2137
    %v2139 = vadd.f32 %v2135, %v2138
    %vm2140 = vweird.f32 %v2134
    %vm2141 = vweird.f32 %v2135
    %vm2142 = vmor %vm2140, %vm2141
    %v2143 = vsel %vm2142, %v2135, %v2139
    %v2144 = vand.u32 2147483647, %v2134
    %vm2145 = vcmp.eq.f32.partialorder %v2144, 8.507059e+37
    %v2146 = vand.u32 %v2134, 2147483648
    %v2147 = vor.u32 1.1754944e-38, %v2146
    %v2148 = vsel %vm2145, %v2147, %v2143
    %v2149 = vmul.f32 1.0, %v2148
    %v2150 = vadd.f32 %v2005, %v2048
    %v2151 = vxor.u32 %v2150, 2147483648
    %v2152 = vmul.f32 %v2151, 1.442695
    %v2153 = vpow.pop %v2152
    %v2154 = vadd.f32 %v2153, 1.0
    %v2155 = vrcp.pop %v2154
    %v2156 = vmul.f32 %v2154, %v2155
    %v2157 = vsub.f32 1.0, %v2156
    %v2158 = vmul.f32 %v2155, %v2157
    %v2159 = vadd.f32 %v2155, %v2158
    %vm2160 = vweird.f32 %v2154
    %vm2161 = vweird.f32 %v2155
    %vm2162 = vmor %vm2160, %vm2161
    %v2163 = vsel %vm2162, %v2155, %v2159
    %v2164 = vand.u32 2147483647, %v2154
    %vm2165 = vcmp.eq.f32.partialorder %v2164, 8.507059e+37
    %v2166 = vand.u32 %v2154, 2147483648
    %v2167 = vor.u32 1.1754944e-38, %v2166
    %v2168 = vsel %vm2165, %v2167, %v2163
    %v2169 = vmul.f32 1.0, %v2168
    %v2170 = vadd.f32 %v2068, %v821
    %v2171 = vmul.f32 %v2149, %v2170
    %v2172 = vadd.f32 %v2006, %v2171
    %v2173 = vtanh.pop %v2172
    %v2174 = vsub.f32 1.0, %v2169
    %v2175 = vmul.f32 %v2174, %v2173
    %v2176 = vmul.f32 %v2169, %v1953
    %v2177 = vadd.f32 %v2175, %v2176
    %v2178 = vadd.f32 %v2007, %v2088
    %v2179 = vxor.u32 %v2178, 2147483648
    %v2180 = vmul.f32 %v2179, 1.442695
    %v2181 = vpow.pop %v2180
    %v2182 = vadd.f32 %v2181, 1.0
    %v2183 = vrcp.pop %v2182
    %v2184 = vmul.f32 %v2182, %v2183
    %v2185 = vsub.f32 1.0, %v2184
    %v2186 = vmul.f32 %v2183, %v2185
    %v2187 = vadd.f32 %v2183, %v2186
    %vm2188 = vweird.f32 %v2182
    %vm2189 = vweird.f32 %v2183
    %vm2190 = vmor %vm2188, %vm2189
    %v2191 = vsel %vm2190, %v2183, %v2187
    %v2192 = vand.u32 2147483647, %v2182
    %vm2193 = vcmp.eq.f32.partialorder %v2192, 8.507059e+37
    %v2194 = vand.u32 %v2182, 2147483648
    %v2195 = vor.u32 1.1754944e-38, %v2194
    %v2196 = vsel %vm2193, %v2195, %v2191
    %v2197 = vmul.f32 1.0, %v2196
    %v2198 = vadd.f32 %v2008, %v2108
    %v2199 = vxor.u32 %v2198, 2147483648
    %v2200 = vmul.f32 %v2199, 1.442695
    %v2201 = vpow.pop %v2200
    %v2202 = vadd.f32 %v2201, 1.0
    %v2203 = vrcp.pop %v2202
    %v2204 = vmul.f32 %v2202, %v2203
    %v2205 = vsub.f32 1.0, %v2204
    %v2206 = vmul.f32 %v2203, %v2205
    %v2207 = vadd.f32 %v2203, %v2206
    %vm2208 = vweird.f32 %v2202
    %vm2209 = vweird.f32 %v2203
    %vm2210 = vmor %vm2208, %vm2209
    %v2211 = vsel %vm2210, %v2203, %v2207
    %v2212 = vand.u32 2147483647, %v2202
    %vm2213 = vcmp.eq.f32.partialorder %v2212, 8.507059e+37
    %v2214 = vand.u32 %v2202, 2147483648
    %v2215 = vor.u32 1.1754944e-38, %v2214
    %v2216 = vsel %vm2213, %v2215, %v2211
    %v2217 = vmul.f32 1.0, %v2216
    %v2218 = vadd.f32 %v2128, %v872
    %v2219 = vmul.f32 %v2197, %v2218
    %v2220 = vadd.f32 %v2009, %v2219
    %v2221 = vtanh.pop %v2220
    %v2222 = vsub.f32 1.0, %v2217
    %v2223 = vmul.f32 %v2222, %v2221
    %v2224 = vmul.f32 %v2217, %v2001
    %v2225 = vadd.f32 %v2223, %v2224
    %2226 = vst [vmem:[#allocation3 + $0x60] sm:$0xff] %v2177
    %2227 = vst [vmem:[#allocation3 + $0x18] sm:$0xff] %v2225
    %v2228 = vld [vmem:[#allocation2 + $0x150] sm:$0xff]
    %v2229 = vld [vmem:[#allocation2 + $0x158] sm:$0xff]
    %v2230 = vld [vmem:[#allocation2 + $0x160] sm:$0xff]
    %v2231 = vld [vmem:[#allocation2 + $0x18] sm:$0xff]
    %v2232 = vld [vmem:[#allocation2 + $0x20] sm:$0xff]
    %v2233 = vld [vmem:[#allocation2 + $0x28] sm:$0xff]
    %2234 = vmatpush.msra.mxu0 %v646
    %2235 = vmatpush.msra.mxu0 %v640
    %2236 = vmatpush.msra.mxu0 %v634
    %2237 = vmatpush.msra.mxu0 %v628
    %2238 = vmatpush.msra.mxu0 %v622
    %2239 = vmatpush.msra.mxu0 %v616
    %2240 = vmatpush.msra.mxu0 %v610
    %2241 = vmatpush.msra.mxu0 %v604
    %2242 = vmatpush.msra.mxu0 %v598
    %2243 = vmatpush.msra.mxu0 %v592
    %2244 = vmatpush.msra.mxu0 %v586
    %2245 = vmatpush.msra.mxu0 %v580
    %2246 = vmatpush.msra.mxu0 %v574
    %2247 = vmatpush.msra.mxu0 %v568
    %2248 = vmatpush.msra.mxu0 %v562
    %2249 = vmatpush.msra.mxu0 %v556
    %2250 = vmatmul.f32.gmra.mxu0 %v2177
    %v2251 = vpop.f32.mrf.mxu0
    %v2252 = vadd.f32 0.0, %v2251
    %2253 = vdwg.mxu0
    %2254 = vmatpush.msra.mxu0 %v647
    %2255 = vmatpush.msra.mxu0 %v641
    %2256 = vmatpush.msra.mxu0 %v635
    %2257 = vmatpush.msra.mxu0 %v629
    %2258 = vmatpush.msra.mxu0 %v623
    %2259 = vmatpush.msra.mxu0 %v617
    %2260 = vmatpush.msra.mxu0 %v611
    %2261 = vmatpush.msra.mxu0 %v605
    %2262 = vmatpush.msra.mxu0 %v599
    %2263 = vmatpush.msra.mxu0 %v593
    %2264 = vmatpush.msra.mxu0 %v587
    %2265 = vmatpush.msra.mxu0 %v581
    %2266 = vmatpush.msra.mxu0 %v575
    %2267 = vmatpush.msra.mxu0 %v569
    %2268 = vmatpush.msra.mxu0 %v563
    %2269 = vmatpush.msra.mxu0 %v557
    %2270 = vmatmul.f32.gmra.mxu0 %v2177
    %v2271 = vpop.f32.mrf.mxu0
    %v2272 = vadd.f32 0.0, %v2271
    %2273 = vdwg.mxu0
    %2274 = vmatpush.msra.mxu0 %v648
    %2275 = vmatpush.msra.mxu0 %v642
    %2276 = vmatpush.msra.mxu0 %v636
    %2277 = vmatpush.msra.mxu0 %v630
    %2278 = vmatpush.msra.mxu0 %v624
    %2279 = vmatpush.msra.mxu0 %v618
    %2280 = vmatpush.msra.mxu0 %v612
    %2281 = vmatpush.msra.mxu0 %v606
    %2282 = vmatpush.msra.mxu0 %v600
    %2283 = vmatpush.msra.mxu0 %v594
    %2284 = vmatpush.msra.mxu0 %v588
    %2285 = vmatpush.msra.mxu0 %v582
    %2286 = vmatpush.msra.mxu0 %v576
    %2287 = vmatpush.msra.mxu0 %v570
    %2288 = vmatpush.msra.mxu0 %v564
    %2289 = vmatpush.msra.mxu0 %v558
    %2290 = vmatmul.f32.gmra.mxu0 %v2177
    %v2291 = vpop.f32.mrf.mxu0
    %v2292 = vadd.f32 0.0, %v2291
    %2293 = vdwg.mxu0
    %2294 = vmatpush.msra.mxu0 %v649
    %2295 = vmatpush.msra.mxu0 %v643
    %2296 = vmatpush.msra.mxu0 %v637
    %2297 = vmatpush.msra.mxu0 %v631
    %2298 = vmatpush.msra.mxu0 %v625
    %2299 = vmatpush.msra.mxu0 %v619
    %2300 = vmatpush.msra.mxu0 %v613
    %2301 = vmatpush.msra.mxu0 %v607
    %2302 = vmatpush.msra.mxu0 %v601
    %2303 = vmatpush.msra.mxu0 %v595
    %2304 = vmatpush.msra.mxu0 %v589
    %2305 = vmatpush.msra.mxu0 %v583
    %2306 = vmatpush.msra.mxu0 %v577
    %2307 = vmatpush.msra.mxu0 %v571
    %2308 = vmatpush.msra.mxu0 %v565
    %2309 = vmatpush.msra.mxu0 %v559
    %2310 = vmatmul.f32.gmra.mxu0 %v2225
    %v2311 = vpop.f32.mrf.mxu0
    %v2312 = vadd.f32 0.0, %v2311
    %2313 = vdwg.mxu0
    %2314 = vmatpush.msra.mxu0 %v650
    %2315 = vmatpush.msra.mxu0 %v644
    %2316 = vmatpush.msra.mxu0 %v638
    %2317 = vmatpush.msra.mxu0 %v632
    %2318 = vmatpush.msra.mxu0 %v626
    %2319 = vmatpush.msra.mxu0 %v620
    %2320 = vmatpush.msra.mxu0 %v614
    %2321 = vmatpush.msra.mxu0 %v608
    %2322 = vmatpush.msra.mxu0 %v602
    %2323 = vmatpush.msra.mxu0 %v596
    %2324 = vmatpush.msra.mxu0 %v590
    %2325 = vmatpush.msra.mxu0 %v584
    %2326 = vmatpush.msra.mxu0 %v578
    %2327 = vmatpush.msra.mxu0 %v572
    %2328 = vmatpush.msra.mxu0 %v566
    %2329 = vmatpush.msra.mxu0 %v560
    %2330 = vmatmul.f32.gmra.mxu0 %v2225
    %v2331 = vpop.f32.mrf.mxu0
    %v2332 = vadd.f32 0.0, %v2331
    %2333 = vdwg.mxu0
    %2334 = vmatpush.msra.mxu0 %v651
    %2335 = vmatpush.msra.mxu0 %v645
    %2336 = vmatpush.msra.mxu0 %v639
    %2337 = vmatpush.msra.mxu0 %v633
    %2338 = vmatpush.msra.mxu0 %v627
    %2339 = vmatpush.msra.mxu0 %v621
    %2340 = vmatpush.msra.mxu0 %v615
    %2341 = vmatpush.msra.mxu0 %v609
    %2342 = vmatpush.msra.mxu0 %v603
    %2343 = vmatpush.msra.mxu0 %v597
    %2344 = vmatpush.msra.mxu0 %v591
    %2345 = vmatpush.msra.mxu0 %v585
    %2346 = vmatpush.msra.mxu0 %v579
    %2347 = vmatpush.msra.mxu0 %v573
    %2348 = vmatpush.msra.mxu0 %v567
    %2349 = vmatpush.msra.mxu0 %v561
    %2350 = vmatmul.f32.gmra.mxu0 %v2225
    %v2351 = vpop.f32.mrf.mxu0
    %v2352 = vadd.f32 0.0, %v2351
    %2353 = vdwg.mxu0
    %v2354 = vadd.f32 %v2228, %v2252
    %v2355 = vxor.u32 %v2354, 2147483648
    %v2356 = vmul.f32 %v2355, 1.442695
    %v2357 = vpow.pop %v2356
    %v2358 = vadd.f32 %v2357, 1.0
    %v2359 = vrcp.pop %v2358
    %v2360 = vmul.f32 %v2358, %v2359
    %v2361 = vsub.f32 1.0, %v2360
    %v2362 = vmul.f32 %v2359, %v2361
    %v2363 = vadd.f32 %v2359, %v2362
    %vm2364 = vweird.f32 %v2358
    %vm2365 = vweird.f32 %v2359
    %vm2366 = vmor %vm2364, %vm2365
    %v2367 = vsel %vm2366, %v2359, %v2363
    %v2368 = vand.u32 2147483647, %v2358
    %vm2369 = vcmp.eq.f32.partialorder %v2368, 8.507059e+37
    %v2370 = vand.u32 %v2358, 2147483648
    %v2371 = vor.u32 1.1754944e-38, %v2370
    %v2372 = vsel %vm2369, %v2371, %v2367
    %v2373 = vmul.f32 1.0, %v2372
    %v2374 = vadd.f32 %v2229, %v2272
    %v2375 = vxor.u32 %v2374, 2147483648
    %v2376 = vmul.f32 %v2375, 1.442695
    %v2377 = vpow.pop %v2376
    %v2378 = vadd.f32 %v2377, 1.0
    %v2379 = vrcp.pop %v2378
    %v2380 = vmul.f32 %v2378, %v2379
    %v2381 = vsub.f32 1.0, %v2380
    %v2382 = vmul.f32 %v2379, %v2381
    %v2383 = vadd.f32 %v2379, %v2382
    %vm2384 = vweird.f32 %v2378
    %vm2385 = vweird.f32 %v2379
    %vm2386 = vmor %vm2384, %vm2385
    %v2387 = vsel %vm2386, %v2379, %v2383
    %v2388 = vand.u32 2147483647, %v2378
    %vm2389 = vcmp.eq.f32.partialorder %v2388, 8.507059e+37
    %v2390 = vand.u32 %v2378, 2147483648
    %v2391 = vor.u32 1.1754944e-38, %v2390
    %v2392 = vsel %vm2389, %v2391, %v2387
    %v2393 = vmul.f32 1.0, %v2392
    %v2394 = vadd.f32 %v2292, %v821
    %v2395 = vmul.f32 %v2373, %v2394
    %v2396 = vadd.f32 %v2230, %v2395
    %v2397 = vtanh.pop %v2396
    %v2398 = vsub.f32 1.0, %v2393
    %v2399 = vmul.f32 %v2398, %v2397
    %v2400 = vmul.f32 %v2393, %v2177
    %v2401 = vadd.f32 %v2399, %v2400
    %v2402 = vadd.f32 %v2231, %v2312
    %v2403 = vxor.u32 %v2402, 2147483648
    %v2404 = vmul.f32 %v2403, 1.442695
    %v2405 = vpow.pop %v2404
    %v2406 = vadd.f32 %v2405, 1.0
    %v2407 = vrcp.pop %v2406
    %v2408 = vmul.f32 %v2406, %v2407
    %v2409 = vsub.f32 1.0, %v2408
    %v2410 = vmul.f32 %v2407, %v2409
    %v2411 = vadd.f32 %v2407, %v2410
    %vm2412 = vweird.f32 %v2406
    %vm2413 = vweird.f32 %v2407
    %vm2414 = vmor %vm2412, %vm2413
    %v2415 = vsel %vm2414, %v2407, %v2411
    %v2416 = vand.u32 2147483647, %v2406
    %vm2417 = vcmp.eq.f32.partialorder %v2416, 8.507059e+37
    %v2418 = vand.u32 %v2406, 2147483648
    %v2419 = vor.u32 1.1754944e-38, %v2418
    %v2420 = vsel %vm2417, %v2419, %v2415
    %v2421 = vmul.f32 1.0, %v2420
    %v2422 = vadd.f32 %v2232, %v2332
    %v2423 = vxor.u32 %v2422, 2147483648
    %v2424 = vmul.f32 %v2423, 1.442695
    %v2425 = vpow.pop %v2424
    %v2426 = vadd.f32 %v2425, 1.0
    %v2427 = vrcp.pop %v2426
    %v2428 = vmul.f32 %v2426, %v2427
    %v2429 = vsub.f32 1.0, %v2428
    %v2430 = vmul.f32 %v2427, %v2429
    %v2431 = vadd.f32 %v2427, %v2430
    %vm2432 = vweird.f32 %v2426
    %vm2433 = vweird.f32 %v2427
    %vm2434 = vmor %vm2432, %vm2433
    %v2435 = vsel %vm2434, %v2427, %v2431
    %v2436 = vand.u32 2147483647, %v2426
    %vm2437 = vcmp.eq.f32.partialorder %v2436, 8.507059e+37
    %v2438 = vand.u32 %v2426, 2147483648
    %v2439 = vor.u32 1.1754944e-38, %v2438
    %v2440 = vsel %vm2437, %v2439, %v2435
    %v2441 = vmul.f32 1.0, %v2440
    %v2442 = vadd.f32 %v2352, %v872
    %v2443 = vmul.f32 %v2421, %v2442
    %v2444 = vadd.f32 %v2233, %v2443
    %v2445 = vtanh.pop %v2444
    %v2446 = vsub.f32 1.0, %v2441
    %v2447 = vmul.f32 %v2446, %v2445
    %v2448 = vmul.f32 %v2441, %v2225
    %v2449 = vadd.f32 %v2447, %v2448
    %2450 = vst [vmem:[#allocation3 + $0x70] sm:$0xff] %v2401
    %2451 = vst [vmem:[#allocation3 + $0x8] sm:$0xff] %v2449
    %v2452 = vld [vmem:[#allocation3] sm:$0xff]
    %v2453 = vld [vmem:[#allocation3 + $0x8] sm:$0xff]
    %v2454 = vld [vmem:[#allocation3 + $0x10] sm:$0xff]
    %v2455 = vld [vmem:[#allocation3 + $0x18] sm:$0xff]
    %v2456 = vld [vmem:[#allocation3 + $0x20] sm:$0xff]
    %v2457 = vld [vmem:[#allocation3 + $0x28] sm:$0xff]
    %v2458 = vld [vmem:[#allocation3 + $0x30] sm:$0xff]
    %v2459 = vld [vmem:[#allocation3 + $0x38] sm:$0xff]
    %v2460 = vld [vmem:[#allocation3 + $0x40] sm:$0xff]
    %v2461 = vld [vmem:[#allocation3 + $0x48] sm:$0xff]
    %v2462 = vld [vmem:[#allocation3 + $0x50] sm:$0xff]
    %v2463 = vld [vmem:[#allocation3 + $0x58] sm:$0xff]
    %v2464 = vld [vmem:[#allocation3 + $0x60] sm:$0xff]
    %v2465 = vld [vmem:[#allocation3 + $0x68] sm:$0xff]
    %v2466 = vld [vmem:[#allocation3 + $0x70] sm:$0xff]
    %v2467 = vld [vmem:[#allocation3 + $0x78] sm:$0xff]
    %v2468 = vpack.c.bf16 %v2454, %v2452
    %v2469 = vpack.c.bf16 %v2455, %v2453
    %v2470 = vpack.c.bf16 %v2458, %v2456
    %v2471 = vpack.c.bf16 %v2459, %v2457
    %v2472 = vpack.c.bf16 %v2462, %v2460
    %v2473 = vpack.c.bf16 %v2463, %v2461
    %v2474 = vpack.c.bf16 %v2466, %v2464
    %v2475 = vpack.c.bf16 %v2467, %v2465
    %s2476 = scalar_lea.vmem %s3, 16
    %v2477 = vld [vmem:[%s2476] sm:$0xff]
    %s2478 = scalar_lea.vmem %s3, 24
    %v2479 = vld [vmem:[%s2478] sm:$0xff]
    %v2480 = vld [vmem:[#allocation7] sm:$0xff]
    %v2481 = vld [vmem:[#allocation7 + $0x8] sm:$0xff]
    %v2482 = vld [vmem:[#allocation7 + $0x10] sm:$0xff]
    %v2483 = vld [vmem:[#allocation7 + $0x18] sm:$0xff]
    %v2484 = vld [vmem:[#allocation7 + $0x20] sm:$0xff]
    %v2485 = vld [vmem:[#allocation7 + $0x28] sm:$0xff]
    %v2486 = vld [vmem:[#allocation7 + $0x30] sm:$0xff]
    %v2487 = vld [vmem:[#allocation7 + $0x38] sm:$0xff]
    %v2488 = vld [vmem:[#allocation7 + $0x40] sm:$0xff]
    %v2489 = vld [vmem:[#allocation7 + $0x48] sm:$0xff]
    %v2490 = vld [vmem:[#allocation7 + $0x50] sm:$0xff]
    %v2491 = vld [vmem:[#allocation7 + $0x58] sm:$0xff]
    %v2492 = vld [vmem:[#allocation7 + $0x60] sm:$0xff]
    %v2493 = vld [vmem:[#allocation7 + $0x68] sm:$0xff]
    %v2494 = vld [vmem:[#allocation7 + $0x70] sm:$0xff]
    %v2495 = vld [vmem:[#allocation7 + $0x78] sm:$0xff]
    %v2496 = vld [vmem:[#allocation7 + $0x80] sm:$0xff]
    %v2497 = vld [vmem:[#allocation7 + $0x88] sm:$0xff]
    %v2498 = vld [vmem:[#allocation7 + $0x90] sm:$0xff]
    %v2499 = vld [vmem:[#allocation7 + $0x98] sm:$0xff]
    %v2500 = vld [vmem:[#allocation7 + $0xa0] sm:$0xff]
    %v2501 = vld [vmem:[#allocation7 + $0xa8] sm:$0xff]
    %v2502 = vld [vmem:[#allocation7 + $0xb0] sm:$0xff]
    %v2503 = vld [vmem:[#allocation7 + $0xb8] sm:$0xff]
    %v2504 = vld [vmem:[#allocation7 + $0xc0] sm:$0xff]
    %v2505 = vld [vmem:[#allocation7 + $0xc8] sm:$0xff]
    %v2506 = vld [vmem:[#allocation7 + $0xd0] sm:$0xff]
    %v2507 = vld [vmem:[#allocation7 + $0xd8] sm:$0xff]
    %v2508 = vld [vmem:[#allocation7 + $0xe0] sm:$0xff]
    %v2509 = vld [vmem:[#allocation7 + $0xe8] sm:$0xff]
    %v2510 = vld [vmem:[#allocation7 + $0xf0] sm:$0xff]
    %v2511 = vld [vmem:[#allocation7 + $0xf8] sm:$0xff]
    %v2512 = vld [vmem:[#allocation7 + $0x100] sm:$0xff]
    %v2513 = vld [vmem:[#allocation7 + $0x108] sm:$0xff]
    %v2514 = vld [vmem:[#allocation7 + $0x110] sm:$0xff]
    %v2515 = vld [vmem:[#allocation7 + $0x118] sm:$0xff]
    %v2516 = vld [vmem:[#allocation7 + $0x120] sm:$0xff]
    %v2517 = vld [vmem:[#allocation7 + $0x128] sm:$0xff]
    %v2518 = vld [vmem:[#allocation7 + $0x130] sm:$0xff]
    %v2519 = vld [vmem:[#allocation7 + $0x138] sm:$0xff]
    %v2520 = vld [vmem:[#allocation7 + $0x140] sm:$0xff]
    %v2521 = vld [vmem:[#allocation7 + $0x148] sm:$0xff]
    %v2522 = vld [vmem:[#allocation7 + $0x150] sm:$0xff]
    %v2523 = vld [vmem:[#allocation7 + $0x158] sm:$0xff]
    %v2524 = vld [vmem:[#allocation7 + $0x160] sm:$0xff]
    %v2525 = vld [vmem:[#allocation7 + $0x168] sm:$0xff]
    %v2526 = vld [vmem:[#allocation7 + $0x170] sm:$0xff]
    %v2527 = vld [vmem:[#allocation7 + $0x178] sm:$0xff]
    %v2528 = vld [vmem:[#allocation7 + $0x180] sm:$0xff]
    %v2529 = vld [vmem:[#allocation7 + $0x188] sm:$0xff]
    %v2530 = vld [vmem:[#allocation7 + $0x190] sm:$0xff]
    %v2531 = vld [vmem:[#allocation7 + $0x198] sm:$0xff]
    %v2532 = vld [vmem:[#allocation7 + $0x1a0] sm:$0xff]
    %v2533 = vld [vmem:[#allocation7 + $0x1a8] sm:$0xff]
    %v2534 = vld [vmem:[#allocation7 + $0x1b0] sm:$0xff]
    %v2535 = vld [vmem:[#allocation7 + $0x1b8] sm:$0xff]
    %v2536 = vld [vmem:[#allocation7 + $0x1c0] sm:$0xff]
    %v2537 = vld [vmem:[#allocation7 + $0x1c8] sm:$0xff]
    %v2538 = vld [vmem:[#allocation7 + $0x1d0] sm:$0xff]
    %v2539 = vld [vmem:[#allocation7 + $0x1d8] sm:$0xff]
    %v2540 = vld [vmem:[#allocation7 + $0x1e0] sm:$0xff]
    %v2541 = vld [vmem:[#allocation7 + $0x1e8] sm:$0xff]
    %v2542 = vld [vmem:[#allocation7 + $0x1f0] sm:$0xff]
    %v2543 = vld [vmem:[#allocation7 + $0x1f8] sm:$0xff]
    %v2544 = vld [vmem:[#allocation7 + $0x200] sm:$0xff]
    %v2545 = vld [vmem:[#allocation7 + $0x208] sm:$0xff]
    %v2546 = vld [vmem:[#allocation7 + $0x210] sm:$0xff]
    %v2547 = vld [vmem:[#allocation7 + $0x218] sm:$0xff]
    %v2548 = vld [vmem:[#allocation7 + $0x220] sm:$0xff]
    %v2549 = vld [vmem:[#allocation7 + $0x228] sm:$0xff]
    %v2550 = vld [vmem:[#allocation7 + $0x230] sm:$0xff]
    %v2551 = vld [vmem:[#allocation7 + $0x238] sm:$0xff]
    %v2552 = vld [vmem:[#allocation7 + $0x240] sm:$0xff]
    %v2553 = vld [vmem:[#allocation7 + $0x248] sm:$0xff]
    %v2554 = vld [vmem:[#allocation7 + $0x250] sm:$0xff]
    %v2555 = vld [vmem:[#allocation7 + $0x258] sm:$0xff]
    %v2556 = vld [vmem:[#allocation7 + $0x260] sm:$0xff]
    %v2557 = vld [vmem:[#allocation7 + $0x268] sm:$0xff]
    %v2558 = vld [vmem:[#allocation7 + $0x270] sm:$0xff]
    %v2559 = vld [vmem:[#allocation7 + $0x278] sm:$0xff]
    %v2560 = vld [vmem:[#allocation7 + $0x280] sm:$0xff]
    %v2561 = vld [vmem:[#allocation7 + $0x288] sm:$0xff]
    %v2562 = vld [vmem:[#allocation7 + $0x290] sm:$0xff]
    %v2563 = vld [vmem:[#allocation7 + $0x298] sm:$0xff]
    %v2564 = vld [vmem:[#allocation7 + $0x2a0] sm:$0xff]
    %v2565 = vld [vmem:[#allocation7 + $0x2a8] sm:$0xff]
    %v2566 = vld [vmem:[#allocation7 + $0x2b0] sm:$0xff]
    %v2567 = vld [vmem:[#allocation7 + $0x2b8] sm:$0xff]
    %v2568 = vld [vmem:[#allocation7 + $0x2c0] sm:$0xff]
    %v2569 = vld [vmem:[#allocation7 + $0x2c8] sm:$0xff]
    %v2570 = vld [vmem:[#allocation7 + $0x2d0] sm:$0xff]
    %v2571 = vld [vmem:[#allocation7 + $0x2d8] sm:$0xff]
    %v2572 = vld [vmem:[#allocation7 + $0x2e0] sm:$0xff]
    %v2573 = vld [vmem:[#allocation7 + $0x2e8] sm:$0xff]
    %v2574 = vld [vmem:[#allocation7 + $0x2f0] sm:$0xff]
    %v2575 = vld [vmem:[#allocation7 + $0x2f8] sm:$0xff]
    %v2576 = vld [vmem:[%s21] sm:$0x3f]
    %v2578 = vperm.slane %v2576, 0
    %v2579 = vperm.slane %v2576, 1
    %v2580 = vperm.slane %v2576, 2
    %v2581 = vperm.slane %v2576, 3
    %v2582 = vperm.slane %v2576, 4
    %v2583 = vperm.slane %v2576, 5
    %v2686 = vunpack.c.l.b16 %v2480
    %v2687 = vunpack.c.h.b16 %v2480
    %v2688 = vunpack.c.l.b16 %v2481
    %v2689 = vunpack.c.h.b16 %v2481
    %v2690 = vunpack.c.l.b16 %v2482
    %v2691 = vunpack.c.h.b16 %v2482
    %v2692 = vunpack.c.l.b16 %v2483
    %v2693 = vunpack.c.h.b16 %v2483
    %v2694 = vunpack.c.l.b16 %v2484
    %v2695 = vunpack.c.h.b16 %v2484
    %v2696 = vunpack.c.l.b16 %v2485
    %v2697 = vunpack.c.h.b16 %v2485
    %v2698 = vunpack.c.l.b16 %v2486
    %v2699 = vunpack.c.h.b16 %v2486
    %v2700 = vunpack.c.l.b16 %v2487
    %v2701 = vunpack.c.h.b16 %v2487
    %v2702 = vunpack.c.l.b16 %v2488
    %v2703 = vunpack.c.h.b16 %v2488
    %v2704 = vunpack.c.l.b16 %v2489
    %v2705 = vunpack.c.h.b16 %v2489
    %v2706 = vunpack.c.l.b16 %v2490
    %v2707 = vunpack.c.h.b16 %v2490
    %v2708 = vunpack.c.l.b16 %v2491
    %v2709 = vunpack.c.h.b16 %v2491
    %v2710 = vunpack.c.l.b16 %v2492
    %v2711 = vunpack.c.h.b16 %v2492
    %v2712 = vunpack.c.l.b16 %v2493
    %v2713 = vunpack.c.h.b16 %v2493
    %v2714 = vunpack.c.l.b16 %v2494
    %v2715 = vunpack.c.h.b16 %v2494
    %v2716 = vunpack.c.l.b16 %v2495
    %v2717 = vunpack.c.h.b16 %v2495
    %v2718 = vunpack.c.l.b16 %v2496
    %v2719 = vunpack.c.h.b16 %v2496
    %v2720 = vunpack.c.l.b16 %v2497
    %v2721 = vunpack.c.h.b16 %v2497
    %v2722 = vunpack.c.l.b16 %v2498
    %v2723 = vunpack.c.h.b16 %v2498
    %v2724 = vunpack.c.l.b16 %v2499
    %v2725 = vunpack.c.h.b16 %v2499
    %v2726 = vunpack.c.l.b16 %v2500
    %v2727 = vunpack.c.h.b16 %v2500
    %v2728 = vunpack.c.l.b16 %v2501
    %v2729 = vunpack.c.h.b16 %v2501
    %v2730 = vunpack.c.l.b16 %v2502
    %v2731 = vunpack.c.h.b16 %v2502
    %v2732 = vunpack.c.l.b16 %v2503
    %v2733 = vunpack.c.h.b16 %v2503
    %v2734 = vunpack.c.l.b16 %v2504
    %v2735 = vunpack.c.h.b16 %v2504
    %v2736 = vunpack.c.l.b16 %v2505
    %v2737 = vunpack.c.h.b16 %v2505
    %v2738 = vunpack.c.l.b16 %v2506
    %v2739 = vunpack.c.h.b16 %v2506
    %v2740 = vunpack.c.l.b16 %v2507
    %v2741 = vunpack.c.h.b16 %v2507
    %v2742 = vunpack.c.l.b16 %v2508
    %v2743 = vunpack.c.h.b16 %v2508
    %v2744 = vunpack.c.l.b16 %v2509
    %v2745 = vunpack.c.h.b16 %v2509
    %v2746 = vunpack.c.l.b16 %v2510
    %v2747 = vunpack.c.h.b16 %v2510
    %v2748 = vunpack.c.l.b16 %v2511
    %v2749 = vunpack.c.h.b16 %v2511
    %v2750 = vunpack.c.l.b16 %v2512
    %v2751 = vunpack.c.h.b16 %v2512
    %v2752 = vunpack.c.l.b16 %v2513
    %v2753 = vunpack.c.h.b16 %v2513
    %v2754 = vunpack.c.l.b16 %v2514
    %v2755 = vunpack.c.h.b16 %v2514
    %v2756 = vunpack.c.l.b16 %v2515
    %v2757 = vunpack.c.h.b16 %v2515
    %v2758 = vunpack.c.l.b16 %v2516
    %v2759 = vunpack.c.h.b16 %v2516
    %v2760 = vunpack.c.l.b16 %v2517
    %v2761 = vunpack.c.h.b16 %v2517
    %v2762 = vunpack.c.l.b16 %v2518
    %v2763 = vunpack.c.h.b16 %v2518
    %v2764 = vunpack.c.l.b16 %v2519
    %v2765 = vunpack.c.h.b16 %v2519
    %v2766 = vunpack.c.l.b16 %v2520
    %v2767 = vunpack.c.h.b16 %v2520
    %v2768 = vunpack.c.l.b16 %v2521
    %v2769 = vunpack.c.h.b16 %v2521
    %v2770 = vunpack.c.l.b16 %v2522
    %v2771 = vunpack.c.h.b16 %v2522
    %v2772 = vunpack.c.l.b16 %v2523
    %v2773 = vunpack.c.h.b16 %v2523
    %v2774 = vunpack.c.l.b16 %v2524
    %v2775 = vunpack.c.h.b16 %v2524
    %v2776 = vunpack.c.l.b16 %v2525
    %v2777 = vunpack.c.h.b16 %v2525
    %v2778 = vunpack.c.l.b16 %v2526
    %v2779 = vunpack.c.h.b16 %v2526
    %v2780 = vunpack.c.l.b16 %v2527
    %v2781 = vunpack.c.h.b16 %v2527
    %v2782 = vunpack.c.l.b16 %v2528
    %v2783 = vunpack.c.h.b16 %v2528
    %v2784 = vunpack.c.l.b16 %v2529
    %v2785 = vunpack.c.h.b16 %v2529
    %v2786 = vunpack.c.l.b16 %v2530
    %v2787 = vunpack.c.h.b16 %v2530
    %v2788 = vunpack.c.l.b16 %v2531
    %v2789 = vunpack.c.h.b16 %v2531
    %v2790 = vunpack.c.l.b16 %v2532
    %v2791 = vunpack.c.h.b16 %v2532
    %v2792 = vunpack.c.l.b16 %v2533
    %v2793 = vunpack.c.h.b16 %v2533
    %v2794 = vunpack.c.l.b16 %v2534
    %v2795 = vunpack.c.h.b16 %v2534
    %v2796 = vunpack.c.l.b16 %v2535
    %v2797 = vunpack.c.h.b16 %v2535
    %v2798 = vunpack.c.l.b16 %v2536
    %v2799 = vunpack.c.h.b16 %v2536
    %v2800 = vunpack.c.l.b16 %v2537
    %v2801 = vunpack.c.h.b16 %v2537
    %v2802 = vunpack.c.l.b16 %v2538
    %v2803 = vunpack.c.h.b16 %v2538
    %v2804 = vunpack.c.l.b16 %v2539
    %v2805 = vunpack.c.h.b16 %v2539
    %v2806 = vunpack.c.l.b16 %v2540
    %v2807 = vunpack.c.h.b16 %v2540
    %v2808 = vunpack.c.l.b16 %v2541
    %v2809 = vunpack.c.h.b16 %v2541
    %v2810 = vunpack.c.l.b16 %v2542
    %v2811 = vunpack.c.h.b16 %v2542
    %v2812 = vunpack.c.l.b16 %v2543
    %v2813 = vunpack.c.h.b16 %v2543
    %v2814 = vunpack.c.l.b16 %v2544
    %v2815 = vunpack.c.h.b16 %v2544
    %v2816 = vunpack.c.l.b16 %v2545
    %v2817 = vunpack.c.h.b16 %v2545
    %v2818 = vunpack.c.l.b16 %v2546
    %v2819 = vunpack.c.h.b16 %v2546
    %v2820 = vunpack.c.l.b16 %v2547
    %v2821 = vunpack.c.h.b16 %v2547
    %v2822 = vunpack.c.l.b16 %v2548
    %v2823 = vunpack.c.h.b16 %v2548
    %v2824 = vunpack.c.l.b16 %v2549
    %v2825 = vunpack.c.h.b16 %v2549
    %v2826 = vunpack.c.l.b16 %v2550
    %v2827 = vunpack.c.h.b16 %v2550
    %v2828 = vunpack.c.l.b16 %v2551
    %v2829 = vunpack.c.h.b16 %v2551
    %v2830 = vunpack.c.l.b16 %v2552
    %v2831 = vunpack.c.h.b16 %v2552
    %v2832 = vunpack.c.l.b16 %v2553
    %v2833 = vunpack.c.h.b16 %v2553
    %v2834 = vunpack.c.l.b16 %v2554
    %v2835 = vunpack.c.h.b16 %v2554
    %v2836 = vunpack.c.l.b16 %v2555
    %v2837 = vunpack.c.h.b16 %v2555
    %v2838 = vunpack.c.l.b16 %v2556
    %v2839 = vunpack.c.h.b16 %v2556
    %v2840 = vunpack.c.l.b16 %v2557
    %v2841 = vunpack.c.h.b16 %v2557
    %v2842 = vunpack.c.l.b16 %v2558
    %v2843 = vunpack.c.h.b16 %v2558
    %v2844 = vunpack.c.l.b16 %v2559
    %v2845 = vunpack.c.h.b16 %v2559
    %v2846 = vunpack.c.l.b16 %v2560
    %v2847 = vunpack.c.h.b16 %v2560
    %v2848 = vunpack.c.l.b16 %v2561
    %v2849 = vunpack.c.h.b16 %v2561
    %v2850 = vunpack.c.l.b16 %v2562
    %v2851 = vunpack.c.h.b16 %v2562
    %v2852 = vunpack.c.l.b16 %v2563
    %v2853 = vunpack.c.h.b16 %v2563
    %v2854 = vunpack.c.l.b16 %v2564
    %v2855 = vunpack.c.h.b16 %v2564
    %v2856 = vunpack.c.l.b16 %v2565
    %v2857 = vunpack.c.h.b16 %v2565
    %v2858 = vunpack.c.l.b16 %v2566
    %v2859 = vunpack.c.h.b16 %v2566
    %v2860 = vunpack.c.l.b16 %v2567
    %v2861 = vunpack.c.h.b16 %v2567
    %v2862 = vunpack.c.l.b16 %v2568
    %v2863 = vunpack.c.h.b16 %v2568
    %v2864 = vunpack.c.l.b16 %v2569
    %v2865 = vunpack.c.h.b16 %v2569
    %v2866 = vunpack.c.l.b16 %v2570
    %v2867 = vunpack.c.h.b16 %v2570
    %v2868 = vunpack.c.l.b16 %v2571
    %v2869 = vunpack.c.h.b16 %v2571
    %v2870 = vunpack.c.l.b16 %v2572
    %v2871 = vunpack.c.h.b16 %v2572
    %v2872 = vunpack.c.l.b16 %v2573
    %v2873 = vunpack.c.h.b16 %v2573
    %v2874 = vunpack.c.l.b16 %v2574
    %v2875 = vunpack.c.h.b16 %v2574
    %v2876 = vunpack.c.l.b16 %v2575
    %v2877 = vunpack.c.h.b16 %v2575
    %v2878 = vpack.c.b16 %v2692, %v2686
    %v2879 = vpack.c.b16 %v2693, %v2687
    %v2880 = vpack.c.b16 %v2694, %v2688
    %v2881 = vpack.c.b16 %v2695, %v2689
    %v2882 = vpack.c.b16 %v2696, %v2690
    %v2883 = vpack.c.b16 %v2697, %v2691
    %v2884 = vpack.c.b16 %v2704, %v2698
    %v2885 = vpack.c.b16 %v2705, %v2699
    %v2886 = vpack.c.b16 %v2706, %v2700
    %v2887 = vpack.c.b16 %v2707, %v2701
    %v2888 = vpack.c.b16 %v2708, %v2702
    %v2889 = vpack.c.b16 %v2709, %v2703
    %v2890 = vpack.c.b16 %v2716, %v2710
    %v2891 = vpack.c.b16 %v2717, %v2711
    %v2892 = vpack.c.b16 %v2718, %v2712
    %v2893 = vpack.c.b16 %v2719, %v2713
    %v2894 = vpack.c.b16 %v2720, %v2714
    %v2895 = vpack.c.b16 %v2721, %v2715
    %v2896 = vpack.c.b16 %v2728, %v2722
    %v2897 = vpack.c.b16 %v2729, %v2723
    %v2898 = vpack.c.b16 %v2730, %v2724
    %v2899 = vpack.c.b16 %v2731, %v2725
    %v2900 = vpack.c.b16 %v2732, %v2726
    %v2901 = vpack.c.b16 %v2733, %v2727
    %v2902 = vpack.c.b16 %v2740, %v2734
    %v2903 = vpack.c.b16 %v2741, %v2735
    %v2904 = vpack.c.b16 %v2742, %v2736
    %v2905 = vpack.c.b16 %v2743, %v2737
    %v2906 = vpack.c.b16 %v2744, %v2738
    %v2907 = vpack.c.b16 %v2745, %v2739
    %v2908 = vpack.c.b16 %v2752, %v2746
    %v2909 = vpack.c.b16 %v2753, %v2747
    %v2910 = vpack.c.b16 %v2754, %v2748
    %v2911 = vpack.c.b16 %v2755, %v2749
    %v2912 = vpack.c.b16 %v2756, %v2750
    %v2913 = vpack.c.b16 %v2757, %v2751
    %v2914 = vpack.c.b16 %v2764, %v2758
    %v2915 = vpack.c.b16 %v2765, %v2759
    %v2916 = vpack.c.b16 %v2766, %v2760
    %v2917 = vpack.c.b16 %v2767, %v2761
    %v2918 = vpack.c.b16 %v2768, %v2762
    %v2919 = vpack.c.b16 %v2769, %v2763
    %v2920 = vpack.c.b16 %v2776, %v2770
    %v2921 = vpack.c.b16 %v2777, %v2771
    %v2922 = vpack.c.b16 %v2778, %v2772
    %v2923 = vpack.c.b16 %v2779, %v2773
    %v2924 = vpack.c.b16 %v2780, %v2774
    %v2925 = vpack.c.b16 %v2781, %v2775
    %v2926 = vpack.c.b16 %v2788, %v2782
    %v2927 = vpack.c.b16 %v2789, %v2783
    %v2928 = vpack.c.b16 %v2790, %v2784
    %v2929 = vpack.c.b16 %v2791, %v2785
    %v2930 = vpack.c.b16 %v2792, %v2786
    %v2931 = vpack.c.b16 %v2793, %v2787
    %v2932 = vpack.c.b16 %v2800, %v2794
    %v2933 = vpack.c.b16 %v2801, %v2795
    %v2934 = vpack.c.b16 %v2802, %v2796
    %v2935 = vpack.c.b16 %v2803, %v2797
    %v2936 = vpack.c.b16 %v2804, %v2798
    %v2937 = vpack.c.b16 %v2805, %v2799
    %v2938 = vpack.c.b16 %v2812, %v2806
    %v2939 = vpack.c.b16 %v2813, %v2807
    %v2940 = vpack.c.b16 %v2814, %v2808
    %v2941 = vpack.c.b16 %v2815, %v2809
    %v2942 = vpack.c.b16 %v2816, %v2810
    %v2943 = vpack.c.b16 %v2817, %v2811
    %v2944 = vpack.c.b16 %v2824, %v2818
    %v2945 = vpack.c.b16 %v2825, %v2819
    %v2946 = vpack.c.b16 %v2826, %v2820
    %v2947 = vpack.c.b16 %v2827, %v2821
    %v2948 = vpack.c.b16 %v2828, %v2822
    %v2949 = vpack.c.b16 %v2829, %v2823
    %v2950 = vpack.c.b16 %v2836, %v2830
    %v2951 = vpack.c.b16 %v2837, %v2831
    %v2952 = vpack.c.b16 %v2838, %v2832
    %v2953 = vpack.c.b16 %v2839, %v2833
    %v2954 = vpack.c.b16 %v2840, %v2834
    %v2955 = vpack.c.b16 %v2841, %v2835
    %v2956 = vpack.c.b16 %v2848, %v2842
    %v2957 = vpack.c.b16 %v2849, %v2843
    %v2958 = vpack.c.b16 %v2850, %v2844
    %v2959 = vpack.c.b16 %v2851, %v2845
    %v2960 = vpack.c.b16 %v2852, %v2846
    %v2961 = vpack.c.b16 %v2853, %v2847
    %v2962 = vpack.c.b16 %v2860, %v2854
    %v2963 = vpack.c.b16 %v2861, %v2855
    %v2964 = vpack.c.b16 %v2862, %v2856
    %v2965 = vpack.c.b16 %v2863, %v2857
    %v2966 = vpack.c.b16 %v2864, %v2858
    %v2967 = vpack.c.b16 %v2865, %v2859
    %v2968 = vpack.c.b16 %v2872, %v2866
    %v2969 = vpack.c.b16 %v2873, %v2867
    %v2970 = vpack.c.b16 %v2874, %v2868
    %v2971 = vpack.c.b16 %v2875, %v2869
    %v2972 = vpack.c.b16 %v2876, %v2870
    %v2973 = vpack.c.b16 %v2877, %v2871
    %3070 = vmatpush.bf16.msra.mxu0 %v2920
    %3071 = vmatpush.bf16.msra.mxu0 %v2914
    %3072 = vmatpush.bf16.msra.mxu0 %v2908
    %3073 = vmatpush.bf16.msra.mxu0 %v2902
    %3074 = vmatpush.bf16.msra.mxu0 %v2896
    %3075 = vmatpush.bf16.msra.mxu0 %v2890
    %3076 = vmatpush.bf16.msra.mxu0 %v2884
    %3077 = vmatpush.bf16.msra.mxu0 %v2878
    %3078 = vmatmul.bf16.gmra.mxu0 %v2468
    %v3079 = vpop.f32.mrf.mxu0
    %v3080 = vadd.f32 %v2578, %v3079
    %v3081 = vpop.f32.mrf.mxu0
    %v3082 = vadd.f32 %v2578, %v3081
    %3083 = vmatmul.bf16.gmra.mxu0 %v2470
    %v3084 = vpop.f32.mrf.mxu0
    %v3085 = vadd.f32 %v2578, %v3084
    %v3086 = vpop.f32.mrf.mxu0
    %v3087 = vadd.f32 %v2578, %v3086
    %3088 = vmatmul.bf16.gmra.mxu0 %v2472
    %v3089 = vpop.f32.mrf.mxu0
    %v3090 = vadd.f32 %v2578, %v3089
    %v3091 = vpop.f32.mrf.mxu0
    %v3092 = vadd.f32 %v2578, %v3091
    %3093 = vmatmul.bf16.gmra.mxu0 %v2474
    %v3094 = vpop.f32.mrf.mxu0
    %v3095 = vadd.f32 %v2578, %v3094
    %v3096 = vpop.f32.mrf.mxu0
    %v3097 = vadd.f32 %v2578, %v3096
    %3098 = vdwg.mxu0
    %3099 = vmatpush.bf16.msra.mxu0 %v2968
    %3100 = vmatpush.bf16.msra.mxu0 %v2962
    %3101 = vmatpush.bf16.msra.mxu0 %v2956
    %3102 = vmatpush.bf16.msra.mxu0 %v2950
    %3103 = vmatpush.bf16.msra.mxu0 %v2944
    %3104 = vmatpush.bf16.msra.mxu0 %v2938
    %3105 = vmatpush.bf16.msra.mxu0 %v2932
    %3106 = vmatpush.bf16.msra.mxu0 %v2926
    %3107 = vmatmul.bf16.gmra.mxu0 %v2469
    %v3108 = vpop.f32.mrf.mxu0
    %v3109 = vadd.f32 %v3080, %v3108
    %v3110 = vpop.f32.mrf.mxu0
    %v3111 = vadd.f32 %v3082, %v3110
    %3112 = vmatmul.bf16.gmra.mxu0 %v2471
    %v3113 = vpop.f32.mrf.mxu0
    %v3114 = vadd.f32 %v3085, %v3113
    %v3115 = vpop.f32.mrf.mxu0
    %v3116 = vadd.f32 %v3087, %v3115
    %3117 = vmatmul.bf16.gmra.mxu0 %v2473
    %v3118 = vpop.f32.mrf.mxu0
    %v3119 = vadd.f32 %v3090, %v3118
    %v3120 = vpop.f32.mrf.mxu0
    %v3121 = vadd.f32 %v3092, %v3120
    %3122 = vmatmul.bf16.gmra.mxu0 %v2475
    %v3123 = vpop.f32.mrf.mxu0
    %v3124 = vadd.f32 %v3095, %v3123
    %v3125 = vpop.f32.mrf.mxu0
    %v3126 = vadd.f32 %v3097, %v3125
    %3127 = vdwg.mxu0
    %3128 = vmatpush.bf16.msra.mxu0 %v2921
    %3129 = vmatpush.bf16.msra.mxu0 %v2915
    %3130 = vmatpush.bf16.msra.mxu0 %v2909
    %3131 = vmatpush.bf16.msra.mxu0 %v2903
    %3132 = vmatpush.bf16.msra.mxu0 %v2897
    %3133 = vmatpush.bf16.msra.mxu0 %v2891
    %3134 = vmatpush.bf16.msra.mxu0 %v2885
    %3135 = vmatpush.bf16.msra.mxu0 %v2879
    %3136 = vmatmul.bf16.gmra.mxu0 %v2468
    %v3137 = vpop.f32.mrf.mxu0
    %v3138 = vadd.f32 %v2579, %v3137
    %v3139 = vpop.f32.mrf.mxu0
    %v3140 = vadd.f32 %v2579, %v3139
    %3141 = vmatmul.bf16.gmra.mxu0 %v2470
    %v3142 = vpop.f32.mrf.mxu0
    %v3143 = vadd.f32 %v2579, %v3142
    %v3144 = vpop.f32.mrf.mxu0
    %v3145 = vadd.f32 %v2579, %v3144
    %3146 = vmatmul.bf16.gmra.mxu0 %v2472
    %v3147 = vpop.f32.mrf.mxu0
    %v3148 = vadd.f32 %v2579, %v3147
    %v3149 = vpop.f32.mrf.mxu0
    %v3150 = vadd.f32 %v2579, %v3149
    %3151 = vmatmul.bf16.gmra.mxu0 %v2474
    %v3152 = vpop.f32.mrf.mxu0
    %v3153 = vadd.f32 %v2579, %v3152
    %v3154 = vpop.f32.mrf.mxu0
    %v3155 = vadd.f32 %v2579, %v3154
    %3156 = vdwg.mxu0
    %3157 = vmatpush.bf16.msra.mxu0 %v2969
    %3158 = vmatpush.bf16.msra.mxu0 %v2963
    %3159 = vmatpush.bf16.msra.mxu0 %v2957
    %3160 = vmatpush.bf16.msra.mxu0 %v2951
    %3161 = vmatpush.bf16.msra.mxu0 %v2945
    %3162 = vmatpush.bf16.msra.mxu0 %v2939
    %3163 = vmatpush.bf16.msra.mxu0 %v2933
    %3164 = vmatpush.bf16.msra.mxu0 %v2927
    %3165 = vmatmul.bf16.gmra.mxu0 %v2469
    %v3166 = vpop.f32.mrf.mxu0
    %v3167 = vadd.f32 %v3138, %v3166
    %v3168 = vpop.f32.mrf.mxu0
    %v3169 = vadd.f32 %v3140, %v3168
    %3170 = vmatmul.bf16.gmra.mxu0 %v2471
    %v3171 = vpop.f32.mrf.mxu0
    %v3172 = vadd.f32 %v3143, %v3171
    %v3173 = vpop.f32.mrf.mxu0
    %v3174 = vadd.f32 %v3145, %v3173
    %3175 = vmatmul.bf16.gmra.mxu0 %v2473
    %v3176 = vpop.f32.mrf.mxu0
    %v3177 = vadd.f32 %v3148, %v3176
    %v3178 = vpop.f32.mrf.mxu0
    %v3179 = vadd.f32 %v3150, %v3178
    %3180 = vmatmul.bf16.gmra.mxu0 %v2475
    %v3181 = vpop.f32.mrf.mxu0
    %v3182 = vadd.f32 %v3153, %v3181
    %v3183 = vpop.f32.mrf.mxu0
    %v3184 = vadd.f32 %v3155, %v3183
    %3185 = vdwg.mxu0
    %3186 = vmatpush.bf16.msra.mxu0 %v2922
    %3187 = vmatpush.bf16.msra.mxu0 %v2916
    %3188 = vmatpush.bf16.msra.mxu0 %v2910
    %3189 = vmatpush.bf16.msra.mxu0 %v2904
    %3190 = vmatpush.bf16.msra.mxu0 %v2898
    %3191 = vmatpush.bf16.msra.mxu0 %v2892
    %3192 = vmatpush.bf16.msra.mxu0 %v2886
    %3193 = vmatpush.bf16.msra.mxu0 %v2880
    %3194 = vmatmul.bf16.gmra.mxu0 %v2468
    %v3195 = vpop.f32.mrf.mxu0
    %v3196 = vadd.f32 %v2580, %v3195
    %v3197 = vpop.f32.mrf.mxu0
    %v3198 = vadd.f32 %v2580, %v3197
    %3199 = vmatmul.bf16.gmra.mxu0 %v2470
    %v3200 = vpop.f32.mrf.mxu0
    %v3201 = vadd.f32 %v2580, %v3200
    %v3202 = vpop.f32.mrf.mxu0
    %v3203 = vadd.f32 %v2580, %v3202
    %3204 = vmatmul.bf16.gmra.mxu0 %v2472
    %v3205 = vpop.f32.mrf.mxu0
    %v3206 = vadd.f32 %v2580, %v3205
    %v3207 = vpop.f32.mrf.mxu0
    %v3208 = vadd.f32 %v2580, %v3207
    %3209 = vmatmul.bf16.gmra.mxu0 %v2474
    %v3210 = vpop.f32.mrf.mxu0
    %v3211 = vadd.f32 %v2580, %v3210
    %v3212 = vpop.f32.mrf.mxu0
    %v3213 = vadd.f32 %v2580, %v3212
    %3214 = vdwg.mxu0
    %3215 = vmatpush.bf16.msra.mxu0 %v2970
    %3216 = vmatpush.bf16.msra.mxu0 %v2964
    %3217 = vmatpush.bf16.msra.mxu0 %v2958
    %3218 = vmatpush.bf16.msra.mxu0 %v2952
    %3219 = vmatpush.bf16.msra.mxu0 %v2946
    %3220 = vmatpush.bf16.msra.mxu0 %v2940
    %3221 = vmatpush.bf16.msra.mxu0 %v2934
    %3222 = vmatpush.bf16.msra.mxu0 %v2928
    %3223 = vmatmul.bf16.gmra.mxu0 %v2469
    %v3224 = vpop.f32.mrf.mxu0
    %v3225 = vadd.f32 %v3196, %v3224
    %v3226 = vpop.f32.mrf.mxu0
    %v3227 = vadd.f32 %v3198, %v3226
    %3228 = vmatmul.bf16.gmra.mxu0 %v2471
    %v3229 = vpop.f32.mrf.mxu0
    %v3230 = vadd.f32 %v3201, %v3229
    %v3231 = vpop.f32.mrf.mxu0
    %v3232 = vadd.f32 %v3203, %v3231
    %3233 = vmatmul.bf16.gmra.mxu0 %v2473
    %v3234 = vpop.f32.mrf.mxu0
    %v3235 = vadd.f32 %v3206, %v3234
    %v3236 = vpop.f32.mrf.mxu0
    %v3237 = vadd.f32 %v3208, %v3236
    %3238 = vmatmul.bf16.gmra.mxu0 %v2475
    %v3239 = vpop.f32.mrf.mxu0
    %v3240 = vadd.f32 %v3211, %v3239
    %v3241 = vpop.f32.mrf.mxu0
    %v3242 = vadd.f32 %v3213, %v3241
    %3243 = vdwg.mxu0
    %3244 = vmatpush.bf16.msra.mxu0 %v2923
    %3245 = vmatpush.bf16.msra.mxu0 %v2917
    %3246 = vmatpush.bf16.msra.mxu0 %v2911
    %3247 = vmatpush.bf16.msra.mxu0 %v2905
    %3248 = vmatpush.bf16.msra.mxu0 %v2899
    %3249 = vmatpush.bf16.msra.mxu0 %v2893
    %3250 = vmatpush.bf16.msra.mxu0 %v2887
    %3251 = vmatpush.bf16.msra.mxu0 %v2881
    %3252 = vmatmul.bf16.gmra.mxu0 %v2468
    %v3253 = vpop.f32.mrf.mxu0
    %v3254 = vadd.f32 %v2581, %v3253
    %v3255 = vpop.f32.mrf.mxu0
    %v3256 = vadd.f32 %v2581, %v3255
    %3257 = vmatmul.bf16.gmra.mxu0 %v2470
    %v3258 = vpop.f32.mrf.mxu0
    %v3259 = vadd.f32 %v2581, %v3258
    %v3260 = vpop.f32.mrf.mxu0
    %v3261 = vadd.f32 %v2581, %v3260
    %3262 = vmatmul.bf16.gmra.mxu0 %v2472
    %v3263 = vpop.f32.mrf.mxu0
    %v3264 = vadd.f32 %v2581, %v3263
    %v3265 = vpop.f32.mrf.mxu0
    %v3266 = vadd.f32 %v2581, %v3265
    %3267 = vmatmul.bf16.gmra.mxu0 %v2474
    %v3268 = vpop.f32.mrf.mxu0
    %v3269 = vadd.f32 %v2581, %v3268
    %v3270 = vpop.f32.mrf.mxu0
    %v3271 = vadd.f32 %v2581, %v3270
    %3272 = vdwg.mxu0
    %3273 = vmatpush.bf16.msra.mxu0 %v2971
    %3274 = vmatpush.bf16.msra.mxu0 %v2965
    %3275 = vmatpush.bf16.msra.mxu0 %v2959
    %3276 = vmatpush.bf16.msra.mxu0 %v2953
    %3277 = vmatpush.bf16.msra.mxu0 %v2947
    %3278 = vmatpush.bf16.msra.mxu0 %v2941
    %3279 = vmatpush.bf16.msra.mxu0 %v2935
    %3280 = vmatpush.bf16.msra.mxu0 %v2929
    %3281 = vmatmul.bf16.gmra.mxu0 %v2469
    %v3282 = vpop.f32.mrf.mxu0
    %v3283 = vadd.f32 %v3254, %v3282
    %v3284 = vpop.f32.mrf.mxu0
    %v3285 = vadd.f32 %v3256, %v3284
    %3286 = vmatmul.bf16.gmra.mxu0 %v2471
    %v3287 = vpop.f32.mrf.mxu0
    %v3288 = vadd.f32 %v3259, %v3287
    %v3289 = vpop.f32.mrf.mxu0
    %v3290 = vadd.f32 %v3261, %v3289
    %3291 = vmatmul.bf16.gmra.mxu0 %v2473
    %v3292 = vpop.f32.mrf.mxu0
    %v3293 = vadd.f32 %v3264, %v3292
    %v3294 = vpop.f32.mrf.mxu0
    %v3295 = vadd.f32 %v3266, %v3294
    %3296 = vmatmul.bf16.gmra.mxu0 %v2475
    %v3297 = vpop.f32.mrf.mxu0
    %v3298 = vadd.f32 %v3269, %v3297
    %v3299 = vpop.f32.mrf.mxu0
    %v3300 = vadd.f32 %v3271, %v3299
    %3301 = vdwg.mxu0
    %3302 = vmatpush.bf16.msra.mxu0 %v2924
    %3303 = vmatpush.bf16.msra.mxu0 %v2918
    %3304 = vmatpush.bf16.msra.mxu0 %v2912
    %3305 = vmatpush.bf16.msra.mxu0 %v2906
    %3306 = vmatpush.bf16.msra.mxu0 %v2900
    %3307 = vmatpush.bf16.msra.mxu0 %v2894
    %3308 = vmatpush.bf16.msra.mxu0 %v2888
    %3309 = vmatpush.bf16.msra.mxu0 %v2882
    %3310 = vmatmul.bf16.gmra.mxu0 %v2468
    %v3311 = vpop.f32.mrf.mxu0
    %v3312 = vadd.f32 %v2582, %v3311
    %v3313 = vpop.f32.mrf.mxu0
    %v3314 = vadd.f32 %v2582, %v3313
    %3315 = vmatmul.bf16.gmra.mxu0 %v2470
    %v3316 = vpop.f32.mrf.mxu0
    %v3317 = vadd.f32 %v2582, %v3316
    %v3318 = vpop.f32.mrf.mxu0
    %v3319 = vadd.f32 %v2582, %v3318
    %3320 = vmatmul.bf16.gmra.mxu0 %v2472
    %v3321 = vpop.f32.mrf.mxu0
    %v3322 = vadd.f32 %v2582, %v3321
    %v3323 = vpop.f32.mrf.mxu0
    %v3324 = vadd.f32 %v2582, %v3323
    %3325 = vmatmul.bf16.gmra.mxu0 %v2474
    %v3326 = vpop.f32.mrf.mxu0
    %v3327 = vadd.f32 %v2582, %v3326
    %v3328 = vpop.f32.mrf.mxu0
    %v3329 = vadd.f32 %v2582, %v3328
    %3330 = vdwg.mxu0
    %3331 = vmatpush.bf16.msra.mxu0 %v2972
    %3332 = vmatpush.bf16.msra.mxu0 %v2966
    %3333 = vmatpush.bf16.msra.mxu0 %v2960
    %3334 = vmatpush.bf16.msra.mxu0 %v2954
    %3335 = vmatpush.bf16.msra.mxu0 %v2948
    %3336 = vmatpush.bf16.msra.mxu0 %v2942
    %3337 = vmatpush.bf16.msra.mxu0 %v2936
    %3338 = vmatpush.bf16.msra.mxu0 %v2930
    %3339 = vmatmul.bf16.gmra.mxu0 %v2469
    %v3340 = vpop.f32.mrf.mxu0
    %v3341 = vadd.f32 %v3312, %v3340
    %v3342 = vpop.f32.mrf.mxu0
    %v3343 = vadd.f32 %v3314, %v3342
    %3344 = vmatmul.bf16.gmra.mxu0 %v2471
    %v3345 = vpop.f32.mrf.mxu0
    %v3346 = vadd.f32 %v3317, %v3345
    %v3347 = vpop.f32.mrf.mxu0
    %v3348 = vadd.f32 %v3319, %v3347
    %3349 = vmatmul.bf16.gmra.mxu0 %v2473
    %v3350 = vpop.f32.mrf.mxu0
    %v3351 = vadd.f32 %v3322, %v3350
    %v3352 = vpop.f32.mrf.mxu0
    %v3353 = vadd.f32 %v3324, %v3352
    %3354 = vmatmul.bf16.gmra.mxu0 %v2475
    %v3355 = vpop.f32.mrf.mxu0
    %v3356 = vadd.f32 %v3327, %v3355
    %v3357 = vpop.f32.mrf.mxu0
    %v3358 = vadd.f32 %v3329, %v3357
    %3359 = vdwg.mxu0
    %3360 = vmatpush.bf16.msra.mxu0 %v2925
    %3361 = vmatpush.bf16.msra.mxu0 %v2919
    %3362 = vmatpush.bf16.msra.mxu0 %v2913
    %3363 = vmatpush.bf16.msra.mxu0 %v2907
    %3364 = vmatpush.bf16.msra.mxu0 %v2901
    %3365 = vmatpush.bf16.msra.mxu0 %v2895
    %3366 = vmatpush.bf16.msra.mxu0 %v2889
    %3367 = vmatpush.bf16.msra.mxu0 %v2883
    %3368 = vmatmul.bf16.gmra.mxu0 %v2468
    %v3369 = vpop.f32.mrf.mxu0
    %v3370 = vadd.f32 %v2583, %v3369
    %v3371 = vpop.f32.mrf.mxu0
    %v3372 = vadd.f32 %v2583, %v3371
    %3373 = vmatmul.bf16.gmra.mxu0 %v2470
    %v3374 = vpop.f32.mrf.mxu0
    %v3375 = vadd.f32 %v2583, %v3374
    %v3376 = vpop.f32.mrf.mxu0
    %v3377 = vadd.f32 %v2583, %v3376
    %3378 = vmatmul.bf16.gmra.mxu0 %v2472
    %v3379 = vpop.f32.mrf.mxu0
    %v3380 = vadd.f32 %v2583, %v3379
    %v3381 = vpop.f32.mrf.mxu0
    %v3382 = vadd.f32 %v2583, %v3381
    %3383 = vmatmul.bf16.gmra.mxu0 %v2474
    %v3384 = vpop.f32.mrf.mxu0
    %v3385 = vadd.f32 %v2583, %v3384
    %v3386 = vpop.f32.mrf.mxu0
    %v3387 = vadd.f32 %v2583, %v3386
    %3388 = vdwg.mxu0
    %3389 = vmatpush.bf16.msra.mxu0 %v2973
    %3390 = vmatpush.bf16.msra.mxu0 %v2967
    %3391 = vmatpush.bf16.msra.mxu0 %v2961
    %3392 = vmatpush.bf16.msra.mxu0 %v2955
    %3393 = vmatpush.bf16.msra.mxu0 %v2949
    %3394 = vmatpush.bf16.msra.mxu0 %v2943
    %3395 = vmatpush.bf16.msra.mxu0 %v2937
    %3396 = vmatpush.bf16.msra.mxu0 %v2931
    %3397 = vmatmul.bf16.gmra.mxu0 %v2469
    %v3398 = vpop.f32.mrf.mxu0
    %v3399 = vadd.f32 %v3370, %v3398
    %v3400 = vpop.f32.mrf.mxu0
    %v3401 = vadd.f32 %v3372, %v3400
    %3402 = vmatmul.bf16.gmra.mxu0 %v2471
    %v3403 = vpop.f32.mrf.mxu0
    %v3404 = vadd.f32 %v3375, %v3403
    %v3405 = vpop.f32.mrf.mxu0
    %v3406 = vadd.f32 %v3377, %v3405
    %3407 = vmatmul.bf16.gmra.mxu0 %v2473
    %v3408 = vpop.f32.mrf.mxu0
    %v3409 = vadd.f32 %v3380, %v3408
    %v3410 = vpop.f32.mrf.mxu0
    %v3411 = vadd.f32 %v3382, %v3410
    %3412 = vmatmul.bf16.gmra.mxu0 %v2475
    %v3413 = vpop.f32.mrf.mxu0
    %v3414 = vadd.f32 %v3385, %v3413
    %v3415 = vpop.f32.mrf.mxu0
    %v3416 = vadd.f32 %v3387, %v3415
    %3417 = vdwg.mxu0
    %3418 = vst [vmem:[#allocation2] sm:$0xff] %v3109
    %3419 = vst [vmem:[#allocation2 + $0x8] sm:$0xff] %v3167
    %3420 = vst [vmem:[#allocation2 + $0x10] sm:$0xff] %v3225
    %3421 = vst [vmem:[#allocation2 + $0x18] sm:$0xff] %v3283
    %3422 = vst [vmem:[#allocation2 + $0x20] sm:$0xff] %v3341
    %3423 = vst [vmem:[#allocation2 + $0x28] sm:$0xff] %v3399
    %3424 = vst [vmem:[#allocation2 + $0x30] sm:$0xff] %v3111
    %3425 = vst [vmem:[#allocation2 + $0x38] sm:$0xff] %v3169
    %3426 = vst [vmem:[#allocation2 + $0x40] sm:$0xff] %v3227
    %3427 = vst [vmem:[#allocation2 + $0x48] sm:$0xff] %v3285
    %3428 = vst [vmem:[#allocation2 + $0x50] sm:$0xff] %v3343
    %3429 = vst [vmem:[#allocation2 + $0x58] sm:$0xff] %v3401
    %3430 = vst [vmem:[#allocation2 + $0x60] sm:$0xff] %v3114
    %3431 = vst [vmem:[#allocation2 + $0x68] sm:$0xff] %v3172
    %3432 = vst [vmem:[#allocation2 + $0x70] sm:$0xff] %v3230
    %3433 = vst [vmem:[#allocation2 + $0x78] sm:$0xff] %v3288
    %3434 = vst [vmem:[#allocation2 + $0x80] sm:$0xff] %v3346
    %3435 = vst [vmem:[#allocation2 + $0x88] sm:$0xff] %v3404
    %3436 = vst [vmem:[#allocation2 + $0x90] sm:$0xff] %v3116
    %3437 = vst [vmem:[#allocation2 + $0x98] sm:$0xff] %v3174
    %3438 = vst [vmem:[#allocation2 + $0xa0] sm:$0xff] %v3232
    %3439 = vst [vmem:[#allocation2 + $0xa8] sm:$0xff] %v3290
    %3440 = vst [vmem:[#allocation2 + $0xb0] sm:$0xff] %v3348
    %3441 = vst [vmem:[#allocation2 + $0xb8] sm:$0xff] %v3406
    %3442 = vst [vmem:[#allocation2 + $0xc0] sm:$0xff] %v3119
    %3443 = vst [vmem:[#allocation2 + $0xc8] sm:$0xff] %v3177
    %3444 = vst [vmem:[#allocation2 + $0xd0] sm:$0xff] %v3235
    %3445 = vst [vmem:[#allocation2 + $0xd8] sm:$0xff] %v3293
    %3446 = vst [vmem:[#allocation2 + $0xe0] sm:$0xff] %v3351
    %3447 = vst [vmem:[#allocation2 + $0xe8] sm:$0xff] %v3409
    %3448 = vst [vmem:[#allocation2 + $0xf0] sm:$0xff] %v3121
    %3449 = vst [vmem:[#allocation2 + $0xf8] sm:$0xff] %v3179
    %3450 = vst [vmem:[#allocation2 + $0x100] sm:$0xff] %v3237
    %3451 = vst [vmem:[#allocation2 + $0x108] sm:$0xff] %v3295
    %3452 = vst [vmem:[#allocation2 + $0x110] sm:$0xff] %v3353
    %3453 = vst [vmem:[#allocation2 + $0x118] sm:$0xff] %v3411
    %3454 = vst [vmem:[#allocation2 + $0x120] sm:$0xff] %v3124
    %3455 = vst [vmem:[#allocation2 + $0x128] sm:$0xff] %v3182
    %3456 = vst [vmem:[#allocation2 + $0x130] sm:$0xff] %v3240
    %3457 = vst [vmem:[#allocation2 + $0x138] sm:$0xff] %v3298
    %3458 = vst [vmem:[#allocation2 + $0x140] sm:$0xff] %v3356
    %3459 = vst [vmem:[#allocation2 + $0x148] sm:$0xff] %v3414
    %3460 = vst [vmem:[#allocation2 + $0x150] sm:$0xff] %v3126
    %3461 = vst [vmem:[#allocation2 + $0x158] sm:$0xff] %v3184
    %3462 = vst [vmem:[#allocation2 + $0x160] sm:$0xff] %v3242
    %3463 = vst [vmem:[#allocation2 + $0x168] sm:$0xff] %v3300
    %3464 = vst [vmem:[#allocation2 + $0x170] sm:$0xff] %v3358
    %3465 = vst [vmem:[#allocation2 + $0x178] sm:$0xff] %v3416
    %v3466 = vld [vmem:[#allocation9] sm:$0xff]
    %v3467 = vld [vmem:[#allocation9 + $0x8] sm:$0xff]
    %v3468 = vld [vmem:[#allocation9 + $0x10] sm:$0xff]
    %v3469 = vld [vmem:[#allocation9 + $0x18] sm:$0xff]
    %v3470 = vld [vmem:[#allocation9 + $0x20] sm:$0xff]
    %v3471 = vld [vmem:[#allocation9 + $0x28] sm:$0xff]
    %v3472 = vld [vmem:[#allocation9 + $0x30] sm:$0xff]
    %v3473 = vld [vmem:[#allocation9 + $0x38] sm:$0xff]
    %v3474 = vld [vmem:[#allocation9 + $0x40] sm:$0xff]
    %v3475 = vld [vmem:[#allocation9 + $0x48] sm:$0xff]
    %v3476 = vld [vmem:[#allocation9 + $0x50] sm:$0xff]
    %v3477 = vld [vmem:[#allocation9 + $0x58] sm:$0xff]
    %v3478 = vld [vmem:[#allocation9 + $0x60] sm:$0xff]
    %v3479 = vld [vmem:[#allocation9 + $0x68] sm:$0xff]
    %v3480 = vld [vmem:[#allocation9 + $0x70] sm:$0xff]
    %v3481 = vld [vmem:[#allocation9 + $0x78] sm:$0xff]
    %v3482 = vld [vmem:[#allocation9 + $0x80] sm:$0xff]
    %v3483 = vld [vmem:[#allocation9 + $0x88] sm:$0xff]
    %v3484 = vld [vmem:[#allocation9 + $0x90] sm:$0xff]
    %v3485 = vld [vmem:[#allocation9 + $0x98] sm:$0xff]
    %v3486 = vld [vmem:[#allocation9 + $0xa0] sm:$0xff]
    %v3487 = vld [vmem:[#allocation9 + $0xa8] sm:$0xff]
    %v3488 = vld [vmem:[#allocation9 + $0xb0] sm:$0xff]
    %v3489 = vld [vmem:[#allocation9 + $0xb8] sm:$0xff]
    %v3490 = vld [vmem:[#allocation9 + $0xc0] sm:$0xff]
    %v3491 = vld [vmem:[#allocation9 + $0xc8] sm:$0xff]
    %v3492 = vld [vmem:[#allocation9 + $0xd0] sm:$0xff]
    %v3493 = vld [vmem:[#allocation9 + $0xd8] sm:$0xff]
    %v3494 = vld [vmem:[#allocation9 + $0xe0] sm:$0xff]
    %v3495 = vld [vmem:[#allocation9 + $0xe8] sm:$0xff]
    %v3496 = vld [vmem:[#allocation9 + $0xf0] sm:$0xff]
    %v3497 = vld [vmem:[#allocation9 + $0xf8] sm:$0xff]
    %v3498 = vld [vmem:[#allocation9 + $0x100] sm:$0xff]
    %v3499 = vld [vmem:[#allocation9 + $0x108] sm:$0xff]
    %v3500 = vld [vmem:[#allocation9 + $0x110] sm:$0xff]
    %v3501 = vld [vmem:[#allocation9 + $0x118] sm:$0xff]
    %v3502 = vld [vmem:[#allocation9 + $0x120] sm:$0xff]
    %v3503 = vld [vmem:[#allocation9 + $0x128] sm:$0xff]
    %v3504 = vld [vmem:[#allocation9 + $0x130] sm:$0xff]
    %v3505 = vld [vmem:[#allocation9 + $0x138] sm:$0xff]
    %v3506 = vld [vmem:[#allocation9 + $0x140] sm:$0xff]
    %v3507 = vld [vmem:[#allocation9 + $0x148] sm:$0xff]
    %v3508 = vld [vmem:[#allocation9 + $0x150] sm:$0xff]
    %v3509 = vld [vmem:[#allocation9 + $0x158] sm:$0xff]
    %v3510 = vld [vmem:[#allocation9 + $0x160] sm:$0xff]
    %v3511 = vld [vmem:[#allocation9 + $0x168] sm:$0xff]
    %v3512 = vld [vmem:[#allocation9 + $0x170] sm:$0xff]
    %v3513 = vld [vmem:[#allocation9 + $0x178] sm:$0xff]
    %v3514 = vld [vmem:[#allocation9 + $0x180] sm:$0xff]
    %v3515 = vld [vmem:[#allocation9 + $0x188] sm:$0xff]
    %v3516 = vld [vmem:[#allocation9 + $0x190] sm:$0xff]
    %v3517 = vld [vmem:[#allocation9 + $0x198] sm:$0xff]
    %v3518 = vld [vmem:[#allocation9 + $0x1a0] sm:$0xff]
    %v3519 = vld [vmem:[#allocation9 + $0x1a8] sm:$0xff]
    %v3520 = vld [vmem:[#allocation9 + $0x1b0] sm:$0xff]
    %v3521 = vld [vmem:[#allocation9 + $0x1b8] sm:$0xff]
    %v3522 = vld [vmem:[#allocation9 + $0x1c0] sm:$0xff]
    %v3523 = vld [vmem:[#allocation9 + $0x1c8] sm:$0xff]
    %v3524 = vld [vmem:[#allocation9 + $0x1d0] sm:$0xff]
    %v3525 = vld [vmem:[#allocation9 + $0x1d8] sm:$0xff]
    %v3526 = vld [vmem:[#allocation9 + $0x1e0] sm:$0xff]
    %v3527 = vld [vmem:[#allocation9 + $0x1e8] sm:$0xff]
    %v3528 = vld [vmem:[#allocation9 + $0x1f0] sm:$0xff]
    %v3529 = vld [vmem:[#allocation9 + $0x1f8] sm:$0xff]
    %v3530 = vld [vmem:[#allocation9 + $0x200] sm:$0xff]
    %v3531 = vld [vmem:[#allocation9 + $0x208] sm:$0xff]
    %v3532 = vld [vmem:[#allocation9 + $0x210] sm:$0xff]
    %v3533 = vld [vmem:[#allocation9 + $0x218] sm:$0xff]
    %v3534 = vld [vmem:[#allocation9 + $0x220] sm:$0xff]
    %v3535 = vld [vmem:[#allocation9 + $0x228] sm:$0xff]
    %v3536 = vld [vmem:[#allocation9 + $0x230] sm:$0xff]
    %v3537 = vld [vmem:[#allocation9 + $0x238] sm:$0xff]
    %v3538 = vld [vmem:[#allocation9 + $0x240] sm:$0xff]
    %v3539 = vld [vmem:[#allocation9 + $0x248] sm:$0xff]
    %v3540 = vld [vmem:[#allocation9 + $0x250] sm:$0xff]
    %v3541 = vld [vmem:[#allocation9 + $0x258] sm:$0xff]
    %v3542 = vld [vmem:[#allocation9 + $0x260] sm:$0xff]
    %v3543 = vld [vmem:[#allocation9 + $0x268] sm:$0xff]
    %v3544 = vld [vmem:[#allocation9 + $0x270] sm:$0xff]
    %v3545 = vld [vmem:[#allocation9 + $0x278] sm:$0xff]
    %v3546 = vld [vmem:[#allocation9 + $0x280] sm:$0xff]
    %v3547 = vld [vmem:[#allocation9 + $0x288] sm:$0xff]
    %v3548 = vld [vmem:[#allocation9 + $0x290] sm:$0xff]
    %v3549 = vld [vmem:[#allocation9 + $0x298] sm:$0xff]
    %v3550 = vld [vmem:[#allocation9 + $0x2a0] sm:$0xff]
    %v3551 = vld [vmem:[#allocation9 + $0x2a8] sm:$0xff]
    %v3552 = vld [vmem:[#allocation9 + $0x2b0] sm:$0xff]
    %v3553 = vld [vmem:[#allocation9 + $0x2b8] sm:$0xff]
    %v3554 = vld [vmem:[#allocation9 + $0x2c0] sm:$0xff]
    %v3555 = vld [vmem:[#allocation9 + $0x2c8] sm:$0xff]
    %v3556 = vld [vmem:[#allocation9 + $0x2d0] sm:$0xff]
    %v3557 = vld [vmem:[#allocation9 + $0x2d8] sm:$0xff]
    %v3558 = vld [vmem:[#allocation9 + $0x2e0] sm:$0xff]
    %v3559 = vld [vmem:[#allocation9 + $0x2e8] sm:$0xff]
    %v3560 = vld [vmem:[#allocation9 + $0x2f0] sm:$0xff]
    %v3561 = vld [vmem:[#allocation9 + $0x2f8] sm:$0xff]
    %v3562 = vld [vmem:[%s23] sm:$0x1]
    %v3563 = vld [vmem:[%s23 + $0x1] sm:$0x1]
    %v3564 = vld [vmem:[#allocation2] sm:$0xff]
    %v3565 = vld [vmem:[#allocation2 + $0x8] sm:$0xff]
    %v3566 = vld [vmem:[#allocation2 + $0x10] sm:$0xff]
    %v3567 = vld [vmem:[#allocation2 + $0x168] sm:$0xff]
    %v3568 = vld [vmem:[#allocation2 + $0x170] sm:$0xff]
    %v3569 = vld [vmem:[#allocation2 + $0x178] sm:$0xff]
    %3570 = vmatpush.msra.mxu0 %v3556
    %3571 = vmatpush.msra.mxu0 %v3550
    %3572 = vmatpush.msra.mxu0 %v3544
    %3573 = vmatpush.msra.mxu0 %v3538
    %3574 = vmatpush.msra.mxu0 %v3532
    %3575 = vmatpush.msra.mxu0 %v3526
    %3576 = vmatpush.msra.mxu0 %v3520
    %3577 = vmatpush.msra.mxu0 %v3514
    %3578 = vmatpush.msra.mxu0 %v3508
    %3579 = vmatpush.msra.mxu0 %v3502
    %3580 = vmatpush.msra.mxu0 %v3496
    %3581 = vmatpush.msra.mxu0 %v3490
    %3582 = vmatpush.msra.mxu0 %v3484
    %3583 = vmatpush.msra.mxu0 %v3478
    %3584 = vmatpush.msra.mxu0 %v3472
    %3585 = vmatpush.msra.mxu0 %v3466
    %3586 = vmatmul.f32.gmra.mxu0 %v2477
    %v3587 = vpop.f32.mrf.mxu0
    %v3588 = vadd.f32 0.0, %v3587
    %3589 = vdwg.mxu0
    %3590 = vmatpush.msra.mxu0 %v3557
    %3591 = vmatpush.msra.mxu0 %v3551
    %3592 = vmatpush.msra.mxu0 %v3545
    %3593 = vmatpush.msra.mxu0 %v3539
    %3594 = vmatpush.msra.mxu0 %v3533
    %3595 = vmatpush.msra.mxu0 %v3527
    %3596 = vmatpush.msra.mxu0 %v3521
    %3597 = vmatpush.msra.mxu0 %v3515
    %3598 = vmatpush.msra.mxu0 %v3509
    %3599 = vmatpush.msra.mxu0 %v3503
    %3600 = vmatpush.msra.mxu0 %v3497
    %3601 = vmatpush.msra.mxu0 %v3491
    %3602 = vmatpush.msra.mxu0 %v3485
    %3603 = vmatpush.msra.mxu0 %v3479
    %3604 = vmatpush.msra.mxu0 %v3473
    %3605 = vmatpush.msra.mxu0 %v3467
    %3606 = vmatmul.f32.gmra.mxu0 %v2477
    %v3607 = vpop.f32.mrf.mxu0
    %v3608 = vadd.f32 0.0, %v3607
    %3609 = vdwg.mxu0
    %3610 = vmatpush.msra.mxu0 %v3558
    %3611 = vmatpush.msra.mxu0 %v3552
    %3612 = vmatpush.msra.mxu0 %v3546
    %3613 = vmatpush.msra.mxu0 %v3540
    %3614 = vmatpush.msra.mxu0 %v3534
    %3615 = vmatpush.msra.mxu0 %v3528
    %3616 = vmatpush.msra.mxu0 %v3522
    %3617 = vmatpush.msra.mxu0 %v3516
    %3618 = vmatpush.msra.mxu0 %v3510
    %3619 = vmatpush.msra.mxu0 %v3504
    %3620 = vmatpush.msra.mxu0 %v3498
    %3621 = vmatpush.msra.mxu0 %v3492
    %3622 = vmatpush.msra.mxu0 %v3486
    %3623 = vmatpush.msra.mxu0 %v3480
    %3624 = vmatpush.msra.mxu0 %v3474
    %3625 = vmatpush.msra.mxu0 %v3468
    %3626 = vmatmul.f32.gmra.mxu0 %v2477
    %v3627 = vpop.f32.mrf.mxu0
    %v3628 = vadd.f32 0.0, %v3627
    %3629 = vdwg.mxu0
    %3630 = vmatpush.msra.mxu0 %v3559
    %3631 = vmatpush.msra.mxu0 %v3553
    %3632 = vmatpush.msra.mxu0 %v3547
    %3633 = vmatpush.msra.mxu0 %v3541
    %3634 = vmatpush.msra.mxu0 %v3535
    %3635 = vmatpush.msra.mxu0 %v3529
    %3636 = vmatpush.msra.mxu0 %v3523
    %3637 = vmatpush.msra.mxu0 %v3517
    %3638 = vmatpush.msra.mxu0 %v3511
    %3639 = vmatpush.msra.mxu0 %v3505
    %3640 = vmatpush.msra.mxu0 %v3499
    %3641 = vmatpush.msra.mxu0 %v3493
    %3642 = vmatpush.msra.mxu0 %v3487
    %3643 = vmatpush.msra.mxu0 %v3481
    %3644 = vmatpush.msra.mxu0 %v3475
    %3645 = vmatpush.msra.mxu0 %v3469
    %3646 = vmatmul.f32.gmra.mxu0 %v2479
    %v3647 = vpop.f32.mrf.mxu0
    %v3648 = vadd.f32 0.0, %v3647
    %3649 = vdwg.mxu0
    %3650 = vmatpush.msra.mxu0 %v3560
    %3651 = vmatpush.msra.mxu0 %v3554
    %3652 = vmatpush.msra.mxu0 %v3548
    %3653 = vmatpush.msra.mxu0 %v3542
    %3654 = vmatpush.msra.mxu0 %v3536
    %3655 = vmatpush.msra.mxu0 %v3530
    %3656 = vmatpush.msra.mxu0 %v3524
    %3657 = vmatpush.msra.mxu0 %v3518
    %3658 = vmatpush.msra.mxu0 %v3512
    %3659 = vmatpush.msra.mxu0 %v3506
    %3660 = vmatpush.msra.mxu0 %v3500
    %3661 = vmatpush.msra.mxu0 %v3494
    %3662 = vmatpush.msra.mxu0 %v3488
    %3663 = vmatpush.msra.mxu0 %v3482
    %3664 = vmatpush.msra.mxu0 %v3476
    %3665 = vmatpush.msra.mxu0 %v3470
    %3666 = vmatmul.f32.gmra.mxu0 %v2479
    %v3667 = vpop.f32.mrf.mxu0
    %v3668 = vadd.f32 0.0, %v3667
    %3669 = vdwg.mxu0
    %3670 = vmatpush.msra.mxu0 %v3561
    %3671 = vmatpush.msra.mxu0 %v3555
    %3672 = vmatpush.msra.mxu0 %v3549
    %3673 = vmatpush.msra.mxu0 %v3543
    %3674 = vmatpush.msra.mxu0 %v3537
    %3675 = vmatpush.msra.mxu0 %v3531
    %3676 = vmatpush.msra.mxu0 %v3525
    %3677 = vmatpush.msra.mxu0 %v3519
    %3678 = vmatpush.msra.mxu0 %v3513
    %3679 = vmatpush.msra.mxu0 %v3507
    %3680 = vmatpush.msra.mxu0 %v3501
    %3681 = vmatpush.msra.mxu0 %v3495
    %3682 = vmatpush.msra.mxu0 %v3489
    %3683 = vmatpush.msra.mxu0 %v3483
    %3684 = vmatpush.msra.mxu0 %v3477
    %3685 = vmatpush.msra.mxu0 %v3471
    %3686 = vmatmul.f32.gmra.mxu0 %v2479
    %v3687 = vpop.f32.mrf.mxu0
    %v3688 = vadd.f32 0.0, %v3687
    %3689 = vdwg.mxu0
    %v3690 = vadd.f32 %v3564, %v3588
    %v3691 = vxor.u32 %v3690, 2147483648
    %v3692 = vmul.f32 %v3691, 1.442695
    %v3693 = vpow.pop %v3692
    %v3694 = vadd.f32 %v3693, 1.0
    %v3695 = vrcp.pop %v3694
    %v3696 = vmul.f32 %v3694, %v3695
    %v3697 = vsub.f32 1.0, %v3696
    %v3698 = vmul.f32 %v3695, %v3697
    %v3699 = vadd.f32 %v3695, %v3698
    %vm3700 = vweird.f32 %v3694
    %vm3701 = vweird.f32 %v3695
    %vm3702 = vmor %vm3700, %vm3701
    %v3703 = vsel %vm3702, %v3695, %v3699
    %v3704 = vand.u32 2147483647, %v3694
    %vm3705 = vcmp.eq.f32.partialorder %v3704, 8.507059e+37
    %v3706 = vand.u32 %v3694, 2147483648
    %v3707 = vor.u32 1.1754944e-38, %v3706
    %v3708 = vsel %vm3705, %v3707, %v3703
    %v3709 = vmul.f32 1.0, %v3708
    %v3710 = vadd.f32 %v3565, %v3608
    %v3711 = vxor.u32 %v3710, 2147483648
    %v3712 = vmul.f32 %v3711, 1.442695
    %v3713 = vpow.pop %v3712
    %v3714 = vadd.f32 %v3713, 1.0
    %v3715 = vrcp.pop %v3714
    %v3716 = vmul.f32 %v3714, %v3715
    %v3717 = vsub.f32 1.0, %v3716
    %v3718 = vmul.f32 %v3715, %v3717
    %v3719 = vadd.f32 %v3715, %v3718
    %vm3720 = vweird.f32 %v3714
    %vm3721 = vweird.f32 %v3715
    %vm3722 = vmor %vm3720, %vm3721
    %v3723 = vsel %vm3722, %v3715, %v3719
    %v3724 = vand.u32 2147483647, %v3714
    %vm3725 = vcmp.eq.f32.partialorder %v3724, 8.507059e+37
    %v3726 = vand.u32 %v3714, 2147483648
    %v3727 = vor.u32 1.1754944e-38, %v3726
    %v3728 = vsel %vm3725, %v3727, %v3723
    %v3729 = vmul.f32 1.0, %v3728
    %v3731 = vperm.slane %v3562, 0
    %v3733 = vadd.f32 %v3628, %v3731
    %v3734 = vmul.f32 %v3709, %v3733
    %v3735 = vadd.f32 %v3566, %v3734
    %v3736 = vtanh.pop %v3735
    %v3737 = vsub.f32 1.0, %v3729
    %v3738 = vmul.f32 %v3737, %v3736
    %v3739 = vmul.f32 %v3729, %v2477
    %v3740 = vadd.f32 %v3738, %v3739
    %v3741 = vadd.f32 %v3567, %v3648
    %v3742 = vxor.u32 %v3741, 2147483648
    %v3743 = vmul.f32 %v3742, 1.442695
    %v3744 = vpow.pop %v3743
    %v3745 = vadd.f32 %v3744, 1.0
    %v3746 = vrcp.pop %v3745
    %v3747 = vmul.f32 %v3745, %v3746
    %v3748 = vsub.f32 1.0, %v3747
    %v3749 = vmul.f32 %v3746, %v3748
    %v3750 = vadd.f32 %v3746, %v3749
    %vm3751 = vweird.f32 %v3745
    %vm3752 = vweird.f32 %v3746
    %vm3753 = vmor %vm3751, %vm3752
    %v3754 = vsel %vm3753, %v3746, %v3750
    %v3755 = vand.u32 2147483647, %v3745
    %vm3756 = vcmp.eq.f32.partialorder %v3755, 8.507059e+37
    %v3757 = vand.u32 %v3745, 2147483648
    %v3758 = vor.u32 1.1754944e-38, %v3757
    %v3759 = vsel %vm3756, %v3758, %v3754
    %v3760 = vmul.f32 1.0, %v3759
    %v3761 = vadd.f32 %v3568, %v3668
    %v3762 = vxor.u32 %v3761, 2147483648
    %v3763 = vmul.f32 %v3762, 1.442695
    %v3764 = vpow.pop %v3763
    %v3765 = vadd.f32 %v3764, 1.0
    %v3766 = vrcp.pop %v3765
    %v3767 = vmul.f32 %v3765, %v3766
    %v3768 = vsub.f32 1.0, %v3767
    %v3769 = vmul.f32 %v3766, %v3768
    %v3770 = vadd.f32 %v3766, %v3769
    %vm3771 = vweird.f32 %v3765
    %vm3772 = vweird.f32 %v3766
    %vm3773 = vmor %vm3771, %vm3772
    %v3774 = vsel %vm3773, %v3766, %v3770
    %v3775 = vand.u32 2147483647, %v3765
    %vm3776 = vcmp.eq.f32.partialorder %v3775, 8.507059e+37
    %v3777 = vand.u32 %v3765, 2147483648
    %v3778 = vor.u32 1.1754944e-38, %v3777
    %v3779 = vsel %vm3776, %v3778, %v3774
    %v3780 = vmul.f32 1.0, %v3779
    %v3782 = vperm.slane %v3563, 0
    %v3784 = vadd.f32 %v3688, %v3782
    %v3785 = vmul.f32 %v3760, %v3784
    %v3786 = vadd.f32 %v3569, %v3785
    %v3787 = vtanh.pop %v3786
    %v3788 = vsub.f32 1.0, %v3780
    %v3789 = vmul.f32 %v3788, %v3787
    %v3790 = vmul.f32 %v3780, %v2479
    %v3791 = vadd.f32 %v3789, %v3790
    %3792 = vst [vmem:[#allocation4] sm:$0xff] %v3740
    %3793 = vst [vmem:[#allocation4 + $0x78] sm:$0xff] %v3791
    %v3794 = vld [vmem:[#allocation2 + $0x30] sm:$0xff]
    %v3795 = vld [vmem:[#allocation2 + $0x38] sm:$0xff]
    %v3796 = vld [vmem:[#allocation2 + $0x40] sm:$0xff]
    %v3797 = vld [vmem:[#allocation2 + $0x138] sm:$0xff]
    %v3798 = vld [vmem:[#allocation2 + $0x140] sm:$0xff]
    %v3799 = vld [vmem:[#allocation2 + $0x148] sm:$0xff]
    %3800 = vmatpush.msra.mxu0 %v3556
    %3801 = vmatpush.msra.mxu0 %v3550
    %3802 = vmatpush.msra.mxu0 %v3544
    %3803 = vmatpush.msra.mxu0 %v3538
    %3804 = vmatpush.msra.mxu0 %v3532
    %3805 = vmatpush.msra.mxu0 %v3526
    %3806 = vmatpush.msra.mxu0 %v3520
    %3807 = vmatpush.msra.mxu0 %v3514
    %3808 = vmatpush.msra.mxu0 %v3508
    %3809 = vmatpush.msra.mxu0 %v3502
    %3810 = vmatpush.msra.mxu0 %v3496
    %3811 = vmatpush.msra.mxu0 %v3490
    %3812 = vmatpush.msra.mxu0 %v3484
    %3813 = vmatpush.msra.mxu0 %v3478
    %3814 = vmatpush.msra.mxu0 %v3472
    %3815 = vmatpush.msra.mxu0 %v3466
    %3816 = vmatmul.f32.gmra.mxu0 %v3740
    %v3817 = vpop.f32.mrf.mxu0
    %v3818 = vadd.f32 0.0, %v3817
    %3819 = vdwg.mxu0
    %3820 = vmatpush.msra.mxu0 %v3557
    %3821 = vmatpush.msra.mxu0 %v3551
    %3822 = vmatpush.msra.mxu0 %v3545
    %3823 = vmatpush.msra.mxu0 %v3539
    %3824 = vmatpush.msra.mxu0 %v3533
    %3825 = vmatpush.msra.mxu0 %v3527
    %3826 = vmatpush.msra.mxu0 %v3521
    %3827 = vmatpush.msra.mxu0 %v3515
    %3828 = vmatpush.msra.mxu0 %v3509
    %3829 = vmatpush.msra.mxu0 %v3503
    %3830 = vmatpush.msra.mxu0 %v3497
    %3831 = vmatpush.msra.mxu0 %v3491
    %3832 = vmatpush.msra.mxu0 %v3485
    %3833 = vmatpush.msra.mxu0 %v3479
    %3834 = vmatpush.msra.mxu0 %v3473
    %3835 = vmatpush.msra.mxu0 %v3467
    %3836 = vmatmul.f32.gmra.mxu0 %v3740
    %v3837 = vpop.f32.mrf.mxu0
    %v3838 = vadd.f32 0.0, %v3837
    %3839 = vdwg.mxu0
    %3840 = vmatpush.msra.mxu0 %v3558
    %3841 = vmatpush.msra.mxu0 %v3552
    %3842 = vmatpush.msra.mxu0 %v3546
    %3843 = vmatpush.msra.mxu0 %v3540
    %3844 = vmatpush.msra.mxu0 %v3534
    %3845 = vmatpush.msra.mxu0 %v3528
    %3846 = vmatpush.msra.mxu0 %v3522
    %3847 = vmatpush.msra.mxu0 %v3516
    %3848 = vmatpush.msra.mxu0 %v3510
    %3849 = vmatpush.msra.mxu0 %v3504
    %3850 = vmatpush.msra.mxu0 %v3498
    %3851 = vmatpush.msra.mxu0 %v3492
    %3852 = vmatpush.msra.mxu0 %v3486
    %3853 = vmatpush.msra.mxu0 %v3480
    %3854 = vmatpush.msra.mxu0 %v3474
    %3855 = vmatpush.msra.mxu0 %v3468
    %3856 = vmatmul.f32.gmra.mxu0 %v3740
    %v3857 = vpop.f32.mrf.mxu0
    %v3858 = vadd.f32 0.0, %v3857
    %3859 = vdwg.mxu0
    %3860 = vmatpush.msra.mxu0 %v3559
    %3861 = vmatpush.msra.mxu0 %v3553
    %3862 = vmatpush.msra.mxu0 %v3547
    %3863 = vmatpush.msra.mxu0 %v3541
    %3864 = vmatpush.msra.mxu0 %v3535
    %3865 = vmatpush.msra.mxu0 %v3529
    %3866 = vmatpush.msra.mxu0 %v3523
    %3867 = vmatpush.msra.mxu0 %v3517
    %3868 = vmatpush.msra.mxu0 %v3511
    %3869 = vmatpush.msra.mxu0 %v3505
    %3870 = vmatpush.msra.mxu0 %v3499
    %3871 = vmatpush.msra.mxu0 %v3493
    %3872 = vmatpush.msra.mxu0 %v3487
    %3873 = vmatpush.msra.mxu0 %v3481
    %3874 = vmatpush.msra.mxu0 %v3475
    %3875 = vmatpush.msra.mxu0 %v3469
    %3876 = vmatmul.f32.gmra.mxu0 %v3791
    %v3877 = vpop.f32.mrf.mxu0
    %v3878 = vadd.f32 0.0, %v3877
    %3879 = vdwg.mxu0
    %3880 = vmatpush.msra.mxu0 %v3560
    %3881 = vmatpush.msra.mxu0 %v3554
    %3882 = vmatpush.msra.mxu0 %v3548
    %3883 = vmatpush.msra.mxu0 %v3542
    %3884 = vmatpush.msra.mxu0 %v3536
    %3885 = vmatpush.msra.mxu0 %v3530
    %3886 = vmatpush.msra.mxu0 %v3524
    %3887 = vmatpush.msra.mxu0 %v3518
    %3888 = vmatpush.msra.mxu0 %v3512
    %3889 = vmatpush.msra.mxu0 %v3506
    %3890 = vmatpush.msra.mxu0 %v3500
    %3891 = vmatpush.msra.mxu0 %v3494
    %3892 = vmatpush.msra.mxu0 %v3488
    %3893 = vmatpush.msra.mxu0 %v3482
    %3894 = vmatpush.msra.mxu0 %v3476
    %3895 = vmatpush.msra.mxu0 %v3470
    %3896 = vmatmul.f32.gmra.mxu0 %v3791
    %v3897 = vpop.f32.mrf.mxu0
    %v3898 = vadd.f32 0.0, %v3897
    %3899 = vdwg.mxu0
    %3900 = vmatpush.msra.mxu0 %v3561
    %3901 = vmatpush.msra.mxu0 %v3555
    %3902 = vmatpush.msra.mxu0 %v3549
    %3903 = vmatpush.msra.mxu0 %v3543
    %3904 = vmatpush.msra.mxu0 %v3537
    %3905 = vmatpush.msra.mxu0 %v3531
    %3906 = vmatpush.msra.mxu0 %v3525
    %3907 = vmatpush.msra.mxu0 %v3519
    %3908 = vmatpush.msra.mxu0 %v3513
    %3909 = vmatpush.msra.mxu0 %v3507
    %3910 = vmatpush.msra.mxu0 %v3501
    %3911 = vmatpush.msra.mxu0 %v3495
    %3912 = vmatpush.msra.mxu0 %v3489
    %3913 = vmatpush.msra.mxu0 %v3483
    %3914 = vmatpush.msra.mxu0 %v3477
    %3915 = vmatpush.msra.mxu0 %v3471
    %3916 = vmatmul.f32.gmra.mxu0 %v3791
    %v3917 = vpop.f32.mrf.mxu0
    %v3918 = vadd.f32 0.0, %v3917
    %3919 = vdwg.mxu0
    %v3920 = vadd.f32 %v3794, %v3818
    %v3921 = vxor.u32 %v3920, 2147483648
    %v3922 = vmul.f32 %v3921, 1.442695
    %v3923 = vpow.pop %v3922
    %v3924 = vadd.f32 %v3923, 1.0
    %v3925 = vrcp.pop %v3924
    %v3926 = vmul.f32 %v3924, %v3925
    %v3927 = vsub.f32 1.0, %v3926
    %v3928 = vmul.f32 %v3925, %v3927
    %v3929 = vadd.f32 %v3925, %v3928
    %vm3930 = vweird.f32 %v3924
    %vm3931 = vweird.f32 %v3925
    %vm3932 = vmor %vm3930, %vm3931
    %v3933 = vsel %vm3932, %v3925, %v3929
    %v3934 = vand.u32 2147483647, %v3924
    %vm3935 = vcmp.eq.f32.partialorder %v3934, 8.507059e+37
    %v3936 = vand.u32 %v3924, 2147483648
    %v3937 = vor.u32 1.1754944e-38, %v3936
    %v3938 = vsel %vm3935, %v3937, %v3933
    %v3939 = vmul.f32 1.0, %v3938
    %v3940 = vadd.f32 %v3795, %v3838
    %v3941 = vxor.u32 %v3940, 2147483648
    %v3942 = vmul.f32 %v3941, 1.442695
    %v3943 = vpow.pop %v3942
    %v3944 = vadd.f32 %v3943, 1.0
    %v3945 = vrcp.pop %v3944
    %v3946 = vmul.f32 %v3944, %v3945
    %v3947 = vsub.f32 1.0, %v3946
    %v3948 = vmul.f32 %v3945, %v3947
    %v3949 = vadd.f32 %v3945, %v3948
    %vm3950 = vweird.f32 %v3944
    %vm3951 = vweird.f32 %v3945
    %vm3952 = vmor %vm3950, %vm3951
    %v3953 = vsel %vm3952, %v3945, %v3949
    %v3954 = vand.u32 2147483647, %v3944
    %vm3955 = vcmp.eq.f32.partialorder %v3954, 8.507059e+37
    %v3956 = vand.u32 %v3944, 2147483648
    %v3957 = vor.u32 1.1754944e-38, %v3956
    %v3958 = vsel %vm3955, %v3957, %v3953
    %v3959 = vmul.f32 1.0, %v3958
    %v3960 = vadd.f32 %v3858, %v3731
    %v3961 = vmul.f32 %v3939, %v3960
    %v3962 = vadd.f32 %v3796, %v3961
    %v3963 = vtanh.pop %v3962
    %v3964 = vsub.f32 1.0, %v3959
    %v3965 = vmul.f32 %v3964, %v3963
    %v3966 = vmul.f32 %v3959, %v3740
    %v3967 = vadd.f32 %v3965, %v3966
    %v3968 = vadd.f32 %v3797, %v3878
    %v3969 = vxor.u32 %v3968, 2147483648
    %v3970 = vmul.f32 %v3969, 1.442695
    %v3971 = vpow.pop %v3970
    %v3972 = vadd.f32 %v3971, 1.0
    %v3973 = vrcp.pop %v3972
    %v3974 = vmul.f32 %v3972, %v3973
    %v3975 = vsub.f32 1.0, %v3974
    %v3976 = vmul.f32 %v3973, %v3975
    %v3977 = vadd.f32 %v3973, %v3976
    %vm3978 = vweird.f32 %v3972
    %vm3979 = vweird.f32 %v3973
    %vm3980 = vmor %vm3978, %vm3979
    %v3981 = vsel %vm3980, %v3973, %v3977
    %v3982 = vand.u32 2147483647, %v3972
    %vm3983 = vcmp.eq.f32.partialorder %v3982, 8.507059e+37
    %v3984 = vand.u32 %v3972, 2147483648
    %v3985 = vor.u32 1.1754944e-38, %v3984
    %v3986 = vsel %vm3983, %v3985, %v3981
    %v3987 = vmul.f32 1.0, %v3986
    %v3988 = vadd.f32 %v3798, %v3898
    %v3989 = vxor.u32 %v3988, 2147483648
    %v3990 = vmul.f32 %v3989, 1.442695
    %v3991 = vpow.pop %v3990
    %v3992 = vadd.f32 %v3991, 1.0
    %v3993 = vrcp.pop %v3992
    %v3994 = vmul.f32 %v3992, %v3993
    %v3995 = vsub.f32 1.0, %v3994
    %v3996 = vmul.f32 %v3993, %v3995
    %v3997 = vadd.f32 %v3993, %v3996
    %vm3998 = vweird.f32 %v3992
    %vm3999 = vweird.f32 %v3993
    %vm4000 = vmor %vm3998, %vm3999
    %v4001 = vsel %vm4000, %v3993, %v3997
    %v4002 = vand.u32 2147483647, %v3992
    %vm4003 = vcmp.eq.f32.partialorder %v4002, 8.507059e+37
    %v4004 = vand.u32 %v3992, 2147483648
    %v4005 = vor.u32 1.1754944e-38, %v4004
    %v4006 = vsel %vm4003, %v4005, %v4001
    %v4007 = vmul.f32 1.0, %v4006
    %v4008 = vadd.f32 %v3918, %v3782
    %v4009 = vmul.f32 %v3987, %v4008
    %v4010 = vadd.f32 %v3799, %v4009
    %v4011 = vtanh.pop %v4010
    %v4012 = vsub.f32 1.0, %v4007
    %v4013 = vmul.f32 %v4012, %v4011
    %v4014 = vmul.f32 %v4007, %v3791
    %v4015 = vadd.f32 %v4013, %v4014
    %4016 = vst [vmem:[#allocation4 + $0x10] sm:$0xff] %v3967
    %4017 = vst [vmem:[#allocation4 + $0x68] sm:$0xff] %v4015
    %v4018 = vld [vmem:[#allocation2 + $0x60] sm:$0xff]
    %v4019 = vld [vmem:[#allocation2 + $0x68] sm:$0xff]
    %v4020 = vld [vmem:[#allocation2 + $0x70] sm:$0xff]
    %v4021 = vld [vmem:[#allocation2 + $0x108] sm:$0xff]
    %v4022 = vld [vmem:[#allocation2 + $0x110] sm:$0xff]
    %v4023 = vld [vmem:[#allocation2 + $0x118] sm:$0xff]
    %4024 = vmatpush.msra.mxu0 %v3556
    %4025 = vmatpush.msra.mxu0 %v3550
    %4026 = vmatpush.msra.mxu0 %v3544
    %4027 = vmatpush.msra.mxu0 %v3538
    %4028 = vmatpush.msra.mxu0 %v3532
    %4029 = vmatpush.msra.mxu0 %v3526
    %4030 = vmatpush.msra.mxu0 %v3520
    %4031 = vmatpush.msra.mxu0 %v3514
    %4032 = vmatpush.msra.mxu0 %v3508
    %4033 = vmatpush.msra.mxu0 %v3502
    %4034 = vmatpush.msra.mxu0 %v3496
    %4035 = vmatpush.msra.mxu0 %v3490
    %4036 = vmatpush.msra.mxu0 %v3484
    %4037 = vmatpush.msra.mxu0 %v3478
    %4038 = vmatpush.msra.mxu0 %v3472
    %4039 = vmatpush.msra.mxu0 %v3466
    %4040 = vmatmul.f32.gmra.mxu0 %v3967
    %v4041 = vpop.f32.mrf.mxu0
    %v4042 = vadd.f32 0.0, %v4041
    %4043 = vdwg.mxu0
    %4044 = vmatpush.msra.mxu0 %v3557
    %4045 = vmatpush.msra.mxu0 %v3551
    %4046 = vmatpush.msra.mxu0 %v3545
    %4047 = vmatpush.msra.mxu0 %v3539
    %4048 = vmatpush.msra.mxu0 %v3533
    %4049 = vmatpush.msra.mxu0 %v3527
    %4050 = vmatpush.msra.mxu0 %v3521
    %4051 = vmatpush.msra.mxu0 %v3515
    %4052 = vmatpush.msra.mxu0 %v3509
    %4053 = vmatpush.msra.mxu0 %v3503
    %4054 = vmatpush.msra.mxu0 %v3497
    %4055 = vmatpush.msra.mxu0 %v3491
    %4056 = vmatpush.msra.mxu0 %v3485
    %4057 = vmatpush.msra.mxu0 %v3479
    %4058 = vmatpush.msra.mxu0 %v3473
    %4059 = vmatpush.msra.mxu0 %v3467
    %4060 = vmatmul.f32.gmra.mxu0 %v3967
    %v4061 = vpop.f32.mrf.mxu0
    %v4062 = vadd.f32 0.0, %v4061
    %4063 = vdwg.mxu0
    %4064 = vmatpush.msra.mxu0 %v3558
    %4065 = vmatpush.msra.mxu0 %v3552
    %4066 = vmatpush.msra.mxu0 %v3546
    %4067 = vmatpush.msra.mxu0 %v3540
    %4068 = vmatpush.msra.mxu0 %v3534
    %4069 = vmatpush.msra.mxu0 %v3528
    %4070 = vmatpush.msra.mxu0 %v3522
    %4071 = vmatpush.msra.mxu0 %v3516
    %4072 = vmatpush.msra.mxu0 %v3510
    %4073 = vmatpush.msra.mxu0 %v3504
    %4074 = vmatpush.msra.mxu0 %v3498
    %4075 = vmatpush.msra.mxu0 %v3492
    %4076 = vmatpush.msra.mxu0 %v3486
    %4077 = vmatpush.msra.mxu0 %v3480
    %4078 = vmatpush.msra.mxu0 %v3474
    %4079 = vmatpush.msra.mxu0 %v3468
    %4080 = vmatmul.f32.gmra.mxu0 %v3967
    %v4081 = vpop.f32.mrf.mxu0
    %v4082 = vadd.f32 0.0, %v4081
    %4083 = vdwg.mxu0
    %4084 = vmatpush.msra.mxu0 %v3559
    %4085 = vmatpush.msra.mxu0 %v3553
    %4086 = vmatpush.msra.mxu0 %v3547
    %4087 = vmatpush.msra.mxu0 %v3541
    %4088 = vmatpush.msra.mxu0 %v3535
    %4089 = vmatpush.msra.mxu0 %v3529
    %4090 = vmatpush.msra.mxu0 %v3523
    %4091 = vmatpush.msra.mxu0 %v3517
    %4092 = vmatpush.msra.mxu0 %v3511
    %4093 = vmatpush.msra.mxu0 %v3505
    %4094 = vmatpush.msra.mxu0 %v3499
    %4095 = vmatpush.msra.mxu0 %v3493
    %4096 = vmatpush.msra.mxu0 %v3487
    %4097 = vmatpush.msra.mxu0 %v3481
    %4098 = vmatpush.msra.mxu0 %v3475
    %4099 = vmatpush.msra.mxu0 %v3469
    %4100 = vmatmul.f32.gmra.mxu0 %v4015
    %v4101 = vpop.f32.mrf.mxu0
    %v4102 = vadd.f32 0.0, %v4101
    %4103 = vdwg.mxu0
    %4104 = vmatpush.msra.mxu0 %v3560
    %4105 = vmatpush.msra.mxu0 %v3554
    %4106 = vmatpush.msra.mxu0 %v3548
    %4107 = vmatpush.msra.mxu0 %v3542
    %4108 = vmatpush.msra.mxu0 %v3536
    %4109 = vmatpush.msra.mxu0 %v3530
    %4110 = vmatpush.msra.mxu0 %v3524
    %4111 = vmatpush.msra.mxu0 %v3518
    %4112 = vmatpush.msra.mxu0 %v3512
    %4113 = vmatpush.msra.mxu0 %v3506
    %4114 = vmatpush.msra.mxu0 %v3500
    %4115 = vmatpush.msra.mxu0 %v3494
    %4116 = vmatpush.msra.mxu0 %v3488
    %4117 = vmatpush.msra.mxu0 %v3482
    %4118 = vmatpush.msra.mxu0 %v3476
    %4119 = vmatpush.msra.mxu0 %v3470
    %4120 = vmatmul.f32.gmra.mxu0 %v4015
    %v4121 = vpop.f32.mrf.mxu0
    %v4122 = vadd.f32 0.0, %v4121
    %4123 = vdwg.mxu0
    %4124 = vmatpush.msra.mxu0 %v3561
    %4125 = vmatpush.msra.mxu0 %v3555
    %4126 = vmatpush.msra.mxu0 %v3549
    %4127 = vmatpush.msra.mxu0 %v3543
    %4128 = vmatpush.msra.mxu0 %v3537
    %4129 = vmatpush.msra.mxu0 %v3531
    %4130 = vmatpush.msra.mxu0 %v3525
    %4131 = vmatpush.msra.mxu0 %v3519
    %4132 = vmatpush.msra.mxu0 %v3513
    %4133 = vmatpush.msra.mxu0 %v3507
    %4134 = vmatpush.msra.mxu0 %v3501
    %4135 = vmatpush.msra.mxu0 %v3495
    %4136 = vmatpush.msra.mxu0 %v3489
    %4137 = vmatpush.msra.mxu0 %v3483
    %4138 = vmatpush.msra.mxu0 %v3477
    %4139 = vmatpush.msra.mxu0 %v3471
    %4140 = vmatmul.f32.gmra.mxu0 %v4015
    %v4141 = vpop.f32.mrf.mxu0
    %v4142 = vadd.f32 0.0, %v4141
    %4143 = vdwg.mxu0
    %v4144 = vadd.f32 %v4018, %v4042
    %v4145 = vxor.u32 %v4144, 2147483648
    %v4146 = vmul.f32 %v4145, 1.442695
    %v4147 = vpow.pop %v4146
    %v4148 = vadd.f32 %v4147, 1.0
    %v4149 = vrcp.pop %v4148
    %v4150 = vmul.f32 %v4148, %v4149
    %v4151 = vsub.f32 1.0, %v4150
    %v4152 = vmul.f32 %v4149, %v4151
    %v4153 = vadd.f32 %v4149, %v4152
    %vm4154 = vweird.f32 %v4148
    %vm4155 = vweird.f32 %v4149
    %vm4156 = vmor %vm4154, %vm4155
    %v4157 = vsel %vm4156, %v4149, %v4153
    %v4158 = vand.u32 2147483647, %v4148
    %vm4159 = vcmp.eq.f32.partialorder %v4158, 8.507059e+37
    %v4160 = vand.u32 %v4148, 2147483648
    %v4161 = vor.u32 1.1754944e-38, %v4160
    %v4162 = vsel %vm4159, %v4161, %v4157
    %v4163 = vmul.f32 1.0, %v4162
    %v4164 = vadd.f32 %v4019, %v4062
    %v4165 = vxor.u32 %v4164, 2147483648
    %v4166 = vmul.f32 %v4165, 1.442695
    %v4167 = vpow.pop %v4166
    %v4168 = vadd.f32 %v4167, 1.0
    %v4169 = vrcp.pop %v4168
    %v4170 = vmul.f32 %v4168, %v4169
    %v4171 = vsub.f32 1.0, %v4170
    %v4172 = vmul.f32 %v4169, %v4171
    %v4173 = vadd.f32 %v4169, %v4172
    %vm4174 = vweird.f32 %v4168
    %vm4175 = vweird.f32 %v4169
    %vm4176 = vmor %vm4174, %vm4175
    %v4177 = vsel %vm4176, %v4169, %v4173
    %v4178 = vand.u32 2147483647, %v4168
    %vm4179 = vcmp.eq.f32.partialorder %v4178, 8.507059e+37
    %v4180 = vand.u32 %v4168, 2147483648
    %v4181 = vor.u32 1.1754944e-38, %v4180
    %v4182 = vsel %vm4179, %v4181, %v4177
    %v4183 = vmul.f32 1.0, %v4182
    %v4184 = vadd.f32 %v4082, %v3731
    %v4185 = vmul.f32 %v4163, %v4184
    %v4186 = vadd.f32 %v4020, %v4185
    %v4187 = vtanh.pop %v4186
    %v4188 = vsub.f32 1.0, %v4183
    %v4189 = vmul.f32 %v4188, %v4187
    %v4190 = vmul.f32 %v4183, %v3967
    %v4191 = vadd.f32 %v4189, %v4190
    %v4192 = vadd.f32 %v4021, %v4102
    %v4193 = vxor.u32 %v4192, 2147483648
    %v4194 = vmul.f32 %v4193, 1.442695
    %v4195 = vpow.pop %v4194
    %v4196 = vadd.f32 %v4195, 1.0
    %v4197 = vrcp.pop %v4196
    %v4198 = vmul.f32 %v4196, %v4197
    %v4199 = vsub.f32 1.0, %v4198
    %v4200 = vmul.f32 %v4197, %v4199
    %v4201 = vadd.f32 %v4197, %v4200
    %vm4202 = vweird.f32 %v4196
    %vm4203 = vweird.f32 %v4197
    %vm4204 = vmor %vm4202, %vm4203
    %v4205 = vsel %vm4204, %v4197, %v4201
    %v4206 = vand.u32 2147483647, %v4196
    %vm4207 = vcmp.eq.f32.partialorder %v4206, 8.507059e+37
    %v4208 = vand.u32 %v4196, 2147483648
    %v4209 = vor.u32 1.1754944e-38, %v4208
    %v4210 = vsel %vm4207, %v4209, %v4205
    %v4211 = vmul.f32 1.0, %v4210
    %v4212 = vadd.f32 %v4022, %v4122
    %v4213 = vxor.u32 %v4212, 2147483648
    %v4214 = vmul.f32 %v4213, 1.442695
    %v4215 = vpow.pop %v4214
    %v4216 = vadd.f32 %v4215, 1.0
    %v4217 = vrcp.pop %v4216
    %v4218 = vmul.f32 %v4216, %v4217
    %v4219 = vsub.f32 1.0, %v4218
    %v4220 = vmul.f32 %v4217, %v4219
    %v4221 = vadd.f32 %v4217, %v4220
    %vm4222 = vweird.f32 %v4216
    %vm4223 = vweird.f32 %v4217
    %vm4224 = vmor %vm4222, %vm4223
    %v4225 = vsel %vm4224, %v4217, %v4221
    %v4226 = vand.u32 2147483647, %v4216
    %vm4227 = vcmp.eq.f32.partialorder %v4226, 8.507059e+37
    %v4228 = vand.u32 %v4216, 2147483648
    %v4229 = vor.u32 1.1754944e-38, %v4228
    %v4230 = vsel %vm4227, %v4229, %v4225
    %v4231 = vmul.f32 1.0, %v4230
    %v4232 = vadd.f32 %v4142, %v3782
    %v4233 = vmul.f32 %v4211, %v4232
    %v4234 = vadd.f32 %v4023, %v4233
    %v4235 = vtanh.pop %v4234
    %v4236 = vsub.f32 1.0, %v4231
    %v4237 = vmul.f32 %v4236, %v4235
    %v4238 = vmul.f32 %v4231, %v4015
    %v4239 = vadd.f32 %v4237, %v4238
    %4240 = vst [vmem:[#allocation4 + $0x20] sm:$0xff] %v4191
    %4241 = vst [vmem:[#allocation4 + $0x58] sm:$0xff] %v4239
    %v4242 = vld [vmem:[#allocation2 + $0x90] sm:$0xff]
    %v4243 = vld [vmem:[#allocation2 + $0x98] sm:$0xff]
    %v4244 = vld [vmem:[#allocation2 + $0xa0] sm:$0xff]
    %v4245 = vld [vmem:[#allocation2 + $0xd8] sm:$0xff]
    %v4246 = vld [vmem:[#allocation2 + $0xe0] sm:$0xff]
    %v4247 = vld [vmem:[#allocation2 + $0xe8] sm:$0xff]
    %4248 = vmatpush.msra.mxu0 %v3556
    %4249 = vmatpush.msra.mxu0 %v3550
    %4250 = vmatpush.msra.mxu0 %v3544
    %4251 = vmatpush.msra.mxu0 %v3538
    %4252 = vmatpush.msra.mxu0 %v3532
    %4253 = vmatpush.msra.mxu0 %v3526
    %4254 = vmatpush.msra.mxu0 %v3520
    %4255 = vmatpush.msra.mxu0 %v3514
    %4256 = vmatpush.msra.mxu0 %v3508
    %4257 = vmatpush.msra.mxu0 %v3502
    %4258 = vmatpush.msra.mxu0 %v3496
    %4259 = vmatpush.msra.mxu0 %v3490
    %4260 = vmatpush.msra.mxu0 %v3484
    %4261 = vmatpush.msra.mxu0 %v3478
    %4262 = vmatpush.msra.mxu0 %v3472
    %4263 = vmatpush.msra.mxu0 %v3466
    %4264 = vmatmul.f32.gmra.mxu0 %v4191
    %v4265 = vpop.f32.mrf.mxu0
    %v4266 = vadd.f32 0.0, %v4265
    %4267 = vdwg.mxu0
    %4268 = vmatpush.msra.mxu0 %v3557
    %4269 = vmatpush.msra.mxu0 %v3551
    %4270 = vmatpush.msra.mxu0 %v3545
    %4271 = vmatpush.msra.mxu0 %v3539
    %4272 = vmatpush.msra.mxu0 %v3533
    %4273 = vmatpush.msra.mxu0 %v3527
    %4274 = vmatpush.msra.mxu0 %v3521
    %4275 = vmatpush.msra.mxu0 %v3515
    %4276 = vmatpush.msra.mxu0 %v3509
    %4277 = vmatpush.msra.mxu0 %v3503
    %4278 = vmatpush.msra.mxu0 %v3497
    %4279 = vmatpush.msra.mxu0 %v3491
    %4280 = vmatpush.msra.mxu0 %v3485
    %4281 = vmatpush.msra.mxu0 %v3479
    %4282 = vmatpush.msra.mxu0 %v3473
    %4283 = vmatpush.msra.mxu0 %v3467
    %4284 = vmatmul.f32.gmra.mxu0 %v4191
    %v4285 = vpop.f32.mrf.mxu0
    %v4286 = vadd.f32 0.0, %v4285
    %4287 = vdwg.mxu0
    %4288 = vmatpush.msra.mxu0 %v3558
    %4289 = vmatpush.msra.mxu0 %v3552
    %4290 = vmatpush.msra.mxu0 %v3546
    %4291 = vmatpush.msra.mxu0 %v3540
    %4292 = vmatpush.msra.mxu0 %v3534
    %4293 = vmatpush.msra.mxu0 %v3528
    %4294 = vmatpush.msra.mxu0 %v3522
    %4295 = vmatpush.msra.mxu0 %v3516
    %4296 = vmatpush.msra.mxu0 %v3510
    %4297 = vmatpush.msra.mxu0 %v3504
    %4298 = vmatpush.msra.mxu0 %v3498
    %4299 = vmatpush.msra.mxu0 %v3492
    %4300 = vmatpush.msra.mxu0 %v3486
    %4301 = vmatpush.msra.mxu0 %v3480
    %4302 = vmatpush.msra.mxu0 %v3474
    %4303 = vmatpush.msra.mxu0 %v3468
    %4304 = vmatmul.f32.gmra.mxu0 %v4191
    %v4305 = vpop.f32.mrf.mxu0
    %v4306 = vadd.f32 0.0, %v4305
    %4307 = vdwg.mxu0
    %4308 = vmatpush.msra.mxu0 %v3559
    %4309 = vmatpush.msra.mxu0 %v3553
    %4310 = vmatpush.msra.mxu0 %v3547
    %4311 = vmatpush.msra.mxu0 %v3541
    %4312 = vmatpush.msra.mxu0 %v3535
    %4313 = vmatpush.msra.mxu0 %v3529
    %4314 = vmatpush.msra.mxu0 %v3523
    %4315 = vmatpush.msra.mxu0 %v3517
    %4316 = vmatpush.msra.mxu0 %v3511
    %4317 = vmatpush.msra.mxu0 %v3505
    %4318 = vmatpush.msra.mxu0 %v3499
    %4319 = vmatpush.msra.mxu0 %v3493
    %4320 = vmatpush.msra.mxu0 %v3487
    %4321 = vmatpush.msra.mxu0 %v3481
    %4322 = vmatpush.msra.mxu0 %v3475
    %4323 = vmatpush.msra.mxu0 %v3469
    %4324 = vmatmul.f32.gmra.mxu0 %v4239
    %v4325 = vpop.f32.mrf.mxu0
    %v4326 = vadd.f32 0.0, %v4325
    %4327 = vdwg.mxu0
    %4328 = vmatpush.msra.mxu0 %v3560
    %4329 = vmatpush.msra.mxu0 %v3554
    %4330 = vmatpush.msra.mxu0 %v3548
    %4331 = vmatpush.msra.mxu0 %v3542
    %4332 = vmatpush.msra.mxu0 %v3536
    %4333 = vmatpush.msra.mxu0 %v3530
    %4334 = vmatpush.msra.mxu0 %v3524
    %4335 = vmatpush.msra.mxu0 %v3518
    %4336 = vmatpush.msra.mxu0 %v3512
    %4337 = vmatpush.msra.mxu0 %v3506
    %4338 = vmatpush.msra.mxu0 %v3500
    %4339 = vmatpush.msra.mxu0 %v3494
    %4340 = vmatpush.msra.mxu0 %v3488
    %4341 = vmatpush.msra.mxu0 %v3482
    %4342 = vmatpush.msra.mxu0 %v3476
    %4343 = vmatpush.msra.mxu0 %v3470
    %4344 = vmatmul.f32.gmra.mxu0 %v4239
    %v4345 = vpop.f32.mrf.mxu0
    %v4346 = vadd.f32 0.0, %v4345
    %4347 = vdwg.mxu0
    %4348 = vmatpush.msra.mxu0 %v3561
    %4349 = vmatpush.msra.mxu0 %v3555
    %4350 = vmatpush.msra.mxu0 %v3549
    %4351 = vmatpush.msra.mxu0 %v3543
    %4352 = vmatpush.msra.mxu0 %v3537
    %4353 = vmatpush.msra.mxu0 %v3531
    %4354 = vmatpush.msra.mxu0 %v3525
    %4355 = vmatpush.msra.mxu0 %v3519
    %4356 = vmatpush.msra.mxu0 %v3513
    %4357 = vmatpush.msra.mxu0 %v3507
    %4358 = vmatpush.msra.mxu0 %v3501
    %4359 = vmatpush.msra.mxu0 %v3495
    %4360 = vmatpush.msra.mxu0 %v3489
    %4361 = vmatpush.msra.mxu0 %v3483
    %4362 = vmatpush.msra.mxu0 %v3477
    %4363 = vmatpush.msra.mxu0 %v3471
    %4364 = vmatmul.f32.gmra.mxu0 %v4239
    %v4365 = vpop.f32.mrf.mxu0
    %v4366 = vadd.f32 0.0, %v4365
    %4367 = vdwg.mxu0
    %v4368 = vadd.f32 %v4242, %v4266
    %v4369 = vxor.u32 %v4368, 2147483648
    %v4370 = vmul.f32 %v4369, 1.442695
    %v4371 = vpow.pop %v4370
    %v4372 = vadd.f32 %v4371, 1.0
    %v4373 = vrcp.pop %v4372
    %v4374 = vmul.f32 %v4372, %v4373
    %v4375 = vsub.f32 1.0, %v4374
    %v4376 = vmul.f32 %v4373, %v4375
    %v4377 = vadd.f32 %v4373, %v4376
    %vm4378 = vweird.f32 %v4372
    %vm4379 = vweird.f32 %v4373
    %vm4380 = vmor %vm4378, %vm4379
    %v4381 = vsel %vm4380, %v4373, %v4377
    %v4382 = vand.u32 2147483647, %v4372
    %vm4383 = vcmp.eq.f32.partialorder %v4382, 8.507059e+37
    %v4384 = vand.u32 %v4372, 2147483648
    %v4385 = vor.u32 1.1754944e-38, %v4384
    %v4386 = vsel %vm4383, %v4385, %v4381
    %v4387 = vmul.f32 1.0, %v4386
    %v4388 = vadd.f32 %v4243, %v4286
    %v4389 = vxor.u32 %v4388, 2147483648
    %v4390 = vmul.f32 %v4389, 1.442695
    %v4391 = vpow.pop %v4390
    %v4392 = vadd.f32 %v4391, 1.0
    %v4393 = vrcp.pop %v4392
    %v4394 = vmul.f32 %v4392, %v4393
    %v4395 = vsub.f32 1.0, %v4394
    %v4396 = vmul.f32 %v4393, %v4395
    %v4397 = vadd.f32 %v4393, %v4396
    %vm4398 = vweird.f32 %v4392
    %vm4399 = vweird.f32 %v4393
    %vm4400 = vmor %vm4398, %vm4399
    %v4401 = vsel %vm4400, %v4393, %v4397
    %v4402 = vand.u32 2147483647, %v4392
    %vm4403 = vcmp.eq.f32.partialorder %v4402, 8.507059e+37
    %v4404 = vand.u32 %v4392, 2147483648
    %v4405 = vor.u32 1.1754944e-38, %v4404
    %v4406 = vsel %vm4403, %v4405, %v4401
    %v4407 = vmul.f32 1.0, %v4406
    %v4408 = vadd.f32 %v4306, %v3731
    %v4409 = vmul.f32 %v4387, %v4408
    %v4410 = vadd.f32 %v4244, %v4409
    %v4411 = vtanh.pop %v4410
    %v4412 = vsub.f32 1.0, %v4407
    %v4413 = vmul.f32 %v4412, %v4411
    %v4414 = vmul.f32 %v4407, %v4191
    %v4415 = vadd.f32 %v4413, %v4414
    %v4416 = vadd.f32 %v4245, %v4326
    %v4417 = vxor.u32 %v4416, 2147483648
    %v4418 = vmul.f32 %v4417, 1.442695
    %v4419 = vpow.pop %v4418
    %v4420 = vadd.f32 %v4419, 1.0
    %v4421 = vrcp.pop %v4420
    %v4422 = vmul.f32 %v4420, %v4421
    %v4423 = vsub.f32 1.0, %v4422
    %v4424 = vmul.f32 %v4421, %v4423
    %v4425 = vadd.f32 %v4421, %v4424
    %vm4426 = vweird.f32 %v4420
    %vm4427 = vweird.f32 %v4421
    %vm4428 = vmor %vm4426, %vm4427
    %v4429 = vsel %vm4428, %v4421, %v4425
    %v4430 = vand.u32 2147483647, %v4420
    %vm4431 = vcmp.eq.f32.partialorder %v4430, 8.507059e+37
    %v4432 = vand.u32 %v4420, 2147483648
    %v4433 = vor.u32 1.1754944e-38, %v4432
    %v4434 = vsel %vm4431, %v4433, %v4429
    %v4435 = vmul.f32 1.0, %v4434
    %v4436 = vadd.f32 %v4246, %v4346
    %v4437 = vxor.u32 %v4436, 2147483648
    %v4438 = vmul.f32 %v4437, 1.442695
    %v4439 = vpow.pop %v4438
    %v4440 = vadd.f32 %v4439, 1.0
    %v4441 = vrcp.pop %v4440
    %v4442 = vmul.f32 %v4440, %v4441
    %v4443 = vsub.f32 1.0, %v4442
    %v4444 = vmul.f32 %v4441, %v4443
    %v4445 = vadd.f32 %v4441, %v4444
    %vm4446 = vweird.f32 %v4440
    %vm4447 = vweird.f32 %v4441
    %vm4448 = vmor %vm4446, %vm4447
    %v4449 = vsel %vm4448, %v4441, %v4445
    %v4450 = vand.u32 2147483647, %v4440
    %vm4451 = vcmp.eq.f32.partialorder %v4450, 8.507059e+37
    %v4452 = vand.u32 %v4440, 2147483648
    %v4453 = vor.u32 1.1754944e-38, %v4452
    %v4454 = vsel %vm4451, %v4453, %v4449
    %v4455 = vmul.f32 1.0, %v4454
    %v4456 = vadd.f32 %v4366, %v3782
    %v4457 = vmul.f32 %v4435, %v4456
    %v4458 = vadd.f32 %v4247, %v4457
    %v4459 = vtanh.pop %v4458
    %v4460 = vsub.f32 1.0, %v4455
    %v4461 = vmul.f32 %v4460, %v4459
    %v4462 = vmul.f32 %v4455, %v4239
    %v4463 = vadd.f32 %v4461, %v4462
    %4464 = vst [vmem:[#allocation4 + $0x30] sm:$0xff] %v4415
    %4465 = vst [vmem:[#allocation4 + $0x48] sm:$0xff] %v4463
    %v4466 = vld [vmem:[#allocation2 + $0xc0] sm:$0xff]
    %v4467 = vld [vmem:[#allocation2 + $0xc8] sm:$0xff]
    %v4468 = vld [vmem:[#allocation2 + $0xd0] sm:$0xff]
    %v4469 = vld [vmem:[#allocation2 + $0xa8] sm:$0xff]
    %v4470 = vld [vmem:[#allocation2 + $0xb0] sm:$0xff]
    %v4471 = vld [vmem:[#allocation2 + $0xb8] sm:$0xff]
    %4472 = vmatpush.msra.mxu0 %v3556
    %4473 = vmatpush.msra.mxu0 %v3550
    %4474 = vmatpush.msra.mxu0 %v3544
    %4475 = vmatpush.msra.mxu0 %v3538
    %4476 = vmatpush.msra.mxu0 %v3532
    %4477 = vmatpush.msra.mxu0 %v3526
    %4478 = vmatpush.msra.mxu0 %v3520
    %4479 = vmatpush.msra.mxu0 %v3514
    %4480 = vmatpush.msra.mxu0 %v3508
    %4481 = vmatpush.msra.mxu0 %v3502
    %4482 = vmatpush.msra.mxu0 %v3496
    %4483 = vmatpush.msra.mxu0 %v3490
    %4484 = vmatpush.msra.mxu0 %v3484
    %4485 = vmatpush.msra.mxu0 %v3478
    %4486 = vmatpush.msra.mxu0 %v3472
    %4487 = vmatpush.msra.mxu0 %v3466
    %4488 = vmatmul.f32.gmra.mxu0 %v4415
    %v4489 = vpop.f32.mrf.mxu0
    %v4490 = vadd.f32 0.0, %v4489
    %4491 = vdwg.mxu0
    %4492 = vmatpush.msra.mxu0 %v3557
    %4493 = vmatpush.msra.mxu0 %v3551
    %4494 = vmatpush.msra.mxu0 %v3545
    %4495 = vmatpush.msra.mxu0 %v3539
    %4496 = vmatpush.msra.mxu0 %v3533
    %4497 = vmatpush.msra.mxu0 %v3527
    %4498 = vmatpush.msra.mxu0 %v3521
    %4499 = vmatpush.msra.mxu0 %v3515
    %4500 = vmatpush.msra.mxu0 %v3509
    %4501 = vmatpush.msra.mxu0 %v3503
    %4502 = vmatpush.msra.mxu0 %v3497
    %4503 = vmatpush.msra.mxu0 %v3491
    %4504 = vmatpush.msra.mxu0 %v3485
    %4505 = vmatpush.msra.mxu0 %v3479
    %4506 = vmatpush.msra.mxu0 %v3473
    %4507 = vmatpush.msra.mxu0 %v3467
    %4508 = vmatmul.f32.gmra.mxu0 %v4415
    %v4509 = vpop.f32.mrf.mxu0
    %v4510 = vadd.f32 0.0, %v4509
    %4511 = vdwg.mxu0
    %4512 = vmatpush.msra.mxu0 %v3558
    %4513 = vmatpush.msra.mxu0 %v3552
    %4514 = vmatpush.msra.mxu0 %v3546
    %4515 = vmatpush.msra.mxu0 %v3540
    %4516 = vmatpush.msra.mxu0 %v3534
    %4517 = vmatpush.msra.mxu0 %v3528
    %4518 = vmatpush.msra.mxu0 %v3522
    %4519 = vmatpush.msra.mxu0 %v3516
    %4520 = vmatpush.msra.mxu0 %v3510
    %4521 = vmatpush.msra.mxu0 %v3504
    %4522 = vmatpush.msra.mxu0 %v3498
    %4523 = vmatpush.msra.mxu0 %v3492
    %4524 = vmatpush.msra.mxu0 %v3486
    %4525 = vmatpush.msra.mxu0 %v3480
    %4526 = vmatpush.msra.mxu0 %v3474
    %4527 = vmatpush.msra.mxu0 %v3468
    %4528 = vmatmul.f32.gmra.mxu0 %v4415
    %v4529 = vpop.f32.mrf.mxu0
    %v4530 = vadd.f32 0.0, %v4529
    %4531 = vdwg.mxu0
    %4532 = vmatpush.msra.mxu0 %v3559
    %4533 = vmatpush.msra.mxu0 %v3553
    %4534 = vmatpush.msra.mxu0 %v3547
    %4535 = vmatpush.msra.mxu0 %v3541
    %4536 = vmatpush.msra.mxu0 %v3535
    %4537 = vmatpush.msra.mxu0 %v3529
    %4538 = vmatpush.msra.mxu0 %v3523
    %4539 = vmatpush.msra.mxu0 %v3517
    %4540 = vmatpush.msra.mxu0 %v3511
    %4541 = vmatpush.msra.mxu0 %v3505
    %4542 = vmatpush.msra.mxu0 %v3499
    %4543 = vmatpush.msra.mxu0 %v3493
    %4544 = vmatpush.msra.mxu0 %v3487
    %4545 = vmatpush.msra.mxu0 %v3481
    %4546 = vmatpush.msra.mxu0 %v3475
    %4547 = vmatpush.msra.mxu0 %v3469
    %4548 = vmatmul.f32.gmra.mxu0 %v4463
    %v4549 = vpop.f32.mrf.mxu0
    %v4550 = vadd.f32 0.0, %v4549
    %4551 = vdwg.mxu0
    %4552 = vmatpush.msra.mxu0 %v3560
    %4553 = vmatpush.msra.mxu0 %v3554
    %4554 = vmatpush.msra.mxu0 %v3548
    %4555 = vmatpush.msra.mxu0 %v3542
    %4556 = vmatpush.msra.mxu0 %v3536
    %4557 = vmatpush.msra.mxu0 %v3530
    %4558 = vmatpush.msra.mxu0 %v3524
    %4559 = vmatpush.msra.mxu0 %v3518
    %4560 = vmatpush.msra.mxu0 %v3512
    %4561 = vmatpush.msra.mxu0 %v3506
    %4562 = vmatpush.msra.mxu0 %v3500
    %4563 = vmatpush.msra.mxu0 %v3494
    %4564 = vmatpush.msra.mxu0 %v3488
    %4565 = vmatpush.msra.mxu0 %v3482
    %4566 = vmatpush.msra.mxu0 %v3476
    %4567 = vmatpush.msra.mxu0 %v3470
    %4568 = vmatmul.f32.gmra.mxu0 %v4463
    %v4569 = vpop.f32.mrf.mxu0
    %v4570 = vadd.f32 0.0, %v4569
    %4571 = vdwg.mxu0
    %4572 = vmatpush.msra.mxu0 %v3561
    %4573 = vmatpush.msra.mxu0 %v3555
    %4574 = vmatpush.msra.mxu0 %v3549
    %4575 = vmatpush.msra.mxu0 %v3543
    %4576 = vmatpush.msra.mxu0 %v3537
    %4577 = vmatpush.msra.mxu0 %v3531
    %4578 = vmatpush.msra.mxu0 %v3525
    %4579 = vmatpush.msra.mxu0 %v3519
    %4580 = vmatpush.msra.mxu0 %v3513
    %4581 = vmatpush.msra.mxu0 %v3507
    %4582 = vmatpush.msra.mxu0 %v3501
    %4583 = vmatpush.msra.mxu0 %v3495
    %4584 = vmatpush.msra.mxu0 %v3489
    %4585 = vmatpush.msra.mxu0 %v3483
    %4586 = vmatpush.msra.mxu0 %v3477
    %4587 = vmatpush.msra.mxu0 %v3471
    %4588 = vmatmul.f32.gmra.mxu0 %v4463
    %v4589 = vpop.f32.mrf.mxu0
    %v4590 = vadd.f32 0.0, %v4589
    %4591 = vdwg.mxu0
    %v4592 = vadd.f32 %v4466, %v4490
    %v4593 = vxor.u32 %v4592, 2147483648
    %v4594 = vmul.f32 %v4593, 1.442695
    %v4595 = vpow.pop %v4594
    %v4596 = vadd.f32 %v4595, 1.0
    %v4597 = vrcp.pop %v4596
    %v4598 = vmul.f32 %v4596, %v4597
    %v4599 = vsub.f32 1.0, %v4598
    %v4600 = vmul.f32 %v4597, %v4599
    %v4601 = vadd.f32 %v4597, %v4600
    %vm4602 = vweird.f32 %v4596
    %vm4603 = vweird.f32 %v4597
    %vm4604 = vmor %vm4602, %vm4603
    %v4605 = vsel %vm4604, %v4597, %v4601
    %v4606 = vand.u32 2147483647, %v4596
    %vm4607 = vcmp.eq.f32.partialorder %v4606, 8.507059e+37
    %v4608 = vand.u32 %v4596, 2147483648
    %v4609 = vor.u32 1.1754944e-38, %v4608
    %v4610 = vsel %vm4607, %v4609, %v4605
    %v4611 = vmul.f32 1.0, %v4610
    %v4612 = vadd.f32 %v4467, %v4510
    %v4613 = vxor.u32 %v4612, 2147483648
    %v4614 = vmul.f32 %v4613, 1.442695
    %v4615 = vpow.pop %v4614
    %v4616 = vadd.f32 %v4615, 1.0
    %v4617 = vrcp.pop %v4616
    %v4618 = vmul.f32 %v4616, %v4617
    %v4619 = vsub.f32 1.0, %v4618
    %v4620 = vmul.f32 %v4617, %v4619
    %v4621 = vadd.f32 %v4617, %v4620
    %vm4622 = vweird.f32 %v4616
    %vm4623 = vweird.f32 %v4617
    %vm4624 = vmor %vm4622, %vm4623
    %v4625 = vsel %vm4624, %v4617, %v4621
    %v4626 = vand.u32 2147483647, %v4616
    %vm4627 = vcmp.eq.f32.partialorder %v4626, 8.507059e+37
    %v4628 = vand.u32 %v4616, 2147483648
    %v4629 = vor.u32 1.1754944e-38, %v4628
    %v4630 = vsel %vm4627, %v4629, %v4625
    %v4631 = vmul.f32 1.0, %v4630
    %v4632 = vadd.f32 %v4530, %v3731
    %v4633 = vmul.f32 %v4611, %v4632
    %v4634 = vadd.f32 %v4468, %v4633
    %v4635 = vtanh.pop %v4634
    %v4636 = vsub.f32 1.0, %v4631
    %v4637 = vmul.f32 %v4636, %v4635
    %v4638 = vmul.f32 %v4631, %v4415
    %v4639 = vadd.f32 %v4637, %v4638
    %v4640 = vadd.f32 %v4469, %v4550
    %v4641 = vxor.u32 %v4640, 2147483648
    %v4642 = vmul.f32 %v4641, 1.442695
    %v4643 = vpow.pop %v4642
    %v4644 = vadd.f32 %v4643, 1.0
    %v4645 = vrcp.pop %v4644
    %v4646 = vmul.f32 %v4644, %v4645
    %v4647 = vsub.f32 1.0, %v4646
    %v4648 = vmul.f32 %v4645, %v4647
    %v4649 = vadd.f32 %v4645, %v4648
    %vm4650 = vweird.f32 %v4644
    %vm4651 = vweird.f32 %v4645
    %vm4652 = vmor %vm4650, %vm4651
    %v4653 = vsel %vm4652, %v4645, %v4649
    %v4654 = vand.u32 2147483647, %v4644
    %vm4655 = vcmp.eq.f32.partialorder %v4654, 8.507059e+37
    %v4656 = vand.u32 %v4644, 2147483648
    %v4657 = vor.u32 1.1754944e-38, %v4656
    %v4658 = vsel %vm4655, %v4657, %v4653
    %v4659 = vmul.f32 1.0, %v4658
    %v4660 = vadd.f32 %v4470, %v4570
    %v4661 = vxor.u32 %v4660, 2147483648
    %v4662 = vmul.f32 %v4661, 1.442695
    %v4663 = vpow.pop %v4662
    %v4664 = vadd.f32 %v4663, 1.0
    %v4665 = vrcp.pop %v4664
    %v4666 = vmul.f32 %v4664, %v4665
    %v4667 = vsub.f32 1.0, %v4666
    %v4668 = vmul.f32 %v4665, %v4667
    %v4669 = vadd.f32 %v4665, %v4668
    %vm4670 = vweird.f32 %v4664
    %vm4671 = vweird.f32 %v4665
    %vm4672 = vmor %vm4670, %vm4671
    %v4673 = vsel %vm4672, %v4665, %v4669
    %v4674 = vand.u32 2147483647, %v4664
    %vm4675 = vcmp.eq.f32.partialorder %v4674, 8.507059e+37
    %v4676 = vand.u32 %v4664, 2147483648
    %v4677 = vor.u32 1.1754944e-38, %v4676
    %v4678 = vsel %vm4675, %v4677, %v4673
    %v4679 = vmul.f32 1.0, %v4678
    %v4680 = vadd.f32 %v4590, %v3782
    %v4681 = vmul.f32 %v4659, %v4680
    %v4682 = vadd.f32 %v4471, %v4681
    %v4683 = vtanh.pop %v4682
    %v4684 = vsub.f32 1.0, %v4679
    %v4685 = vmul.f32 %v4684, %v4683
    %v4686 = vmul.f32 %v4679, %v4463
    %v4687 = vadd.f32 %v4685, %v4686
    %4688 = vst [vmem:[#allocation4 + $0x40] sm:$0xff] %v4639
    %4689 = vst [vmem:[#allocation4 + $0x38] sm:$0xff] %v4687
    %v4690 = vld [vmem:[#allocation2 + $0xf0] sm:$0xff]
    %v4691 = vld [vmem:[#allocation2 + $0xf8] sm:$0xff]
    %v4692 = vld [vmem:[#allocation2 + $0x100] sm:$0xff]
    %v4693 = vld [vmem:[#allocation2 + $0x78] sm:$0xff]
    %v4694 = vld [vmem:[#allocation2 + $0x80] sm:$0xff]
    %v4695 = vld [vmem:[#allocation2 + $0x88] sm:$0xff]
    %4696 = vmatpush.msra.mxu0 %v3556
    %4697 = vmatpush.msra.mxu0 %v3550
    %4698 = vmatpush.msra.mxu0 %v3544
    %4699 = vmatpush.msra.mxu0 %v3538
    %4700 = vmatpush.msra.mxu0 %v3532
    %4701 = vmatpush.msra.mxu0 %v3526
    %4702 = vmatpush.msra.mxu0 %v3520
    %4703 = vmatpush.msra.mxu0 %v3514
    %4704 = vmatpush.msra.mxu0 %v3508
    %4705 = vmatpush.msra.mxu0 %v3502
    %4706 = vmatpush.msra.mxu0 %v3496
    %4707 = vmatpush.msra.mxu0 %v3490
    %4708 = vmatpush.msra.mxu0 %v3484
    %4709 = vmatpush.msra.mxu0 %v3478
    %4710 = vmatpush.msra.mxu0 %v3472
    %4711 = vmatpush.msra.mxu0 %v3466
    %4712 = vmatmul.f32.gmra.mxu0 %v4639
    %v4713 = vpop.f32.mrf.mxu0
    %v4714 = vadd.f32 0.0, %v4713
    %4715 = vdwg.mxu0
    %4716 = vmatpush.msra.mxu0 %v3557
    %4717 = vmatpush.msra.mxu0 %v3551
    %4718 = vmatpush.msra.mxu0 %v3545
    %4719 = vmatpush.msra.mxu0 %v3539
    %4720 = vmatpush.msra.mxu0 %v3533
    %4721 = vmatpush.msra.mxu0 %v3527
    %4722 = vmatpush.msra.mxu0 %v3521
    %4723 = vmatpush.msra.mxu0 %v3515
    %4724 = vmatpush.msra.mxu0 %v3509
    %4725 = vmatpush.msra.mxu0 %v3503
    %4726 = vmatpush.msra.mxu0 %v3497
    %4727 = vmatpush.msra.mxu0 %v3491
    %4728 = vmatpush.msra.mxu0 %v3485
    %4729 = vmatpush.msra.mxu0 %v3479
    %4730 = vmatpush.msra.mxu0 %v3473
    %4731 = vmatpush.msra.mxu0 %v3467
    %4732 = vmatmul.f32.gmra.mxu0 %v4639
    %v4733 = vpop.f32.mrf.mxu0
    %v4734 = vadd.f32 0.0, %v4733
    %4735 = vdwg.mxu0
    %4736 = vmatpush.msra.mxu0 %v3558
    %4737 = vmatpush.msra.mxu0 %v3552
    %4738 = vmatpush.msra.mxu0 %v3546
    %4739 = vmatpush.msra.mxu0 %v3540
    %4740 = vmatpush.msra.mxu0 %v3534
    %4741 = vmatpush.msra.mxu0 %v3528
    %4742 = vmatpush.msra.mxu0 %v3522
    %4743 = vmatpush.msra.mxu0 %v3516
    %4744 = vmatpush.msra.mxu0 %v3510
    %4745 = vmatpush.msra.mxu0 %v3504
    %4746 = vmatpush.msra.mxu0 %v3498
    %4747 = vmatpush.msra.mxu0 %v3492
    %4748 = vmatpush.msra.mxu0 %v3486
    %4749 = vmatpush.msra.mxu0 %v3480
    %4750 = vmatpush.msra.mxu0 %v3474
    %4751 = vmatpush.msra.mxu0 %v3468
    %4752 = vmatmul.f32.gmra.mxu0 %v4639
    %v4753 = vpop.f32.mrf.mxu0
    %v4754 = vadd.f32 0.0, %v4753
    %4755 = vdwg.mxu0
    %4756 = vmatpush.msra.mxu0 %v3559
    %4757 = vmatpush.msra.mxu0 %v3553
    %4758 = vmatpush.msra.mxu0 %v3547
    %4759 = vmatpush.msra.mxu0 %v3541
    %4760 = vmatpush.msra.mxu0 %v3535
    %4761 = vmatpush.msra.mxu0 %v3529
    %4762 = vmatpush.msra.mxu0 %v3523
    %4763 = vmatpush.msra.mxu0 %v3517
    %4764 = vmatpush.msra.mxu0 %v3511
    %4765 = vmatpush.msra.mxu0 %v3505
    %4766 = vmatpush.msra.mxu0 %v3499
    %4767 = vmatpush.msra.mxu0 %v3493
    %4768 = vmatpush.msra.mxu0 %v3487
    %4769 = vmatpush.msra.mxu0 %v3481
    %4770 = vmatpush.msra.mxu0 %v3475
    %4771 = vmatpush.msra.mxu0 %v3469
    %4772 = vmatmul.f32.gmra.mxu0 %v4687
    %v4773 = vpop.f32.mrf.mxu0
    %v4774 = vadd.f32 0.0, %v4773
    %4775 = vdwg.mxu0
    %4776 = vmatpush.msra.mxu0 %v3560
    %4777 = vmatpush.msra.mxu0 %v3554
    %4778 = vmatpush.msra.mxu0 %v3548
    %4779 = vmatpush.msra.mxu0 %v3542
    %4780 = vmatpush.msra.mxu0 %v3536
    %4781 = vmatpush.msra.mxu0 %v3530
    %4782 = vmatpush.msra.mxu0 %v3524
    %4783 = vmatpush.msra.mxu0 %v3518
    %4784 = vmatpush.msra.mxu0 %v3512
    %4785 = vmatpush.msra.mxu0 %v3506
    %4786 = vmatpush.msra.mxu0 %v3500
    %4787 = vmatpush.msra.mxu0 %v3494
    %4788 = vmatpush.msra.mxu0 %v3488
    %4789 = vmatpush.msra.mxu0 %v3482
    %4790 = vmatpush.msra.mxu0 %v3476
    %4791 = vmatpush.msra.mxu0 %v3470
    %4792 = vmatmul.f32.gmra.mxu0 %v4687
    %v4793 = vpop.f32.mrf.mxu0
    %v4794 = vadd.f32 0.0, %v4793
    %4795 = vdwg.mxu0
    %4796 = vmatpush.msra.mxu0 %v3561
    %4797 = vmatpush.msra.mxu0 %v3555
    %4798 = vmatpush.msra.mxu0 %v3549
    %4799 = vmatpush.msra.mxu0 %v3543
    %4800 = vmatpush.msra.mxu0 %v3537
    %4801 = vmatpush.msra.mxu0 %v3531
    %4802 = vmatpush.msra.mxu0 %v3525
    %4803 = vmatpush.msra.mxu0 %v3519
    %4804 = vmatpush.msra.mxu0 %v3513
    %4805 = vmatpush.msra.mxu0 %v3507
    %4806 = vmatpush.msra.mxu0 %v3501
    %4807 = vmatpush.msra.mxu0 %v3495
    %4808 = vmatpush.msra.mxu0 %v3489
    %4809 = vmatpush.msra.mxu0 %v3483
    %4810 = vmatpush.msra.mxu0 %v3477
    %4811 = vmatpush.msra.mxu0 %v3471
    %4812 = vmatmul.f32.gmra.mxu0 %v4687
    %v4813 = vpop.f32.mrf.mxu0
    %v4814 = vadd.f32 0.0, %v4813
    %4815 = vdwg.mxu0
    %v4816 = vadd.f32 %v4690, %v4714
    %v4817 = vxor.u32 %v4816, 2147483648
    %v4818 = vmul.f32 %v4817, 1.442695
    %v4819 = vpow.pop %v4818
    %v4820 = vadd.f32 %v4819, 1.0
    %v4821 = vrcp.pop %v4820
    %v4822 = vmul.f32 %v4820, %v4821
    %v4823 = vsub.f32 1.0, %v4822
    %v4824 = vmul.f32 %v4821, %v4823
    %v4825 = vadd.f32 %v4821, %v4824
    %vm4826 = vweird.f32 %v4820
    %vm4827 = vweird.f32 %v4821
    %vm4828 = vmor %vm4826, %vm4827
    %v4829 = vsel %vm4828, %v4821, %v4825
    %v4830 = vand.u32 2147483647, %v4820
    %vm4831 = vcmp.eq.f32.partialorder %v4830, 8.507059e+37
    %v4832 = vand.u32 %v4820, 2147483648
    %v4833 = vor.u32 1.1754944e-38, %v4832
    %v4834 = vsel %vm4831, %v4833, %v4829
    %v4835 = vmul.f32 1.0, %v4834
    %v4836 = vadd.f32 %v4691, %v4734
    %v4837 = vxor.u32 %v4836, 2147483648
    %v4838 = vmul.f32 %v4837, 1.442695
    %v4839 = vpow.pop %v4838
    %v4840 = vadd.f32 %v4839, 1.0
    %v4841 = vrcp.pop %v4840
    %v4842 = vmul.f32 %v4840, %v4841
    %v4843 = vsub.f32 1.0, %v4842
    %v4844 = vmul.f32 %v4841, %v4843
    %v4845 = vadd.f32 %v4841, %v4844
    %vm4846 = vweird.f32 %v4840
    %vm4847 = vweird.f32 %v4841
    %vm4848 = vmor %vm4846, %vm4847
    %v4849 = vsel %vm4848, %v4841, %v4845
    %v4850 = vand.u32 2147483647, %v4840
    %vm4851 = vcmp.eq.f32.partialorder %v4850, 8.507059e+37
    %v4852 = vand.u32 %v4840, 2147483648
    %v4853 = vor.u32 1.1754944e-38, %v4852
    %v4854 = vsel %vm4851, %v4853, %v4849
    %v4855 = vmul.f32 1.0, %v4854
    %v4856 = vadd.f32 %v4754, %v3731
    %v4857 = vmul.f32 %v4835, %v4856
    %v4858 = vadd.f32 %v4692, %v4857
    %v4859 = vtanh.pop %v4858
    %v4860 = vsub.f32 1.0, %v4855
    %v4861 = vmul.f32 %v4860, %v4859
    %v4862 = vmul.f32 %v4855, %v4639
    %v4863 = vadd.f32 %v4861, %v4862
    %v4864 = vadd.f32 %v4693, %v4774
    %v4865 = vxor.u32 %v4864, 2147483648
    %v4866 = vmul.f32 %v4865, 1.442695
    %v4867 = vpow.pop %v4866
    %v4868 = vadd.f32 %v4867, 1.0
    %v4869 = vrcp.pop %v4868
    %v4870 = vmul.f32 %v4868, %v4869
    %v4871 = vsub.f32 1.0, %v4870
    %v4872 = vmul.f32 %v4869, %v4871
    %v4873 = vadd.f32 %v4869, %v4872
    %vm4874 = vweird.f32 %v4868
    %vm4875 = vweird.f32 %v4869
    %vm4876 = vmor %vm4874, %vm4875
    %v4877 = vsel %vm4876, %v4869, %v4873
    %v4878 = vand.u32 2147483647, %v4868
    %vm4879 = vcmp.eq.f32.partialorder %v4878, 8.507059e+37
    %v4880 = vand.u32 %v4868, 2147483648
    %v4881 = vor.u32 1.1754944e-38, %v4880
    %v4882 = vsel %vm4879, %v4881, %v4877
    %v4883 = vmul.f32 1.0, %v4882
    %v4884 = vadd.f32 %v4694, %v4794
    %v4885 = vxor.u32 %v4884, 2147483648
    %v4886 = vmul.f32 %v4885, 1.442695
    %v4887 = vpow.pop %v4886
    %v4888 = vadd.f32 %v4887, 1.0
    %v4889 = vrcp.pop %v4888
    %v4890 = vmul.f32 %v4888, %v4889
    %v4891 = vsub.f32 1.0, %v4890
    %v4892 = vmul.f32 %v4889, %v4891
    %v4893 = vadd.f32 %v4889, %v4892
    %vm4894 = vweird.f32 %v4888
    %vm4895 = vweird.f32 %v4889
    %vm4896 = vmor %vm4894, %vm4895
    %v4897 = vsel %vm4896, %v4889, %v4893
    %v4898 = vand.u32 2147483647, %v4888
    %vm4899 = vcmp.eq.f32.partialorder %v4898, 8.507059e+37
    %v4900 = vand.u32 %v4888, 2147483648
    %v4901 = vor.u32 1.1754944e-38, %v4900
    %v4902 = vsel %vm4899, %v4901, %v4897
    %v4903 = vmul.f32 1.0, %v4902
    %v4904 = vadd.f32 %v4814, %v3782
    %v4905 = vmul.f32 %v4883, %v4904
    %v4906 = vadd.f32 %v4695, %v4905
    %v4907 = vtanh.pop %v4906
    %v4908 = vsub.f32 1.0, %v4903
    %v4909 = vmul.f32 %v4908, %v4907
    %v4910 = vmul.f32 %v4903, %v4687
    %v4911 = vadd.f32 %v4909, %v4910
    %4912 = vst [vmem:[#allocation4 + $0x50] sm:$0xff] %v4863
    %4913 = vst [vmem:[#allocation4 + $0x28] sm:$0xff] %v4911
    %v4914 = vld [vmem:[#allocation2 + $0x120] sm:$0xff]
    %v4915 = vld [vmem:[#allocation2 + $0x128] sm:$0xff]
    %v4916 = vld [vmem:[#allocation2 + $0x130] sm:$0xff]
    %v4917 = vld [vmem:[#allocation2 + $0x48] sm:$0xff]
    %v4918 = vld [vmem:[#allocation2 + $0x50] sm:$0xff]
    %v4919 = vld [vmem:[#allocation2 + $0x58] sm:$0xff]
    %4920 = vmatpush.msra.mxu0 %v3556
    %4921 = vmatpush.msra.mxu0 %v3550
    %4922 = vmatpush.msra.mxu0 %v3544
    %4923 = vmatpush.msra.mxu0 %v3538
    %4924 = vmatpush.msra.mxu0 %v3532
    %4925 = vmatpush.msra.mxu0 %v3526
    %4926 = vmatpush.msra.mxu0 %v3520
    %4927 = vmatpush.msra.mxu0 %v3514
    %4928 = vmatpush.msra.mxu0 %v3508
    %4929 = vmatpush.msra.mxu0 %v3502
    %4930 = vmatpush.msra.mxu0 %v3496
    %4931 = vmatpush.msra.mxu0 %v3490
    %4932 = vmatpush.msra.mxu0 %v3484
    %4933 = vmatpush.msra.mxu0 %v3478
    %4934 = vmatpush.msra.mxu0 %v3472
    %4935 = vmatpush.msra.mxu0 %v3466
    %4936 = vmatmul.f32.gmra.mxu0 %v4863
    %v4937 = vpop.f32.mrf.mxu0
    %v4938 = vadd.f32 0.0, %v4937
    %4939 = vdwg.mxu0
    %4940 = vmatpush.msra.mxu0 %v3557
    %4941 = vmatpush.msra.mxu0 %v3551
    %4942 = vmatpush.msra.mxu0 %v3545
    %4943 = vmatpush.msra.mxu0 %v3539
    %4944 = vmatpush.msra.mxu0 %v3533
    %4945 = vmatpush.msra.mxu0 %v3527
    %4946 = vmatpush.msra.mxu0 %v3521
    %4947 = vmatpush.msra.mxu0 %v3515
    %4948 = vmatpush.msra.mxu0 %v3509
    %4949 = vmatpush.msra.mxu0 %v3503
    %4950 = vmatpush.msra.mxu0 %v3497
    %4951 = vmatpush.msra.mxu0 %v3491
    %4952 = vmatpush.msra.mxu0 %v3485
    %4953 = vmatpush.msra.mxu0 %v3479
    %4954 = vmatpush.msra.mxu0 %v3473
    %4955 = vmatpush.msra.mxu0 %v3467
    %4956 = vmatmul.f32.gmra.mxu0 %v4863
    %v4957 = vpop.f32.mrf.mxu0
    %v4958 = vadd.f32 0.0, %v4957
    %4959 = vdwg.mxu0
    %4960 = vmatpush.msra.mxu0 %v3558
    %4961 = vmatpush.msra.mxu0 %v3552
    %4962 = vmatpush.msra.mxu0 %v3546
    %4963 = vmatpush.msra.mxu0 %v3540
    %4964 = vmatpush.msra.mxu0 %v3534
    %4965 = vmatpush.msra.mxu0 %v3528
    %4966 = vmatpush.msra.mxu0 %v3522
    %4967 = vmatpush.msra.mxu0 %v3516
    %4968 = vmatpush.msra.mxu0 %v3510
    %4969 = vmatpush.msra.mxu0 %v3504
    %4970 = vmatpush.msra.mxu0 %v3498
    %4971 = vmatpush.msra.mxu0 %v3492
    %4972 = vmatpush.msra.mxu0 %v3486
    %4973 = vmatpush.msra.mxu0 %v3480
    %4974 = vmatpush.msra.mxu0 %v3474
    %4975 = vmatpush.msra.mxu0 %v3468
    %4976 = vmatmul.f32.gmra.mxu0 %v4863
    %v4977 = vpop.f32.mrf.mxu0
    %v4978 = vadd.f32 0.0, %v4977
    %4979 = vdwg.mxu0
    %4980 = vmatpush.msra.mxu0 %v3559
    %4981 = vmatpush.msra.mxu0 %v3553
    %4982 = vmatpush.msra.mxu0 %v3547
    %4983 = vmatpush.msra.mxu0 %v3541
    %4984 = vmatpush.msra.mxu0 %v3535
    %4985 = vmatpush.msra.mxu0 %v3529
    %4986 = vmatpush.msra.mxu0 %v3523
    %4987 = vmatpush.msra.mxu0 %v3517
    %4988 = vmatpush.msra.mxu0 %v3511
    %4989 = vmatpush.msra.mxu0 %v3505
    %4990 = vmatpush.msra.mxu0 %v3499
    %4991 = vmatpush.msra.mxu0 %v3493
    %4992 = vmatpush.msra.mxu0 %v3487
    %4993 = vmatpush.msra.mxu0 %v3481
    %4994 = vmatpush.msra.mxu0 %v3475
    %4995 = vmatpush.msra.mxu0 %v3469
    %4996 = vmatmul.f32.gmra.mxu0 %v4911
    %v4997 = vpop.f32.mrf.mxu0
    %v4998 = vadd.f32 0.0, %v4997
    %4999 = vdwg.mxu0
    %5000 = vmatpush.msra.mxu0 %v3560
    %5001 = vmatpush.msra.mxu0 %v3554
    %5002 = vmatpush.msra.mxu0 %v3548
    %5003 = vmatpush.msra.mxu0 %v3542
    %5004 = vmatpush.msra.mxu0 %v3536
    %5005 = vmatpush.msra.mxu0 %v3530
    %5006 = vmatpush.msra.mxu0 %v3524
    %5007 = vmatpush.msra.mxu0 %v3518
    %5008 = vmatpush.msra.mxu0 %v3512
    %5009 = vmatpush.msra.mxu0 %v3506
    %5010 = vmatpush.msra.mxu0 %v3500
    %5011 = vmatpush.msra.mxu0 %v3494
    %5012 = vmatpush.msra.mxu0 %v3488
    %5013 = vmatpush.msra.mxu0 %v3482
    %5014 = vmatpush.msra.mxu0 %v3476
    %5015 = vmatpush.msra.mxu0 %v3470
    %5016 = vmatmul.f32.gmra.mxu0 %v4911
    %v5017 = vpop.f32.mrf.mxu0
    %v5018 = vadd.f32 0.0, %v5017
    %5019 = vdwg.mxu0
    %5020 = vmatpush.msra.mxu0 %v3561
    %5021 = vmatpush.msra.mxu0 %v3555
    %5022 = vmatpush.msra.mxu0 %v3549
    %5023 = vmatpush.msra.mxu0 %v3543
    %5024 = vmatpush.msra.mxu0 %v3537
    %5025 = vmatpush.msra.mxu0 %v3531
    %5026 = vmatpush.msra.mxu0 %v3525
    %5027 = vmatpush.msra.mxu0 %v3519
    %5028 = vmatpush.msra.mxu0 %v3513
    %5029 = vmatpush.msra.mxu0 %v3507
    %5030 = vmatpush.msra.mxu0 %v3501
    %5031 = vmatpush.msra.mxu0 %v3495
    %5032 = vmatpush.msra.mxu0 %v3489
    %5033 = vmatpush.msra.mxu0 %v3483
    %5034 = vmatpush.msra.mxu0 %v3477
    %5035 = vmatpush.msra.mxu0 %v3471
    %5036 = vmatmul.f32.gmra.mxu0 %v4911
    %v5037 = vpop.f32.mrf.mxu0
    %v5038 = vadd.f32 0.0, %v5037
    %5039 = vdwg.mxu0
    %v5040 = vadd.f32 %v4914, %v4938
    %v5041 = vxor.u32 %v5040, 2147483648
    %v5042 = vmul.f32 %v5041, 1.442695
    %v5043 = vpow.pop %v5042
    %v5044 = vadd.f32 %v5043, 1.0
    %v5045 = vrcp.pop %v5044
    %v5046 = vmul.f32 %v5044, %v5045
    %v5047 = vsub.f32 1.0, %v5046
    %v5048 = vmul.f32 %v5045, %v5047
    %v5049 = vadd.f32 %v5045, %v5048
    %vm5050 = vweird.f32 %v5044
    %vm5051 = vweird.f32 %v5045
    %vm5052 = vmor %vm5050, %vm5051
    %v5053 = vsel %vm5052, %v5045, %v5049
    %v5054 = vand.u32 2147483647, %v5044
    %vm5055 = vcmp.eq.f32.partialorder %v5054, 8.507059e+37
    %v5056 = vand.u32 %v5044, 2147483648
    %v5057 = vor.u32 1.1754944e-38, %v5056
    %v5058 = vsel %vm5055, %v5057, %v5053
    %v5059 = vmul.f32 1.0, %v5058
    %v5060 = vadd.f32 %v4915, %v4958
    %v5061 = vxor.u32 %v5060, 2147483648
    %v5062 = vmul.f32 %v5061, 1.442695
    %v5063 = vpow.pop %v5062
    %v5064 = vadd.f32 %v5063, 1.0
    %v5065 = vrcp.pop %v5064
    %v5066 = vmul.f32 %v5064, %v5065
    %v5067 = vsub.f32 1.0, %v5066
    %v5068 = vmul.f32 %v5065, %v5067
    %v5069 = vadd.f32 %v5065, %v5068
    %vm5070 = vweird.f32 %v5064
    %vm5071 = vweird.f32 %v5065
    %vm5072 = vmor %vm5070, %vm5071
    %v5073 = vsel %vm5072, %v5065, %v5069
    %v5074 = vand.u32 2147483647, %v5064
    %vm5075 = vcmp.eq.f32.partialorder %v5074, 8.507059e+37
    %v5076 = vand.u32 %v5064, 2147483648
    %v5077 = vor.u32 1.1754944e-38, %v5076
    %v5078 = vsel %vm5075, %v5077, %v5073
    %v5079 = vmul.f32 1.0, %v5078
    %v5080 = vadd.f32 %v4978, %v3731
    %v5081 = vmul.f32 %v5059, %v5080
    %v5082 = vadd.f32 %v4916, %v5081
    %v5083 = vtanh.pop %v5082
    %v5084 = vsub.f32 1.0, %v5079
    %v5085 = vmul.f32 %v5084, %v5083
    %v5086 = vmul.f32 %v5079, %v4863
    %v5087 = vadd.f32 %v5085, %v5086
    %v5088 = vadd.f32 %v4917, %v4998
    %v5089 = vxor.u32 %v5088, 2147483648
    %v5090 = vmul.f32 %v5089, 1.442695
    %v5091 = vpow.pop %v5090
    %v5092 = vadd.f32 %v5091, 1.0
    %v5093 = vrcp.pop %v5092
    %v5094 = vmul.f32 %v5092, %v5093
    %v5095 = vsub.f32 1.0, %v5094
    %v5096 = vmul.f32 %v5093, %v5095
    %v5097 = vadd.f32 %v5093, %v5096
    %vm5098 = vweird.f32 %v5092
    %vm5099 = vweird.f32 %v5093
    %vm5100 = vmor %vm5098, %vm5099
    %v5101 = vsel %vm5100, %v5093, %v5097
    %v5102 = vand.u32 2147483647, %v5092
    %vm5103 = vcmp.eq.f32.partialorder %v5102, 8.507059e+37
    %v5104 = vand.u32 %v5092, 2147483648
    %v5105 = vor.u32 1.1754944e-38, %v5104
    %v5106 = vsel %vm5103, %v5105, %v5101
    %v5107 = vmul.f32 1.0, %v5106
    %v5108 = vadd.f32 %v4918, %v5018
    %v5109 = vxor.u32 %v5108, 2147483648
    %v5110 = vmul.f32 %v5109, 1.442695
    %v5111 = vpow.pop %v5110
    %v5112 = vadd.f32 %v5111, 1.0
    %v5113 = vrcp.pop %v5112
    %v5114 = vmul.f32 %v5112, %v5113
    %v5115 = vsub.f32 1.0, %v5114
    %v5116 = vmul.f32 %v5113, %v5115
    %v5117 = vadd.f32 %v5113, %v5116
    %vm5118 = vweird.f32 %v5112
    %vm5119 = vweird.f32 %v5113
    %vm5120 = vmor %vm5118, %vm5119
    %v5121 = vsel %vm5120, %v5113, %v5117
    %v5122 = vand.u32 2147483647, %v5112
    %vm5123 = vcmp.eq.f32.partialorder %v5122, 8.507059e+37
    %v5124 = vand.u32 %v5112, 2147483648
    %v5125 = vor.u32 1.1754944e-38, %v5124
    %v5126 = vsel %vm5123, %v5125, %v5121
    %v5127 = vmul.f32 1.0, %v5126
    %v5128 = vadd.f32 %v5038, %v3782
    %v5129 = vmul.f32 %v5107, %v5128
    %v5130 = vadd.f32 %v4919, %v5129
    %v5131 = vtanh.pop %v5130
    %v5132 = vsub.f32 1.0, %v5127
    %v5133 = vmul.f32 %v5132, %v5131
    %v5134 = vmul.f32 %v5127, %v4911
    %v5135 = vadd.f32 %v5133, %v5134
    %5136 = vst [vmem:[#allocation4 + $0x60] sm:$0xff] %v5087
    %5137 = vst [vmem:[#allocation4 + $0x18] sm:$0xff] %v5135
    %v5138 = vld [vmem:[#allocation2 + $0x150] sm:$0xff]
    %v5139 = vld [vmem:[#allocation2 + $0x158] sm:$0xff]
    %v5140 = vld [vmem:[#allocation2 + $0x160] sm:$0xff]
    %v5141 = vld [vmem:[#allocation2 + $0x18] sm:$0xff]
    %v5142 = vld [vmem:[#allocation2 + $0x20] sm:$0xff]
    %v5143 = vld [vmem:[#allocation2 + $0x28] sm:$0xff]
    %5144 = vmatpush.msra.mxu0 %v3556
    %5145 = vmatpush.msra.mxu0 %v3550
    %5146 = vmatpush.msra.mxu0 %v3544
    %5147 = vmatpush.msra.mxu0 %v3538
    %5148 = vmatpush.msra.mxu0 %v3532
    %5149 = vmatpush.msra.mxu0 %v3526
    %5150 = vmatpush.msra.mxu0 %v3520
    %5151 = vmatpush.msra.mxu0 %v3514
    %5152 = vmatpush.msra.mxu0 %v3508
    %5153 = vmatpush.msra.mxu0 %v3502
    %5154 = vmatpush.msra.mxu0 %v3496
    %5155 = vmatpush.msra.mxu0 %v3490
    %5156 = vmatpush.msra.mxu0 %v3484
    %5157 = vmatpush.msra.mxu0 %v3478
    %5158 = vmatpush.msra.mxu0 %v3472
    %5159 = vmatpush.msra.mxu0 %v3466
    %5160 = vmatmul.f32.gmra.mxu0 %v5087
    %v5161 = vpop.f32.mrf.mxu0
    %v5162 = vadd.f32 0.0, %v5161
    %5163 = vdwg.mxu0
    %5164 = vmatpush.msra.mxu0 %v3557
    %5165 = vmatpush.msra.mxu0 %v3551
    %5166 = vmatpush.msra.mxu0 %v3545
    %5167 = vmatpush.msra.mxu0 %v3539
    %5168 = vmatpush.msra.mxu0 %v3533
    %5169 = vmatpush.msra.mxu0 %v3527
    %5170 = vmatpush.msra.mxu0 %v3521
    %5171 = vmatpush.msra.mxu0 %v3515
    %5172 = vmatpush.msra.mxu0 %v3509
    %5173 = vmatpush.msra.mxu0 %v3503
    %5174 = vmatpush.msra.mxu0 %v3497
    %5175 = vmatpush.msra.mxu0 %v3491
    %5176 = vmatpush.msra.mxu0 %v3485
    %5177 = vmatpush.msra.mxu0 %v3479
    %5178 = vmatpush.msra.mxu0 %v3473
    %5179 = vmatpush.msra.mxu0 %v3467
    %5180 = vmatmul.f32.gmra.mxu0 %v5087
    %v5181 = vpop.f32.mrf.mxu0
    %v5182 = vadd.f32 0.0, %v5181
    %5183 = vdwg.mxu0
    %5184 = vmatpush.msra.mxu0 %v3558
    %5185 = vmatpush.msra.mxu0 %v3552
    %5186 = vmatpush.msra.mxu0 %v3546
    %5187 = vmatpush.msra.mxu0 %v3540
    %5188 = vmatpush.msra.mxu0 %v3534
    %5189 = vmatpush.msra.mxu0 %v3528
    %5190 = vmatpush.msra.mxu0 %v3522
    %5191 = vmatpush.msra.mxu0 %v3516
    %5192 = vmatpush.msra.mxu0 %v3510
    %5193 = vmatpush.msra.mxu0 %v3504
    %5194 = vmatpush.msra.mxu0 %v3498
    %5195 = vmatpush.msra.mxu0 %v3492
    %5196 = vmatpush.msra.mxu0 %v3486
    %5197 = vmatpush.msra.mxu0 %v3480
    %5198 = vmatpush.msra.mxu0 %v3474
    %5199 = vmatpush.msra.mxu0 %v3468
    %5200 = vmatmul.f32.gmra.mxu0 %v5087
    %v5201 = vpop.f32.mrf.mxu0
    %v5202 = vadd.f32 0.0, %v5201
    %5203 = vdwg.mxu0
    %5204 = vmatpush.msra.mxu0 %v3559
    %5205 = vmatpush.msra.mxu0 %v3553
    %5206 = vmatpush.msra.mxu0 %v3547
    %5207 = vmatpush.msra.mxu0 %v3541
    %5208 = vmatpush.msra.mxu0 %v3535
    %5209 = vmatpush.msra.mxu0 %v3529
    %5210 = vmatpush.msra.mxu0 %v3523
    %5211 = vmatpush.msra.mxu0 %v3517
    %5212 = vmatpush.msra.mxu0 %v3511
    %5213 = vmatpush.msra.mxu0 %v3505
    %5214 = vmatpush.msra.mxu0 %v3499
    %5215 = vmatpush.msra.mxu0 %v3493
    %5216 = vmatpush.msra.mxu0 %v3487
    %5217 = vmatpush.msra.mxu0 %v3481
    %5218 = vmatpush.msra.mxu0 %v3475
    %5219 = vmatpush.msra.mxu0 %v3469
    %5220 = vmatmul.f32.gmra.mxu0 %v5135
    %v5221 = vpop.f32.mrf.mxu0
    %v5222 = vadd.f32 0.0, %v5221
    %5223 = vdwg.mxu0
    %5224 = vmatpush.msra.mxu0 %v3560
    %5225 = vmatpush.msra.mxu0 %v3554
    %5226 = vmatpush.msra.mxu0 %v3548
    %5227 = vmatpush.msra.mxu0 %v3542
    %5228 = vmatpush.msra.mxu0 %v3536
    %5229 = vmatpush.msra.mxu0 %v3530
    %5230 = vmatpush.msra.mxu0 %v3524
    %5231 = vmatpush.msra.mxu0 %v3518
    %5232 = vmatpush.msra.mxu0 %v3512
    %5233 = vmatpush.msra.mxu0 %v3506
    %5234 = vmatpush.msra.mxu0 %v3500
    %5235 = vmatpush.msra.mxu0 %v3494
    %5236 = vmatpush.msra.mxu0 %v3488
    %5237 = vmatpush.msra.mxu0 %v3482
    %5238 = vmatpush.msra.mxu0 %v3476
    %5239 = vmatpush.msra.mxu0 %v3470
    %5240 = vmatmul.f32.gmra.mxu0 %v5135
    %v5241 = vpop.f32.mrf.mxu0
    %v5242 = vadd.f32 0.0, %v5241
    %5243 = vdwg.mxu0
    %5244 = vmatpush.msra.mxu0 %v3561
    %5245 = vmatpush.msra.mxu0 %v3555
    %5246 = vmatpush.msra.mxu0 %v3549
    %5247 = vmatpush.msra.mxu0 %v3543
    %5248 = vmatpush.msra.mxu0 %v3537
    %5249 = vmatpush.msra.mxu0 %v3531
    %5250 = vmatpush.msra.mxu0 %v3525
    %5251 = vmatpush.msra.mxu0 %v3519
    %5252 = vmatpush.msra.mxu0 %v3513
    %5253 = vmatpush.msra.mxu0 %v3507
    %5254 = vmatpush.msra.mxu0 %v3501
    %5255 = vmatpush.msra.mxu0 %v3495
    %5256 = vmatpush.msra.mxu0 %v3489
    %5257 = vmatpush.msra.mxu0 %v3483
    %5258 = vmatpush.msra.mxu0 %v3477
    %5259 = vmatpush.msra.mxu0 %v3471
    %5260 = vmatmul.f32.gmra.mxu0 %v5135
    %v5261 = vpop.f32.mrf.mxu0
    %v5262 = vadd.f32 0.0, %v5261
    %5263 = vdwg.mxu0
    %v5264 = vadd.f32 %v5138, %v5162
    %v5265 = vxor.u32 %v5264, 2147483648
    %v5266 = vmul.f32 %v5265, 1.442695
    %v5267 = vpow.pop %v5266
    %v5268 = vadd.f32 %v5267, 1.0
    %v5269 = vrcp.pop %v5268
    %v5270 = vmul.f32 %v5268, %v5269
    %v5271 = vsub.f32 1.0, %v5270
    %v5272 = vmul.f32 %v5269, %v5271
    %v5273 = vadd.f32 %v5269, %v5272
    %vm5274 = vweird.f32 %v5268
    %vm5275 = vweird.f32 %v5269
    %vm5276 = vmor %vm5274, %vm5275
    %v5277 = vsel %vm5276, %v5269, %v5273
    %v5278 = vand.u32 2147483647, %v5268
    %vm5279 = vcmp.eq.f32.partialorder %v5278, 8.507059e+37
    %v5280 = vand.u32 %v5268, 2147483648
    %v5281 = vor.u32 1.1754944e-38, %v5280
    %v5282 = vsel %vm5279, %v5281, %v5277
    %v5283 = vmul.f32 1.0, %v5282
    %v5284 = vadd.f32 %v5139, %v5182
    %v5285 = vxor.u32 %v5284, 2147483648
    %v5286 = vmul.f32 %v5285, 1.442695
    %v5287 = vpow.pop %v5286
    %v5288 = vadd.f32 %v5287, 1.0
    %v5289 = vrcp.pop %v5288
    %v5290 = vmul.f32 %v5288, %v5289
    %v5291 = vsub.f32 1.0, %v5290
    %v5292 = vmul.f32 %v5289, %v5291
    %v5293 = vadd.f32 %v5289, %v5292
    %vm5294 = vweird.f32 %v5288
    %vm5295 = vweird.f32 %v5289
    %vm5296 = vmor %vm5294, %vm5295
    %v5297 = vsel %vm5296, %v5289, %v5293
    %v5298 = vand.u32 2147483647, %v5288
    %vm5299 = vcmp.eq.f32.partialorder %v5298, 8.507059e+37
    %v5300 = vand.u32 %v5288, 2147483648
    %v5301 = vor.u32 1.1754944e-38, %v5300
    %v5302 = vsel %vm5299, %v5301, %v5297
    %v5303 = vmul.f32 1.0, %v5302
    %v5304 = vadd.f32 %v5202, %v3731
    %v5305 = vmul.f32 %v5283, %v5304
    %v5306 = vadd.f32 %v5140, %v5305
    %v5307 = vtanh.pop %v5306
    %v5308 = vsub.f32 1.0, %v5303
    %v5309 = vmul.f32 %v5308, %v5307
    %v5310 = vmul.f32 %v5303, %v5087
    %v5311 = vadd.f32 %v5309, %v5310
    %v5312 = vadd.f32 %v5141, %v5222
    %v5313 = vxor.u32 %v5312, 2147483648
    %v5314 = vmul.f32 %v5313, 1.442695
    %v5315 = vpow.pop %v5314
    %v5316 = vadd.f32 %v5315, 1.0
    %v5317 = vrcp.pop %v5316
    %v5318 = vmul.f32 %v5316, %v5317
    %v5319 = vsub.f32 1.0, %v5318
    %v5320 = vmul.f32 %v5317, %v5319
    %v5321 = vadd.f32 %v5317, %v5320
    %vm5322 = vweird.f32 %v5316
    %vm5323 = vweird.f32 %v5317
    %vm5324 = vmor %vm5322, %vm5323
    %v5325 = vsel %vm5324, %v5317, %v5321
    %v5326 = vand.u32 2147483647, %v5316
    %vm5327 = vcmp.eq.f32.partialorder %v5326, 8.507059e+37
    %v5328 = vand.u32 %v5316, 2147483648
    %v5329 = vor.u32 1.1754944e-38, %v5328
    %v5330 = vsel %vm5327, %v5329, %v5325
    %v5331 = vmul.f32 1.0, %v5330
    %v5332 = vadd.f32 %v5142, %v5242
    %v5333 = vxor.u32 %v5332, 2147483648
    %v5334 = vmul.f32 %v5333, 1.442695
    %v5335 = vpow.pop %v5334
    %v5336 = vadd.f32 %v5335, 1.0
    %v5337 = vrcp.pop %v5336
    %v5338 = vmul.f32 %v5336, %v5337
    %v5339 = vsub.f32 1.0, %v5338
    %v5340 = vmul.f32 %v5337, %v5339
    %v5341 = vadd.f32 %v5337, %v5340
    %vm5342 = vweird.f32 %v5336
    %vm5343 = vweird.f32 %v5337
    %vm5344 = vmor %vm5342, %vm5343
    %v5345 = vsel %vm5344, %v5337, %v5341
    %v5346 = vand.u32 2147483647, %v5336
    %vm5347 = vcmp.eq.f32.partialorder %v5346, 8.507059e+37
    %v5348 = vand.u32 %v5336, 2147483648
    %v5349 = vor.u32 1.1754944e-38, %v5348
    %v5350 = vsel %vm5347, %v5349, %v5345
    %v5351 = vmul.f32 1.0, %v5350
    %v5352 = vadd.f32 %v5262, %v3782
    %v5353 = vmul.f32 %v5331, %v5352
    %v5354 = vadd.f32 %v5143, %v5353
    %v5355 = vtanh.pop %v5354
    %v5356 = vsub.f32 1.0, %v5351
    %v5357 = vmul.f32 %v5356, %v5355
    %v5358 = vmul.f32 %v5351, %v5135
    %v5359 = vadd.f32 %v5357, %v5358
    %5360 = vst [vmem:[#allocation4 + $0x70] sm:$0xff] %v5311
    %5361 = vst [vmem:[#allocation4 + $0x8] sm:$0xff] %v5359
    %v5362 = vld [vmem:[#allocation4] sm:$0xff]
    %v5363 = vld [vmem:[#allocation4 + $0x8] sm:$0xff]
    %v5364 = vld [vmem:[#allocation4 + $0x10] sm:$0xff]
    %v5365 = vld [vmem:[#allocation4 + $0x18] sm:$0xff]
    %v5366 = vld [vmem:[#allocation4 + $0x20] sm:$0xff]
    %v5367 = vld [vmem:[#allocation4 + $0x28] sm:$0xff]
    %v5368 = vld [vmem:[#allocation4 + $0x30] sm:$0xff]
    %v5369 = vld [vmem:[#allocation4 + $0x38] sm:$0xff]
    %v5370 = vld [vmem:[#allocation4 + $0x40] sm:$0xff]
    %v5371 = vld [vmem:[#allocation4 + $0x48] sm:$0xff]
    %v5372 = vld [vmem:[#allocation4 + $0x50] sm:$0xff]
    %v5373 = vld [vmem:[#allocation4 + $0x58] sm:$0xff]
    %v5374 = vld [vmem:[#allocation4 + $0x60] sm:$0xff]
    %v5375 = vld [vmem:[#allocation4 + $0x68] sm:$0xff]
    %v5376 = vld [vmem:[#allocation4 + $0x70] sm:$0xff]
    %v5377 = vld [vmem:[#allocation4 + $0x78] sm:$0xff]
    %v5378 = vpack.c.bf16 %v5363, %v5362
    %v5379 = vpack.c.bf16 %v5365, %v5364
    %v5380 = vpack.c.bf16 %v5367, %v5366
    %v5381 = vpack.c.bf16 %v5369, %v5368
    %v5382 = vpack.c.bf16 %v5371, %v5370
    %v5383 = vpack.c.bf16 %v5373, %v5372
    %v5384 = vpack.c.bf16 %v5375, %v5374
    %v5385 = vpack.c.bf16 %v5377, %v5376
    %s5386 = scalar_lea.vmem %s3, 32
    %v5387 = vld [vmem:[%s5386] sm:$0xff]
    %s5388 = scalar_lea.vmem %s3, 40
    %v5389 = vld [vmem:[%s5388] sm:$0xff]
    %v5390 = vld [vmem:[#allocation10] sm:$0xff]
    %v5391 = vld [vmem:[#allocation10 + $0x8] sm:$0xf]
    %v5392 = vld [vmem:[#allocation10 + $0x18] sm:$0xff]
    %v5393 = vld [vmem:[#allocation10 + $0x20] sm:$0xf]
    %v5394 = vld [vmem:[#allocation10 + $0x30] sm:$0xff]
    %v5395 = vld [vmem:[#allocation10 + $0x38] sm:$0xf]
    %v5396 = vld [vmem:[#allocation10 + $0x48] sm:$0xff]
    %v5397 = vld [vmem:[#allocation10 + $0x50] sm:$0xf]
    %v5398 = vld [vmem:[#allocation10 + $0x60] sm:$0xff]
    %v5399 = vld [vmem:[#allocation10 + $0x68] sm:$0xf]
    %v5400 = vld [vmem:[#allocation10 + $0x78] sm:$0xff]
    %v5401 = vld [vmem:[#allocation10 + $0x80] sm:$0xf]
    %v5402 = vld [vmem:[#allocation10 + $0x90] sm:$0xff]
    %v5403 = vld [vmem:[#allocation10 + $0x98] sm:$0xf]
    %v5404 = vld [vmem:[#allocation10 + $0xa8] sm:$0xff]
    %v5405 = vld [vmem:[#allocation10 + $0xb0] sm:$0xf]
    %v5406 = vld [vmem:[#allocation10 + $0xc0] sm:$0xff]
    %v5407 = vld [vmem:[#allocation10 + $0xc8] sm:$0xf]
    %v5408 = vld [vmem:[#allocation10 + $0xd8] sm:$0xff]
    %v5409 = vld [vmem:[#allocation10 + $0xe0] sm:$0xf]
    %v5410 = vld [vmem:[#allocation10 + $0xf0] sm:$0xff]
    %v5411 = vld [vmem:[#allocation10 + $0xf8] sm:$0xf]
    %v5412 = vld [vmem:[#allocation10 + $0x108] sm:$0xff]
    %v5413 = vld [vmem:[#allocation10 + $0x110] sm:$0xf]
    %v5414 = vld [vmem:[#allocation10 + $0x120] sm:$0xff]
    %v5415 = vld [vmem:[#allocation10 + $0x128] sm:$0xf]
    %v5416 = vld [vmem:[#allocation10 + $0x138] sm:$0xff]
    %v5417 = vld [vmem:[#allocation10 + $0x140] sm:$0xf]
    %v5418 = vld [vmem:[#allocation10 + $0x150] sm:$0xff]
    %v5419 = vld [vmem:[#allocation10 + $0x158] sm:$0xf]
    %v5420 = vld [vmem:[#allocation10 + $0x168] sm:$0xff]
    %v5421 = vld [vmem:[#allocation10 + $0x170] sm:$0xf]
    %v5422 = vld [vmem:[#allocation10 + $0x180] sm:$0xff]
    %v5423 = vld [vmem:[#allocation10 + $0x188] sm:$0xf]
    %v5424 = vld [vmem:[#allocation10 + $0x198] sm:$0xff]
    %v5425 = vld [vmem:[#allocation10 + $0x1a0] sm:$0xf]
    %v5426 = vld [vmem:[#allocation10 + $0x1b0] sm:$0xff]
    %v5427 = vld [vmem:[#allocation10 + $0x1b8] sm:$0xf]
    %v5428 = vld [vmem:[#allocation10 + $0x1c8] sm:$0xff]
    %v5429 = vld [vmem:[#allocation10 + $0x1d0] sm:$0xf]
    %v5430 = vld [vmem:[#allocation10 + $0x1e0] sm:$0xff]
    %v5431 = vld [vmem:[#allocation10 + $0x1e8] sm:$0xf]
    %v5432 = vld [vmem:[#allocation10 + $0x1f8] sm:$0xff]
    %v5433 = vld [vmem:[#allocation10 + $0x200] sm:$0xf]
    %v5434 = vld [vmem:[#allocation10 + $0x210] sm:$0xff]
    %v5435 = vld [vmem:[#allocation10 + $0x218] sm:$0xf]
    %v5436 = vld [vmem:[#allocation10 + $0x228] sm:$0xff]
    %v5437 = vld [vmem:[#allocation10 + $0x230] sm:$0xf]
    %v5438 = vld [vmem:[#allocation10 + $0x240] sm:$0xff]
    %v5439 = vld [vmem:[#allocation10 + $0x248] sm:$0xf]
    %v5440 = vld [vmem:[#allocation10 + $0x258] sm:$0xff]
    %v5441 = vld [vmem:[#allocation10 + $0x260] sm:$0xf]
    %v5442 = vld [vmem:[#allocation10 + $0x270] sm:$0xff]
    %v5443 = vld [vmem:[#allocation10 + $0x278] sm:$0xf]
    %v5444 = vld [vmem:[#allocation10 + $0x288] sm:$0xff]
    %v5445 = vld [vmem:[#allocation10 + $0x290] sm:$0xf]
    %v5446 = vld [vmem:[#allocation10 + $0x2a0] sm:$0xff]
    %v5447 = vld [vmem:[#allocation10 + $0x2a8] sm:$0xf]
    %v5448 = vld [vmem:[#allocation10 + $0x2b8] sm:$0xff]
    %v5449 = vld [vmem:[#allocation10 + $0x2c0] sm:$0xf]
    %v5450 = vld [vmem:[#allocation10 + $0x2d0] sm:$0xff]
    %v5451 = vld [vmem:[#allocation10 + $0x2d8] sm:$0xf]
    %v5452 = vld [vmem:[#allocation10 + $0x2e8] sm:$0xff]
    %v5453 = vld [vmem:[#allocation10 + $0x2f0] sm:$0xf]
    %v5454 = vld [vmem:[%s29] sm:$0x7]
    %v5456 = vperm.slane %v5454, 0
    %v5457 = vperm.slane %v5454, 1
    %v5458 = vperm.slane %v5454, 2
    %v5470 = vunpack.c.l.b16 %v5378
    %v5471 = vunpack.c.h.b16 %v5378
    %v5472 = vunpack.c.l.b16 %v5379
    %v5473 = vunpack.c.h.b16 %v5379
    %v5474 = vunpack.c.l.b16 %v5380
    %v5475 = vunpack.c.h.b16 %v5380
    %v5476 = vunpack.c.l.b16 %v5381
    %v5477 = vunpack.c.h.b16 %v5381
    %v5478 = vunpack.c.l.b16 %v5382
    %v5479 = vunpack.c.h.b16 %v5382
    %v5480 = vunpack.c.l.b16 %v5383
    %v5481 = vunpack.c.h.b16 %v5383
    %v5482 = vunpack.c.l.b16 %v5384
    %v5483 = vunpack.c.h.b16 %v5384
    %v5484 = vunpack.c.l.b16 %v5385
    %v5485 = vunpack.c.h.b16 %v5385
    %v5486 = vpack.c.b16 %v5472, %v5470
    %v5487 = vpack.c.b16 %v5473, %v5471
    %v5488 = vpack.c.b16 %v5476, %v5474
    %v5489 = vpack.c.b16 %v5477, %v5475
    %v5490 = vpack.c.b16 %v5480, %v5478
    %v5491 = vpack.c.b16 %v5481, %v5479
    %v5492 = vpack.c.b16 %v5484, %v5482
    %v5493 = vpack.c.b16 %v5485, %v5483
    %v5566 = vunpack.c.l.b16 %v5390
    %v5567 = vunpack.c.h.b16 %v5390
    %v5568 = vunpack.c.l.b16 %v5391
    %v5569 = vunpack.c.l.b16 %v5392
    %v5570 = vunpack.c.h.b16 %v5392
    %v5571 = vunpack.c.l.b16 %v5393
    %v5572 = vunpack.c.l.b16 %v5394
    %v5573 = vunpack.c.h.b16 %v5394
    %v5574 = vunpack.c.l.b16 %v5395
    %v5575 = vunpack.c.l.b16 %v5396
    %v5576 = vunpack.c.h.b16 %v5396
    %v5577 = vunpack.c.l.b16 %v5397
    %v5578 = vunpack.c.l.b16 %v5398
    %v5579 = vunpack.c.h.b16 %v5398
    %v5580 = vunpack.c.l.b16 %v5399
    %v5581 = vunpack.c.l.b16 %v5400
    %v5582 = vunpack.c.h.b16 %v5400
    %v5583 = vunpack.c.l.b16 %v5401
    %v5584 = vunpack.c.l.b16 %v5402
    %v5585 = vunpack.c.h.b16 %v5402
    %v5586 = vunpack.c.l.b16 %v5403
    %v5587 = vunpack.c.l.b16 %v5404
    %v5588 = vunpack.c.h.b16 %v5404
    %v5589 = vunpack.c.l.b16 %v5405
    %v5590 = vunpack.c.l.b16 %v5406
    %v5591 = vunpack.c.h.b16 %v5406
    %v5592 = vunpack.c.l.b16 %v5407
    %v5593 = vunpack.c.l.b16 %v5408
    %v5594 = vunpack.c.h.b16 %v5408
    %v5595 = vunpack.c.l.b16 %v5409
    %v5596 = vunpack.c.l.b16 %v5410
    %v5597 = vunpack.c.h.b16 %v5410
    %v5598 = vunpack.c.l.b16 %v5411
    %v5599 = vunpack.c.l.b16 %v5412
    %v5600 = vunpack.c.h.b16 %v5412
    %v5601 = vunpack.c.l.b16 %v5413
    %v5602 = vunpack.c.l.b16 %v5414
    %v5603 = vunpack.c.h.b16 %v5414
    %v5604 = vunpack.c.l.b16 %v5415
    %v5605 = vunpack.c.l.b16 %v5416
    %v5606 = vunpack.c.h.b16 %v5416
    %v5607 = vunpack.c.l.b16 %v5417
    %v5608 = vunpack.c.l.b16 %v5418
    %v5609 = vunpack.c.h.b16 %v5418
    %v5610 = vunpack.c.l.b16 %v5419
    %v5611 = vunpack.c.l.b16 %v5420
    %v5612 = vunpack.c.h.b16 %v5420
    %v5613 = vunpack.c.l.b16 %v5421
    %v5614 = vunpack.c.l.b16 %v5422
    %v5615 = vunpack.c.h.b16 %v5422
    %v5616 = vunpack.c.l.b16 %v5423
    %v5617 = vunpack.c.l.b16 %v5424
    %v5618 = vunpack.c.h.b16 %v5424
    %v5619 = vunpack.c.l.b16 %v5425
    %v5620 = vunpack.c.l.b16 %v5426
    %v5621 = vunpack.c.h.b16 %v5426
    %v5622 = vunpack.c.l.b16 %v5427
    %v5623 = vunpack.c.l.b16 %v5428
    %v5624 = vunpack.c.h.b16 %v5428
    %v5625 = vunpack.c.l.b16 %v5429
    %v5626 = vunpack.c.l.b16 %v5430
    %v5627 = vunpack.c.h.b16 %v5430
    %v5628 = vunpack.c.l.b16 %v5431
    %v5629 = vunpack.c.l.b16 %v5432
    %v5630 = vunpack.c.h.b16 %v5432
    %v5631 = vunpack.c.l.b16 %v5433
    %v5632 = vunpack.c.l.b16 %v5434
    %v5633 = vunpack.c.h.b16 %v5434
    %v5634 = vunpack.c.l.b16 %v5435
    %v5635 = vunpack.c.l.b16 %v5436
    %v5636 = vunpack.c.h.b16 %v5436
    %v5637 = vunpack.c.l.b16 %v5437
    %v5638 = vunpack.c.l.b16 %v5438
    %v5639 = vunpack.c.h.b16 %v5438
    %v5640 = vunpack.c.l.b16 %v5439
    %v5641 = vunpack.c.l.b16 %v5440
    %v5642 = vunpack.c.h.b16 %v5440
    %v5643 = vunpack.c.l.b16 %v5441
    %v5644 = vunpack.c.l.b16 %v5442
    %v5645 = vunpack.c.h.b16 %v5442
    %v5646 = vunpack.c.l.b16 %v5443
    %v5647 = vunpack.c.l.b16 %v5444
    %v5648 = vunpack.c.h.b16 %v5444
    %v5649 = vunpack.c.l.b16 %v5445
    %v5650 = vunpack.c.l.b16 %v5446
    %v5651 = vunpack.c.h.b16 %v5446
    %v5652 = vunpack.c.l.b16 %v5447
    %v5653 = vunpack.c.l.b16 %v5448
    %v5654 = vunpack.c.h.b16 %v5448
    %v5655 = vunpack.c.l.b16 %v5449
    %v5656 = vunpack.c.l.b16 %v5450
    %v5657 = vunpack.c.h.b16 %v5450
    %v5658 = vunpack.c.l.b16 %v5451
    %v5659 = vunpack.c.l.b16 %v5452
    %v5660 = vunpack.c.h.b16 %v5452
    %v5661 = vunpack.c.l.b16 %v5453
    %v5662 = vpack.c.b16 %v5569, %v5566
    %v5663 = vpack.c.b16 %v5570, %v5567
    %v5664 = vpack.c.b16 %v5571, %v5568
    %v5665 = vpack.c.b16 %v5575, %v5572
    %v5666 = vpack.c.b16 %v5576, %v5573
    %v5667 = vpack.c.b16 %v5577, %v5574
    %v5668 = vpack.c.b16 %v5581, %v5578
    %v5669 = vpack.c.b16 %v5582, %v5579
    %v5670 = vpack.c.b16 %v5583, %v5580
    %v5671 = vpack.c.b16 %v5587, %v5584
    %v5672 = vpack.c.b16 %v5588, %v5585
    %v5673 = vpack.c.b16 %v5589, %v5586
    %v5674 = vpack.c.b16 %v5593, %v5590
    %v5675 = vpack.c.b16 %v5594, %v5591
    %v5676 = vpack.c.b16 %v5595, %v5592
    %v5677 = vpack.c.b16 %v5599, %v5596
    %v5678 = vpack.c.b16 %v5600, %v5597
    %v5679 = vpack.c.b16 %v5601, %v5598
    %v5680 = vpack.c.b16 %v5605, %v5602
    %v5681 = vpack.c.b16 %v5606, %v5603
    %v5682 = vpack.c.b16 %v5607, %v5604
    %v5683 = vpack.c.b16 %v5611, %v5608
    %v5684 = vpack.c.b16 %v5612, %v5609
    %v5685 = vpack.c.b16 %v5613, %v5610
    %v5686 = vpack.c.b16 %v5617, %v5614
    %v5687 = vpack.c.b16 %v5618, %v5615
    %v5688 = vpack.c.b16 %v5619, %v5616
    %v5689 = vpack.c.b16 %v5623, %v5620
    %v5690 = vpack.c.b16 %v5624, %v5621
    %v5691 = vpack.c.b16 %v5625, %v5622
    %v5692 = vpack.c.b16 %v5629, %v5626
    %v5693 = vpack.c.b16 %v5630, %v5627
    %v5694 = vpack.c.b16 %v5631, %v5628
    %v5695 = vpack.c.b16 %v5635, %v5632
    %v5696 = vpack.c.b16 %v5636, %v5633
    %v5697 = vpack.c.b16 %v5637, %v5634
    %v5698 = vpack.c.b16 %v5641, %v5638
    %v5699 = vpack.c.b16 %v5642, %v5639
    %v5700 = vpack.c.b16 %v5643, %v5640
    %v5701 = vpack.c.b16 %v5647, %v5644
    %v5702 = vpack.c.b16 %v5648, %v5645
    %v5703 = vpack.c.b16 %v5649, %v5646
    %v5704 = vpack.c.b16 %v5653, %v5650
    %v5705 = vpack.c.b16 %v5654, %v5651
    %v5706 = vpack.c.b16 %v5655, %v5652
    %v5707 = vpack.c.b16 %v5659, %v5656
    %v5708 = vpack.c.b16 %v5660, %v5657
    %v5709 = vpack.c.b16 %v5661, %v5658
    %5758 = vmatpush.bf16.msra.mxu0 %v5683
    %5759 = vmatpush.bf16.msra.mxu0 %v5680
    %5760 = vmatpush.bf16.msra.mxu0 %v5677
    %5761 = vmatpush.bf16.msra.mxu0 %v5674
    %5762 = vmatpush.bf16.msra.mxu0 %v5671
    %5763 = vmatpush.bf16.msra.mxu0 %v5668
    %5764 = vmatpush.bf16.msra.mxu0 %v5665
    %5765 = vmatpush.bf16.msra.mxu0 %v5662
    %5766 = vmatmul.bf16.gmra.mxu0 %v5486
    %v5767 = vpop.f32.mrf.mxu0
    %v5768 = vadd.f32 %v5456, %v5767
    %v5769 = vpop.f32.mrf.mxu0
    %v5770 = vadd.f32 %v5456, %v5769
    %5771 = vmatmul.bf16.gmra.mxu0 %v5488
    %v5772 = vpop.f32.mrf.mxu0
    %v5773 = vadd.f32 %v5456, %v5772
    %v5774 = vpop.f32.mrf.mxu0
    %v5775 = vadd.f32 %v5456, %v5774
    %5776 = vmatmul.bf16.gmra.mxu0 %v5490
    %v5777 = vpop.f32.mrf.mxu0
    %v5778 = vadd.f32 %v5456, %v5777
    %v5779 = vpop.f32.mrf.mxu0
    %v5780 = vadd.f32 %v5456, %v5779
    %5781 = vmatmul.bf16.gmra.mxu0 %v5492
    %v5782 = vpop.f32.mrf.mxu0
    %v5783 = vadd.f32 %v5456, %v5782
    %v5784 = vpop.f32.mrf.mxu0
    %v5785 = vadd.f32 %v5456, %v5784
    %5786 = vdwg.mxu0
    %5787 = vmatpush.bf16.msra.mxu0 %v5707
    %5788 = vmatpush.bf16.msra.mxu0 %v5704
    %5789 = vmatpush.bf16.msra.mxu0 %v5701
    %5790 = vmatpush.bf16.msra.mxu0 %v5698
    %5791 = vmatpush.bf16.msra.mxu0 %v5695
    %5792 = vmatpush.bf16.msra.mxu0 %v5692
    %5793 = vmatpush.bf16.msra.mxu0 %v5689
    %5794 = vmatpush.bf16.msra.mxu0 %v5686
    %5795 = vmatmul.bf16.gmra.mxu0 %v5487
    %v5796 = vpop.f32.mrf.mxu0
    %v5797 = vadd.f32 %v5768, %v5796
    %v5798 = vpop.f32.mrf.mxu0
    %v5799 = vadd.f32 %v5770, %v5798
    %5800 = vmatmul.bf16.gmra.mxu0 %v5489
    %v5801 = vpop.f32.mrf.mxu0
    %v5802 = vadd.f32 %v5773, %v5801
    %v5803 = vpop.f32.mrf.mxu0
    %v5804 = vadd.f32 %v5775, %v5803
    %5805 = vmatmul.bf16.gmra.mxu0 %v5491
    %v5806 = vpop.f32.mrf.mxu0
    %v5807 = vadd.f32 %v5778, %v5806
    %v5808 = vpop.f32.mrf.mxu0
    %v5809 = vadd.f32 %v5780, %v5808
    %5810 = vmatmul.bf16.gmra.mxu0 %v5493
    %v5811 = vpop.f32.mrf.mxu0
    %v5812 = vadd.f32 %v5783, %v5811
    %v5813 = vpop.f32.mrf.mxu0
    %v5814 = vadd.f32 %v5785, %v5813
    %5815 = vdwg.mxu0
    %5816 = vmatpush.bf16.msra.mxu0 %v5684
    %5817 = vmatpush.bf16.msra.mxu0 %v5681
    %5818 = vmatpush.bf16.msra.mxu0 %v5678
    %5819 = vmatpush.bf16.msra.mxu0 %v5675
    %5820 = vmatpush.bf16.msra.mxu0 %v5672
    %5821 = vmatpush.bf16.msra.mxu0 %v5669
    %5822 = vmatpush.bf16.msra.mxu0 %v5666
    %5823 = vmatpush.bf16.msra.mxu0 %v5663
    %5824 = vmatmul.bf16.gmra.mxu0 %v5486
    %v5825 = vpop.f32.mrf.mxu0
    %v5826 = vadd.f32 %v5457, %v5825
    %v5827 = vpop.f32.mrf.mxu0
    %v5828 = vadd.f32 %v5457, %v5827
    %5829 = vmatmul.bf16.gmra.mxu0 %v5488
    %v5830 = vpop.f32.mrf.mxu0
    %v5831 = vadd.f32 %v5457, %v5830
    %v5832 = vpop.f32.mrf.mxu0
    %v5833 = vadd.f32 %v5457, %v5832
    %5834 = vmatmul.bf16.gmra.mxu0 %v5490
    %v5835 = vpop.f32.mrf.mxu0
    %v5836 = vadd.f32 %v5457, %v5835
    %v5837 = vpop.f32.mrf.mxu0
    %v5838 = vadd.f32 %v5457, %v5837
    %5839 = vmatmul.bf16.gmra.mxu0 %v5492
    %v5840 = vpop.f32.mrf.mxu0
    %v5841 = vadd.f32 %v5457, %v5840
    %v5842 = vpop.f32.mrf.mxu0
    %v5843 = vadd.f32 %v5457, %v5842
    %5844 = vdwg.mxu0
    %5845 = vmatpush.bf16.msra.mxu0 %v5708
    %5846 = vmatpush.bf16.msra.mxu0 %v5705
    %5847 = vmatpush.bf16.msra.mxu0 %v5702
    %5848 = vmatpush.bf16.msra.mxu0 %v5699
    %5849 = vmatpush.bf16.msra.mxu0 %v5696
    %5850 = vmatpush.bf16.msra.mxu0 %v5693
    %5851 = vmatpush.bf16.msra.mxu0 %v5690
    %5852 = vmatpush.bf16.msra.mxu0 %v5687
    %5853 = vmatmul.bf16.gmra.mxu0 %v5487
    %v5854 = vpop.f32.mrf.mxu0
    %v5855 = vadd.f32 %v5826, %v5854
    %v5856 = vpop.f32.mrf.mxu0
    %v5857 = vadd.f32 %v5828, %v5856
    %5858 = vmatmul.bf16.gmra.mxu0 %v5489
    %v5859 = vpop.f32.mrf.mxu0
    %v5860 = vadd.f32 %v5831, %v5859
    %v5861 = vpop.f32.mrf.mxu0
    %v5862 = vadd.f32 %v5833, %v5861
    %5863 = vmatmul.bf16.gmra.mxu0 %v5491
    %v5864 = vpop.f32.mrf.mxu0
    %v5865 = vadd.f32 %v5836, %v5864
    %v5866 = vpop.f32.mrf.mxu0
    %v5867 = vadd.f32 %v5838, %v5866
    %5868 = vmatmul.bf16.gmra.mxu0 %v5493
    %v5869 = vpop.f32.mrf.mxu0
    %v5870 = vadd.f32 %v5841, %v5869
    %v5871 = vpop.f32.mrf.mxu0
    %v5872 = vadd.f32 %v5843, %v5871
    %5873 = vdwg.mxu0
    %5874 = vmatpush.bf16.msra.mxu0 %v5685
    %5875 = vmatpush.bf16.msra.mxu0 %v5682
    %5876 = vmatpush.bf16.msra.mxu0 %v5679
    %5877 = vmatpush.bf16.msra.mxu0 %v5676
    %5878 = vmatpush.bf16.msra.mxu0 %v5673
    %5879 = vmatpush.bf16.msra.mxu0 %v5670
    %5880 = vmatpush.bf16.msra.mxu0 %v5667
    %5881 = vmatpush.bf16.msra.mxu0 %v5664
    %5882 = vmatmul.bf16.gmra.mxu0 %v5486
    %v5883 = vpop.f32.mrf.mxu0
    %v5884 = vadd.f32 %v5458, %v5883
    %v5885 = vpop.f32.mrf.mxu0
    %v5886 = vadd.f32 %v5458, %v5885
    %5887 = vmatmul.bf16.gmra.mxu0 %v5488
    %v5888 = vpop.f32.mrf.mxu0
    %v5889 = vadd.f32 %v5458, %v5888
    %v5890 = vpop.f32.mrf.mxu0
    %v5891 = vadd.f32 %v5458, %v5890
    %5892 = vmatmul.bf16.gmra.mxu0 %v5490
    %v5893 = vpop.f32.mrf.mxu0
    %v5894 = vadd.f32 %v5458, %v5893
    %v5895 = vpop.f32.mrf.mxu0
    %v5896 = vadd.f32 %v5458, %v5895
    %5897 = vmatmul.bf16.gmra.mxu0 %v5492
    %v5898 = vpop.f32.mrf.mxu0
    %v5899 = vadd.f32 %v5458, %v5898
    %v5900 = vpop.f32.mrf.mxu0
    %v5901 = vadd.f32 %v5458, %v5900
    %5902 = vdwg.mxu0
    %5903 = vmatpush.bf16.msra.mxu0 %v5709
    %5904 = vmatpush.bf16.msra.mxu0 %v5706
    %5905 = vmatpush.bf16.msra.mxu0 %v5703
    %5906 = vmatpush.bf16.msra.mxu0 %v5700
    %5907 = vmatpush.bf16.msra.mxu0 %v5697
    %5908 = vmatpush.bf16.msra.mxu0 %v5694
    %5909 = vmatpush.bf16.msra.mxu0 %v5691
    %5910 = vmatpush.bf16.msra.mxu0 %v5688
    %5911 = vmatmul.bf16.gmra.mxu0 %v5487
    %v5912 = vpop.f32.mrf.mxu0
    %v5913 = vadd.f32 %v5884, %v5912
    %v5914 = vpop.f32.mrf.mxu0
    %v5915 = vadd.f32 %v5886, %v5914
    %5916 = vmatmul.bf16.gmra.mxu0 %v5489
    %v5917 = vpop.f32.mrf.mxu0
    %v5918 = vadd.f32 %v5889, %v5917
    %v5919 = vpop.f32.mrf.mxu0
    %v5920 = vadd.f32 %v5891, %v5919
    %5921 = vmatmul.bf16.gmra.mxu0 %v5491
    %v5922 = vpop.f32.mrf.mxu0
    %v5923 = vadd.f32 %v5894, %v5922
    %v5924 = vpop.f32.mrf.mxu0
    %v5925 = vadd.f32 %v5896, %v5924
    %5926 = vmatmul.bf16.gmra.mxu0 %v5493
    %v5927 = vpop.f32.mrf.mxu0
    %v5928 = vadd.f32 %v5899, %v5927
    %v5929 = vpop.f32.mrf.mxu0
    %v5930 = vadd.f32 %v5901, %v5929
    %5931 = vdwg.mxu0
    %5932 = vst [vmem:[#allocation2] sm:$0xff] %v5797
    %5933 = vst [vmem:[#allocation2 + $0x8] sm:$0xff] %v5855
    %5934 = vst [vmem:[#allocation2 + $0x10] sm:$0xff] %v5913
    %5935 = vst [vmem:[#allocation2 + $0x30] sm:$0xff] %v5799
    %5936 = vst [vmem:[#allocation2 + $0x38] sm:$0xff] %v5857
    %5937 = vst [vmem:[#allocation2 + $0x40] sm:$0xff] %v5915
    %5938 = vst [vmem:[#allocation2 + $0x60] sm:$0xff] %v5802
    %5939 = vst [vmem:[#allocation2 + $0x68] sm:$0xff] %v5860
    %5940 = vst [vmem:[#allocation2 + $0x70] sm:$0xff] %v5918
    %5941 = vst [vmem:[#allocation2 + $0x90] sm:$0xff] %v5804
    %5942 = vst [vmem:[#allocation2 + $0x98] sm:$0xff] %v5862
    %5943 = vst [vmem:[#allocation2 + $0xa0] sm:$0xff] %v5920
    %5944 = vst [vmem:[#allocation2 + $0xc0] sm:$0xff] %v5807
    %5945 = vst [vmem:[#allocation2 + $0xc8] sm:$0xff] %v5865
    %5946 = vst [vmem:[#allocation2 + $0xd0] sm:$0xff] %v5923
    %5947 = vst [vmem:[#allocation2 + $0xf0] sm:$0xff] %v5809
    %5948 = vst [vmem:[#allocation2 + $0xf8] sm:$0xff] %v5867
    %5949 = vst [vmem:[#allocation2 + $0x100] sm:$0xff] %v5925
    %5950 = vst [vmem:[#allocation2 + $0x120] sm:$0xff] %v5812
    %5951 = vst [vmem:[#allocation2 + $0x128] sm:$0xff] %v5870
    %5952 = vst [vmem:[#allocation2 + $0x130] sm:$0xff] %v5928
    %5953 = vst [vmem:[#allocation2 + $0x150] sm:$0xff] %v5814
    %5954 = vst [vmem:[#allocation2 + $0x158] sm:$0xff] %v5872
    %5955 = vst [vmem:[#allocation2 + $0x160] sm:$0xff] %v5930
    %v5956 = vld [vmem:[#allocation12] sm:$0xff]
    %v5957 = vld [vmem:[#allocation12 + $0x8] sm:$0xff]
    %v5958 = vld [vmem:[#allocation12 + $0x10] sm:$0xff]
    %v5959 = vld [vmem:[#allocation12 + $0x18] sm:$0xff]
    %v5960 = vld [vmem:[#allocation12 + $0x20] sm:$0xff]
    %v5961 = vld [vmem:[#allocation12 + $0x28] sm:$0xff]
    %v5962 = vld [vmem:[#allocation12 + $0x30] sm:$0xff]
    %v5963 = vld [vmem:[#allocation12 + $0x38] sm:$0xff]
    %v5964 = vld [vmem:[#allocation12 + $0x40] sm:$0xff]
    %v5965 = vld [vmem:[#allocation12 + $0x48] sm:$0xff]
    %v5966 = vld [vmem:[#allocation12 + $0x50] sm:$0xff]
    %v5967 = vld [vmem:[#allocation12 + $0x58] sm:$0xff]
    %v5968 = vld [vmem:[#allocation12 + $0x60] sm:$0xff]
    %v5969 = vld [vmem:[#allocation12 + $0x68] sm:$0xff]
    %v5970 = vld [vmem:[#allocation12 + $0x70] sm:$0xff]
    %v5971 = vld [vmem:[#allocation12 + $0x78] sm:$0xff]
    %v5972 = vld [vmem:[#allocation12 + $0x80] sm:$0xff]
    %v5973 = vld [vmem:[#allocation12 + $0x88] sm:$0xff]
    %v5974 = vld [vmem:[#allocation12 + $0x90] sm:$0xff]
    %v5975 = vld [vmem:[#allocation12 + $0x98] sm:$0xff]
    %v5976 = vld [vmem:[#allocation12 + $0xa0] sm:$0xff]
    %v5977 = vld [vmem:[#allocation12 + $0xa8] sm:$0xff]
    %v5978 = vld [vmem:[#allocation12 + $0xb0] sm:$0xff]
    %v5979 = vld [vmem:[#allocation12 + $0xb8] sm:$0xff]
    %v5980 = vld [vmem:[#allocation12 + $0xc0] sm:$0xff]
    %v5981 = vld [vmem:[#allocation12 + $0xc8] sm:$0xff]
    %v5982 = vld [vmem:[#allocation12 + $0xd0] sm:$0xff]
    %v5983 = vld [vmem:[#allocation12 + $0xd8] sm:$0xff]
    %v5984 = vld [vmem:[#allocation12 + $0xe0] sm:$0xff]
    %v5985 = vld [vmem:[#allocation12 + $0xe8] sm:$0xff]
    %v5986 = vld [vmem:[#allocation12 + $0xf0] sm:$0xff]
    %v5987 = vld [vmem:[#allocation12 + $0xf8] sm:$0xff]
    %v5988 = vld [vmem:[#allocation12 + $0x100] sm:$0xff]
    %v5989 = vld [vmem:[#allocation12 + $0x108] sm:$0xff]
    %v5990 = vld [vmem:[#allocation12 + $0x110] sm:$0xff]
    %v5991 = vld [vmem:[#allocation12 + $0x118] sm:$0xff]
    %v5992 = vld [vmem:[#allocation12 + $0x120] sm:$0xff]
    %v5993 = vld [vmem:[#allocation12 + $0x128] sm:$0xff]
    %v5994 = vld [vmem:[#allocation12 + $0x130] sm:$0xff]
    %v5995 = vld [vmem:[#allocation12 + $0x138] sm:$0xff]
    %v5996 = vld [vmem:[#allocation12 + $0x140] sm:$0xff]
    %v5997 = vld [vmem:[#allocation12 + $0x148] sm:$0xff]
    %v5998 = vld [vmem:[#allocation12 + $0x150] sm:$0xff]
    %v5999 = vld [vmem:[#allocation12 + $0x158] sm:$0xff]
    %v6000 = vld [vmem:[#allocation12 + $0x160] sm:$0xff]
    %v6001 = vld [vmem:[#allocation12 + $0x168] sm:$0xff]
    %v6002 = vld [vmem:[#allocation12 + $0x170] sm:$0xff]
    %v6003 = vld [vmem:[#allocation12 + $0x178] sm:$0xff]
    %v6004 = vld [vmem:[#allocation12 + $0x180] sm:$0xff]
    %v6005 = vld [vmem:[#allocation12 + $0x188] sm:$0xff]
    %v6006 = vld [vmem:[#allocation12 + $0x190] sm:$0xff]
    %v6007 = vld [vmem:[#allocation12 + $0x198] sm:$0xff]
    %v6008 = vld [vmem:[#allocation12 + $0x1a0] sm:$0xff]
    %v6009 = vld [vmem:[#allocation12 + $0x1a8] sm:$0xff]
    %v6010 = vld [vmem:[#allocation12 + $0x1b0] sm:$0xff]
    %v6011 = vld [vmem:[#allocation12 + $0x1b8] sm:$0xff]
    %v6012 = vld [vmem:[#allocation12 + $0x1c0] sm:$0xff]
    %v6013 = vld [vmem:[#allocation12 + $0x1c8] sm:$0xff]
    %v6014 = vld [vmem:[#allocation12 + $0x1d0] sm:$0xff]
    %v6015 = vld [vmem:[#allocation12 + $0x1d8] sm:$0xff]
    %v6016 = vld [vmem:[#allocation12 + $0x1e0] sm:$0xff]
    %v6017 = vld [vmem:[#allocation12 + $0x1e8] sm:$0xff]
    %v6018 = vld [vmem:[#allocation12 + $0x1f0] sm:$0xff]
    %v6019 = vld [vmem:[#allocation12 + $0x1f8] sm:$0xff]
    %v6020 = vld [vmem:[#allocation12 + $0x200] sm:$0xff]
    %v6021 = vld [vmem:[#allocation12 + $0x208] sm:$0xff]
    %v6022 = vld [vmem:[#allocation12 + $0x210] sm:$0xff]
    %v6023 = vld [vmem:[#allocation12 + $0x218] sm:$0xff]
    %v6024 = vld [vmem:[#allocation12 + $0x220] sm:$0xff]
    %v6025 = vld [vmem:[#allocation12 + $0x228] sm:$0xff]
    %v6026 = vld [vmem:[#allocation12 + $0x230] sm:$0xff]
    %v6027 = vld [vmem:[#allocation12 + $0x238] sm:$0xff]
    %v6028 = vld [vmem:[#allocation12 + $0x240] sm:$0xff]
    %v6029 = vld [vmem:[#allocation12 + $0x248] sm:$0xff]
    %v6030 = vld [vmem:[#allocation12 + $0x250] sm:$0xff]
    %v6031 = vld [vmem:[#allocation12 + $0x258] sm:$0xff]
    %v6032 = vld [vmem:[#allocation12 + $0x260] sm:$0xff]
    %v6033 = vld [vmem:[#allocation12 + $0x268] sm:$0xff]
    %v6034 = vld [vmem:[#allocation12 + $0x270] sm:$0xff]
    %v6035 = vld [vmem:[#allocation12 + $0x278] sm:$0xff]
    %v6036 = vld [vmem:[#allocation12 + $0x280] sm:$0xff]
    %v6037 = vld [vmem:[#allocation12 + $0x288] sm:$0xff]
    %v6038 = vld [vmem:[#allocation12 + $0x290] sm:$0xff]
    %v6039 = vld [vmem:[#allocation12 + $0x298] sm:$0xff]
    %v6040 = vld [vmem:[#allocation12 + $0x2a0] sm:$0xff]
    %v6041 = vld [vmem:[#allocation12 + $0x2a8] sm:$0xff]
    %v6042 = vld [vmem:[#allocation12 + $0x2b0] sm:$0xff]
    %v6043 = vld [vmem:[#allocation12 + $0x2b8] sm:$0xff]
    %v6044 = vld [vmem:[#allocation12 + $0x2c0] sm:$0xff]
    %v6045 = vld [vmem:[#allocation12 + $0x2c8] sm:$0xff]
    %v6046 = vld [vmem:[#allocation12 + $0x2d0] sm:$0xff]
    %v6047 = vld [vmem:[#allocation12 + $0x2d8] sm:$0xff]
    %v6048 = vld [vmem:[#allocation12 + $0x2e0] sm:$0xff]
    %v6049 = vld [vmem:[#allocation12 + $0x2e8] sm:$0xff]
    %v6050 = vld [vmem:[#allocation12 + $0x2f0] sm:$0xff]
    %v6051 = vld [vmem:[#allocation12 + $0x2f8] sm:$0xff]
    %v6052 = vld [vmem:[%s31] sm:$0x1]
    %v6053 = vld [vmem:[%s31 + $0x1] sm:$0x1]
    %v6054 = vld [vmem:[#allocation2] sm:$0xff]
    %v6055 = vld [vmem:[#allocation2 + $0x8] sm:$0xff]
    %v6056 = vld [vmem:[#allocation2 + $0x10] sm:$0xff]
    %6057 = vmatpush.msra.mxu0 %v6046
    %6058 = vmatpush.msra.mxu0 %v6040
    %6059 = vmatpush.msra.mxu0 %v6034
    %6060 = vmatpush.msra.mxu0 %v6028
    %6061 = vmatpush.msra.mxu0 %v6022
    %6062 = vmatpush.msra.mxu0 %v6016
    %6063 = vmatpush.msra.mxu0 %v6010
    %6064 = vmatpush.msra.mxu0 %v6004
    %6065 = vmatpush.msra.mxu0 %v5998
    %6066 = vmatpush.msra.mxu0 %v5992
    %6067 = vmatpush.msra.mxu0 %v5986
    %6068 = vmatpush.msra.mxu0 %v5980
    %6069 = vmatpush.msra.mxu0 %v5974
    %6070 = vmatpush.msra.mxu0 %v5968
    %6071 = vmatpush.msra.mxu0 %v5962
    %6072 = vmatpush.msra.mxu0 %v5956
    %6073 = vmatmul.f32.gmra.mxu0 %v5387
    %v6074 = vpop.f32.mrf.mxu0
    %v6075 = vadd.f32 0.0, %v6074
    %6076 = vdwg.mxu0
    %6077 = vmatpush.msra.mxu0 %v6047
    %6078 = vmatpush.msra.mxu0 %v6041
    %6079 = vmatpush.msra.mxu0 %v6035
    %6080 = vmatpush.msra.mxu0 %v6029
    %6081 = vmatpush.msra.mxu0 %v6023
    %6082 = vmatpush.msra.mxu0 %v6017
    %6083 = vmatpush.msra.mxu0 %v6011
    %6084 = vmatpush.msra.mxu0 %v6005
    %6085 = vmatpush.msra.mxu0 %v5999
    %6086 = vmatpush.msra.mxu0 %v5993
    %6087 = vmatpush.msra.mxu0 %v5987
    %6088 = vmatpush.msra.mxu0 %v5981
    %6089 = vmatpush.msra.mxu0 %v5975
    %6090 = vmatpush.msra.mxu0 %v5969
    %6091 = vmatpush.msra.mxu0 %v5963
    %6092 = vmatpush.msra.mxu0 %v5957
    %6093 = vmatmul.f32.gmra.mxu0 %v5387
    %v6094 = vpop.f32.mrf.mxu0
    %v6095 = vadd.f32 0.0, %v6094
    %6096 = vdwg.mxu0
    %6097 = vmatpush.msra.mxu0 %v6048
    %6098 = vmatpush.msra.mxu0 %v6042
    %6099 = vmatpush.msra.mxu0 %v6036
    %6100 = vmatpush.msra.mxu0 %v6030
    %6101 = vmatpush.msra.mxu0 %v6024
    %6102 = vmatpush.msra.mxu0 %v6018
    %6103 = vmatpush.msra.mxu0 %v6012
    %6104 = vmatpush.msra.mxu0 %v6006
    %6105 = vmatpush.msra.mxu0 %v6000
    %6106 = vmatpush.msra.mxu0 %v5994
    %6107 = vmatpush.msra.mxu0 %v5988
    %6108 = vmatpush.msra.mxu0 %v5982
    %6109 = vmatpush.msra.mxu0 %v5976
    %6110 = vmatpush.msra.mxu0 %v5970
    %6111 = vmatpush.msra.mxu0 %v5964
    %6112 = vmatpush.msra.mxu0 %v5958
    %6113 = vmatmul.f32.gmra.mxu0 %v5387
    %v6114 = vpop.f32.mrf.mxu0
    %v6115 = vadd.f32 0.0, %v6114
    %6116 = vdwg.mxu0
    %v6117 = vadd.f32 %v6054, %v6075
    %v6118 = vxor.u32 %v6117, 2147483648
    %v6119 = vmul.f32 %v6118, 1.442695
    %v6120 = vpow.pop %v6119
    %v6121 = vadd.f32 %v6120, 1.0
    %v6122 = vrcp.pop %v6121
    %v6123 = vmul.f32 %v6121, %v6122
    %v6124 = vsub.f32 1.0, %v6123
    %v6125 = vmul.f32 %v6122, %v6124
    %v6126 = vadd.f32 %v6122, %v6125
    %vm6127 = vweird.f32 %v6121
    %vm6128 = vweird.f32 %v6122
    %vm6129 = vmor %vm6127, %vm6128
    %v6130 = vsel %vm6129, %v6122, %v6126
    %v6131 = vand.u32 2147483647, %v6121
    %vm6132 = vcmp.eq.f32.partialorder %v6131, 8.507059e+37
    %v6133 = vand.u32 %v6121, 2147483648
    %v6134 = vor.u32 1.1754944e-38, %v6133
    %v6135 = vsel %vm6132, %v6134, %v6130
    %v6136 = vmul.f32 1.0, %v6135
    %v6137 = vadd.f32 %v6055, %v6095
    %v6138 = vxor.u32 %v6137, 2147483648
    %v6139 = vmul.f32 %v6138, 1.442695
    %v6140 = vpow.pop %v6139
    %v6141 = vadd.f32 %v6140, 1.0
    %v6142 = vrcp.pop %v6141
    %v6143 = vmul.f32 %v6141, %v6142
    %v6144 = vsub.f32 1.0, %v6143
    %v6145 = vmul.f32 %v6142, %v6144
    %v6146 = vadd.f32 %v6142, %v6145
    %vm6147 = vweird.f32 %v6141
    %vm6148 = vweird.f32 %v6142
    %vm6149 = vmor %vm6147, %vm6148
    %v6150 = vsel %vm6149, %v6142, %v6146
    %v6151 = vand.u32 2147483647, %v6141
    %vm6152 = vcmp.eq.f32.partialorder %v6151, 8.507059e+37
    %v6153 = vand.u32 %v6141, 2147483648
    %v6154 = vor.u32 1.1754944e-38, %v6153
    %v6155 = vsel %vm6152, %v6154, %v6150
    %v6156 = vmul.f32 1.0, %v6155
    %v6158 = vperm.slane %v6052, 0
    %v6160 = vadd.f32 %v6115, %v6158
    %v6161 = vmul.f32 %v6136, %v6160
    %v6162 = vadd.f32 %v6056, %v6161
    %v6163 = vtanh.pop %v6162
    %v6164 = vsub.f32 1.0, %v6156
    %v6165 = vmul.f32 %v6164, %v6163
    %v6166 = vmul.f32 %v6156, %v5387
    %v6167 = vadd.f32 %v6165, %v6166
    %v6168 = vld [vmem:[#allocation2 + $0x30] sm:$0xff]
    %v6169 = vld [vmem:[#allocation2 + $0x38] sm:$0xff]
    %v6170 = vld [vmem:[#allocation2 + $0x40] sm:$0xff]
    %6171 = vmatpush.msra.mxu0 %v6046
    %6172 = vmatpush.msra.mxu0 %v6040
    %6173 = vmatpush.msra.mxu0 %v6034
    %6174 = vmatpush.msra.mxu0 %v6028
    %6175 = vmatpush.msra.mxu0 %v6022
    %6176 = vmatpush.msra.mxu0 %v6016
    %6177 = vmatpush.msra.mxu0 %v6010
    %6178 = vmatpush.msra.mxu0 %v6004
    %6179 = vmatpush.msra.mxu0 %v5998
    %6180 = vmatpush.msra.mxu0 %v5992
    %6181 = vmatpush.msra.mxu0 %v5986
    %6182 = vmatpush.msra.mxu0 %v5980
    %6183 = vmatpush.msra.mxu0 %v5974
    %6184 = vmatpush.msra.mxu0 %v5968
    %6185 = vmatpush.msra.mxu0 %v5962
    %6186 = vmatpush.msra.mxu0 %v5956
    %6187 = vmatmul.f32.gmra.mxu0 %v6167
    %v6188 = vpop.f32.mrf.mxu0
    %v6189 = vadd.f32 0.0, %v6188
    %6190 = vdwg.mxu0
    %6191 = vmatpush.msra.mxu0 %v6047
    %6192 = vmatpush.msra.mxu0 %v6041
    %6193 = vmatpush.msra.mxu0 %v6035
    %6194 = vmatpush.msra.mxu0 %v6029
    %6195 = vmatpush.msra.mxu0 %v6023
    %6196 = vmatpush.msra.mxu0 %v6017
    %6197 = vmatpush.msra.mxu0 %v6011
    %6198 = vmatpush.msra.mxu0 %v6005
    %6199 = vmatpush.msra.mxu0 %v5999
    %6200 = vmatpush.msra.mxu0 %v5993
    %6201 = vmatpush.msra.mxu0 %v5987
    %6202 = vmatpush.msra.mxu0 %v5981
    %6203 = vmatpush.msra.mxu0 %v5975
    %6204 = vmatpush.msra.mxu0 %v5969
    %6205 = vmatpush.msra.mxu0 %v5963
    %6206 = vmatpush.msra.mxu0 %v5957
    %6207 = vmatmul.f32.gmra.mxu0 %v6167
    %v6208 = vpop.f32.mrf.mxu0
    %v6209 = vadd.f32 0.0, %v6208
    %6210 = vdwg.mxu0
    %6211 = vmatpush.msra.mxu0 %v6048
    %6212 = vmatpush.msra.mxu0 %v6042
    %6213 = vmatpush.msra.mxu0 %v6036
    %6214 = vmatpush.msra.mxu0 %v6030
    %6215 = vmatpush.msra.mxu0 %v6024
    %6216 = vmatpush.msra.mxu0 %v6018
    %6217 = vmatpush.msra.mxu0 %v6012
    %6218 = vmatpush.msra.mxu0 %v6006
    %6219 = vmatpush.msra.mxu0 %v6000
    %6220 = vmatpush.msra.mxu0 %v5994
    %6221 = vmatpush.msra.mxu0 %v5988
    %6222 = vmatpush.msra.mxu0 %v5982
    %6223 = vmatpush.msra.mxu0 %v5976
    %6224 = vmatpush.msra.mxu0 %v5970
    %6225 = vmatpush.msra.mxu0 %v5964
    %6226 = vmatpush.msra.mxu0 %v5958
    %6227 = vmatmul.f32.gmra.mxu0 %v6167
    %v6228 = vpop.f32.mrf.mxu0
    %v6229 = vadd.f32 0.0, %v6228
    %6230 = vdwg.mxu0
    %v6231 = vadd.f32 %v6168, %v6189
    %v6232 = vxor.u32 %v6231, 2147483648
    %v6233 = vmul.f32 %v6232, 1.442695
    %v6234 = vpow.pop %v6233
    %v6235 = vadd.f32 %v6234, 1.0
    %v6236 = vrcp.pop %v6235
    %v6237 = vmul.f32 %v6235, %v6236
    %v6238 = vsub.f32 1.0, %v6237
    %v6239 = vmul.f32 %v6236, %v6238
    %v6240 = vadd.f32 %v6236, %v6239
    %vm6241 = vweird.f32 %v6235
    %vm6242 = vweird.f32 %v6236
    %vm6243 = vmor %vm6241, %vm6242
    %v6244 = vsel %vm6243, %v6236, %v6240
    %v6245 = vand.u32 2147483647, %v6235
    %vm6246 = vcmp.eq.f32.partialorder %v6245, 8.507059e+37
    %v6247 = vand.u32 %v6235, 2147483648
    %v6248 = vor.u32 1.1754944e-38, %v6247
    %v6249 = vsel %vm6246, %v6248, %v6244
    %v6250 = vmul.f32 1.0, %v6249
    %v6251 = vadd.f32 %v6169, %v6209
    %v6252 = vxor.u32 %v6251, 2147483648
    %v6253 = vmul.f32 %v6252, 1.442695
    %v6254 = vpow.pop %v6253
    %v6255 = vadd.f32 %v6254, 1.0
    %v6256 = vrcp.pop %v6255
    %v6257 = vmul.f32 %v6255, %v6256
    %v6258 = vsub.f32 1.0, %v6257
    %v6259 = vmul.f32 %v6256, %v6258
    %v6260 = vadd.f32 %v6256, %v6259
    %vm6261 = vweird.f32 %v6255
    %vm6262 = vweird.f32 %v6256
    %vm6263 = vmor %vm6261, %vm6262
    %v6264 = vsel %vm6263, %v6256, %v6260
    %v6265 = vand.u32 2147483647, %v6255
    %vm6266 = vcmp.eq.f32.partialorder %v6265, 8.507059e+37
    %v6267 = vand.u32 %v6255, 2147483648
    %v6268 = vor.u32 1.1754944e-38, %v6267
    %v6269 = vsel %vm6266, %v6268, %v6264
    %v6270 = vmul.f32 1.0, %v6269
    %v6271 = vadd.f32 %v6229, %v6158
    %v6272 = vmul.f32 %v6250, %v6271
    %v6273 = vadd.f32 %v6170, %v6272
    %v6274 = vtanh.pop %v6273
    %v6275 = vsub.f32 1.0, %v6270
    %v6276 = vmul.f32 %v6275, %v6274
    %v6277 = vmul.f32 %v6270, %v6167
    %v6278 = vadd.f32 %v6276, %v6277
    %v6279 = vld [vmem:[#allocation2 + $0x60] sm:$0xff]
    %v6280 = vld [vmem:[#allocation2 + $0x68] sm:$0xff]
    %v6281 = vld [vmem:[#allocation2 + $0x70] sm:$0xff]
    %6282 = vmatpush.msra.mxu0 %v6046
    %6283 = vmatpush.msra.mxu0 %v6040
    %6284 = vmatpush.msra.mxu0 %v6034
    %6285 = vmatpush.msra.mxu0 %v6028
    %6286 = vmatpush.msra.mxu0 %v6022
    %6287 = vmatpush.msra.mxu0 %v6016
    %6288 = vmatpush.msra.mxu0 %v6010
    %6289 = vmatpush.msra.mxu0 %v6004
    %6290 = vmatpush.msra.mxu0 %v5998
    %6291 = vmatpush.msra.mxu0 %v5992
    %6292 = vmatpush.msra.mxu0 %v5986
    %6293 = vmatpush.msra.mxu0 %v5980
    %6294 = vmatpush.msra.mxu0 %v5974
    %6295 = vmatpush.msra.mxu0 %v5968
    %6296 = vmatpush.msra.mxu0 %v5962
    %6297 = vmatpush.msra.mxu0 %v5956
    %6298 = vmatmul.f32.gmra.mxu0 %v6278
    %v6299 = vpop.f32.mrf.mxu0
    %v6300 = vadd.f32 0.0, %v6299
    %6301 = vdwg.mxu0
    %6302 = vmatpush.msra.mxu0 %v6047
    %6303 = vmatpush.msra.mxu0 %v6041
    %6304 = vmatpush.msra.mxu0 %v6035
    %6305 = vmatpush.msra.mxu0 %v6029
    %6306 = vmatpush.msra.mxu0 %v6023
    %6307 = vmatpush.msra.mxu0 %v6017
    %6308 = vmatpush.msra.mxu0 %v6011
    %6309 = vmatpush.msra.mxu0 %v6005
    %6310 = vmatpush.msra.mxu0 %v5999
    %6311 = vmatpush.msra.mxu0 %v5993
    %6312 = vmatpush.msra.mxu0 %v5987
    %6313 = vmatpush.msra.mxu0 %v5981
    %6314 = vmatpush.msra.mxu0 %v5975
    %6315 = vmatpush.msra.mxu0 %v5969
    %6316 = vmatpush.msra.mxu0 %v5963
    %6317 = vmatpush.msra.mxu0 %v5957
    %6318 = vmatmul.f32.gmra.mxu0 %v6278
    %v6319 = vpop.f32.mrf.mxu0
    %v6320 = vadd.f32 0.0, %v6319
    %6321 = vdwg.mxu0
    %6322 = vmatpush.msra.mxu0 %v6048
    %6323 = vmatpush.msra.mxu0 %v6042
    %6324 = vmatpush.msra.mxu0 %v6036
    %6325 = vmatpush.msra.mxu0 %v6030
    %6326 = vmatpush.msra.mxu0 %v6024
    %6327 = vmatpush.msra.mxu0 %v6018
    %6328 = vmatpush.msra.mxu0 %v6012
    %6329 = vmatpush.msra.mxu0 %v6006
    %6330 = vmatpush.msra.mxu0 %v6000
    %6331 = vmatpush.msra.mxu0 %v5994
    %6332 = vmatpush.msra.mxu0 %v5988
    %6333 = vmatpush.msra.mxu0 %v5982
    %6334 = vmatpush.msra.mxu0 %v5976
    %6335 = vmatpush.msra.mxu0 %v5970
    %6336 = vmatpush.msra.mxu0 %v5964
    %6337 = vmatpush.msra.mxu0 %v5958
    %6338 = vmatmul.f32.gmra.mxu0 %v6278
    %v6339 = vpop.f32.mrf.mxu0
    %v6340 = vadd.f32 0.0, %v6339
    %6341 = vdwg.mxu0
    %v6342 = vadd.f32 %v6279, %v6300
    %v6343 = vxor.u32 %v6342, 2147483648
    %v6344 = vmul.f32 %v6343, 1.442695
    %v6345 = vpow.pop %v6344
    %v6346 = vadd.f32 %v6345, 1.0
    %v6347 = vrcp.pop %v6346
    %v6348 = vmul.f32 %v6346, %v6347
    %v6349 = vsub.f32 1.0, %v6348
    %v6350 = vmul.f32 %v6347, %v6349
    %v6351 = vadd.f32 %v6347, %v6350
    %vm6352 = vweird.f32 %v6346
    %vm6353 = vweird.f32 %v6347
    %vm6354 = vmor %vm6352, %vm6353
    %v6355 = vsel %vm6354, %v6347, %v6351
    %v6356 = vand.u32 2147483647, %v6346
    %vm6357 = vcmp.eq.f32.partialorder %v6356, 8.507059e+37
    %v6358 = vand.u32 %v6346, 2147483648
    %v6359 = vor.u32 1.1754944e-38, %v6358
    %v6360 = vsel %vm6357, %v6359, %v6355
    %v6361 = vmul.f32 1.0, %v6360
    %v6362 = vadd.f32 %v6280, %v6320
    %v6363 = vxor.u32 %v6362, 2147483648
    %v6364 = vmul.f32 %v6363, 1.442695
    %v6365 = vpow.pop %v6364
    %v6366 = vadd.f32 %v6365, 1.0
    %v6367 = vrcp.pop %v6366
    %v6368 = vmul.f32 %v6366, %v6367
    %v6369 = vsub.f32 1.0, %v6368
    %v6370 = vmul.f32 %v6367, %v6369
    %v6371 = vadd.f32 %v6367, %v6370
    %vm6372 = vweird.f32 %v6366
    %vm6373 = vweird.f32 %v6367
    %vm6374 = vmor %vm6372, %vm6373
    %v6375 = vsel %vm6374, %v6367, %v6371
    %v6376 = vand.u32 2147483647, %v6366
    %vm6377 = vcmp.eq.f32.partialorder %v6376, 8.507059e+37
    %v6378 = vand.u32 %v6366, 2147483648
    %v6379 = vor.u32 1.1754944e-38, %v6378
    %v6380 = vsel %vm6377, %v6379, %v6375
    %v6381 = vmul.f32 1.0, %v6380
    %v6382 = vadd.f32 %v6340, %v6158
    %v6383 = vmul.f32 %v6361, %v6382
    %v6384 = vadd.f32 %v6281, %v6383
    %v6385 = vtanh.pop %v6384
    %v6386 = vsub.f32 1.0, %v6381
    %v6387 = vmul.f32 %v6386, %v6385
    %v6388 = vmul.f32 %v6381, %v6278
    %v6389 = vadd.f32 %v6387, %v6388
    %v6390 = vld [vmem:[#allocation2 + $0x90] sm:$0xff]
    %v6391 = vld [vmem:[#allocation2 + $0x98] sm:$0xff]
    %v6392 = vld [vmem:[#allocation2 + $0xa0] sm:$0xff]
    %6393 = vmatpush.msra.mxu0 %v6046
    %6394 = vmatpush.msra.mxu0 %v6040
    %6395 = vmatpush.msra.mxu0 %v6034
    %6396 = vmatpush.msra.mxu0 %v6028
    %6397 = vmatpush.msra.mxu0 %v6022
    %6398 = vmatpush.msra.mxu0 %v6016
    %6399 = vmatpush.msra.mxu0 %v6010
    %6400 = vmatpush.msra.mxu0 %v6004
    %6401 = vmatpush.msra.mxu0 %v5998
    %6402 = vmatpush.msra.mxu0 %v5992
    %6403 = vmatpush.msra.mxu0 %v5986
    %6404 = vmatpush.msra.mxu0 %v5980
    %6405 = vmatpush.msra.mxu0 %v5974
    %6406 = vmatpush.msra.mxu0 %v5968
    %6407 = vmatpush.msra.mxu0 %v5962
    %6408 = vmatpush.msra.mxu0 %v5956
    %6409 = vmatmul.f32.gmra.mxu0 %v6389
    %v6410 = vpop.f32.mrf.mxu0
    %v6411 = vadd.f32 0.0, %v6410
    %6412 = vdwg.mxu0
    %6413 = vmatpush.msra.mxu0 %v6047
    %6414 = vmatpush.msra.mxu0 %v6041
    %6415 = vmatpush.msra.mxu0 %v6035
    %6416 = vmatpush.msra.mxu0 %v6029
    %6417 = vmatpush.msra.mxu0 %v6023
    %6418 = vmatpush.msra.mxu0 %v6017
    %6419 = vmatpush.msra.mxu0 %v6011
    %6420 = vmatpush.msra.mxu0 %v6005
    %6421 = vmatpush.msra.mxu0 %v5999
    %6422 = vmatpush.msra.mxu0 %v5993
    %6423 = vmatpush.msra.mxu0 %v5987
    %6424 = vmatpush.msra.mxu0 %v5981
    %6425 = vmatpush.msra.mxu0 %v5975
    %6426 = vmatpush.msra.mxu0 %v5969
    %6427 = vmatpush.msra.mxu0 %v5963
    %6428 = vmatpush.msra.mxu0 %v5957
    %6429 = vmatmul.f32.gmra.mxu0 %v6389
    %v6430 = vpop.f32.mrf.mxu0
    %v6431 = vadd.f32 0.0, %v6430
    %6432 = vdwg.mxu0
    %6433 = vmatpush.msra.mxu0 %v6048
    %6434 = vmatpush.msra.mxu0 %v6042
    %6435 = vmatpush.msra.mxu0 %v6036
    %6436 = vmatpush.msra.mxu0 %v6030
    %6437 = vmatpush.msra.mxu0 %v6024
    %6438 = vmatpush.msra.mxu0 %v6018
    %6439 = vmatpush.msra.mxu0 %v6012
    %6440 = vmatpush.msra.mxu0 %v6006
    %6441 = vmatpush.msra.mxu0 %v6000
    %6442 = vmatpush.msra.mxu0 %v5994
    %6443 = vmatpush.msra.mxu0 %v5988
    %6444 = vmatpush.msra.mxu0 %v5982
    %6445 = vmatpush.msra.mxu0 %v5976
    %6446 = vmatpush.msra.mxu0 %v5970
    %6447 = vmatpush.msra.mxu0 %v5964
    %6448 = vmatpush.msra.mxu0 %v5958
    %6449 = vmatmul.f32.gmra.mxu0 %v6389
    %v6450 = vpop.f32.mrf.mxu0
    %v6451 = vadd.f32 0.0, %v6450
    %6452 = vdwg.mxu0
    %v6453 = vadd.f32 %v6390, %v6411
    %v6454 = vxor.u32 %v6453, 2147483648
    %v6455 = vmul.f32 %v6454, 1.442695
    %v6456 = vpow.pop %v6455
    %v6457 = vadd.f32 %v6456, 1.0
    %v6458 = vrcp.pop %v6457
    %v6459 = vmul.f32 %v6457, %v6458
    %v6460 = vsub.f32 1.0, %v6459
    %v6461 = vmul.f32 %v6458, %v6460
    %v6462 = vadd.f32 %v6458, %v6461
    %vm6463 = vweird.f32 %v6457
    %vm6464 = vweird.f32 %v6458
    %vm6465 = vmor %vm6463, %vm6464
    %v6466 = vsel %vm6465, %v6458, %v6462
    %v6467 = vand.u32 2147483647, %v6457
    %vm6468 = vcmp.eq.f32.partialorder %v6467, 8.507059e+37
    %v6469 = vand.u32 %v6457, 2147483648
    %v6470 = vor.u32 1.1754944e-38, %v6469
    %v6471 = vsel %vm6468, %v6470, %v6466
    %v6472 = vmul.f32 1.0, %v6471
    %v6473 = vadd.f32 %v6391, %v6431
    %v6474 = vxor.u32 %v6473, 2147483648
    %v6475 = vmul.f32 %v6474, 1.442695
    %v6476 = vpow.pop %v6475
    %v6477 = vadd.f32 %v6476, 1.0
    %v6478 = vrcp.pop %v6477
    %v6479 = vmul.f32 %v6477, %v6478
    %v6480 = vsub.f32 1.0, %v6479
    %v6481 = vmul.f32 %v6478, %v6480
    %v6482 = vadd.f32 %v6478, %v6481
    %vm6483 = vweird.f32 %v6477
    %vm6484 = vweird.f32 %v6478
    %vm6485 = vmor %vm6483, %vm6484
    %v6486 = vsel %vm6485, %v6478, %v6482
    %v6487 = vand.u32 2147483647, %v6477
    %vm6488 = vcmp.eq.f32.partialorder %v6487, 8.507059e+37
    %v6489 = vand.u32 %v6477, 2147483648
    %v6490 = vor.u32 1.1754944e-38, %v6489
    %v6491 = vsel %vm6488, %v6490, %v6486
    %v6492 = vmul.f32 1.0, %v6491
    %v6493 = vadd.f32 %v6451, %v6158
    %v6494 = vmul.f32 %v6472, %v6493
    %v6495 = vadd.f32 %v6392, %v6494
    %v6496 = vtanh.pop %v6495
    %v6497 = vsub.f32 1.0, %v6492
    %v6498 = vmul.f32 %v6497, %v6496
    %v6499 = vmul.f32 %v6492, %v6389
    %v6500 = vadd.f32 %v6498, %v6499
    %v6501 = vld [vmem:[#allocation2 + $0xc0] sm:$0xff]
    %v6502 = vld [vmem:[#allocation2 + $0xc8] sm:$0xff]
    %v6503 = vld [vmem:[#allocation2 + $0xd0] sm:$0xff]
    %6504 = vmatpush.msra.mxu0 %v6046
    %6505 = vmatpush.msra.mxu0 %v6040
    %6506 = vmatpush.msra.mxu0 %v6034
    %6507 = vmatpush.msra.mxu0 %v6028
    %6508 = vmatpush.msra.mxu0 %v6022
    %6509 = vmatpush.msra.mxu0 %v6016
    %6510 = vmatpush.msra.mxu0 %v6010
    %6511 = vmatpush.msra.mxu0 %v6004
    %6512 = vmatpush.msra.mxu0 %v5998
    %6513 = vmatpush.msra.mxu0 %v5992
    %6514 = vmatpush.msra.mxu0 %v5986
    %6515 = vmatpush.msra.mxu0 %v5980
    %6516 = vmatpush.msra.mxu0 %v5974
    %6517 = vmatpush.msra.mxu0 %v5968
    %6518 = vmatpush.msra.mxu0 %v5962
    %6519 = vmatpush.msra.mxu0 %v5956
    %6520 = vmatmul.f32.gmra.mxu0 %v6500
    %v6521 = vpop.f32.mrf.mxu0
    %v6522 = vadd.f32 0.0, %v6521
    %6523 = vdwg.mxu0
    %6524 = vmatpush.msra.mxu0 %v6047
    %6525 = vmatpush.msra.mxu0 %v6041
    %6526 = vmatpush.msra.mxu0 %v6035
    %6527 = vmatpush.msra.mxu0 %v6029
    %6528 = vmatpush.msra.mxu0 %v6023
    %6529 = vmatpush.msra.mxu0 %v6017
    %6530 = vmatpush.msra.mxu0 %v6011
    %6531 = vmatpush.msra.mxu0 %v6005
    %6532 = vmatpush.msra.mxu0 %v5999
    %6533 = vmatpush.msra.mxu0 %v5993
    %6534 = vmatpush.msra.mxu0 %v5987
    %6535 = vmatpush.msra.mxu0 %v5981
    %6536 = vmatpush.msra.mxu0 %v5975
    %6537 = vmatpush.msra.mxu0 %v5969
    %6538 = vmatpush.msra.mxu0 %v5963
    %6539 = vmatpush.msra.mxu0 %v5957
    %6540 = vmatmul.f32.gmra.mxu0 %v6500
    %v6541 = vpop.f32.mrf.mxu0
    %v6542 = vadd.f32 0.0, %v6541
    %6543 = vdwg.mxu0
    %6544 = vmatpush.msra.mxu0 %v6048
    %6545 = vmatpush.msra.mxu0 %v6042
    %6546 = vmatpush.msra.mxu0 %v6036
    %6547 = vmatpush.msra.mxu0 %v6030
    %6548 = vmatpush.msra.mxu0 %v6024
    %6549 = vmatpush.msra.mxu0 %v6018
    %6550 = vmatpush.msra.mxu0 %v6012
    %6551 = vmatpush.msra.mxu0 %v6006
    %6552 = vmatpush.msra.mxu0 %v6000
    %6553 = vmatpush.msra.mxu0 %v5994
    %6554 = vmatpush.msra.mxu0 %v5988
    %6555 = vmatpush.msra.mxu0 %v5982
    %6556 = vmatpush.msra.mxu0 %v5976
    %6557 = vmatpush.msra.mxu0 %v5970
    %6558 = vmatpush.msra.mxu0 %v5964
    %6559 = vmatpush.msra.mxu0 %v5958
    %6560 = vmatmul.f32.gmra.mxu0 %v6500
    %v6561 = vpop.f32.mrf.mxu0
    %v6562 = vadd.f32 0.0, %v6561
    %6563 = vdwg.mxu0
    %v6564 = vadd.f32 %v6501, %v6522
    %v6565 = vxor.u32 %v6564, 2147483648
    %v6566 = vmul.f32 %v6565, 1.442695
    %v6567 = vpow.pop %v6566
    %v6568 = vadd.f32 %v6567, 1.0
    %v6569 = vrcp.pop %v6568
    %v6570 = vmul.f32 %v6568, %v6569
    %v6571 = vsub.f32 1.0, %v6570
    %v6572 = vmul.f32 %v6569, %v6571
    %v6573 = vadd.f32 %v6569, %v6572
    %vm6574 = vweird.f32 %v6568
    %vm6575 = vweird.f32 %v6569
    %vm6576 = vmor %vm6574, %vm6575
    %v6577 = vsel %vm6576, %v6569, %v6573
    %v6578 = vand.u32 2147483647, %v6568
    %vm6579 = vcmp.eq.f32.partialorder %v6578, 8.507059e+37
    %v6580 = vand.u32 %v6568, 2147483648
    %v6581 = vor.u32 1.1754944e-38, %v6580
    %v6582 = vsel %vm6579, %v6581, %v6577
    %v6583 = vmul.f32 1.0, %v6582
    %v6584 = vadd.f32 %v6502, %v6542
    %v6585 = vxor.u32 %v6584, 2147483648
    %v6586 = vmul.f32 %v6585, 1.442695
    %v6587 = vpow.pop %v6586
    %v6588 = vadd.f32 %v6587, 1.0
    %v6589 = vrcp.pop %v6588
    %v6590 = vmul.f32 %v6588, %v6589
    %v6591 = vsub.f32 1.0, %v6590
    %v6592 = vmul.f32 %v6589, %v6591
    %v6593 = vadd.f32 %v6589, %v6592
    %vm6594 = vweird.f32 %v6588
    %vm6595 = vweird.f32 %v6589
    %vm6596 = vmor %vm6594, %vm6595
    %v6597 = vsel %vm6596, %v6589, %v6593
    %v6598 = vand.u32 2147483647, %v6588
    %vm6599 = vcmp.eq.f32.partialorder %v6598, 8.507059e+37
    %v6600 = vand.u32 %v6588, 2147483648
    %v6601 = vor.u32 1.1754944e-38, %v6600
    %v6602 = vsel %vm6599, %v6601, %v6597
    %v6603 = vmul.f32 1.0, %v6602
    %v6604 = vadd.f32 %v6562, %v6158
    %v6605 = vmul.f32 %v6583, %v6604
    %v6606 = vadd.f32 %v6503, %v6605
    %v6607 = vtanh.pop %v6606
    %v6608 = vsub.f32 1.0, %v6603
    %v6609 = vmul.f32 %v6608, %v6607
    %v6610 = vmul.f32 %v6603, %v6500
    %v6611 = vadd.f32 %v6609, %v6610
    %v6612 = vld [vmem:[#allocation2 + $0xf0] sm:$0xff]
    %v6613 = vld [vmem:[#allocation2 + $0xf8] sm:$0xff]
    %v6614 = vld [vmem:[#allocation2 + $0x100] sm:$0xff]
    %6615 = vmatpush.msra.mxu0 %v6046
    %6616 = vmatpush.msra.mxu0 %v6040
    %6617 = vmatpush.msra.mxu0 %v6034
    %6618 = vmatpush.msra.mxu0 %v6028
    %6619 = vmatpush.msra.mxu0 %v6022
    %6620 = vmatpush.msra.mxu0 %v6016
    %6621 = vmatpush.msra.mxu0 %v6010
    %6622 = vmatpush.msra.mxu0 %v6004
    %6623 = vmatpush.msra.mxu0 %v5998
    %6624 = vmatpush.msra.mxu0 %v5992
    %6625 = vmatpush.msra.mxu0 %v5986
    %6626 = vmatpush.msra.mxu0 %v5980
    %6627 = vmatpush.msra.mxu0 %v5974
    %6628 = vmatpush.msra.mxu0 %v5968
    %6629 = vmatpush.msra.mxu0 %v5962
    %6630 = vmatpush.msra.mxu0 %v5956
    %6631 = vmatmul.f32.gmra.mxu0 %v6611
    %v6632 = vpop.f32.mrf.mxu0
    %v6633 = vadd.f32 0.0, %v6632
    %6634 = vdwg.mxu0
    %6635 = vmatpush.msra.mxu0 %v6047
    %6636 = vmatpush.msra.mxu0 %v6041
    %6637 = vmatpush.msra.mxu0 %v6035
    %6638 = vmatpush.msra.mxu0 %v6029
    %6639 = vmatpush.msra.mxu0 %v6023
    %6640 = vmatpush.msra.mxu0 %v6017
    %6641 = vmatpush.msra.mxu0 %v6011
    %6642 = vmatpush.msra.mxu0 %v6005
    %6643 = vmatpush.msra.mxu0 %v5999
    %6644 = vmatpush.msra.mxu0 %v5993
    %6645 = vmatpush.msra.mxu0 %v5987
    %6646 = vmatpush.msra.mxu0 %v5981
    %6647 = vmatpush.msra.mxu0 %v5975
    %6648 = vmatpush.msra.mxu0 %v5969
    %6649 = vmatpush.msra.mxu0 %v5963
    %6650 = vmatpush.msra.mxu0 %v5957
    %6651 = vmatmul.f32.gmra.mxu0 %v6611
    %v6652 = vpop.f32.mrf.mxu0
    %v6653 = vadd.f32 0.0, %v6652
    %6654 = vdwg.mxu0
    %6655 = vmatpush.msra.mxu0 %v6048
    %6656 = vmatpush.msra.mxu0 %v6042
    %6657 = vmatpush.msra.mxu0 %v6036
    %6658 = vmatpush.msra.mxu0 %v6030
    %6659 = vmatpush.msra.mxu0 %v6024
    %6660 = vmatpush.msra.mxu0 %v6018
    %6661 = vmatpush.msra.mxu0 %v6012
    %6662 = vmatpush.msra.mxu0 %v6006
    %6663 = vmatpush.msra.mxu0 %v6000
    %6664 = vmatpush.msra.mxu0 %v5994
    %6665 = vmatpush.msra.mxu0 %v5988
    %6666 = vmatpush.msra.mxu0 %v5982
    %6667 = vmatpush.msra.mxu0 %v5976
    %6668 = vmatpush.msra.mxu0 %v5970
    %6669 = vmatpush.msra.mxu0 %v5964
    %6670 = vmatpush.msra.mxu0 %v5958
    %6671 = vmatmul.f32.gmra.mxu0 %v6611
    %v6672 = vpop.f32.mrf.mxu0
    %v6673 = vadd.f32 0.0, %v6672
    %6674 = vdwg.mxu0
    %v6675 = vadd.f32 %v6612, %v6633
    %v6676 = vxor.u32 %v6675, 2147483648
    %v6677 = vmul.f32 %v6676, 1.442695
    %v6678 = vpow.pop %v6677
    %v6679 = vadd.f32 %v6678, 1.0
    %v6680 = vrcp.pop %v6679
    %v6681 = vmul.f32 %v6679, %v6680
    %v6682 = vsub.f32 1.0, %v6681
    %v6683 = vmul.f32 %v6680, %v6682
    %v6684 = vadd.f32 %v6680, %v6683
    %vm6685 = vweird.f32 %v6679
    %vm6686 = vweird.f32 %v6680
    %vm6687 = vmor %vm6685, %vm6686
    %v6688 = vsel %vm6687, %v6680, %v6684
    %v6689 = vand.u32 2147483647, %v6679
    %vm6690 = vcmp.eq.f32.partialorder %v6689, 8.507059e+37
    %v6691 = vand.u32 %v6679, 2147483648
    %v6692 = vor.u32 1.1754944e-38, %v6691
    %v6693 = vsel %vm6690, %v6692, %v6688
    %v6694 = vmul.f32 1.0, %v6693
    %v6695 = vadd.f32 %v6613, %v6653
    %v6696 = vxor.u32 %v6695, 2147483648
    %v6697 = vmul.f32 %v6696, 1.442695
    %v6698 = vpow.pop %v6697
    %v6699 = vadd.f32 %v6698, 1.0
    %v6700 = vrcp.pop %v6699
    %v6701 = vmul.f32 %v6699, %v6700
    %v6702 = vsub.f32 1.0, %v6701
    %v6703 = vmul.f32 %v6700, %v6702
    %v6704 = vadd.f32 %v6700, %v6703
    %vm6705 = vweird.f32 %v6699
    %vm6706 = vweird.f32 %v6700
    %vm6707 = vmor %vm6705, %vm6706
    %v6708 = vsel %vm6707, %v6700, %v6704
    %v6709 = vand.u32 2147483647, %v6699
    %vm6710 = vcmp.eq.f32.partialorder %v6709, 8.507059e+37
    %v6711 = vand.u32 %v6699, 2147483648
    %v6712 = vor.u32 1.1754944e-38, %v6711
    %v6713 = vsel %vm6710, %v6712, %v6708
    %v6714 = vmul.f32 1.0, %v6713
    %v6715 = vadd.f32 %v6673, %v6158
    %v6716 = vmul.f32 %v6694, %v6715
    %v6717 = vadd.f32 %v6614, %v6716
    %v6718 = vtanh.pop %v6717
    %v6719 = vsub.f32 1.0, %v6714
    %v6720 = vmul.f32 %v6719, %v6718
    %v6721 = vmul.f32 %v6714, %v6611
    %v6722 = vadd.f32 %v6720, %v6721
    %v6723 = vld [vmem:[#allocation2 + $0x120] sm:$0xff]
    %v6724 = vld [vmem:[#allocation2 + $0x128] sm:$0xff]
    %v6725 = vld [vmem:[#allocation2 + $0x130] sm:$0xff]
    %6726 = vmatpush.msra.mxu0 %v6046
    %6727 = vmatpush.msra.mxu0 %v6040
    %6728 = vmatpush.msra.mxu0 %v6034
    %6729 = vmatpush.msra.mxu0 %v6028
    %6730 = vmatpush.msra.mxu0 %v6022
    %6731 = vmatpush.msra.mxu0 %v6016
    %6732 = vmatpush.msra.mxu0 %v6010
    %6733 = vmatpush.msra.mxu0 %v6004
    %6734 = vmatpush.msra.mxu0 %v5998
    %6735 = vmatpush.msra.mxu0 %v5992
    %6736 = vmatpush.msra.mxu0 %v5986
    %6737 = vmatpush.msra.mxu0 %v5980
    %6738 = vmatpush.msra.mxu0 %v5974
    %6739 = vmatpush.msra.mxu0 %v5968
    %6740 = vmatpush.msra.mxu0 %v5962
    %6741 = vmatpush.msra.mxu0 %v5956
    %6742 = vmatmul.f32.gmra.mxu0 %v6722
    %v6743 = vpop.f32.mrf.mxu0
    %v6744 = vadd.f32 0.0, %v6743
    %6745 = vdwg.mxu0
    %6746 = vmatpush.msra.mxu0 %v6047
    %6747 = vmatpush.msra.mxu0 %v6041
    %6748 = vmatpush.msra.mxu0 %v6035
    %6749 = vmatpush.msra.mxu0 %v6029
    %6750 = vmatpush.msra.mxu0 %v6023
    %6751 = vmatpush.msra.mxu0 %v6017
    %6752 = vmatpush.msra.mxu0 %v6011
    %6753 = vmatpush.msra.mxu0 %v6005
    %6754 = vmatpush.msra.mxu0 %v5999
    %6755 = vmatpush.msra.mxu0 %v5993
    %6756 = vmatpush.msra.mxu0 %v5987
    %6757 = vmatpush.msra.mxu0 %v5981
    %6758 = vmatpush.msra.mxu0 %v5975
    %6759 = vmatpush.msra.mxu0 %v5969
    %6760 = vmatpush.msra.mxu0 %v5963
    %6761 = vmatpush.msra.mxu0 %v5957
    %6762 = vmatmul.f32.gmra.mxu0 %v6722
    %v6763 = vpop.f32.mrf.mxu0
    %v6764 = vadd.f32 0.0, %v6763
    %6765 = vdwg.mxu0
    %6766 = vmatpush.msra.mxu0 %v6048
    %6767 = vmatpush.msra.mxu0 %v6042
    %6768 = vmatpush.msra.mxu0 %v6036
    %6769 = vmatpush.msra.mxu0 %v6030
    %6770 = vmatpush.msra.mxu0 %v6024
    %6771 = vmatpush.msra.mxu0 %v6018
    %6772 = vmatpush.msra.mxu0 %v6012
    %6773 = vmatpush.msra.mxu0 %v6006
    %6774 = vmatpush.msra.mxu0 %v6000
    %6775 = vmatpush.msra.mxu0 %v5994
    %6776 = vmatpush.msra.mxu0 %v5988
    %6777 = vmatpush.msra.mxu0 %v5982
    %6778 = vmatpush.msra.mxu0 %v5976
    %6779 = vmatpush.msra.mxu0 %v5970
    %6780 = vmatpush.msra.mxu0 %v5964
    %6781 = vmatpush.msra.mxu0 %v5958
    %6782 = vmatmul.f32.gmra.mxu0 %v6722
    %v6783 = vpop.f32.mrf.mxu0
    %v6784 = vadd.f32 0.0, %v6783
    %6785 = vdwg.mxu0
    %v6786 = vadd.f32 %v6723, %v6744
    %v6787 = vxor.u32 %v6786, 2147483648
    %v6788 = vmul.f32 %v6787, 1.442695
    %v6789 = vpow.pop %v6788
    %v6790 = vadd.f32 %v6789, 1.0
    %v6791 = vrcp.pop %v6790
    %v6792 = vmul.f32 %v6790, %v6791
    %v6793 = vsub.f32 1.0, %v6792
    %v6794 = vmul.f32 %v6791, %v6793
    %v6795 = vadd.f32 %v6791, %v6794
    %vm6796 = vweird.f32 %v6790
    %vm6797 = vweird.f32 %v6791
    %vm6798 = vmor %vm6796, %vm6797
    %v6799 = vsel %vm6798, %v6791, %v6795
    %v6800 = vand.u32 2147483647, %v6790
    %vm6801 = vcmp.eq.f32.partialorder %v6800, 8.507059e+37
    %v6802 = vand.u32 %v6790, 2147483648
    %v6803 = vor.u32 1.1754944e-38, %v6802
    %v6804 = vsel %vm6801, %v6803, %v6799
    %v6805 = vmul.f32 1.0, %v6804
    %v6806 = vadd.f32 %v6724, %v6764
    %v6807 = vxor.u32 %v6806, 2147483648
    %v6808 = vmul.f32 %v6807, 1.442695
    %v6809 = vpow.pop %v6808
    %v6810 = vadd.f32 %v6809, 1.0
    %v6811 = vrcp.pop %v6810
    %v6812 = vmul.f32 %v6810, %v6811
    %v6813 = vsub.f32 1.0, %v6812
    %v6814 = vmul.f32 %v6811, %v6813
    %v6815 = vadd.f32 %v6811, %v6814
    %vm6816 = vweird.f32 %v6810
    %vm6817 = vweird.f32 %v6811
    %vm6818 = vmor %vm6816, %vm6817
    %v6819 = vsel %vm6818, %v6811, %v6815
    %v6820 = vand.u32 2147483647, %v6810
    %vm6821 = vcmp.eq.f32.partialorder %v6820, 8.507059e+37
    %v6822 = vand.u32 %v6810, 2147483648
    %v6823 = vor.u32 1.1754944e-38, %v6822
    %v6824 = vsel %vm6821, %v6823, %v6819
    %v6825 = vmul.f32 1.0, %v6824
    %v6826 = vadd.f32 %v6784, %v6158
    %v6827 = vmul.f32 %v6805, %v6826
    %v6828 = vadd.f32 %v6725, %v6827
    %v6829 = vtanh.pop %v6828
    %v6830 = vsub.f32 1.0, %v6825
    %v6831 = vmul.f32 %v6830, %v6829
    %v6832 = vmul.f32 %v6825, %v6722
    %v6833 = vadd.f32 %v6831, %v6832
    %v6834 = vld [vmem:[#allocation2 + $0x150] sm:$0xff]
    %v6835 = vld [vmem:[#allocation2 + $0x158] sm:$0xff]
    %v6836 = vld [vmem:[#allocation2 + $0x160] sm:$0xff]
    %6837 = vmatpush.msra.mxu0 %v6046
    %6838 = vmatpush.msra.mxu0 %v6040
    %6839 = vmatpush.msra.mxu0 %v6034
    %6840 = vmatpush.msra.mxu0 %v6028
    %6841 = vmatpush.msra.mxu0 %v6022
    %6842 = vmatpush.msra.mxu0 %v6016
    %6843 = vmatpush.msra.mxu0 %v6010
    %6844 = vmatpush.msra.mxu0 %v6004
    %6845 = vmatpush.msra.mxu0 %v5998
    %6846 = vmatpush.msra.mxu0 %v5992
    %6847 = vmatpush.msra.mxu0 %v5986
    %6848 = vmatpush.msra.mxu0 %v5980
    %6849 = vmatpush.msra.mxu0 %v5974
    %6850 = vmatpush.msra.mxu0 %v5968
    %6851 = vmatpush.msra.mxu0 %v5962
    %6852 = vmatpush.msra.mxu0 %v5956
    %6853 = vmatmul.f32.gmra.mxu0 %v6833
    %v6854 = vpop.f32.mrf.mxu0
    %v6855 = vadd.f32 0.0, %v6854
    %6856 = vdwg.mxu0
    %6857 = vmatpush.msra.mxu0 %v6047
    %6858 = vmatpush.msra.mxu0 %v6041
    %6859 = vmatpush.msra.mxu0 %v6035
    %6860 = vmatpush.msra.mxu0 %v6029
    %6861 = vmatpush.msra.mxu0 %v6023
    %6862 = vmatpush.msra.mxu0 %v6017
    %6863 = vmatpush.msra.mxu0 %v6011
    %6864 = vmatpush.msra.mxu0 %v6005
    %6865 = vmatpush.msra.mxu0 %v5999
    %6866 = vmatpush.msra.mxu0 %v5993
    %6867 = vmatpush.msra.mxu0 %v5987
    %6868 = vmatpush.msra.mxu0 %v5981
    %6869 = vmatpush.msra.mxu0 %v5975
    %6870 = vmatpush.msra.mxu0 %v5969
    %6871 = vmatpush.msra.mxu0 %v5963
    %6872 = vmatpush.msra.mxu0 %v5957
    %6873 = vmatmul.f32.gmra.mxu0 %v6833
    %v6874 = vpop.f32.mrf.mxu0
    %v6875 = vadd.f32 0.0, %v6874
    %6876 = vdwg.mxu0
    %6877 = vmatpush.msra.mxu0 %v6048
    %6878 = vmatpush.msra.mxu0 %v6042
    %6879 = vmatpush.msra.mxu0 %v6036
    %6880 = vmatpush.msra.mxu0 %v6030
    %6881 = vmatpush.msra.mxu0 %v6024
    %6882 = vmatpush.msra.mxu0 %v6018
    %6883 = vmatpush.msra.mxu0 %v6012
    %6884 = vmatpush.msra.mxu0 %v6006
    %6885 = vmatpush.msra.mxu0 %v6000
    %6886 = vmatpush.msra.mxu0 %v5994
    %6887 = vmatpush.msra.mxu0 %v5988
    %6888 = vmatpush.msra.mxu0 %v5982
    %6889 = vmatpush.msra.mxu0 %v5976
    %6890 = vmatpush.msra.mxu0 %v5970
    %6891 = vmatpush.msra.mxu0 %v5964
    %6892 = vmatpush.msra.mxu0 %v5958
    %6893 = vmatmul.f32.gmra.mxu0 %v6833
    %v6894 = vpop.f32.mrf.mxu0
    %v6895 = vadd.f32 0.0, %v6894
    %6896 = vdwg.mxu0
    %v6897 = vadd.f32 %v6834, %v6855
    %v6898 = vxor.u32 %v6897, 2147483648
    %v6899 = vmul.f32 %v6898, 1.442695
    %v6900 = vpow.pop %v6899
    %v6901 = vadd.f32 %v6900, 1.0
    %v6902 = vrcp.pop %v6901
    %v6903 = vmul.f32 %v6901, %v6902
    %v6904 = vsub.f32 1.0, %v6903
    %v6905 = vmul.f32 %v6902, %v6904
    %v6906 = vadd.f32 %v6902, %v6905
    %vm6907 = vweird.f32 %v6901
    %vm6908 = vweird.f32 %v6902
    %vm6909 = vmor %vm6907, %vm6908
    %v6910 = vsel %vm6909, %v6902, %v6906
    %v6911 = vand.u32 2147483647, %v6901
    %vm6912 = vcmp.eq.f32.partialorder %v6911, 8.507059e+37
    %v6913 = vand.u32 %v6901, 2147483648
    %v6914 = vor.u32 1.1754944e-38, %v6913
    %v6915 = vsel %vm6912, %v6914, %v6910
    %v6916 = vmul.f32 1.0, %v6915
    %v6917 = vadd.f32 %v6835, %v6875
    %v6918 = vxor.u32 %v6917, 2147483648
    %v6919 = vmul.f32 %v6918, 1.442695
    %v6920 = vpow.pop %v6919
    %v6921 = vadd.f32 %v6920, 1.0
    %v6922 = vrcp.pop %v6921
    %v6923 = vmul.f32 %v6921, %v6922
    %v6924 = vsub.f32 1.0, %v6923
    %v6925 = vmul.f32 %v6922, %v6924
    %v6926 = vadd.f32 %v6922, %v6925
    %vm6927 = vweird.f32 %v6921
    %vm6928 = vweird.f32 %v6922
    %vm6929 = vmor %vm6927, %vm6928
    %v6930 = vsel %vm6929, %v6922, %v6926
    %v6931 = vand.u32 2147483647, %v6921
    %vm6932 = vcmp.eq.f32.partialorder %v6931, 8.507059e+37
    %v6933 = vand.u32 %v6921, 2147483648
    %v6934 = vor.u32 1.1754944e-38, %v6933
    %v6935 = vsel %vm6932, %v6934, %v6930
    %v6936 = vmul.f32 1.0, %v6935
    %v6937 = vadd.f32 %v6895, %v6158
    %v6938 = vmul.f32 %v6916, %v6937
    %v6939 = vadd.f32 %v6836, %v6938
    %v6940 = vtanh.pop %v6939
    %v6941 = vsub.f32 1.0, %v6936
    %v6942 = vmul.f32 %v6941, %v6940
    %v6943 = vmul.f32 %v6936, %v6833
    %v6944 = vadd.f32 %v6942, %v6943
    %v6945 = vld [vmem:[#allocation10 + $0xc] sm:$0xff]
    %v6946 = vld [vmem:[#allocation10 + $0x14] sm:$0xf]
    %v6947 = vld [vmem:[#allocation10 + $0x24] sm:$0xff]
    %v6948 = vld [vmem:[#allocation10 + $0x2c] sm:$0xf]
    %v6949 = vld [vmem:[#allocation10 + $0x3c] sm:$0xff]
    %v6950 = vld [vmem:[#allocation10 + $0x44] sm:$0xf]
    %v6951 = vld [vmem:[#allocation10 + $0x54] sm:$0xff]
    %v6952 = vld [vmem:[#allocation10 + $0x5c] sm:$0xf]
    %v6953 = vld [vmem:[#allocation10 + $0x6c] sm:$0xff]
    %v6954 = vld [vmem:[#allocation10 + $0x74] sm:$0xf]
    %v6955 = vld [vmem:[#allocation10 + $0x84] sm:$0xff]
    %v6956 = vld [vmem:[#allocation10 + $0x8c] sm:$0xf]
    %v6957 = vld [vmem:[#allocation10 + $0x9c] sm:$0xff]
    %v6958 = vld [vmem:[#allocation10 + $0xa4] sm:$0xf]
    %v6959 = vld [vmem:[#allocation10 + $0xb4] sm:$0xff]
    %v6960 = vld [vmem:[#allocation10 + $0xbc] sm:$0xf]
    %v6961 = vld [vmem:[#allocation10 + $0xcc] sm:$0xff]
    %v6962 = vld [vmem:[#allocation10 + $0xd4] sm:$0xf]
    %v6963 = vld [vmem:[#allocation10 + $0xe4] sm:$0xff]
    %v6964 = vld [vmem:[#allocation10 + $0xec] sm:$0xf]
    %v6965 = vld [vmem:[#allocation10 + $0xfc] sm:$0xff]
    %v6966 = vld [vmem:[#allocation10 + $0x104] sm:$0xf]
    %v6967 = vld [vmem:[#allocation10 + $0x114] sm:$0xff]
    %v6968 = vld [vmem:[#allocation10 + $0x11c] sm:$0xf]
    %v6969 = vld [vmem:[#allocation10 + $0x12c] sm:$0xff]
    %v6970 = vld [vmem:[#allocation10 + $0x134] sm:$0xf]
    %v6971 = vld [vmem:[#allocation10 + $0x144] sm:$0xff]
    %v6972 = vld [vmem:[#allocation10 + $0x14c] sm:$0xf]
    %v6973 = vld [vmem:[#allocation10 + $0x15c] sm:$0xff]
    %v6974 = vld [vmem:[#allocation10 + $0x164] sm:$0xf]
    %v6975 = vld [vmem:[#allocation10 + $0x174] sm:$0xff]
    %v6976 = vld [vmem:[#allocation10 + $0x17c] sm:$0xf]
    %v6977 = vld [vmem:[#allocation10 + $0x18c] sm:$0xff]
    %v6978 = vld [vmem:[#allocation10 + $0x194] sm:$0xf]
    %v6979 = vld [vmem:[#allocation10 + $0x1a4] sm:$0xff]
    %v6980 = vld [vmem:[#allocation10 + $0x1ac] sm:$0xf]
    %v6981 = vld [vmem:[#allocation10 + $0x1bc] sm:$0xff]
    %v6982 = vld [vmem:[#allocation10 + $0x1c4] sm:$0xf]
    %v6983 = vld [vmem:[#allocation10 + $0x1d4] sm:$0xff]
    %v6984 = vld [vmem:[#allocation10 + $0x1dc] sm:$0xf]
    %v6985 = vld [vmem:[#allocation10 + $0x1ec] sm:$0xff]
    %v6986 = vld [vmem:[#allocation10 + $0x1f4] sm:$0xf]
    %v6987 = vld [vmem:[#allocation10 + $0x204] sm:$0xff]
    %v6988 = vld [vmem:[#allocation10 + $0x20c] sm:$0xf]
    %v6989 = vld [vmem:[#allocation10 + $0x21c] sm:$0xff]
    %v6990 = vld [vmem:[#allocation10 + $0x224] sm:$0xf]
    %v6991 = vld [vmem:[#allocation10 + $0x234] sm:$0xff]
    %v6992 = vld [vmem:[#allocation10 + $0x23c] sm:$0xf]
    %v6993 = vld [vmem:[#allocation10 + $0x24c] sm:$0xff]
    %v6994 = vld [vmem:[#allocation10 + $0x254] sm:$0xf]
    %v6995 = vld [vmem:[#allocation10 + $0x264] sm:$0xff]
    %v6996 = vld [vmem:[#allocation10 + $0x26c] sm:$0xf]
    %v6997 = vld [vmem:[#allocation10 + $0x27c] sm:$0xff]
    %v6998 = vld [vmem:[#allocation10 + $0x284] sm:$0xf]
    %v6999 = vld [vmem:[#allocation10 + $0x294] sm:$0xff]
    %v7000 = vld [vmem:[#allocation10 + $0x29c] sm:$0xf]
    %v7001 = vld [vmem:[#allocation10 + $0x2ac] sm:$0xff]
    %v7002 = vld [vmem:[#allocation10 + $0x2b4] sm:$0xf]
    %v7003 = vld [vmem:[#allocation10 + $0x2c4] sm:$0xff]
    %v7004 = vld [vmem:[#allocation10 + $0x2cc] sm:$0xf]
    %v7005 = vld [vmem:[#allocation10 + $0x2dc] sm:$0xff]
    %v7006 = vld [vmem:[#allocation10 + $0x2e4] sm:$0xf]
    %v7007 = vld [vmem:[#allocation10 + $0x2f4] sm:$0xff]
    %v7008 = vld [vmem:[#allocation10 + $0x2fc] sm:$0xf]
    %v7009 = vld [vmem:[%s29 + $0x3] sm:$0x7]
    %v7011 = vperm.slane %v7009, 0
    %v7012 = vperm.slane %v7009, 1
    %v7013 = vperm.slane %v7009, 2
    %v7017 = vpack.c.b16 %v5484, %v5484
    %v7018 = vpack.c.b16 %v5485, %v5485
    %v7085 = vunpack.c.l.b16 %v6945
    %v7086 = vunpack.c.h.b16 %v6945
    %v7087 = vunpack.c.l.b16 %v6946
    %v7088 = vunpack.c.l.b16 %v6947
    %v7089 = vunpack.c.h.b16 %v6947
    %v7090 = vunpack.c.l.b16 %v6948
    %v7091 = vunpack.c.l.b16 %v6949
    %v7092 = vunpack.c.h.b16 %v6949
    %v7093 = vunpack.c.l.b16 %v6950
    %v7094 = vunpack.c.l.b16 %v6951
    %v7095 = vunpack.c.h.b16 %v6951
    %v7096 = vunpack.c.l.b16 %v6952
    %v7097 = vunpack.c.l.b16 %v6953
    %v7098 = vunpack.c.h.b16 %v6953
    %v7099 = vunpack.c.l.b16 %v6954
    %v7100 = vunpack.c.l.b16 %v6955
    %v7101 = vunpack.c.h.b16 %v6955
    %v7102 = vunpack.c.l.b16 %v6956
    %v7103 = vunpack.c.l.b16 %v6957
    %v7104 = vunpack.c.h.b16 %v6957
    %v7105 = vunpack.c.l.b16 %v6958
    %v7106 = vunpack.c.l.b16 %v6959
    %v7107 = vunpack.c.h.b16 %v6959
    %v7108 = vunpack.c.l.b16 %v6960
    %v7109 = vunpack.c.l.b16 %v6961
    %v7110 = vunpack.c.h.b16 %v6961
    %v7111 = vunpack.c.l.b16 %v6962
    %v7112 = vunpack.c.l.b16 %v6963
    %v7113 = vunpack.c.h.b16 %v6963
    %v7114 = vunpack.c.l.b16 %v6964
    %v7115 = vunpack.c.l.b16 %v6965
    %v7116 = vunpack.c.h.b16 %v6965
    %v7117 = vunpack.c.l.b16 %v6966
    %v7118 = vunpack.c.l.b16 %v6967
    %v7119 = vunpack.c.h.b16 %v6967
    %v7120 = vunpack.c.l.b16 %v6968
    %v7121 = vunpack.c.l.b16 %v6969
    %v7122 = vunpack.c.h.b16 %v6969
    %v7123 = vunpack.c.l.b16 %v6970
    %v7124 = vunpack.c.l.b16 %v6971
    %v7125 = vunpack.c.h.b16 %v6971
    %v7126 = vunpack.c.l.b16 %v6972
    %v7127 = vunpack.c.l.b16 %v6973
    %v7128 = vunpack.c.h.b16 %v6973
    %v7129 = vunpack.c.l.b16 %v6974
    %v7130 = vunpack.c.l.b16 %v6975
    %v7131 = vunpack.c.h.b16 %v6975
    %v7132 = vunpack.c.l.b16 %v6976
    %v7133 = vunpack.c.l.b16 %v6977
    %v7134 = vunpack.c.h.b16 %v6977
    %v7135 = vunpack.c.l.b16 %v6978
    %v7136 = vunpack.c.l.b16 %v6979
    %v7137 = vunpack.c.h.b16 %v6979
    %v7138 = vunpack.c.l.b16 %v6980
    %v7139 = vunpack.c.l.b16 %v6981
    %v7140 = vunpack.c.h.b16 %v6981
    %v7141 = vunpack.c.l.b16 %v6982
    %v7142 = vunpack.c.l.b16 %v6983
    %v7143 = vunpack.c.h.b16 %v6983
    %v7144 = vunpack.c.l.b16 %v6984
    %v7145 = vunpack.c.l.b16 %v6985
    %v7146 = vunpack.c.h.b16 %v6985
    %v7147 = vunpack.c.l.b16 %v6986
    %v7148 = vunpack.c.l.b16 %v6987
    %v7149 = vunpack.c.h.b16 %v6987
    %v7150 = vunpack.c.l.b16 %v6988
    %v7151 = vunpack.c.l.b16 %v6989
    %v7152 = vunpack.c.h.b16 %v6989
    %v7153 = vunpack.c.l.b16 %v6990
    %v7154 = vunpack.c.l.b16 %v6991
    %v7155 = vunpack.c.h.b16 %v6991
    %v7156 = vunpack.c.l.b16 %v6992
    %v7157 = vunpack.c.l.b16 %v6993
    %v7158 = vunpack.c.h.b16 %v6993
    %v7159 = vunpack.c.l.b16 %v6994
    %v7160 = vunpack.c.l.b16 %v6995
    %v7161 = vunpack.c.h.b16 %v6995
    %v7162 = vunpack.c.l.b16 %v6996
    %v7163 = vunpack.c.l.b16 %v6997
    %v7164 = vunpack.c.h.b16 %v6997
    %v7165 = vunpack.c.l.b16 %v6998
    %v7166 = vunpack.c.l.b16 %v6999
    %v7167 = vunpack.c.h.b16 %v6999
    %v7168 = vunpack.c.l.b16 %v7000
    %v7169 = vunpack.c.l.b16 %v7001
    %v7170 = vunpack.c.h.b16 %v7001
    %v7171 = vunpack.c.l.b16 %v7002
    %v7172 = vunpack.c.l.b16 %v7003
    %v7173 = vunpack.c.h.b16 %v7003
    %v7174 = vunpack.c.l.b16 %v7004
    %v7175 = vunpack.c.l.b16 %v7005
    %v7176 = vunpack.c.h.b16 %v7005
    %v7177 = vunpack.c.l.b16 %v7006
    %v7178 = vunpack.c.l.b16 %v7007
    %v7179 = vunpack.c.h.b16 %v7007
    %v7180 = vunpack.c.l.b16 %v7008
    %v7181 = vpack.c.b16 %v7088, %v7085
    %v7182 = vpack.c.b16 %v7089, %v7086
    %v7183 = vpack.c.b16 %v7090, %v7087
    %v7184 = vpack.c.b16 %v7094, %v7091
    %v7185 = vpack.c.b16 %v7095, %v7092
    %v7186 = vpack.c.b16 %v7096, %v7093
    %v7187 = vpack.c.b16 %v7100, %v7097
    %v7188 = vpack.c.b16 %v7101, %v7098
    %v7189 = vpack.c.b16 %v7102, %v7099
    %v7190 = vpack.c.b16 %v7106, %v7103
    %v7191 = vpack.c.b16 %v7107, %v7104
    %v7192 = vpack.c.b16 %v7108, %v7105
    %v7193 = vpack.c.b16 %v7112, %v7109
    %v7194 = vpack.c.b16 %v7113, %v7110
    %v7195 = vpack.c.b16 %v7114, %v7111
    %v7196 = vpack.c.b16 %v7118, %v7115
    %v7197 = vpack.c.b16 %v7119, %v7116
    %v7198 = vpack.c.b16 %v7120, %v7117
    %v7199 = vpack.c.b16 %v7124, %v7121
    %v7200 = vpack.c.b16 %v7125, %v7122
    %v7201 = vpack.c.b16 %v7126, %v7123
    %v7202 = vpack.c.b16 %v7130, %v7127
    %v7203 = vpack.c.b16 %v7131, %v7128
    %v7204 = vpack.c.b16 %v7132, %v7129
    %v7205 = vpack.c.b16 %v7136, %v7133
    %v7206 = vpack.c.b16 %v7137, %v7134
    %v7207 = vpack.c.b16 %v7138, %v7135
    %v7208 = vpack.c.b16 %v7142, %v7139
    %v7209 = vpack.c.b16 %v7143, %v7140
    %v7210 = vpack.c.b16 %v7144, %v7141
    %v7211 = vpack.c.b16 %v7148, %v7145
    %v7212 = vpack.c.b16 %v7149, %v7146
    %v7213 = vpack.c.b16 %v7150, %v7147
    %v7214 = vpack.c.b16 %v7154, %v7151
    %v7215 = vpack.c.b16 %v7155, %v7152
    %v7216 = vpack.c.b16 %v7156, %v7153
    %v7217 = vpack.c.b16 %v7160, %v7157
    %v7218 = vpack.c.b16 %v7161, %v7158
    %v7219 = vpack.c.b16 %v7162, %v7159
    %v7220 = vpack.c.b16 %v7166, %v7163
    %v7221 = vpack.c.b16 %v7167, %v7164
    %v7222 = vpack.c.b16 %v7168, %v7165
    %v7223 = vpack.c.b16 %v7172, %v7169
    %v7224 = vpack.c.b16 %v7173, %v7170
    %v7225 = vpack.c.b16 %v7174, %v7171
    %v7226 = vpack.c.b16 %v7178, %v7175
    %v7227 = vpack.c.b16 %v7179, %v7176
    %v7228 = vpack.c.b16 %v7180, %v7177
    %7277 = vmatpush.bf16.msra.mxu0 %v7202
    %7278 = vmatpush.bf16.msra.mxu0 %v7199
    %7279 = vmatpush.bf16.msra.mxu0 %v7196
    %7280 = vmatpush.bf16.msra.mxu0 %v7193
    %7281 = vmatpush.bf16.msra.mxu0 %v7190
    %7282 = vmatpush.bf16.msra.mxu0 %v7187
    %7283 = vmatpush.bf16.msra.mxu0 %v7184
    %7284 = vmatpush.bf16.msra.mxu0 %v7181
    %7285 = vmatmul.bf16.gmra.mxu0 %v7017
    %v7286 = vpop.f32.mrf.mxu0
    %v7287 = vadd.f32 %v7011, %v7286
    %v7288 = vpop.f32.mrf.mxu0
    %7289 = vdwg.mxu0
    %7290 = vmatpush.bf16.msra.mxu0 %v7226
    %7291 = vmatpush.bf16.msra.mxu0 %v7223
    %7292 = vmatpush.bf16.msra.mxu0 %v7220
    %7293 = vmatpush.bf16.msra.mxu0 %v7217
    %7294 = vmatpush.bf16.msra.mxu0 %v7214
    %7295 = vmatpush.bf16.msra.mxu0 %v7211
    %7296 = vmatpush.bf16.msra.mxu0 %v7208
    %7297 = vmatpush.bf16.msra.mxu0 %v7205
    %7298 = vmatmul.bf16.gmra.mxu0 %v7018
    %v7299 = vpop.f32.mrf.mxu0
    %v7300 = vadd.f32 %v7287, %v7299
    %v7301 = vpop.f32.mrf.mxu0
    %7302 = vdwg.mxu0
    %7303 = vmatpush.bf16.msra.mxu0 %v7203
    %7304 = vmatpush.bf16.msra.mxu0 %v7200
    %7305 = vmatpush.bf16.msra.mxu0 %v7197
    %7306 = vmatpush.bf16.msra.mxu0 %v7194
    %7307 = vmatpush.bf16.msra.mxu0 %v7191
    %7308 = vmatpush.bf16.msra.mxu0 %v7188
    %7309 = vmatpush.bf16.msra.mxu0 %v7185
    %7310 = vmatpush.bf16.msra.mxu0 %v7182
    %7311 = vmatmul.bf16.gmra.mxu0 %v7017
    %v7312 = vpop.f32.mrf.mxu0
    %v7313 = vadd.f32 %v7012, %v7312
    %v7314 = vpop.f32.mrf.mxu0
    %7315 = vdwg.mxu0
    %7316 = vmatpush.bf16.msra.mxu0 %v7227
    %7317 = vmatpush.bf16.msra.mxu0 %v7224
    %7318 = vmatpush.bf16.msra.mxu0 %v7221
    %7319 = vmatpush.bf16.msra.mxu0 %v7218
    %7320 = vmatpush.bf16.msra.mxu0 %v7215
    %7321 = vmatpush.bf16.msra.mxu0 %v7212
    %7322 = vmatpush.bf16.msra.mxu0 %v7209
    %7323 = vmatpush.bf16.msra.mxu0 %v7206
    %7324 = vmatmul.bf16.gmra.mxu0 %v7018
    %v7325 = vpop.f32.mrf.mxu0
    %v7326 = vadd.f32 %v7313, %v7325
    %v7327 = vpop.f32.mrf.mxu0
    %7328 = vdwg.mxu0
    %7329 = vmatpush.bf16.msra.mxu0 %v7204
    %7330 = vmatpush.bf16.msra.mxu0 %v7201
    %7331 = vmatpush.bf16.msra.mxu0 %v7198
    %7332 = vmatpush.bf16.msra.mxu0 %v7195
    %7333 = vmatpush.bf16.msra.mxu0 %v7192
    %7334 = vmatpush.bf16.msra.mxu0 %v7189
    %7335 = vmatpush.bf16.msra.mxu0 %v7186
    %7336 = vmatpush.bf16.msra.mxu0 %v7183
    %7337 = vmatmul.bf16.gmra.mxu0 %v7017
    %v7338 = vpop.f32.mrf.mxu0
    %v7339 = vadd.f32 %v7013, %v7338
    %v7340 = vpop.f32.mrf.mxu0
    %7341 = vdwg.mxu0
    %7342 = vmatpush.bf16.msra.mxu0 %v7228
    %7343 = vmatpush.bf16.msra.mxu0 %v7225
    %7344 = vmatpush.bf16.msra.mxu0 %v7222
    %7345 = vmatpush.bf16.msra.mxu0 %v7219
    %7346 = vmatpush.bf16.msra.mxu0 %v7216
    %7347 = vmatpush.bf16.msra.mxu0 %v7213
    %7348 = vmatpush.bf16.msra.mxu0 %v7210
    %7349 = vmatpush.bf16.msra.mxu0 %v7207
    %7350 = vmatmul.bf16.gmra.mxu0 %v7018
    %v7351 = vpop.f32.mrf.mxu0
    %v7352 = vadd.f32 %v7339, %v7351
    %v7353 = vpop.f32.mrf.mxu0
    %7354 = vdwg.mxu0
    %7355 = vmatpush.msra.mxu0 %v6049
    %7356 = vmatpush.msra.mxu0 %v6043
    %7357 = vmatpush.msra.mxu0 %v6037
    %7358 = vmatpush.msra.mxu0 %v6031
    %7359 = vmatpush.msra.mxu0 %v6025
    %7360 = vmatpush.msra.mxu0 %v6019
    %7361 = vmatpush.msra.mxu0 %v6013
    %7362 = vmatpush.msra.mxu0 %v6007
    %7363 = vmatpush.msra.mxu0 %v6001
    %7364 = vmatpush.msra.mxu0 %v5995
    %7365 = vmatpush.msra.mxu0 %v5989
    %7366 = vmatpush.msra.mxu0 %v5983
    %7367 = vmatpush.msra.mxu0 %v5977
    %7368 = vmatpush.msra.mxu0 %v5971
    %7369 = vmatpush.msra.mxu0 %v5965
    %7370 = vmatpush.msra.mxu0 %v5959
    %7371 = vmatmul.f32.gmra.mxu0 %v5389
    %v7372 = vpop.f32.mrf.mxu0
    %v7373 = vadd.f32 0.0, %v7372
    %7374 = vdwg.mxu0
    %7375 = vmatpush.msra.mxu0 %v6050
    %7376 = vmatpush.msra.mxu0 %v6044
    %7377 = vmatpush.msra.mxu0 %v6038
    %7378 = vmatpush.msra.mxu0 %v6032
    %7379 = vmatpush.msra.mxu0 %v6026
    %7380 = vmatpush.msra.mxu0 %v6020
    %7381 = vmatpush.msra.mxu0 %v6014
    %7382 = vmatpush.msra.mxu0 %v6008
    %7383 = vmatpush.msra.mxu0 %v6002
    %7384 = vmatpush.msra.mxu0 %v5996
    %7385 = vmatpush.msra.mxu0 %v5990
    %7386 = vmatpush.msra.mxu0 %v5984
    %7387 = vmatpush.msra.mxu0 %v5978
    %7388 = vmatpush.msra.mxu0 %v5972
    %7389 = vmatpush.msra.mxu0 %v5966
    %7390 = vmatpush.msra.mxu0 %v5960
    %7391 = vmatmul.f32.gmra.mxu0 %v5389
    %v7392 = vpop.f32.mrf.mxu0
    %v7393 = vadd.f32 0.0, %v7392
    %7394 = vdwg.mxu0
    %7395 = vmatpush.msra.mxu0 %v6051
    %7396 = vmatpush.msra.mxu0 %v6045
    %7397 = vmatpush.msra.mxu0 %v6039
    %7398 = vmatpush.msra.mxu0 %v6033
    %7399 = vmatpush.msra.mxu0 %v6027
    %7400 = vmatpush.msra.mxu0 %v6021
    %7401 = vmatpush.msra.mxu0 %v6015
    %7402 = vmatpush.msra.mxu0 %v6009
    %7403 = vmatpush.msra.mxu0 %v6003
    %7404 = vmatpush.msra.mxu0 %v5997
    %7405 = vmatpush.msra.mxu0 %v5991
    %7406 = vmatpush.msra.mxu0 %v5985
    %7407 = vmatpush.msra.mxu0 %v5979
    %7408 = vmatpush.msra.mxu0 %v5973
    %7409 = vmatpush.msra.mxu0 %v5967
    %7410 = vmatpush.msra.mxu0 %v5961
    %7411 = vmatmul.f32.gmra.mxu0 %v5389
    %v7412 = vpop.f32.mrf.mxu0
    %v7413 = vadd.f32 0.0, %v7412
    %7414 = vdwg.mxu0
    %v7415 = vadd.f32 %v7300, %v7373
    %v7416 = vxor.u32 %v7415, 2147483648
    %v7417 = vmul.f32 %v7416, 1.442695
    %v7418 = vpow.pop %v7417
    %v7419 = vadd.f32 %v7418, 1.0
    %v7420 = vrcp.pop %v7419
    %v7421 = vmul.f32 %v7419, %v7420
    %v7422 = vsub.f32 1.0, %v7421
    %v7423 = vmul.f32 %v7420, %v7422
    %v7424 = vadd.f32 %v7420, %v7423
    %vm7425 = vweird.f32 %v7419
    %vm7426 = vweird.f32 %v7420
    %vm7427 = vmor %vm7425, %vm7426
    %v7428 = vsel %vm7427, %v7420, %v7424
    %v7429 = vand.u32 2147483647, %v7419
    %vm7430 = vcmp.eq.f32.partialorder %v7429, 8.507059e+37
    %v7431 = vand.u32 %v7419, 2147483648
    %v7432 = vor.u32 1.1754944e-38, %v7431
    %v7433 = vsel %vm7430, %v7432, %v7428
    %v7434 = vmul.f32 1.0, %v7433
    %v7435 = vadd.f32 %v7326, %v7393
    %v7436 = vxor.u32 %v7435, 2147483648
    %v7437 = vmul.f32 %v7436, 1.442695
    %v7438 = vpow.pop %v7437
    %v7439 = vadd.f32 %v7438, 1.0
    %v7440 = vrcp.pop %v7439
    %v7441 = vmul.f32 %v7439, %v7440
    %v7442 = vsub.f32 1.0, %v7441
    %v7443 = vmul.f32 %v7440, %v7442
    %v7444 = vadd.f32 %v7440, %v7443
    %vm7445 = vweird.f32 %v7439
    %vm7446 = vweird.f32 %v7440
    %vm7447 = vmor %vm7445, %vm7446
    %v7448 = vsel %vm7447, %v7440, %v7444
    %v7449 = vand.u32 2147483647, %v7439
    %vm7450 = vcmp.eq.f32.partialorder %v7449, 8.507059e+37
    %v7451 = vand.u32 %v7439, 2147483648
    %v7452 = vor.u32 1.1754944e-38, %v7451
    %v7453 = vsel %vm7450, %v7452, %v7448
    %v7454 = vmul.f32 1.0, %v7453
    %v7456 = vperm.slane %v6053, 0
    %v7458 = vadd.f32 %v7413, %v7456
    %v7459 = vmul.f32 %v7434, %v7458
    %v7460 = vadd.f32 %v7352, %v7459
    %v7461 = vtanh.pop %v7460
    %v7462 = vsub.f32 1.0, %v7454
    %v7463 = vmul.f32 %v7462, %v7461
    %v7464 = vmul.f32 %v7454, %v5389
    %v7465 = vadd.f32 %v7463, %v7464
    %v7466 = vld [vmem:[%s5] sm:$0xff]
    %v7467 = vld [vmem:[%s33] sm:$0xff]
    %v7468 = vld [vmem:[%s33 + $0x8] sm:$0xff]
    %v7469 = vld [vmem:[%s33 + $0x10] sm:$0xff]
    %v7470 = vld [vmem:[%s33 + $0x18] sm:$0xff]
    %v7471 = vld [vmem:[%s33 + $0x20] sm:$0xff]
    %v7472 = vld [vmem:[%s33 + $0x28] sm:$0x3f]
    %v7473 = vld [vmem:[%s35] sm:$0x1]
    %v7475 = vperm.slane %v7473, 0
    %vm7477 = vcmask 375808
    %v7479 = vsel %vm7477, %v7466, 0
    %vm7481 = vcmask 1045504
    %v7483 = vsel %vm7481, %v7472, 0
    %7485 = vmatpush.msra.mxu0 0.0
    %7486 = vmatpush.msra.mxu0 0.0
    %7487 = vmatpush.msra.mxu0 0.0
    %7488 = vmatpush.msra.mxu0 0.0
    %7489 = vmatpush.msra.mxu0 0.0
    %7490 = vmatpush.msra.mxu0 0.0
    %7491 = vmatpush.msra.mxu0 0.0
    %7492 = vmatpush.msra.mxu0 0.0
    %7493 = vmatpush.msra.mxu0 0.0
    %7494 = vmatpush.msra.mxu0 0.0
    %7495 = vmatpush.msra.mxu0 %v7483
    %7496 = vmatpush.msra.mxu0 %v7471
    %7497 = vmatpush.msra.mxu0 %v7470
    %7498 = vmatpush.msra.mxu0 %v7469
    %7499 = vmatpush.msra.mxu0 %v7468
    %7500 = vmatpush.msra.mxu0 %v7467
    %7501 = vmatmul.f32.gmra.mxu0 %v7479
    %v7502 = vpop.f32.mrf.mxu0
    %v7503 = vadd.f32 %v7475, %v7502
    %7504 = vdwg.mxu0
    %v7505 = vld [vmem:[%s7] sm:$0xff]
    %v7506 = vmul.f32 %v7503, %v7505
    %v7508 = vrot.slane %v7506, 1
    %v7509 = vrot.slane %v7506, 2
    %v7510 = vrot.slane %v7506, 3
    %v7511 = vrot.slane %v7506, 4
    %v7512 = vrot.slane %v7506, 5
    %v7513 = vrot.slane %v7506, 6
    %v7514 = vrot.slane %v7506, 7
    %v7515 = vld [vmem:[%s37] sm:$0xff]
    %v7516 = vld [vmem:[%s37 + $0x8] sm:$0xff]
    %v7517 = vld [vmem:[%s37 + $0x10] sm:$0xff]
    %v7518 = vld [vmem:[%s37 + $0x18] sm:$0xff]
    %v7519 = vld [vmem:[%s39] sm:$0xff]
    %v7520 = vld [vmem:[%s39 + $0x8] sm:$0xff]
    %v7521 = vld [vmem:[%s39 + $0x10] sm:$0xff]
    %v7522 = vld [vmem:[%s39 + $0x18] sm:$0xff]
    %v7523 = vld [vmem:[%s41] sm:$0xff]
    %v7524 = vld [vmem:[%s41 + $0x8] sm:$0xff]
    %v7525 = vld [vmem:[%s41 + $0x10] sm:$0xff]
    %v7526 = vld [vmem:[%s41 + $0x18] sm:$0xff]
    %v7527 = vperm.slane %v7506, 0
    %v7528 = vperm.slane %v7508, 0
    %v7529 = vperm.slane %v7509, 0
    %v7530 = vperm.slane %v7510, 0
    %v7531 = vperm.slane %v7511, 0
    %v7532 = vperm.slane %v7512, 0
    %v7533 = vperm.slane %v7513, 0
    %v7534 = vperm.slane %v7514, 0
    %7544 = vset.pattern.permute.xlu0 0
    %7545 = vperm.xlu0 %7544, %v7515
    %v7546 = vpop.permute.xlu0 %7545
    %7549 = vset.pattern.permute.xlu0 0
    %7550 = vperm.xlu0 %7549, %v7516
    %v7551 = vpop.permute.xlu0 %7550
    %7554 = vset.pattern.permute.xlu0 0
    %7555 = vperm.xlu0 %7554, %v7517
    %v7556 = vpop.permute.xlu0 %7555
    %7559 = vset.pattern.permute.xlu0 0
    %7560 = vperm.xlu0 %7559, %v7518
    %v7561 = vpop.permute.xlu0 %7560
    %v7563 = vmul.f32 %v7527, %v7546
    %v7564 = vmul.f32 %v7527, %v7551
    %v7565 = vmul.f32 %v7527, %v7556
    %v7566 = vmul.f32 %v7527, %v7561
    %v7567 = vmul.f32 %v7528, %v7546
    %v7568 = vmul.f32 %v7528, %v7551
    %v7569 = vmul.f32 %v7528, %v7556
    %v7570 = vmul.f32 %v7528, %v7561
    %v7571 = vmul.f32 %v7529, %v7546
    %v7572 = vmul.f32 %v7529, %v7551
    %v7573 = vmul.f32 %v7529, %v7556
    %v7574 = vmul.f32 %v7529, %v7561
    %v7575 = vmul.f32 %v7530, %v7546
    %v7576 = vmul.f32 %v7530, %v7551
    %v7577 = vmul.f32 %v7530, %v7556
    %v7578 = vmul.f32 %v7530, %v7561
    %v7579 = vmul.f32 %v7531, %v7546
    %v7580 = vmul.f32 %v7531, %v7551
    %v7581 = vmul.f32 %v7531, %v7556
    %v7582 = vmul.f32 %v7531, %v7561
    %v7583 = vmul.f32 %v7532, %v7546
    %v7584 = vmul.f32 %v7532, %v7551
    %v7585 = vmul.f32 %v7532, %v7556
    %v7586 = vmul.f32 %v7532, %v7561
    %v7587 = vmul.f32 %v7533, %v7546
    %v7588 = vmul.f32 %v7533, %v7551
    %v7589 = vmul.f32 %v7533, %v7556
    %v7590 = vmul.f32 %v7533, %v7561
    %v7591 = vmul.f32 %v7534, %v7546
    %v7592 = vmul.f32 %v7534, %v7551
    %v7593 = vmul.f32 %v7534, %v7556
    %v7594 = vmul.f32 %v7534, %v7561
    %7596 = vset.pattern.permute.xlu0 0
    %7597 = vperm.xlu0 %7596, %v7519
    %v7598 = vpop.permute.xlu0 %7597
    %7601 = vset.pattern.permute.xlu0 0
    %7602 = vperm.xlu0 %7601, %v7520
    %v7603 = vpop.permute.xlu0 %7602
    %7606 = vset.pattern.permute.xlu0 0
    %7607 = vperm.xlu0 %7606, %v7521
    %v7608 = vpop.permute.xlu0 %7607
    %7611 = vset.pattern.permute.xlu0 0
    %7612 = vperm.xlu0 %7611, %v7522
    %v7613 = vpop.permute.xlu0 %7612
    %v7615 = vmul.f32 %v7527, %v7598
    %v7616 = vmul.f32 %v7527, %v7603
    %v7617 = vmul.f32 %v7527, %v7608
    %v7618 = vmul.f32 %v7527, %v7613
    %v7619 = vmul.f32 %v7528, %v7598
    %v7620 = vmul.f32 %v7528, %v7603
    %v7621 = vmul.f32 %v7528, %v7608
    %v7622 = vmul.f32 %v7528, %v7613
    %v7623 = vmul.f32 %v7529, %v7598
    %v7624 = vmul.f32 %v7529, %v7603
    %v7625 = vmul.f32 %v7529, %v7608
    %v7626 = vmul.f32 %v7529, %v7613
    %v7627 = vmul.f32 %v7530, %v7598
    %v7628 = vmul.f32 %v7530, %v7603
    %v7629 = vmul.f32 %v7530, %v7608
    %v7630 = vmul.f32 %v7530, %v7613
    %v7631 = vmul.f32 %v7531, %v7598
    %v7632 = vmul.f32 %v7531, %v7603
    %v7633 = vmul.f32 %v7531, %v7608
    %v7634 = vmul.f32 %v7531, %v7613
    %v7635 = vmul.f32 %v7532, %v7598
    %v7636 = vmul.f32 %v7532, %v7603
    %v7637 = vmul.f32 %v7532, %v7608
    %v7638 = vmul.f32 %v7532, %v7613
    %v7639 = vmul.f32 %v7533, %v7598
    %v7640 = vmul.f32 %v7533, %v7603
    %v7641 = vmul.f32 %v7533, %v7608
    %v7642 = vmul.f32 %v7533, %v7613
    %v7643 = vmul.f32 %v7534, %v7598
    %v7644 = vmul.f32 %v7534, %v7603
    %v7645 = vmul.f32 %v7534, %v7608
    %v7646 = vmul.f32 %v7534, %v7613
    %7679 = vrot.lane.b32.xlu0 %v7615, 127
    %v7680 = vpop.permute.xlu0 %7679
    %7681 = vrot.lane.b32.xlu0 %v7616, 127
    %v7682 = vpop.permute.xlu0 %7681
    %7683 = vrot.lane.b32.xlu0 %v7617, 127
    %v7684 = vpop.permute.xlu0 %7683
    %7685 = vrot.lane.b32.xlu0 %v7618, 127
    %v7686 = vpop.permute.xlu0 %7685
    %7687 = vrot.lane.b32.xlu0 %v7619, 127
    %v7688 = vpop.permute.xlu0 %7687
    %7689 = vrot.lane.b32.xlu0 %v7620, 127
    %v7690 = vpop.permute.xlu0 %7689
    %7691 = vrot.lane.b32.xlu0 %v7621, 127
    %v7692 = vpop.permute.xlu0 %7691
    %7693 = vrot.lane.b32.xlu0 %v7622, 127
    %v7694 = vpop.permute.xlu0 %7693
    %7695 = vrot.lane.b32.xlu0 %v7623, 127
    %v7696 = vpop.permute.xlu0 %7695
    %7697 = vrot.lane.b32.xlu0 %v7624, 127
    %v7698 = vpop.permute.xlu0 %7697
    %7699 = vrot.lane.b32.xlu0 %v7625, 127
    %v7700 = vpop.permute.xlu0 %7699
    %7701 = vrot.lane.b32.xlu0 %v7626, 127
    %v7702 = vpop.permute.xlu0 %7701
    %7703 = vrot.lane.b32.xlu0 %v7627, 127
    %v7704 = vpop.permute.xlu0 %7703
    %7705 = vrot.lane.b32.xlu0 %v7628, 127
    %v7706 = vpop.permute.xlu0 %7705
    %7707 = vrot.lane.b32.xlu0 %v7629, 127
    %v7708 = vpop.permute.xlu0 %7707
    %7709 = vrot.lane.b32.xlu0 %v7630, 127
    %v7710 = vpop.permute.xlu0 %7709
    %7711 = vrot.lane.b32.xlu0 %v7631, 127
    %v7712 = vpop.permute.xlu0 %7711
    %7713 = vrot.lane.b32.xlu0 %v7632, 127
    %v7714 = vpop.permute.xlu0 %7713
    %7715 = vrot.lane.b32.xlu0 %v7633, 127
    %v7716 = vpop.permute.xlu0 %7715
    %7717 = vrot.lane.b32.xlu0 %v7634, 127
    %v7718 = vpop.permute.xlu0 %7717
    %7719 = vrot.lane.b32.xlu0 %v7635, 127
    %v7720 = vpop.permute.xlu0 %7719
    %7721 = vrot.lane.b32.xlu0 %v7636, 127
    %v7722 = vpop.permute.xlu0 %7721
    %7723 = vrot.lane.b32.xlu0 %v7637, 127
    %v7724 = vpop.permute.xlu0 %7723
    %7725 = vrot.lane.b32.xlu0 %v7638, 127
    %v7726 = vpop.permute.xlu0 %7725
    %7727 = vrot.lane.b32.xlu0 %v7639, 127
    %v7728 = vpop.permute.xlu0 %7727
    %7729 = vrot.lane.b32.xlu0 %v7640, 127
    %v7730 = vpop.permute.xlu0 %7729
    %7731 = vrot.lane.b32.xlu0 %v7641, 127
    %v7732 = vpop.permute.xlu0 %7731
    %7733 = vrot.lane.b32.xlu0 %v7642, 127
    %v7734 = vpop.permute.xlu0 %7733
    %7735 = vrot.lane.b32.xlu0 %v7643, 127
    %v7736 = vpop.permute.xlu0 %7735
    %7737 = vrot.lane.b32.xlu0 %v7644, 127
    %v7738 = vpop.permute.xlu0 %7737
    %7739 = vrot.lane.b32.xlu0 %v7645, 127
    %v7740 = vpop.permute.xlu0 %7739
    %7741 = vrot.lane.b32.xlu0 %v7646, 127
    %v7742 = vpop.permute.xlu0 %7741
    %v7775 = vadd.f32 %v7563, %v7680
    %v7776 = vadd.f32 %v7564, %v7682
    %v7777 = vadd.f32 %v7565, %v7684
    %v7778 = vadd.f32 %v7566, %v7686
    %v7779 = vadd.f32 %v7567, %v7688
    %v7780 = vadd.f32 %v7568, %v7690
    %v7781 = vadd.f32 %v7569, %v7692
    %v7782 = vadd.f32 %v7570, %v7694
    %v7783 = vadd.f32 %v7571, %v7696
    %v7784 = vadd.f32 %v7572, %v7698
    %v7785 = vadd.f32 %v7573, %v7700
    %v7786 = vadd.f32 %v7574, %v7702
    %v7787 = vadd.f32 %v7575, %v7704
    %v7788 = vadd.f32 %v7576, %v7706
    %v7789 = vadd.f32 %v7577, %v7708
    %v7790 = vadd.f32 %v7578, %v7710
    %v7791 = vadd.f32 %v7579, %v7712
    %v7792 = vadd.f32 %v7580, %v7714
    %v7793 = vadd.f32 %v7581, %v7716
    %v7794 = vadd.f32 %v7582, %v7718
    %v7795 = vadd.f32 %v7583, %v7720
    %v7796 = vadd.f32 %v7584, %v7722
    %v7797 = vadd.f32 %v7585, %v7724
    %v7798 = vadd.f32 %v7586, %v7726
    %v7799 = vadd.f32 %v7587, %v7728
    %v7800 = vadd.f32 %v7588, %v7730
    %v7801 = vadd.f32 %v7589, %v7732
    %v7802 = vadd.f32 %v7590, %v7734
    %v7803 = vadd.f32 %v7591, %v7736
    %v7804 = vadd.f32 %v7592, %v7738
    %v7805 = vadd.f32 %v7593, %v7740
    %v7806 = vadd.f32 %v7594, %v7742
    %7808 = vset.pattern.permute.xlu0 0
    %7809 = vperm.xlu0 %7808, %v7523
    %v7810 = vpop.permute.xlu0 %7809
    %7813 = vset.pattern.permute.xlu0 0
    %7814 = vperm.xlu0 %7813, %v7524
    %v7815 = vpop.permute.xlu0 %7814
    %7818 = vset.pattern.permute.xlu0 0
    %7819 = vperm.xlu0 %7818, %v7525
    %v7820 = vpop.permute.xlu0 %7819
    %7823 = vset.pattern.permute.xlu0 0
    %7824 = vperm.xlu0 %7823, %v7526
    %v7825 = vpop.permute.xlu0 %7824
    %v7827 = vadd.f32 %v7775, %v7810
    %v7828 = vadd.f32 %v7776, %v7815
    %v7829 = vadd.f32 %v7777, %v7820
    %v7830 = vadd.f32 %v7778, %v7825
    %v7831 = vadd.f32 %v7779, %v7810
    %v7832 = vadd.f32 %v7780, %v7815
    %v7833 = vadd.f32 %v7781, %v7820
    %v7834 = vadd.f32 %v7782, %v7825
    %v7835 = vadd.f32 %v7783, %v7810
    %v7836 = vadd.f32 %v7784, %v7815
    %v7837 = vadd.f32 %v7785, %v7820
    %v7838 = vadd.f32 %v7786, %v7825
    %v7839 = vadd.f32 %v7787, %v7810
    %v7840 = vadd.f32 %v7788, %v7815
    %v7841 = vadd.f32 %v7789, %v7820
    %v7842 = vadd.f32 %v7790, %v7825
    %v7843 = vadd.f32 %v7791, %v7810
    %v7844 = vadd.f32 %v7792, %v7815
    %v7845 = vadd.f32 %v7793, %v7820
    %v7846 = vadd.f32 %v7794, %v7825
    %v7847 = vadd.f32 %v7795, %v7810
    %v7848 = vadd.f32 %v7796, %v7815
    %v7849 = vadd.f32 %v7797, %v7820
    %v7850 = vadd.f32 %v7798, %v7825
    %v7851 = vadd.f32 %v7799, %v7810
    %v7852 = vadd.f32 %v7800, %v7815
    %v7853 = vadd.f32 %v7801, %v7820
    %v7854 = vadd.f32 %v7802, %v7825
    %v7855 = vadd.f32 %v7803, %v7810
    %v7856 = vadd.f32 %v7804, %v7815
    %v7857 = vadd.f32 %v7805, %v7820
    %v7858 = vadd.f32 %v7806, %v7825
    %vm7859 = vcmp.ge.f32.partialorder %v7827, 0.0
    %vm7860 = vcmp.ge.f32.partialorder %v7828, 0.0
    %vm7861 = vcmp.ge.f32.partialorder %v7829, 0.0
    %vm7862 = vcmp.ge.f32.partialorder %v7830, 0.0
    %vm7863 = vcmp.ge.f32.partialorder %v7831, 0.0
    %vm7864 = vcmp.ge.f32.partialorder %v7832, 0.0
    %vm7865 = vcmp.ge.f32.partialorder %v7833, 0.0
    %vm7866 = vcmp.ge.f32.partialorder %v7834, 0.0
    %vm7867 = vcmp.ge.f32.partialorder %v7835, 0.0
    %vm7868 = vcmp.ge.f32.partialorder %v7836, 0.0
    %vm7869 = vcmp.ge.f32.partialorder %v7837, 0.0
    %vm7870 = vcmp.ge.f32.partialorder %v7838, 0.0
    %vm7871 = vcmp.ge.f32.partialorder %v7839, 0.0
    %vm7872 = vcmp.ge.f32.partialorder %v7840, 0.0
    %vm7873 = vcmp.ge.f32.partialorder %v7841, 0.0
    %vm7874 = vcmp.ge.f32.partialorder %v7842, 0.0
    %vm7875 = vcmp.ge.f32.partialorder %v7843, 0.0
    %vm7876 = vcmp.ge.f32.partialorder %v7844, 0.0
    %vm7877 = vcmp.ge.f32.partialorder %v7845, 0.0
    %vm7878 = vcmp.ge.f32.partialorder %v7846, 0.0
    %vm7879 = vcmp.ge.f32.partialorder %v7847, 0.0
    %vm7880 = vcmp.ge.f32.partialorder %v7848, 0.0
    %vm7881 = vcmp.ge.f32.partialorder %v7849, 0.0
    %vm7882 = vcmp.ge.f32.partialorder %v7850, 0.0
    %vm7883 = vcmp.ge.f32.partialorder %v7851, 0.0
    %vm7884 = vcmp.ge.f32.partialorder %v7852, 0.0
    %vm7885 = vcmp.ge.f32.partialorder %v7853, 0.0
    %vm7886 = vcmp.ge.f32.partialorder %v7854, 0.0
    %vm7887 = vcmp.ge.f32.partialorder %v7855, 0.0
    %vm7888 = vcmp.ge.f32.partialorder %v7856, 0.0
    %vm7889 = vcmp.ge.f32.partialorder %v7857, 0.0
    %vm7890 = vcmp.ge.f32.partialorder %v7858, 0.0
    %v7891 = vmul.f32 %v7827, 0.01
    %v7892 = vmul.f32 %v7828, 0.01
    %v7893 = vmul.f32 %v7829, 0.01
    %v7894 = vmul.f32 %v7830, 0.01
    %v7895 = vmul.f32 %v7831, 0.01
    %v7896 = vmul.f32 %v7832, 0.01
    %v7897 = vmul.f32 %v7833, 0.01
    %v7898 = vmul.f32 %v7834, 0.01
    %v7899 = vmul.f32 %v7835, 0.01
    %v7900 = vmul.f32 %v7836, 0.01
    %v7901 = vmul.f32 %v7837, 0.01
    %v7902 = vmul.f32 %v7838, 0.01
    %v7903 = vmul.f32 %v7839, 0.01
    %v7904 = vmul.f32 %v7840, 0.01
    %v7905 = vmul.f32 %v7841, 0.01
    %v7906 = vmul.f32 %v7842, 0.01
    %v7907 = vmul.f32 %v7843, 0.01
    %v7908 = vmul.f32 %v7844, 0.01
    %v7909 = vmul.f32 %v7845, 0.01
    %v7910 = vmul.f32 %v7846, 0.01
    %v7911 = vmul.f32 %v7847, 0.01
    %v7912 = vmul.f32 %v7848, 0.01
    %v7913 = vmul.f32 %v7849, 0.01
    %v7914 = vmul.f32 %v7850, 0.01
    %v7915 = vmul.f32 %v7851, 0.01
    %v7916 = vmul.f32 %v7852, 0.01
    %v7917 = vmul.f32 %v7853, 0.01
    %v7918 = vmul.f32 %v7854, 0.01
    %v7919 = vmul.f32 %v7855, 0.01
    %v7920 = vmul.f32 %v7856, 0.01
    %v7921 = vmul.f32 %v7857, 0.01
    %v7922 = vmul.f32 %v7858, 0.01
    %v7923 = vsel %vm7859, %v7827, %v7891
    %v7924 = vsel %vm7860, %v7828, %v7892
    %v7925 = vsel %vm7861, %v7829, %v7893
    %v7926 = vsel %vm7862, %v7830, %v7894
    %v7927 = vsel %vm7863, %v7831, %v7895
    %v7928 = vsel %vm7864, %v7832, %v7896
    %v7929 = vsel %vm7865, %v7833, %v7897
    %v7930 = vsel %vm7866, %v7834, %v7898
    %v7931 = vsel %vm7867, %v7835, %v7899
    %v7932 = vsel %vm7868, %v7836, %v7900
    %v7933 = vsel %vm7869, %v7837, %v7901
    %v7934 = vsel %vm7870, %v7838, %v7902
    %v7935 = vsel %vm7871, %v7839, %v7903
    %v7936 = vsel %vm7872, %v7840, %v7904
    %v7937 = vsel %vm7873, %v7841, %v7905
    %v7938 = vsel %vm7874, %v7842, %v7906
    %v7939 = vsel %vm7875, %v7843, %v7907
    %v7940 = vsel %vm7876, %v7844, %v7908
    %v7941 = vsel %vm7877, %v7845, %v7909
    %v7942 = vsel %vm7878, %v7846, %v7910
    %v7943 = vsel %vm7879, %v7847, %v7911
    %v7944 = vsel %vm7880, %v7848, %v7912
    %v7945 = vsel %vm7881, %v7849, %v7913
    %v7946 = vsel %vm7882, %v7850, %v7914
    %v7947 = vsel %vm7883, %v7851, %v7915
    %v7948 = vsel %vm7884, %v7852, %v7916
    %v7949 = vsel %vm7885, %v7853, %v7917
    %v7950 = vsel %vm7886, %v7854, %v7918
    %v7951 = vsel %vm7887, %v7855, %v7919
    %v7952 = vsel %vm7888, %v7856, %v7920
    %v7953 = vsel %vm7889, %v7857, %v7921
    %v7954 = vsel %vm7890, %v7858, %v7922
    %vm7955 = vcmask 252928
    %v7956 = vsel %vm7955, %v7923, -inf
    %7957 = vmax.xlane.f32.xlu0 %v7956
    %v7958 = vpop.xlane.xlu0 %7957
    %v7959 = vsel %vm7955, %v7924, -inf
    %7960 = vmax.xlane.f32.xlu0 %v7959
    %v7961 = vpop.xlane.xlu0 %7960
    %v7962 = vsel %vm7955, %v7925, -inf
    %7963 = vmax.xlane.f32.xlu0 %v7962
    %v7964 = vpop.xlane.xlu0 %7963
    %v7965 = vsel %vm7955, %v7926, -inf
    %7966 = vmax.xlane.f32.xlu0 %v7965
    %v7967 = vpop.xlane.xlu0 %7966
    %v7968 = vsel %vm7955, %v7927, -inf
    %7969 = vmax.xlane.f32.xlu0 %v7968
    %v7970 = vpop.xlane.xlu0 %7969
    %v7971 = vsel %vm7955, %v7928, -inf
    %7972 = vmax.xlane.f32.xlu0 %v7971
    %v7973 = vpop.xlane.xlu0 %7972
    %v7974 = vsel %vm7955, %v7929, -inf
    %7975 = vmax.xlane.f32.xlu0 %v7974
    %v7976 = vpop.xlane.xlu0 %7975
    %v7977 = vsel %vm7955, %v7930, -inf
    %7978 = vmax.xlane.f32.xlu0 %v7977
    %v7979 = vpop.xlane.xlu0 %7978
    %v7980 = vsel %vm7955, %v7931, -inf
    %7981 = vmax.xlane.f32.xlu0 %v7980
    %v7982 = vpop.xlane.xlu0 %7981
    %v7983 = vsel %vm7955, %v7932, -inf
    %7984 = vmax.xlane.f32.xlu0 %v7983
    %v7985 = vpop.xlane.xlu0 %7984
    %v7986 = vsel %vm7955, %v7933, -inf
    %7987 = vmax.xlane.f32.xlu0 %v7986
    %v7988 = vpop.xlane.xlu0 %7987
    %v7989 = vsel %vm7955, %v7934, -inf
    %7990 = vmax.xlane.f32.xlu0 %v7989
    %v7991 = vpop.xlane.xlu0 %7990
    %v7992 = vsel %vm7955, %v7935, -inf
    %7993 = vmax.xlane.f32.xlu0 %v7992
    %v7994 = vpop.xlane.xlu0 %7993
    %v7995 = vsel %vm7955, %v7936, -inf
    %7996 = vmax.xlane.f32.xlu0 %v7995
    %v7997 = vpop.xlane.xlu0 %7996
    %v7998 = vsel %vm7955, %v7937, -inf
    %7999 = vmax.xlane.f32.xlu0 %v7998
    %v8000 = vpop.xlane.xlu0 %7999
    %v8001 = vsel %vm7955, %v7938, -inf
    %8002 = vmax.xlane.f32.xlu0 %v8001
    %v8003 = vpop.xlane.xlu0 %8002
    %v8004 = vsel %vm7955, %v7939, -inf
    %8005 = vmax.xlane.f32.xlu0 %v8004
    %v8006 = vpop.xlane.xlu0 %8005
    %v8007 = vsel %vm7955, %v7940, -inf
    %8008 = vmax.xlane.f32.xlu0 %v8007
    %v8009 = vpop.xlane.xlu0 %8008
    %v8010 = vsel %vm7955, %v7941, -inf
    %8011 = vmax.xlane.f32.xlu0 %v8010
    %v8012 = vpop.xlane.xlu0 %8011
    %v8013 = vsel %vm7955, %v7942, -inf
    %8014 = vmax.xlane.f32.xlu0 %v8013
    %v8015 = vpop.xlane.xlu0 %8014
    %v8016 = vsel %vm7955, %v7943, -inf
    %8017 = vmax.xlane.f32.xlu0 %v8016
    %v8018 = vpop.xlane.xlu0 %8017
    %v8019 = vsel %vm7955, %v7944, -inf
    %8020 = vmax.xlane.f32.xlu0 %v8019
    %v8021 = vpop.xlane.xlu0 %8020
    %v8022 = vsel %vm7955, %v7945, -inf
    %8023 = vmax.xlane.f32.xlu0 %v8022
    %v8024 = vpop.xlane.xlu0 %8023
    %v8025 = vsel %vm7955, %v7946, -inf
    %8026 = vmax.xlane.f32.xlu0 %v8025
    %v8027 = vpop.xlane.xlu0 %8026
    %v8028 = vsel %vm7955, %v7947, -inf
    %8029 = vmax.xlane.f32.xlu0 %v8028
    %v8030 = vpop.xlane.xlu0 %8029
    %v8031 = vsel %vm7955, %v7948, -inf
    %8032 = vmax.xlane.f32.xlu0 %v8031
    %v8033 = vpop.xlane.xlu0 %8032
    %v8034 = vsel %vm7955, %v7949, -inf
    %8035 = vmax.xlane.f32.xlu0 %v8034
    %v8036 = vpop.xlane.xlu0 %8035
    %v8037 = vsel %vm7955, %v7950, -inf
    %8038 = vmax.xlane.f32.xlu0 %v8037
    %v8039 = vpop.xlane.xlu0 %8038
    %v8040 = vsel %vm7955, %v7951, -inf
    %8041 = vmax.xlane.f32.xlu0 %v8040
    %v8042 = vpop.xlane.xlu0 %8041
    %v8043 = vsel %vm7955, %v7952, -inf
    %8044 = vmax.xlane.f32.xlu0 %v8043
    %v8045 = vpop.xlane.xlu0 %8044
    %v8046 = vsel %vm7955, %v7953, -inf
    %8047 = vmax.xlane.f32.xlu0 %v8046
    %v8048 = vpop.xlane.xlu0 %8047
    %v8049 = vsel %vm7955, %v7954, -inf
    %8050 = vmax.xlane.f32.xlu0 %v8049
    %v8051 = vpop.xlane.xlu0 %8050
    %v8052 = vld [vmem:[%s43] sm:$0xff]
    %v8053 = vld [vmem:[%s43 + $0x8] sm:$0xff]
    %v8054 = vld [vmem:[%s43 + $0x10] sm:$0xff]
    %v8055 = vld [vmem:[%s43 + $0x18] sm:$0xff]
    %v8056 = vld [vmem:[%s45] sm:$0x1]
    %v8058 = vperm.slane %v8056, 0
    %v8092 = vlaneseq
    %v8093 = vand.u32 %v8092, 127
    %v8094 = vperm.slane %v7958, %v8093
    %v8095 = vadd.s32 %v8093, 4294967288
    %v8096 = vperm.slane %v7961, %v8095
    %vm8097 = vcmask 130112
    %v8098 = vsel %vm8097, %v8096, %v8094
    %v8099 = vadd.s32 %v8093, 4294967280
    %v8100 = vperm.slane %v7964, %v8099
    %vm8101 = vcmask 195712
    %v8102 = vsel %vm8101, %v8100, %v8098
    %v8103 = vadd.s32 %v8093, 4294967272
    %v8104 = vperm.slane %v7967, %v8103
    %vm8105 = vcmask 261312
    %v8106 = vsel %vm8105, %v8104, %v8102
    %v8107 = vperm.slane %v7970, %v8093
    %v8108 = vperm.slane %v7973, %v8095
    %v8109 = vsel %vm8097, %v8108, %v8107
    %v8110 = vperm.slane %v7976, %v8099
    %v8111 = vsel %vm8101, %v8110, %v8109
    %v8112 = vperm.slane %v7979, %v8103
    %v8113 = vsel %vm8105, %v8112, %v8111
    %v8114 = vperm.slane %v7982, %v8093
    %v8115 = vperm.slane %v7985, %v8095
    %v8116 = vsel %vm8097, %v8115, %v8114
    %v8117 = vperm.slane %v7988, %v8099
    %v8118 = vsel %vm8101, %v8117, %v8116
    %v8119 = vperm.slane %v7991, %v8103
    %v8120 = vsel %vm8105, %v8119, %v8118
    %v8121 = vperm.slane %v7994, %v8093
    %v8122 = vperm.slane %v7997, %v8095
    %v8123 = vsel %vm8097, %v8122, %v8121
    %v8124 = vperm.slane %v8000, %v8099
    %v8125 = vsel %vm8101, %v8124, %v8123
    %v8126 = vperm.slane %v8003, %v8103
    %v8127 = vsel %vm8105, %v8126, %v8125
    %v8128 = vperm.slane %v8006, %v8093
    %v8129 = vperm.slane %v8009, %v8095
    %v8130 = vsel %vm8097, %v8129, %v8128
    %v8131 = vperm.slane %v8012, %v8099
    %v8132 = vsel %vm8101, %v8131, %v8130
    %v8133 = vperm.slane %v8015, %v8103
    %v8134 = vsel %vm8105, %v8133, %v8132
    %v8135 = vperm.slane %v8018, %v8093
    %v8136 = vperm.slane %v8021, %v8095
    %v8137 = vsel %vm8097, %v8136, %v8135
    %v8138 = vperm.slane %v8024, %v8099
    %v8139 = vsel %vm8101, %v8138, %v8137
    %v8140 = vperm.slane %v8027, %v8103
    %v8141 = vsel %vm8105, %v8140, %v8139
    %v8142 = vperm.slane %v8030, %v8093
    %v8143 = vperm.slane %v8033, %v8095
    %v8144 = vsel %vm8097, %v8143, %v8142
    %v8145 = vperm.slane %v8036, %v8099
    %v8146 = vsel %vm8101, %v8145, %v8144
    %v8147 = vperm.slane %v8039, %v8103
    %v8148 = vsel %vm8105, %v8147, %v8146
    %v8149 = vperm.slane %v8042, %v8093
    %v8150 = vperm.slane %v8045, %v8095
    %v8151 = vsel %vm8097, %v8150, %v8149
    %v8152 = vperm.slane %v8048, %v8099
    %v8153 = vsel %vm8101, %v8152, %v8151
    %v8154 = vperm.slane %v8051, %v8103
    %v8155 = vsel %vm8105, %v8154, %v8153
    %vm8156 = vcmask 1041409
    %v8157 = vsel %vm8156, %v8113, %v8106
    %vm8158 = vcmask 1042434
    %v8159 = vsel %vm8158, %v8120, %v8157
    %vm8160 = vcmask 1043459
    %v8161 = vsel %vm8160, %v8127, %v8159
    %vm8162 = vcmask 1044484
    %v8163 = vsel %vm8162, %v8134, %v8161
    %vm8164 = vcmask 1045509
    %v8165 = vsel %vm8164, %v8141, %v8163
    %vm8166 = vcmask 1046534
    %v8167 = vsel %vm8166, %v8148, %v8165
    %vm8168 = vcmask 1047559
    %v8169 = vsel %vm8168, %v8155, %v8167
    %v8170 = vsel %vm321, %v8169, 0
    %8172 = vmatpush.msra.mxu0 0.0
    %8173 = vmatpush.msra.mxu0 0.0
    %8174 = vmatpush.msra.mxu0 0.0
    %8175 = vmatpush.msra.mxu0 0.0
    %8176 = vmatpush.msra.mxu0 0.0
    %8177 = vmatpush.msra.mxu0 0.0
    %8178 = vmatpush.msra.mxu0 0.0
    %8179 = vmatpush.msra.mxu0 0.0
    %8180 = vmatpush.msra.mxu0 0.0
    %8181 = vmatpush.msra.mxu0 0.0
    %8182 = vmatpush.msra.mxu0 0.0
    %8183 = vmatpush.msra.mxu0 0.0
    %8184 = vmatpush.msra.mxu0 %v8055
    %8185 = vmatpush.msra.mxu0 %v8054
    %8186 = vmatpush.msra.mxu0 %v8053
    %8187 = vmatpush.msra.mxu0 %v8052
    %8188 = vmatmul.f32.gmra.mxu0 %v8170
    %v8189 = vpop.f32.mrf.mxu0
    %v8190 = vadd.f32 %v8058, %v8189
    %8191 = vdwg.mxu0
    %v8192 = vld [vmem:[%s47] sm:$0xff]
    %v8193 = vld [vmem:[%s47 + $0x8] sm:$0xff]
    %v8194 = vld [vmem:[%s49] sm:$0xff]
    %v8195 = vld [vmem:[%s49 + $0x8] sm:$0xff]
    %v8196 = vld [vmem:[%s49 + $0x10] sm:$0xff]
    %v8197 = vld [vmem:[%s49 + $0x18] sm:$0xff]
    %v8198 = vld [vmem:[%s49 + $0x20] sm:$0xff]
    %v8199 = vld [vmem:[%s49 + $0x28] sm:$0xff]
    %v8200 = vld [vmem:[%s49 + $0x30] sm:$0xff]
    %v8201 = vld [vmem:[%s49 + $0x38] sm:$0xff]
    %v8202 = vld [vmem:[%s49 + $0x40] sm:$0xff]
    %v8203 = vld [vmem:[%s49 + $0x48] sm:$0xff]
    %v8204 = vld [vmem:[%s49 + $0x50] sm:$0xff]
    %v8205 = vld [vmem:[%s49 + $0x58] sm:$0xff]
    %v8206 = vld [vmem:[%s49 + $0x60] sm:$0xff]
    %v8207 = vld [vmem:[%s49 + $0x68] sm:$0xff]
    %v8208 = vld [vmem:[%s49 + $0x70] sm:$0xff]
    %v8209 = vld [vmem:[%s49 + $0x78] sm:$0xff]
    %v8210 = vld [vmem:[%s49 + $0x80] sm:$0xff]
    %v8211 = vld [vmem:[%s49 + $0x88] sm:$0xff]
    %v8212 = vld [vmem:[%s49 + $0x90] sm:$0xff]
    %v8213 = vld [vmem:[%s49 + $0x98] sm:$0xff]
    %v8214 = vld [vmem:[%s49 + $0xa0] sm:$0xff]
    %v8215 = vld [vmem:[%s49 + $0xa8] sm:$0xff]
    %v8216 = vld [vmem:[%s49 + $0xb0] sm:$0xff]
    %v8217 = vld [vmem:[%s49 + $0xb8] sm:$0xff]
    %v8218 = vld [vmem:[%s49 + $0xc0] sm:$0xff]
    %v8219 = vld [vmem:[%s49 + $0xc8] sm:$0xff]
    %v8220 = vld [vmem:[%s49 + $0xd0] sm:$0xff]
    %v8221 = vld [vmem:[%s49 + $0xd8] sm:$0xff]
    %v8222 = vld [vmem:[%s49 + $0xe0] sm:$0xff]
    %v8223 = vld [vmem:[%s49 + $0xe8] sm:$0xff]
    %v8224 = vld [vmem:[%s49 + $0xf0] sm:$0xff]
    %v8225 = vld [vmem:[%s49 + $0xf8] sm:$0xff]
    %8226 = vmatpush.msra.mxu0 %v8209
    %8227 = vmatpush.msra.mxu0 %v8208
    %8228 = vmatpush.msra.mxu0 %v8207
    %8229 = vmatpush.msra.mxu0 %v8206
    %8230 = vmatpush.msra.mxu0 %v8205
    %8231 = vmatpush.msra.mxu0 %v8204
    %8232 = vmatpush.msra.mxu0 %v8203
    %8233 = vmatpush.msra.mxu0 %v8202
    %8234 = vmatpush.msra.mxu0 %v8201
    %8235 = vmatpush.msra.mxu0 %v8200
    %8236 = vmatpush.msra.mxu0 %v8199
    %8237 = vmatpush.msra.mxu0 %v8198
    %8238 = vmatpush.msra.mxu0 %v8197
    %8239 = vmatpush.msra.mxu0 %v8196
    %8240 = vmatpush.msra.mxu0 %v8195
    %8241 = vmatpush.msra.mxu0 %v8194
    %8242 = vmatmul.f32.gmra.mxu0 %v6944
    %v8243 = vpop.f32.mrf.mxu0
    %v8244 = vadd.f32 0.0, %v8243
    %8245 = vdwg.mxu0
    %8246 = vmatpush.msra.mxu0 %v8225
    %8247 = vmatpush.msra.mxu0 %v8224
    %8248 = vmatpush.msra.mxu0 %v8223
    %8249 = vmatpush.msra.mxu0 %v8222
    %8250 = vmatpush.msra.mxu0 %v8221
    %8251 = vmatpush.msra.mxu0 %v8220
    %8252 = vmatpush.msra.mxu0 %v8219
    %8253 = vmatpush.msra.mxu0 %v8218
    %8254 = vmatpush.msra.mxu0 %v8217
    %8255 = vmatpush.msra.mxu0 %v8216
    %8256 = vmatpush.msra.mxu0 %v8215
    %8257 = vmatpush.msra.mxu0 %v8214
    %8258 = vmatpush.msra.mxu0 %v8213
    %8259 = vmatpush.msra.mxu0 %v8212
    %8260 = vmatpush.msra.mxu0 %v8211
    %8261 = vmatpush.msra.mxu0 %v8210
    %8262 = vmatmul.f32.gmra.mxu0 %v7465
    %v8263 = vpop.f32.mrf.mxu0
    %v8264 = vadd.f32 %v8244, %v8263
    %8265 = vdwg.mxu0
    %vm8266 = vcmask 130048
    %v8268 = vsel %vm8266, %v8190, 0
    %8270 = vmatpush.msra.mxu0 0.0
    %8271 = vmatpush.msra.mxu0 0.0
    %8272 = vmatpush.msra.mxu0 0.0
    %8273 = vmatpush.msra.mxu0 0.0
    %8274 = vmatpush.msra.mxu0 0.0
    %8275 = vmatpush.msra.mxu0 0.0
    %8276 = vmatpush.msra.mxu0 0.0
    %8277 = vmatpush.msra.mxu0 0.0
    %8278 = vmatpush.msra.mxu0 0.0
    %8279 = vmatpush.msra.mxu0 0.0
    %8280 = vmatpush.msra.mxu0 0.0
    %8281 = vmatpush.msra.mxu0 0.0
    %8282 = vmatpush.msra.mxu0 0.0
    %8283 = vmatpush.msra.mxu0 0.0
    %8284 = vmatpush.msra.mxu0 %v8193
    %8285 = vmatpush.msra.mxu0 %v8192
    %8286 = vmatmul.f32.gmra.mxu0 %v8268
    %v8287 = vpop.f32.mrf.mxu0
    %v8288 = vadd.f32 %v8264, %v8287
    %8289 = vdwg.mxu0
    %v8290 = vld [vmem:[%s51] sm:$0xff]
    %v8291 = vld [vmem:[%s51 + $0x8] sm:$0xff]
    %v8292 = vld [vmem:[%s51 + $0x10] sm:$0xff]
    %v8293 = vld [vmem:[%s51 + $0x18] sm:$0xff]
    %v8294 = vld [vmem:[%s51 + $0x20] sm:$0xff]
    %v8295 = vld [vmem:[%s51 + $0x28] sm:$0x3f]
    %v8297 = vsel %vm7481, %v8295, 0
    %8299 = vmatpush.msra.mxu0 0.0
    %8300 = vmatpush.msra.mxu0 0.0
    %8301 = vmatpush.msra.mxu0 0.0
    %8302 = vmatpush.msra.mxu0 0.0
    %8303 = vmatpush.msra.mxu0 0.0
    %8304 = vmatpush.msra.mxu0 0.0
    %8305 = vmatpush.msra.mxu0 0.0
    %8306 = vmatpush.msra.mxu0 0.0
    %8307 = vmatpush.msra.mxu0 0.0
    %8308 = vmatpush.msra.mxu0 0.0
    %8309 = vmatpush.msra.mxu0 %v8297
    %8310 = vmatpush.msra.mxu0 %v8294
    %8311 = vmatpush.msra.mxu0 %v8293
    %8312 = vmatpush.msra.mxu0 %v8292
    %8313 = vmatpush.msra.mxu0 %v8291
    %8314 = vmatpush.msra.mxu0 %v8290
    %8315 = vmatmul.f32.gmra.mxu0 %v7479
    %v8316 = vpop.f32.mrf.mxu0
    %v8317 = vadd.f32 0.0, %v8316
    %8318 = vdwg.mxu0
    %v8319 = vadd.f32 %v8288, %v8317
    %v8320 = vld [vmem:[%s53] sm:$0x1]
    %v8322 = vperm.slane %v8320, 0
    %v8324 = vadd.f32 %v8319, %v8322
    %vm8325 = vcmp.ge.f32.partialorder %v8324, 0.0
    %v8326 = vmul.f32 %v8324, 0.01
    %v8327 = vsel %vm8325, %v8324, %v8326
    %v8328 = vld [vmem:[%s55] sm:$0xff]
    %v8329 = vld [vmem:[%s55 + $0x8] sm:$0xff]
    %v8330 = vld [vmem:[%s55 + $0x10] sm:$0xff]
    %v8331 = vld [vmem:[%s55 + $0x18] sm:$0xff]
    %v8332 = vld [vmem:[%s55 + $0x20] sm:$0xff]
    %v8333 = vld [vmem:[%s55 + $0x28] sm:$0xff]
    %v8334 = vld [vmem:[%s55 + $0x30] sm:$0xff]
    %v8335 = vld [vmem:[%s55 + $0x38] sm:$0xff]
    %v8336 = vld [vmem:[%s55 + $0x40] sm:$0xff]
    %v8337 = vld [vmem:[%s55 + $0x48] sm:$0xff]
    %v8338 = vld [vmem:[%s55 + $0x50] sm:$0xff]
    %v8339 = vld [vmem:[%s55 + $0x58] sm:$0xff]
    %v8340 = vld [vmem:[%s55 + $0x60] sm:$0xff]
    %v8341 = vld [vmem:[%s55 + $0x68] sm:$0xff]
    %v8342 = vld [vmem:[%s55 + $0x70] sm:$0xff]
    %v8343 = vld [vmem:[%s55 + $0x78] sm:$0xff]
    %v8344 = vld [vmem:[%s57] sm:$0x1]
    %v8346 = vperm.slane %v8344, 0
    %8348 = vmatpush.msra.mxu0 %v8343
    %8349 = vmatpush.msra.mxu0 %v8342
    %8350 = vmatpush.msra.mxu0 %v8341
    %8351 = vmatpush.msra.mxu0 %v8340
    %8352 = vmatpush.msra.mxu0 %v8339
    %8353 = vmatpush.msra.mxu0 %v8338
    %8354 = vmatpush.msra.mxu0 %v8337
    %8355 = vmatpush.msra.mxu0 %v8336
    %8356 = vmatpush.msra.mxu0 %v8335
    %8357 = vmatpush.msra.mxu0 %v8334
    %8358 = vmatpush.msra.mxu0 %v8333
    %8359 = vmatpush.msra.mxu0 %v8332
    %8360 = vmatpush.msra.mxu0 %v8331
    %8361 = vmatpush.msra.mxu0 %v8330
    %8362 = vmatpush.msra.mxu0 %v8329
    %8363 = vmatpush.msra.mxu0 %v8328
    %8364 = vmatmul.f32.gmra.mxu0 %v8327
    %v8365 = vpop.f32.mrf.mxu0
    %v8366 = vadd.f32 %v8346, %v8365
    %8367 = vdwg.mxu0
    %vm8368 = vcmask 15360
    %8369 = vst.msk [vmem:[%s59] sm:$0xff] %vm8368, %v8366
    %v8370 = vsel %vm8368, %v8366, -inf
    %8371 = vmax.xlane.f32.xlu0 %v8370
    %v8372 = vpop.xlane.xlu0 %8371
    %v8373 = vsub.f32 %v8366, %v8372
    %v8374 = vmul.f32 %v8373, 1.442695
    %v8375 = vpow.pop %v8374
    %v8376 = vsel %vm8368, %v8375, 0.0
    %8377 = vadd.xlane.f32.xlu0 %v8376
    %v8378 = vpop.xlane.xlu0 %8377
    %v8379 = vrcp.pop %v8378
    %v8380 = vmul.f32 %v8378, %v8379
    %v8381 = vsub.f32 1.0, %v8380
    %v8382 = vmul.f32 %v8379, %v8381
    %v8383 = vadd.f32 %v8379, %v8382
    %vm8384 = vweird.f32 %v8378
    %vm8385 = vweird.f32 %v8379
    %vm8386 = vmor %vm8384, %vm8385
    %v8387 = vsel %vm8386, %v8379, %v8383
    %v8388 = vand.u32 2147483647, %v8378
    %vm8389 = vcmp.eq.f32.partialorder %v8388, 8.507059e+37
    %v8390 = vand.u32 %v8378, 2147483648
    %v8391 = vor.u32 1.1754944e-38, %v8390
    %v8392 = vsel %vm8389, %v8391, %v8387
    %v8393 = vmul.f32 %v8375, %v8392
    %8394 = vst.msk [vmem:[%s61] sm:$0xff] %vm8368, %v8393
    // Predicated region
    $region138: #{forward.1} parent=1 // pred_check
      _
    $region139: #{forward.1} parent=1 // pred_check_branch
      %8396 = sbr.rel (0) target = $region141
    $region140: #{forward.1} parent=1 // pred_region
      _
    $region141: #{forward.1} parent=1 // pred_fallthru
      _
    // Predicated region
    $region142: #{forward.1} parent=1 // pred_check
      _
    $region143: #{forward.1} parent=1 // pred_check_branch
      %8398 = sbr.rel (0) target = $region145
    $region144: #{forward.1} parent=1 // pred_region
      _
    $region145: #{forward.1} parent=1 // pred_fallthru
      _
    // Predicated region
    $region146: #{forward.1} parent=1 // pred_check
      _
    $region147: #{forward.1} parent=1 // pred_check_branch
      %8400 = sbr.rel (0) target = $region149
    $region148: #{forward.1} parent=1 // pred_region
      _
    $region149: #{forward.1} parent=1 // pred_fallthru
      _
    // Predicated region
    $region150: #{forward.1} parent=1 // pred_check
      _
    $region151: #{forward.1} parent=1 // pred_check_branch
      %8402 = sbr.rel (0) target = $region153
    $region152: #{forward.1} parent=1 // pred_region
      _
    $region153: #{forward.1} parent=1 // pred_fallthru
      _
    %8403 = vsyncpa [#allocation6], 1
    %8404 = vsyncpa [#allocation8], 1
    %8405 = vsyncpa [#allocation11], 1

</llo_original>
